<compile_context>
chip_gen: v6e
topology: v6e:2x2x1
jax: 0.10.0
libtpu: 0.0.40
codegen_flags: <defaults>
</compile_context>

<pallas_src>
import functools

import numpy as np
import jax
import jax.numpy as jnp
from jax import lax
from jax.experimental import pallas as pl
from jax.experimental.pallas import tpu as pltpu


HP = 128     # single packed lane block holding all 3 GRU gates (needs 3*H <= 128)
LANE = 128
SUB = 8


def round_up(x, m):
    return (x + m - 1) // m * m


# ----------------------------------------------------------------------------
# Deterministic parameter setup (glue, plain JAX / numpy)
# ----------------------------------------------------------------------------
def melscale_fbanks(n_freqs, f_min, f_max, n_mels, sample_rate):
    """HTK-mel triangular filterbank with slaney norm (torchaudio semantics)."""
    def hz_to_mel(f):
        return 2595.0 * np.log10(1.0 + f / 700.0)

    def mel_to_hz(m):
        return 700.0 * (10.0 ** (m / 2595.0) - 1.0)

    all_freqs = np.linspace(0.0, sample_rate // 2, n_freqs)
    m_pts = np.linspace(hz_to_mel(f_min), hz_to_mel(f_max), n_mels + 2)
    f_pts = mel_to_hz(m_pts)
    f_diff = f_pts[1:] - f_pts[:-1]
    slopes = f_pts[None, :] - all_freqs[:, None]          # (n_freqs, n_mels+2)
    down = -slopes[:, :-2] / f_diff[:-1]
    up = slopes[:, 2:] / f_diff[1:]
    fb = np.maximum(0.0, np.minimum(down, up))
    enorm = 2.0 / (f_pts[2:n_mels + 2] - f_pts[:n_mels])  # slaney norm
    fb = fb * enorm[None, :]
    return fb.astype(np.float32)                          # (n_freqs, n_mels)


KERNEL_PARAM_ORDER = [
    "mel",
    "vad_wih", "vad_whh", "vad_gib", "vad_ghb",
    "nz_wih_f", "nz_wih_vad", "nz_whh", "nz_gib", "nz_ghb",
    "en_wih_f", "en_wih_n", "en_wih_vad", "en_whh", "en_gib", "en_ghb",
    "lin_w", "lin_b",
]


def init_params(key, spec_size, samplerate, n_mels, vad, noise, enh):
    p = {}
    p["mel"] = jnp.asarray(
        melscale_fbanks(spec_size, 0.0, samplerate / 2.0, n_mels, samplerate))

    ks = iter(jax.random.split(key, 32))

    def u(shape, fan):
        b = 1.0 / np.sqrt(fan)
        return jax.random.uniform(next(ks), shape, jnp.float32, -b, b)

    # vad_model_gru: GRU(n_mels, vad)   (weights stored transposed: (in, 3H))
    p["vad_wih"] = u((n_mels, 3 * vad), vad)
    p["vad_whh"] = u((vad, 3 * vad), vad)
    p["vad_bih"] = u((1, 3 * vad), vad)
    p["vad_bhh"] = u((1, 3 * vad), vad)
    # vad_model_fc: Linear(vad, 1)
    p["fc_w"] = u((vad, 1), vad)
    p["fc_b"] = u((1, 1), vad)
    # noise_model: GRU(n_mels + 1, noise) -- split ih weight rows (feat / vad)
    nz_wih = u((n_mels + 1, 3 * noise), noise)
    p["nz_wih_f"] = nz_wih[:n_mels]
    p["nz_wih_v"] = nz_wih[n_mels:]
    p["nz_whh"] = u((noise, 3 * noise), noise)
    p["nz_bih"] = u((1, 3 * noise), noise)
    p["nz_bhh"] = u((1, 3 * noise), noise)
    # enhance_model_gru: GRU(n_mels + noise + 1, enh) -- split ih weight rows
    en_wih = u((n_mels + noise + 1, 3 * enh), enh)
    p["en_wih_f"] = en_wih[:n_mels]
    p["en_wih_n"] = en_wih[n_mels:n_mels + noise]
    p["en_wih_v"] = en_wih[n_mels + noise:]
    p["en_whh"] = u((enh, 3 * enh), enh)
    p["en_bih"] = u((1, 3 * enh), enh)
    p["en_bhh"] = u((1, 3 * enh), enh)
    # enhance_model_linear: Linear(enh, spec_size) + Sigmoid
    p["lin_w"] = u((enh, spec_size), enh)
    p["lin_b"] = u((1, spec_size), enh)
    return p


def prepare_padded_params(p, S_pad, M_pad):
    """Pack each GRU's three gates contiguously into one 128-lane block, pad
    all lane dims to multiples of 128, fold the r/z hidden biases into the
    precomputed input-gate bias (gib), keep only the n-gate hidden bias (ghb),
    and fold the VAD fc layer into the noise/enhance input projections."""
    V = p["vad_whh"].shape[0]
    N = p["nz_whh"].shape[0]
    E = p["en_whh"].shape[0]
    # TODO(synk): hidden sizes with 3*H > 128 need the v2 per-gate 128-lane
    # padding; the packed layout requires 3*H <= 128.
    assert 3 * max(V, N, E) <= HP, "packed-gate layout requires 3*hidden <= 128"

    def pad2(a, rows, cols):
        a = jnp.asarray(a, jnp.float32)
        out = jnp.zeros((rows, cols), jnp.float32)
        return out.at[:a.shape[0], :a.shape[1]].set(a)

    def biases(bih, bhh, H, extra=None):
        mask_rz = jnp.concatenate(
            [jnp.ones((1, 2 * H), jnp.float32), jnp.zeros((1, H), jnp.float32)],
            axis=1)
        gib = bih + bhh * mask_rz          # r,z: bih+bhh ; n: bih only
        if extra is not None:
            gib = gib + extra              # folded fc_b * w_ih_vad term
        ghb = bhh * (1.0 - mask_rz)        # [0, 0, b_hn]
        return pad2(gib, 1, HP), pad2(ghb, 1, HP)

    k = {}
    k["mel"] = pad2(p["mel"], S_pad, M_pad)

    # VAD GRU
    k["vad_wih"] = pad2(p["vad_wih"], M_pad, HP)
    k["vad_whh"] = pad2(p["vad_whh"], V, HP)
    k["vad_gib"], k["vad_ghb"] = biases(p["vad_bih"], p["vad_bhh"], V)

    # Noise GRU -- fold the VAD fc layer:
    #   vad_p * w_v == h_vad @ (fc_w @ w_v) + fc_b * w_v
    k["nz_wih_f"] = pad2(p["nz_wih_f"], M_pad, HP)
    k["nz_wih_vad"] = pad2(p["fc_w"] @ p["nz_wih_v"], V, HP)
    k["nz_whh"] = pad2(p["nz_whh"], N, HP)
    k["nz_gib"], k["nz_ghb"] = biases(
        p["nz_bih"], p["nz_bhh"], N, extra=p["fc_b"] * p["nz_wih_v"])

    # Enhance GRU
    k["en_wih_f"] = pad2(p["en_wih_f"], M_pad, HP)
    k["en_wih_n"] = pad2(p["en_wih_n"], N, HP)
    k["en_wih_vad"] = pad2(p["fc_w"] @ p["en_wih_v"], V, HP)
    k["en_whh"] = pad2(p["en_whh"], E, HP)
    k["en_gib"], k["en_ghb"] = biases(
        p["en_bih"], p["en_bhh"], E, extra=p["fc_b"] * p["en_wih_v"])

    # Output linear
    k["lin_w"] = pad2(p["lin_w"], E, S_pad)
    k["lin_b"] = pad2(p["lin_b"], 1, S_pad)
    # TODO(synk): optionally cast the non-recurrent weights to bf16 (f32
    # accumulation) on v6e/v7x; kept f32 here to preserve the 1e-3 tolerance.
    return k


# ----------------------------------------------------------------------------
# Pallas kernel: per time-tile batched precompute + 3 short GRU recurrences,
# hidden state carried in VMEM scratch across grid steps.
# ----------------------------------------------------------------------------
def vad_enhancer_kernel(
    x_ref, mel_ref,
    vad_wih_ref, vad_whh_ref, vad_gib_ref, vad_ghb_ref,
    nz_wih_f_ref, nz_wih_vad_ref, nz_whh_ref, nz_gib_ref, nz_ghb_ref,
    en_wih_f_ref, en_wih_n_ref, en_wih_vad_ref, en_whh_ref, en_gib_ref, en_ghb_ref,
    lin_w_ref, lin_b_ref,
    out_ref,
    feat_ref, gi_ref, hseq_v_ref, hseq_n_ref, hseq_e_ref,
    hcar_v_ref, hcar_n_ref, hcar_e_ref,
    *, V, N, E,
):
    TT = x_ref.shape[0]                      # time-tile size, multiple of 8
    unroll = True if TT <= 32 else 8

    # Zero the carried hidden states on the first time tile only.
    @pl.when(pl.program_id(0) == 0)
    def _init():
        hcar_v_ref[...] = jnp.zeros_like(hcar_v_ref)
        hcar_n_ref[...] = jnp.zeros_like(hcar_n_ref)
        hcar_e_ref[...] = jnp.zeros_like(hcar_e_ref)

    def run_gru(whh_ref_, ghb_ref_, hseq_ref, hcar_ref, H):
        """Serial GRU recurrence over the tile.  Only the h @ W_hh matmul
        (single MXU column tile), gate nonlinearities and the state update
        remain in the loop; all input projections were precomputed into
        gi_ref (packed gate layout [r | z | n | 0] over 128 lanes)."""
        whh = whh_ref_[...]                  # (H, 128), loop-invariant
        ghb = ghb_ref_[...]                  # (1, 128), n-gate hidden bias
        # TODO(synk): drive the MXU weight-stationary (matmul_push_rhs /
        # matmul_acc_lhs / matmul_pop) so whh is pushed once per tile instead
        # of per step; left to Mosaic for now.

        def step(t, h):                      # h: (1, H) true hidden width
            gi = gi_ref[pl.ds(t, 1), :]      # (1, 128)
            gh = jnp.dot(h, whh, preferred_element_type=jnp.float32) + ghb
            sg = jax.nn.sigmoid(gi + gh)     # r at [0,H), z at [H,2H)
            r = sg[:, 0:H]
            z = sg[:, H:2 * H]
            n = jnp.tanh(gi[:, 2 * H:3 * H] + r * gh[:, 2 * H:3 * H])
            h_new = (1.0 - z) * n + z * h
            hseq_ref[pl.ds(t, 1), :] = h_new
            return h_new

        h_last = lax.fori_loop(0, TT, step, hcar_ref[...], unroll=unroll)
        hcar_ref[...] = h_last               # carry across time tiles

    # ---- batched, non-recurrent precompute (MXU-friendly shapes) ----
    xv = x_ref[...]
    feat_ref[...] = jnp.dot(xv * xv, mel_ref[...],
                            preferred_element_type=jnp.float32)

    # ---- VAD GRU ----
    gi_ref[...] = (jnp.dot(feat_ref[...], vad_wih_ref[...],
                           preferred_element_type=jnp.float32)
                   + vad_gib_ref[...])
    run_gru(vad_whh_ref, vad_ghb_ref, hseq_v_ref, hcar_v_ref, V)

    # ---- Noise GRU (input = concat(feat, vad_p); fc layer folded) ----
    gi_ref[...] = (jnp.dot(feat_ref[...], nz_wih_f_ref[...],
                           preferred_element_type=jnp.float32)
                   + jnp.dot(hseq_v_ref[...], nz_wih_vad_ref[...],
                             preferred_element_type=jnp.float32)
                   + nz_gib_ref[...])
    run_gru(nz_whh_ref, nz_ghb_ref, hseq_n_ref, hcar_n_ref, N)

    # ---- Enhance GRU (input = concat(feat, h_noise, vad_p)) ----
    gi_ref[...] = (jnp.dot(feat_ref[...], en_wih_f_ref[...],
                           preferred_element_type=jnp.float32)
                   + jnp.dot(hseq_n_ref[...], en_wih_n_ref[...],
                             preferred_element_type=jnp.float32)
                   + jnp.dot(hseq_v_ref[...], en_wih_vad_ref[...],
                             preferred_element_type=jnp.float32)
                   + en_gib_ref[...])
    run_gru(en_whh_ref, en_ghb_ref, hseq_e_ref, hcar_e_ref, E)

    # ---- Linear + sigmoid gains, applied to the (re-read) input tile ----
    gains = jax.nn.sigmoid(
        jnp.dot(hseq_e_ref[...], lin_w_ref[...],
                preferred_element_type=jnp.float32) + lin_b_ref[...])
    out_ref[...] = x_ref[...] * gains


def vad_enhancer_forward(x, params, *, tile_t=256):
    T, S = x.shape
    S_pad = round_up(S, LANE)
    M = params["mel"].shape[1]
    M_pad = round_up(M, LANE)
    V = params["vad_whh"].shape[0]
    N = params["nz_whh"].shape[0]
    E = params["en_whh"].shape[0]

    TT = min(round_up(tile_t, SUB), round_up(T, SUB))
    T_pad = round_up(T, TT)
    num_tiles = T_pad // TT

    kp = prepare_padded_params(params, S_pad, M_pad)
    x_pad = jnp.zeros((T_pad, S_pad), jnp.float32).at[:T, :S].set(x)

    args = [x_pad] + [kp[name] for name in KERNEL_PARAM_ORDER]

    def resident(arr):
        # Full-array block with a constant index map: DMA'd once, kept
        # resident in VMEM across all time tiles.
        return pl.BlockSpec(tuple(arr.shape), lambda t: (0, 0))

    in_specs = ([pl.BlockSpec((TT, S_pad), lambda t: (t, 0))]
                + [resident(kp[name]) for name in KERNEL_PARAM_ORDER])
    out_specs = pl.BlockSpec((TT, S_pad), lambda t: (t, 0))

    kernel = functools.partial(vad_enhancer_kernel, V=V, N=N, E=E)

    out = pl.pallas_call(
        kernel,
        out_shape=jax.ShapeDtypeStruct((T_pad, S_pad), jnp.float32),
        grid=(num_tiles,),
        in_specs=in_specs,
        out_specs=out_specs,
        scratch_shapes=[
            pltpu.VMEM((TT, M_pad), jnp.float32),   # feat tile
            pltpu.VMEM((TT, HP), jnp.float32),      # packed gi (reused x3)
            pltpu.VMEM((TT, V), jnp.float32),       # vad hidden trajectory
            pltpu.VMEM((TT, N), jnp.float32),       # noise hidden trajectory
            pltpu.VMEM((TT, E), jnp.float32),       # enhance hidden trajectory
            pltpu.VMEM((1, V), jnp.float32),        # carried h_vad
            pltpu.VMEM((1, N), jnp.float32),        # carried h_noise
            pltpu.VMEM((1, E), jnp.float32),        # carried h_enh
        ],
        compiler_params=pltpu.CompilerParams(
            dimension_semantics=("arbitrary",)),
    )(*args)
    return out[:T, :S]


# ----------------------------------------------------------------------------
# Pure-JAX reference (mirrors the PyTorch forward, train path)
# ----------------------------------------------------------------------------
def reference_forward(x, p):
    T = x.shape[0]
    V = p["vad_whh"].shape[0]
    N = p["nz_whh"].shape[0]
    E = p["en_whh"].shape[0]

    def gru_update(gi, gh, hid, h_prev):
        r = jax.nn.sigmoid(gi[:, :hid] + gh[:, :hid])
        z = jax.nn.sigmoid(gi[:, hid:2 * hid] + gh[:, hid:2 * hid])
        n = jnp.tanh(gi[:, 2 * hid:] + r * gh[:, 2 * hid:])
        return (1.0 - z) * n + z * h_prev

    h_v = jnp.zeros((1, V), jnp.float32)
    h_n = jnp.zeros((1, N), jnp.float32)
    h_e = jnp.zeros((1, E), jnp.float32)
    outs = []
    for t in range(T):
        x_t = x[t:t + 1]
        feat = (x_t * x_t) @ p["mel"]
        gi = feat @ p["vad_wih"] + p["vad_bih"]
        gh = h_v @ p["vad_whh"] + p["vad_bhh"]
        h_v = gru_update(gi, gh, V, h_v)
        vp = h_v @ p["fc_w"] + p["fc_b"]
        gi = feat @ p["nz_wih_f"] + vp * p["nz_wih_v"] + p["nz_bih"]
        gh = h_n @ p["nz_whh"] + p["nz_bhh"]
        h_n = gru_update(gi, gh, N, h_n)
        gi = (feat @ p["en_wih_f"] + h_n @ p["en_wih_n"]
              + vp * p["en_wih_v"] + p["en_bih"])
        gh = h_e @ p["en_whh"] + p["en_bhh"]
        h_e = gru_update(gi, gh, E, h_e)
        gains = jax.nn.sigmoid(h_e @ p["lin_w"] + p["lin_b"])
        outs.append(x_t * gains)
    return jnp.concatenate(outs, axis=0)


if __name__ == "__main__":
    # Small shapes consistent with the module (parameterized down from defaults).
    SPEC_SIZE = 65
    SAMPLERATE = 16000
    N_MELS = 16
    VAD_SIZE = 16
    NOISE_SIZE = 16     # equals n_mels, matching the module's n_mels*2+1 enhance input
    ENH_SIZE = 32
    T = 40

    key = jax.random.PRNGKey(0)
    kx, kp = jax.random.split(key)
    input_spec = jax.random.normal(kx, (T, SPEC_SIZE), jnp.float32)
    params = init_params(kp, SPEC_SIZE, SAMPLERATE, N_MELS,
                         VAD_SIZE, NOISE_SIZE, ENH_SIZE)

    # tile_t=16 exercises the multi-tile path (carried hidden state, padded tail).
    out = vad_enhancer_forward(input_spec, params, tile_t=16)
    out = jax.block_until_ready(out)

    ref = reference_forward(input_spec, params)
    assert out.shape == (T, SPEC_SIZE)
    np.testing.assert_allclose(np.asarray(out), np.asarray(ref),
                               rtol=1e-3, atol=1e-3)
    print("KERNEL_OK")
</pallas_src>

<mosaic_0001>
module attributes {stable_mosaic.version = 11 : i64} {
  func.func @vad_enhancer_kernel(%arg0: i32, %arg1: memref<16x128xf32, #tpu.memory_space<vmem>>, %arg2: memref<128x128xf32, #tpu.memory_space<vmem>>, %arg3: memref<128x128xf32, #tpu.memory_space<vmem>>, %arg4: memref<16x128xf32, #tpu.memory_space<vmem>>, %arg5: memref<1x128xf32, #tpu.memory_space<vmem>>, %arg6: memref<1x128xf32, #tpu.memory_space<vmem>>, %arg7: memref<128x128xf32, #tpu.memory_space<vmem>>, %arg8: memref<16x128xf32, #tpu.memory_space<vmem>>, %arg9: memref<16x128xf32, #tpu.memory_space<vmem>>, %arg10: memref<1x128xf32, #tpu.memory_space<vmem>>, %arg11: memref<1x128xf32, #tpu.memory_space<vmem>>, %arg12: memref<128x128xf32, #tpu.memory_space<vmem>>, %arg13: memref<16x128xf32, #tpu.memory_space<vmem>>, %arg14: memref<16x128xf32, #tpu.memory_space<vmem>>, %arg15: memref<32x128xf32, #tpu.memory_space<vmem>>, %arg16: memref<1x128xf32, #tpu.memory_space<vmem>>, %arg17: memref<1x128xf32, #tpu.memory_space<vmem>>, %arg18: memref<32x128xf32, #tpu.memory_space<vmem>>, %arg19: memref<1x128xf32, #tpu.memory_space<vmem>>, %arg20: memref<16x128xf32, #tpu.memory_space<vmem>>, %arg21: memref<16x128xf32, #tpu.memory_space<vmem>>, %arg22: memref<16x128xf32, #tpu.memory_space<vmem>>, %arg23: memref<16x16xf32, #tpu.memory_space<vmem>>, %arg24: memref<16x16xf32, #tpu.memory_space<vmem>>, %arg25: memref<16x32xf32, #tpu.memory_space<vmem>>, %arg26: memref<1x16xf32, #tpu.memory_space<vmem>>, %arg27: memref<1x16xf32, #tpu.memory_space<vmem>>, %arg28: memref<1x32xf32, #tpu.memory_space<vmem>>) attributes {dimension_semantics = [#tpu.dimension_semantics<arbitrary>], iteration_bounds = array<i64: 3>, scalar_prefetch = 0 : i64, scratch_operands = 8 : i64, tpu.core_type = #tpu.core_type<tc>, window_params = [{transform_indices = @transform_0, window_bounds = array<i64: 16, 128>}, {pipeline_mode = #tpu.pipeline_mode<synchronous>, transform_indices = @transform_1, window_bounds = array<i64: 128, 128>}, {pipeline_mode = #tpu.pipeline_mode<synchronous>, transform_indices = @transform_2, window_bounds = array<i64: 128, 128>}, {pipeline_mode = #tpu.pipeline_mode<synchronous>, transform_indices = @transform_3, window_bounds = array<i64: 16, 128>}, {pipeline_mode = #tpu.pipeline_mode<synchronous>, transform_indices = @transform_4, window_bounds = array<i64: 1, 128>}, {pipeline_mode = #tpu.pipeline_mode<synchronous>, transform_indices = @transform_5, window_bounds = array<i64: 1, 128>}, {pipeline_mode = #tpu.pipeline_mode<synchronous>, transform_indices = @transform_6, window_bounds = array<i64: 128, 128>}, {pipeline_mode = #tpu.pipeline_mode<synchronous>, transform_indices = @transform_7, window_bounds = array<i64: 16, 128>}, {pipeline_mode = #tpu.pipeline_mode<synchronous>, transform_indices = @transform_8, window_bounds = array<i64: 16, 128>}, {pipeline_mode = #tpu.pipeline_mode<synchronous>, transform_indices = @transform_9, window_bounds = array<i64: 1, 128>}, {pipeline_mode = #tpu.pipeline_mode<synchronous>, transform_indices = @transform_10, window_bounds = array<i64: 1, 128>}, {pipeline_mode = #tpu.pipeline_mode<synchronous>, transform_indices = @transform_11, window_bounds = array<i64: 128, 128>}, {pipeline_mode = #tpu.pipeline_mode<synchronous>, transform_indices = @transform_12, window_bounds = array<i64: 16, 128>}, {pipeline_mode = #tpu.pipeline_mode<synchronous>, transform_indices = @transform_13, window_bounds = array<i64: 16, 128>}, {pipeline_mode = #tpu.pipeline_mode<synchronous>, transform_indices = @transform_14, window_bounds = array<i64: 32, 128>}, {pipeline_mode = #tpu.pipeline_mode<synchronous>, transform_indices = @transform_15, window_bounds = array<i64: 1, 128>}, {pipeline_mode = #tpu.pipeline_mode<synchronous>, transform_indices = @transform_16, window_bounds = array<i64: 1, 128>}, {pipeline_mode = #tpu.pipeline_mode<synchronous>, transform_indices = @transform_17, window_bounds = array<i64: 32, 128>}, {pipeline_mode = #tpu.pipeline_mode<synchronous>, transform_indices = @transform_18, window_bounds = array<i64: 1, 128>}, {transform_indices = @transform_19, window_bounds = array<i64: 16, 128>}]} {
    %c0_i32 = arith.constant 0 : i32
    %0 = arith.cmpi eq, %arg0, %c0_i32 : i32
    %1 = arith.extui %0 : i1 to i32
    %c0_i32_0 = arith.constant 0 : i32
    %2 = arith.cmpi ne, %1, %c0_i32_0 : i32
    scf.if %2 {
      %cst_359 = arith.constant 0.000000e+00 : f32
      %1219 = vector.broadcast %cst_359 : f32 to vector<1x16xf32>
      %c0_360 = arith.constant 0 : index
      %c0_361 = arith.constant 0 : index
      %1220 = vector.load %arg26[%c0_360, %c0_361] : memref<1x16xf32, #tpu.memory_space<vmem>>, vector<1x16xf32>
      tpu.vector_store %arg26[%c0_360, %c0_361], %1219 {strides = array<i32>} : memref<1x16xf32, #tpu.memory_space<vmem>>, vector<1x16xf32>,
      %cst_362 = arith.constant 0.000000e+00 : f32
      %1221 = vector.broadcast %cst_362 : f32 to vector<1x16xf32>
      %c0_363 = arith.constant 0 : index
      %c0_364 = arith.constant 0 : index
      %1222 = vector.load %arg27[%c0_363, %c0_364] : memref<1x16xf32, #tpu.memory_space<vmem>>, vector<1x16xf32>
      tpu.vector_store %arg27[%c0_363, %c0_364], %1221 {strides = array<i32>} : memref<1x16xf32, #tpu.memory_space<vmem>>, vector<1x16xf32>,
      %cst_365 = arith.constant 0.000000e+00 : f32
      %1223 = vector.broadcast %cst_365 : f32 to vector<1x32xf32>
      %c0_366 = arith.constant 0 : index
      %c0_367 = arith.constant 0 : index
      %1224 = vector.load %arg28[%c0_366, %c0_367] : memref<1x32xf32, #tpu.memory_space<vmem>>, vector<1x32xf32>
      tpu.vector_store %arg28[%c0_366, %c0_367], %1223 {strides = array<i32>} : memref<1x32xf32, #tpu.memory_space<vmem>>, vector<1x32xf32>,
    } else {
    }
    %c0 = arith.constant 0 : index
    %c0_1 = arith.constant 0 : index
    %3 = vector.load %arg1[%c0, %c0_1] : memref<16x128xf32, #tpu.memory_space<vmem>>, vector<16x128xf32>
    %4 = arith.mulf %3, %3 : vector<16x128xf32>
    %c0_2 = arith.constant 0 : index
    %c0_3 = arith.constant 0 : index
    %5 = vector.load %arg2[%c0_2, %c0_3] : memref<128x128xf32, #tpu.memory_space<vmem>>, vector<128x128xf32>
    %cst = arith.constant dense<0.000000e+00> : vector<16x128xf32>
    %6 = tpu.matmul %4, %5, %cst {dimension_numbers = #tpu.dot_dimension_numbers<[1], [0], [0], [1], [0, 0, 1, 1], [], []>} : vector<16x128xf32>, vector<128x128xf32>, vector<16x128xf32> -> vector<16x128xf32>
    %c0_4 = arith.constant 0 : index
    %c0_5 = arith.constant 0 : index
    %7 = vector.load %arg21[%c0_4, %c0_5] : memref<16x128xf32, #tpu.memory_space<vmem>>, vector<16x128xf32>
    tpu.vector_store %arg21[%c0_4, %c0_5], %6 {strides = array<i32>} : memref<16x128xf32, #tpu.memory_space<vmem>>, vector<16x128xf32>,
    %c0_6 = arith.constant 0 : index
    %c0_7 = arith.constant 0 : index
    %8 = vector.load %arg21[%c0_6, %c0_7] : memref<16x128xf32, #tpu.memory_space<vmem>>, vector<16x128xf32>
    %c0_8 = arith.constant 0 : index
    %c0_9 = arith.constant 0 : index
    %9 = vector.load %arg3[%c0_8, %c0_9] : memref<128x128xf32, #tpu.memory_space<vmem>>, vector<128x128xf32>
    %cst_10 = arith.constant dense<0.000000e+00> : vector<16x128xf32>
    %10 = tpu.matmul %8, %9, %cst_10 {dimension_numbers = #tpu.dot_dimension_numbers<[1], [0], [0], [1], [0, 0, 1, 1], [], []>} : vector<16x128xf32>, vector<128x128xf32>, vector<16x128xf32> -> vector<16x128xf32>
    %c0_11 = arith.constant 0 : index
    %c0_12 = arith.constant 0 : index
    %11 = vector.load %arg5[%c0_11, %c0_12] : memref<1x128xf32, #tpu.memory_space<vmem>>, vector<1x128xf32>
    %12 = vector.broadcast %11 : vector<1x128xf32> to vector<16x128xf32>
    %13 = arith.addf %10, %12 : vector<16x128xf32>
    %c0_13 = arith.constant 0 : index
    %c0_14 = arith.constant 0 : index
    %14 = vector.load %arg22[%c0_13, %c0_14] : memref<16x128xf32, #tpu.memory_space<vmem>>, vector<16x128xf32>
    tpu.vector_store %arg22[%c0_13, %c0_14], %13 {strides = array<i32>} : memref<16x128xf32, #tpu.memory_space<vmem>>, vector<16x128xf32>,
    %c0_15 = arith.constant 0 : index
    %c0_16 = arith.constant 0 : index
    %15 = vector.load %arg4[%c0_15, %c0_16] : memref<16x128xf32, #tpu.memory_space<vmem>>, vector<16x128xf32>
    %c0_17 = arith.constant 0 : index
    %c0_18 = arith.constant 0 : index
    %16 = vector.load %arg6[%c0_17, %c0_18] : memref<1x128xf32, #tpu.memory_space<vmem>>, vector<1x128xf32>
    %c0_19 = arith.constant 0 : index
    %c0_20 = arith.constant 0 : index
    %17 = vector.load %arg26[%c0_19, %c0_20] : memref<1x16xf32, #tpu.memory_space<vmem>>, vector<1x16xf32>
    %c0_i32_21 = arith.constant 0 : i32
    %18 = arith.index_cast %c0_i32_21 : i32 to index
    %c0_22 = arith.constant 0 : index
    %19 = vector.load %arg22[%18, %c0_22] : memref<16x128xf32, #tpu.memory_space<vmem>>, vector<1x128xf32>
    %cst_23 = arith.constant dense<0.000000e+00> : vector<1x128xf32>
    %20 = tpu.matmul %17, %15, %cst_23 {dimension_numbers = #tpu.dot_dimension_numbers<[1], [0], [0], [1], [0, 0, 1, 1], [], []>} : vector<1x16xf32>, vector<16x128xf32>, vector<1x128xf32> -> vector<1x128xf32>
    %21 = arith.addf %20, %16 : vector<1x128xf32>
    %22 = arith.addf %19, %21 : vector<1x128xf32>
    %23 = arith.negf %22 : vector<1x128xf32>
    %24 = math.exp %23 : vector<1x128xf32>
    %cst_24 = arith.constant 1.000000e+00 : f32
    %25 = vector.broadcast %cst_24 : f32 to vector<1x128xf32>
    %26 = arith.addf %25, %24 : vector<1x128xf32>
    %27 = arith.divf %25, %26 : vector<1x128xf32>
    %28 = vector.extract_strided_slice %27 {offsets = [0, 0], sizes = [1, 16], strides = [1, 1]} : vector<1x128xf32> to vector<1x16xf32>
    %29 = vector.extract_strided_slice %27 {offsets = [0, 16], sizes = [1, 16], strides = [1, 1]} : vector<1x128xf32> to vector<1x16xf32>
    %30 = vector.extract_strided_slice %19 {offsets = [0, 32], sizes = [1, 16], strides = [1, 1]} : vector<1x128xf32> to vector<1x16xf32>
    %31 = vector.extract_strided_slice %21 {offsets = [0, 32], sizes = [1, 16], strides = [1, 1]} : vector<1x128xf32> to vector<1x16xf32>
    %32 = arith.mulf %28, %31 : vector<1x16xf32>
    %33 = arith.addf %30, %32 : vector<1x16xf32>
    %34 = math.tanh %33 : vector<1x16xf32>
    %cst_25 = arith.constant 1.000000e+00 : f32
    %35 = vector.broadcast %cst_25 : f32 to vector<1x16xf32>
    %36 = arith.subf %35, %29 : vector<1x16xf32>
    %37 = arith.mulf %36, %34 : vector<1x16xf32>
    %38 = arith.mulf %29, %17 : vector<1x16xf32>
    %39 = arith.addf %37, %38 : vector<1x16xf32>
    %40 = arith.index_cast %c0_i32_21 : i32 to index
    %c0_26 = arith.constant 0 : index
    %41 = vector.load %arg23[%40, %c0_26] : memref<16x16xf32, #tpu.memory_space<vmem>>, vector<1x16xf32>
    tpu.vector_store %arg23[%40, %c0_26], %39 {strides = array<i32>} : memref<16x16xf32, #tpu.memory_space<vmem>>, vector<1x16xf32>,
    %c1_i32 = arith.constant 1 : i32
    %42 = arith.index_cast %c1_i32 : i32 to index
    %c0_27 = arith.constant 0 : index
    %43 = vector.load %arg22[%42, %c0_27] : memref<16x128xf32, #tpu.memory_space<vmem>>, vector<1x128xf32>
    %cst_28 = arith.constant dense<0.000000e+00> : vector<1x128xf32>
    %44 = tpu.matmul %39, %15, %cst_28 {dimension_numbers = #tpu.dot_dimension_numbers<[1], [0], [0], [1], [0, 0, 1, 1], [], []>} : vector<1x16xf32>, vector<16x128xf32>, vector<1x128xf32> -> vector<1x128xf32>
    %45 = arith.addf %44, %16 : vector<1x128xf32>
    %46 = arith.addf %43, %45 : vector<1x128xf32>
    %47 = arith.negf %46 : vector<1x128xf32>
    %48 = math.exp %47 : vector<1x128xf32>
    %cst_29 = arith.constant 1.000000e+00 : f32
    %49 = vector.broadcast %cst_29 : f32 to vector<1x128xf32>
    %50 = arith.addf %49, %48 : vector<1x128xf32>
    %51 = arith.divf %49, %50 : vector<1x128xf32>
    %52 = vector.extract_strided_slice %51 {offsets = [0, 0], sizes = [1, 16], strides = [1, 1]} : vector<1x128xf32> to vector<1x16xf32>
    %53 = vector.extract_strided_slice %51 {offsets = [0, 16], sizes = [1, 16], strides = [1, 1]} : vector<1x128xf32> to vector<1x16xf32>
    %54 = vector.extract_strided_slice %43 {offsets = [0, 32], sizes = [1, 16], strides = [1, 1]} : vector<1x128xf32> to vector<1x16xf32>
    %55 = vector.extract_strided_slice %45 {offsets = [0, 32], sizes = [1, 16], strides = [1, 1]} : vector<1x128xf32> to vector<1x16xf32>
    %56 = arith.mulf %52, %55 : vector<1x16xf32>
    %57 = arith.addf %54, %56 : vector<1x16xf32>
    %58 = math.tanh %57 : vector<1x16xf32>
    %cst_30 = arith.constant 1.000000e+00 : f32
    %59 = vector.broadcast %cst_30 : f32 to vector<1x16xf32>
    %60 = arith.subf %59, %53 : vector<1x16xf32>
    %61 = arith.mulf %60, %58 : vector<1x16xf32>
    %62 = arith.mulf %53, %39 : vector<1x16xf32>
    %63 = arith.addf %61, %62 : vector<1x16xf32>
    %64 = arith.index_cast %c1_i32 : i32 to index
    %c0_31 = arith.constant 0 : index
    %65 = vector.load %arg23[%64, %c0_31] : memref<16x16xf32, #tpu.memory_space<vmem>>, vector<1x16xf32>
    tpu.vector_store %arg23[%64, %c0_31], %63 {strides = array<i32>} : memref<16x16xf32, #tpu.memory_space<vmem>>, vector<1x16xf32>,
    %c2_i32 = arith.constant 2 : i32
    %66 = arith.index_cast %c2_i32 : i32 to index
    %c0_32 = arith.constant 0 : index
    %67 = vector.load %arg22[%66, %c0_32] : memref<16x128xf32, #tpu.memory_space<vmem>>, vector<1x128xf32>
    %cst_33 = arith.constant dense<0.000000e+00> : vector<1x128xf32>
    %68 = tpu.matmul %63, %15, %cst_33 {dimension_numbers = #tpu.dot_dimension_numbers<[1], [0], [0], [1], [0, 0, 1, 1], [], []>} : vector<1x16xf32>, vector<16x128xf32>, vector<1x128xf32> -> vector<1x128xf32>
    %69 = arith.addf %68, %16 : vector<1x128xf32>
    %70 = arith.addf %67, %69 : vector<1x128xf32>
    %71 = arith.negf %70 : vector<1x128xf32>
    %72 = math.exp %71 : vector<1x128xf32>
    %cst_34 = arith.constant 1.000000e+00 : f32
    %73 = vector.broadcast %cst_34 : f32 to vector<1x128xf32>
    %74 = arith.addf %73, %72 : vector<1x128xf32>
    %75 = arith.divf %73, %74 : vector<1x128xf32>
    %76 = vector.extract_strided_slice %75 {offsets = [0, 0], sizes = [1, 16], strides = [1, 1]} : vector<1x128xf32> to vector<1x16xf32>
    %77 = vector.extract_strided_slice %75 {offsets = [0, 16], sizes = [1, 16], strides = [1, 1]} : vector<1x128xf32> to vector<1x16xf32>
    %78 = vector.extract_strided_slice %67 {offsets = [0, 32], sizes = [1, 16], strides = [1, 1]} : vector<1x128xf32> to vector<1x16xf32>
    %79 = vector.extract_strided_slice %69 {offsets = [0, 32], sizes = [1, 16], strides = [1, 1]} : vector<1x128xf32> to vector<1x16xf32>
    %80 = arith.mulf %76, %79 : vector<1x16xf32>
    %81 = arith.addf %78, %80 : vector<1x16xf32>
    %82 = math.tanh %81 : vector<1x16xf32>
    %cst_35 = arith.constant 1.000000e+00 : f32
    %83 = vector.broadcast %cst_35 : f32 to vector<1x16xf32>
    %84 = arith.subf %83, %77 : vector<1x16xf32>
    %85 = arith.mulf %84, %82 : vector<1x16xf32>
    %86 = arith.mulf %77, %63 : vector<1x16xf32>
    %87 = arith.addf %85, %86 : vector<1x16xf32>
    %88 = arith.index_cast %c2_i32 : i32 to index
    %c0_36 = arith.constant 0 : index
    %89 = vector.load %arg23[%88, %c0_36] : memref<16x16xf32, #tpu.memory_space<vmem>>, vector<1x16xf32>
    tpu.vector_store %arg23[%88, %c0_36], %87 {strides = array<i32>} : memref<16x16xf32, #tpu.memory_space<vmem>>, vector<1x16xf32>,
    %c3_i32 = arith.constant 3 : i32
    %90 = arith.index_cast %c3_i32 : i32 to index
    %c0_37 = arith.constant 0 : index
    %91 = vector.load %arg22[%90, %c0_37] : memref<16x128xf32, #tpu.memory_space<vmem>>, vector<1x128xf32>
    %cst_38 = arith.constant dense<0.000000e+00> : vector<1x128xf32>
    %92 = tpu.matmul %87, %15, %cst_38 {dimension_numbers = #tpu.dot_dimension_numbers<[1], [0], [0], [1], [0, 0, 1, 1], [], []>} : vector<1x16xf32>, vector<16x128xf32>, vector<1x128xf32> -> vector<1x128xf32>
    %93 = arith.addf %92, %16 : vector<1x128xf32>
    %94 = arith.addf %91, %93 : vector<1x128xf32>
    %95 = arith.negf %94 : vector<1x128xf32>
    %96 = math.exp %95 : vector<1x128xf32>
    %cst_39 = arith.constant 1.000000e+00 : f32
    %97 = vector.broadcast %cst_39 : f32 to vector<1x128xf32>
    %98 = arith.addf %97, %96 : vector<1x128xf32>
    %99 = arith.divf %97, %98 : vector<1x128xf32>
    %100 = vector.extract_strided_slice %99 {offsets = [0, 0], sizes = [1, 16], strides = [1, 1]} : vector<1x128xf32> to vector<1x16xf32>
    %101 = vector.extract_strided_slice %99 {offsets = [0, 16], sizes = [1, 16], strides = [1, 1]} : vector<1x128xf32> to vector<1x16xf32>
    %102 = vector.extract_strided_slice %91 {offsets = [0, 32], sizes = [1, 16], strides = [1, 1]} : vector<1x128xf32> to vector<1x16xf32>
    %103 = vector.extract_strided_slice %93 {offsets = [0, 32], sizes = [1, 16], strides = [1, 1]} : vector<1x128xf32> to vector<1x16xf32>
    %104 = arith.mulf %100, %103 : vector<1x16xf32>
    %105 = arith.addf %102, %104 : vector<1x16xf32>
    %106 = math.tanh %105 : vector<1x16xf32>
    %cst_40 = arith.constant 1.000000e+00 : f32
    %107 = vector.broadcast %cst_40 : f32 to vector<1x16xf32>
    %108 = arith.subf %107, %101 : vector<1x16xf32>
    %109 = arith.mulf %108, %106 : vector<1x16xf32>
    %110 = arith.mulf %101, %87 : vector<1x16xf32>
    %111 = arith.addf %109, %110 : vector<1x16xf32>
    %112 = arith.index_cast %c3_i32 : i32 to index
    %c0_41 = arith.constant 0 : index
    %113 = vector.load %arg23[%112, %c0_41] : memref<16x16xf32, #tpu.memory_space<vmem>>, vector<1x16xf32>
    tpu.vector_store %arg23[%112, %c0_41], %111 {strides = array<i32>} : memref<16x16xf32, #tpu.memory_space<vmem>>, vector<1x16xf32>,
    %c4_i32 = arith.constant 4 : i32
    %114 = arith.index_cast %c4_i32 : i32 to index
    %c0_42 = arith.constant 0 : index
    %115 = vector.load %arg22[%114, %c0_42] : memref<16x128xf32, #tpu.memory_space<vmem>>, vector<1x128xf32>
    %cst_43 = arith.constant dense<0.000000e+00> : vector<1x128xf32>
    %116 = tpu.matmul %111, %15, %cst_43 {dimension_numbers = #tpu.dot_dimension_numbers<[1], [0], [0], [1], [0, 0, 1, 1], [], []>} : vector<1x16xf32>, vector<16x128xf32>, vector<1x128xf32> -> vector<1x128xf32>
    %117 = arith.addf %116, %16 : vector<1x128xf32>
    %118 = arith.addf %115, %117 : vector<1x128xf32>
    %119 = arith.negf %118 : vector<1x128xf32>
    %120 = math.exp %119 : vector<1x128xf32>
    %cst_44 = arith.constant 1.000000e+00 : f32
    %121 = vector.broadcast %cst_44 : f32 to vector<1x128xf32>
    %122 = arith.addf %121, %120 : vector<1x128xf32>
    %123 = arith.divf %121, %122 : vector<1x128xf32>
    %124 = vector.extract_strided_slice %123 {offsets = [0, 0], sizes = [1, 16], strides = [1, 1]} : vector<1x128xf32> to vector<1x16xf32>
    %125 = vector.extract_strided_slice %123 {offsets = [0, 16], sizes = [1, 16], strides = [1, 1]} : vector<1x128xf32> to vector<1x16xf32>
    %126 = vector.extract_strided_slice %115 {offsets = [0, 32], sizes = [1, 16], strides = [1, 1]} : vector<1x128xf32> to vector<1x16xf32>
    %127 = vector.extract_strided_slice %117 {offsets = [0, 32], sizes = [1, 16], strides = [1, 1]} : vector<1x128xf32> to vector<1x16xf32>
    %128 = arith.mulf %124, %127 : vector<1x16xf32>
    %129 = arith.addf %126, %128 : vector<1x16xf32>
    %130 = math.tanh %129 : vector<1x16xf32>
    %cst_45 = arith.constant 1.000000e+00 : f32
    %131 = vector.broadcast %cst_45 : f32 to vector<1x16xf32>
    %132 = arith.subf %131, %125 : vector<1x16xf32>
    %133 = arith.mulf %132, %130 : vector<1x16xf32>
    %134 = arith.mulf %125, %111 : vector<1x16xf32>
    %135 = arith.addf %133, %134 : vector<1x16xf32>
    %136 = arith.index_cast %c4_i32 : i32 to index
    %c0_46 = arith.constant 0 : index
    %137 = vector.load %arg23[%136, %c0_46] : memref<16x16xf32, #tpu.memory_space<vmem>>, vector<1x16xf32>
    tpu.vector_store %arg23[%136, %c0_46], %135 {strides = array<i32>} : memref<16x16xf32, #tpu.memory_space<vmem>>, vector<1x16xf32>,
    %c5_i32 = arith.constant 5 : i32
    %138 = arith.index_cast %c5_i32 : i32 to index
    %c0_47 = arith.constant 0 : index
    %139 = vector.load %arg22[%138, %c0_47] : memref<16x128xf32, #tpu.memory_space<vmem>>, vector<1x128xf32>
    %cst_48 = arith.constant dense<0.000000e+00> : vector<1x128xf32>
    %140 = tpu.matmul %135, %15, %cst_48 {dimension_numbers = #tpu.dot_dimension_numbers<[1], [0], [0], [1], [0, 0, 1, 1], [], []>} : vector<1x16xf32>, vector<16x128xf32>, vector<1x128xf32> -> vector<1x128xf32>
    %141 = arith.addf %140, %16 : vector<1x128xf32>
    %142 = arith.addf %139, %141 : vector<1x128xf32>
    %143 = arith.negf %142 : vector<1x128xf32>
    %144 = math.exp %143 : vector<1x128xf32>
    %cst_49 = arith.constant 1.000000e+00 : f32
    %145 = vector.broadcast %cst_49 : f32 to vector<1x128xf32>
    %146 = arith.addf %145, %144 : vector<1x128xf32>
    %147 = arith.divf %145, %146 : vector<1x128xf32>
    %148 = vector.extract_strided_slice %147 {offsets = [0, 0], sizes = [1, 16], strides = [1, 1]} : vector<1x128xf32> to vector<1x16xf32>
    %149 = vector.extract_strided_slice %147 {offsets = [0, 16], sizes = [1, 16], strides = [1, 1]} : vector<1x128xf32> to vector<1x16xf32>
    %150 = vector.extract_strided_slice %139 {offsets = [0, 32], sizes = [1, 16], strides = [1, 1]} : vector<1x128xf32> to vector<1x16xf32>
    %151 = vector.extract_strided_slice %141 {offsets = [0, 32], sizes = [1, 16], strides = [1, 1]} : vector<1x128xf32> to vector<1x16xf32>
    %152 = arith.mulf %148, %151 : vector<1x16xf32>
    %153 = arith.addf %150, %152 : vector<1x16xf32>
    %154 = math.tanh %153 : vector<1x16xf32>
    %cst_50 = arith.constant 1.000000e+00 : f32
    %155 = vector.broadcast %cst_50 : f32 to vector<1x16xf32>
    %156 = arith.subf %155, %149 : vector<1x16xf32>
    %157 = arith.mulf %156, %154 : vector<1x16xf32>
    %158 = arith.mulf %149, %135 : vector<1x16xf32>
    %159 = arith.addf %157, %158 : vector<1x16xf32>
    %160 = arith.index_cast %c5_i32 : i32 to index
    %c0_51 = arith.constant 0 : index
    %161 = vector.load %arg23[%160, %c0_51] : memref<16x16xf32, #tpu.memory_space<vmem>>, vector<1x16xf32>
    tpu.vector_store %arg23[%160, %c0_51], %159 {strides = array<i32>} : memref<16x16xf32, #tpu.memory_space<vmem>>, vector<1x16xf32>,
    %c6_i32 = arith.constant 6 : i32
    %162 = arith.index_cast %c6_i32 : i32 to index
    %c0_52 = arith.constant 0 : index
    %163 = vector.load %arg22[%162, %c0_52] : memref<16x128xf32, #tpu.memory_space<vmem>>, vector<1x128xf32>
    %cst_53 = arith.constant dense<0.000000e+00> : vector<1x128xf32>
    %164 = tpu.matmul %159, %15, %cst_53 {dimension_numbers = #tpu.dot_dimension_numbers<[1], [0], [0], [1], [0, 0, 1, 1], [], []>} : vector<1x16xf32>, vector<16x128xf32>, vector<1x128xf32> -> vector<1x128xf32>
    %165 = arith.addf %164, %16 : vector<1x128xf32>
    %166 = arith.addf %163, %165 : vector<1x128xf32>
    %167 = arith.negf %166 : vector<1x128xf32>
    %168 = math.exp %167 : vector<1x128xf32>
    %cst_54 = arith.constant 1.000000e+00 : f32
    %169 = vector.broadcast %cst_54 : f32 to vector<1x128xf32>
    %170 = arith.addf %169, %168 : vector<1x128xf32>
    %171 = arith.divf %169, %170 : vector<1x128xf32>
    %172 = vector.extract_strided_slice %171 {offsets = [0, 0], sizes = [1, 16], strides = [1, 1]} : vector<1x128xf32> to vector<1x16xf32>
    %173 = vector.extract_strided_slice %171 {offsets = [0, 16], sizes = [1, 16], strides = [1, 1]} : vector<1x128xf32> to vector<1x16xf32>
    %174 = vector.extract_strided_slice %163 {offsets = [0, 32], sizes = [1, 16], strides = [1, 1]} : vector<1x128xf32> to vector<1x16xf32>
    %175 = vector.extract_strided_slice %165 {offsets = [0, 32], sizes = [1, 16], strides = [1, 1]} : vector<1x128xf32> to vector<1x16xf32>
    %176 = arith.mulf %172, %175 : vector<1x16xf32>
    %177 = arith.addf %174, %176 : vector<1x16xf32>
    %178 = math.tanh %177 : vector<1x16xf32>
    %cst_55 = arith.constant 1.000000e+00 : f32
    %179 = vector.broadcast %cst_55 : f32 to vector<1x16xf32>
    %180 = arith.subf %179, %173 : vector<1x16xf32>
    %181 = arith.mulf %180, %178 : vector<1x16xf32>
    %182 = arith.mulf %173, %159 : vector<1x16xf32>
    %183 = arith.addf %181, %182 : vector<1x16xf32>
    %184 = arith.index_cast %c6_i32 : i32 to index
    %c0_56 = arith.constant 0 : index
    %185 = vector.load %arg23[%184, %c0_56] : memref<16x16xf32, #tpu.memory_space<vmem>>, vector<1x16xf32>
    tpu.vector_store %arg23[%184, %c0_56], %183 {strides = array<i32>} : memref<16x16xf32, #tpu.memory_space<vmem>>, vector<1x16xf32>,
    %c7_i32 = arith.constant 7 : i32
    %186 = arith.index_cast %c7_i32 : i32 to index
    %c0_57 = arith.constant 0 : index
    %187 = vector.load %arg22[%186, %c0_57] : memref<16x128xf32, #tpu.memory_space<vmem>>, vector<1x128xf32>
    %cst_58 = arith.constant dense<0.000000e+00> : vector<1x128xf32>
    %188 = tpu.matmul %183, %15, %cst_58 {dimension_numbers = #tpu.dot_dimension_numbers<[1], [0], [0], [1], [0, 0, 1, 1], [], []>} : vector<1x16xf32>, vector<16x128xf32>, vector<1x128xf32> -> vector<1x128xf32>
    %189 = arith.addf %188, %16 : vector<1x128xf32>
    %190 = arith.addf %187, %189 : vector<1x128xf32>
    %191 = arith.negf %190 : vector<1x128xf32>
    %192 = math.exp %191 : vector<1x128xf32>
    %cst_59 = arith.constant 1.000000e+00 : f32
    %193 = vector.broadcast %cst_59 : f32 to vector<1x128xf32>
    %194 = arith.addf %193, %192 : vector<1x128xf32>
    %195 = arith.divf %193, %194 : vector<1x128xf32>
    %196 = vector.extract_strided_slice %195 {offsets = [0, 0], sizes = [1, 16], strides = [1, 1]} : vector<1x128xf32> to vector<1x16xf32>
    %197 = vector.extract_strided_slice %195 {offsets = [0, 16], sizes = [1, 16], strides = [1, 1]} : vector<1x128xf32> to vector<1x16xf32>
    %198 = vector.extract_strided_slice %187 {offsets = [0, 32], sizes = [1, 16], strides = [1, 1]} : vector<1x128xf32> to vector<1x16xf32>
    %199 = vector.extract_strided_slice %189 {offsets = [0, 32], sizes = [1, 16], strides = [1, 1]} : vector<1x128xf32> to vector<1x16xf32>
    %200 = arith.mulf %196, %199 : vector<1x16xf32>
    %201 = arith.addf %198, %200 : vector<1x16xf32>
    %202 = math.tanh %201 : vector<1x16xf32>
    %cst_60 = arith.constant 1.000000e+00 : f32
    %203 = vector.broadcast %cst_60 : f32 to vector<1x16xf32>
    %204 = arith.subf %203, %197 : vector<1x16xf32>
    %205 = arith.mulf %204, %202 : vector<1x16xf32>
    %206 = arith.mulf %197, %183 : vector<1x16xf32>
    %207 = arith.addf %205, %206 : vector<1x16xf32>
    %208 = arith.index_cast %c7_i32 : i32 to index
    %c0_61 = arith.constant 0 : index
    %209 = vector.load %arg23[%208, %c0_61] : memref<16x16xf32, #tpu.memory_space<vmem>>, vector<1x16xf32>
    tpu.vector_store %arg23[%208, %c0_61], %207 {strides = array<i32>} : memref<16x16xf32, #tpu.memory_space<vmem>>, vector<1x16xf32>,
    %c8_i32 = arith.constant 8 : i32
    %210 = arith.index_cast %c8_i32 : i32 to index
    %c0_62 = arith.constant 0 : index
    %211 = vector.load %arg22[%210, %c0_62] : memref<16x128xf32, #tpu.memory_space<vmem>>, vector<1x128xf32>
    %cst_63 = arith.constant dense<0.000000e+00> : vector<1x128xf32>
    %212 = tpu.matmul %207, %15, %cst_63 {dimension_numbers = #tpu.dot_dimension_numbers<[1], [0], [0], [1], [0, 0, 1, 1], [], []>} : vector<1x16xf32>, vector<16x128xf32>, vector<1x128xf32> -> vector<1x128xf32>
    %213 = arith.addf %212, %16 : vector<1x128xf32>
    %214 = arith.addf %211, %213 : vector<1x128xf32>
    %215 = arith.negf %214 : vector<1x128xf32>
    %216 = math.exp %215 : vector<1x128xf32>
    %cst_64 = arith.constant 1.000000e+00 : f32
    %217 = vector.broadcast %cst_64 : f32 to vector<1x128xf32>
    %218 = arith.addf %217, %216 : vector<1x128xf32>
    %219 = arith.divf %217, %218 : vector<1x128xf32>
    %220 = vector.extract_strided_slice %219 {offsets = [0, 0], sizes = [1, 16], strides = [1, 1]} : vector<1x128xf32> to vector<1x16xf32>
    %221 = vector.extract_strided_slice %219 {offsets = [0, 16], sizes = [1, 16], strides = [1, 1]} : vector<1x128xf32> to vector<1x16xf32>
    %222 = vector.extract_strided_slice %211 {offsets = [0, 32], sizes = [1, 16], strides = [1, 1]} : vector<1x128xf32> to vector<1x16xf32>
    %223 = vector.extract_strided_slice %213 {offsets = [0, 32], sizes = [1, 16], strides = [1, 1]} : vector<1x128xf32> to vector<1x16xf32>
    %224 = arith.mulf %220, %223 : vector<1x16xf32>
    %225 = arith.addf %222, %224 : vector<1x16xf32>
    %226 = math.tanh %225 : vector<1x16xf32>
    %cst_65 = arith.constant 1.000000e+00 : f32
    %227 = vector.broadcast %cst_65 : f32 to vector<1x16xf32>
    %228 = arith.subf %227, %221 : vector<1x16xf32>
    %229 = arith.mulf %228, %226 : vector<1x16xf32>
    %230 = arith.mulf %221, %207 : vector<1x16xf32>
    %231 = arith.addf %229, %230 : vector<1x16xf32>
    %232 = arith.index_cast %c8_i32 : i32 to index
    %c0_66 = arith.constant 0 : index
    %233 = vector.load %arg23[%232, %c0_66] : memref<16x16xf32, #tpu.memory_space<vmem>>, vector<1x16xf32>
    tpu.vector_store %arg23[%232, %c0_66], %231 {strides = array<i32>} : memref<16x16xf32, #tpu.memory_space<vmem>>, vector<1x16xf32>,
    %c9_i32 = arith.constant 9 : i32
    %234 = arith.index_cast %c9_i32 : i32 to index
    %c0_67 = arith.constant 0 : index
    %235 = vector.load %arg22[%234, %c0_67] : memref<16x128xf32, #tpu.memory_space<vmem>>, vector<1x128xf32>
    %cst_68 = arith.constant dense<0.000000e+00> : vector<1x128xf32>
    %236 = tpu.matmul %231, %15, %cst_68 {dimension_numbers = #tpu.dot_dimension_numbers<[1], [0], [0], [1], [0, 0, 1, 1], [], []>} : vector<1x16xf32>, vector<16x128xf32>, vector<1x128xf32> -> vector<1x128xf32>
    %237 = arith.addf %236, %16 : vector<1x128xf32>
    %238 = arith.addf %235, %237 : vector<1x128xf32>
    %239 = arith.negf %238 : vector<1x128xf32>
    %240 = math.exp %239 : vector<1x128xf32>
    %cst_69 = arith.constant 1.000000e+00 : f32
    %241 = vector.broadcast %cst_69 : f32 to vector<1x128xf32>
    %242 = arith.addf %241, %240 : vector<1x128xf32>
    %243 = arith.divf %241, %242 : vector<1x128xf32>
    %244 = vector.extract_strided_slice %243 {offsets = [0, 0], sizes = [1, 16], strides = [1, 1]} : vector<1x128xf32> to vector<1x16xf32>
    %245 = vector.extract_strided_slice %243 {offsets = [0, 16], sizes = [1, 16], strides = [1, 1]} : vector<1x128xf32> to vector<1x16xf32>
    %246 = vector.extract_strided_slice %235 {offsets = [0, 32], sizes = [1, 16], strides = [1, 1]} : vector<1x128xf32> to vector<1x16xf32>
    %247 = vector.extract_strided_slice %237 {offsets = [0, 32], sizes = [1, 16], strides = [1, 1]} : vector<1x128xf32> to vector<1x16xf32>
    %248 = arith.mulf %244, %247 : vector<1x16xf32>
    %249 = arith.addf %246, %248 : vector<1x16xf32>
    %250 = math.tanh %249 : vector<1x16xf32>
    %cst_70 = arith.constant 1.000000e+00 : f32
    %251 = vector.broadcast %cst_70 : f32 to vector<1x16xf32>
    %252 = arith.subf %251, %245 : vector<1x16xf32>
    %253 = arith.mulf %252, %250 : vector<1x16xf32>
    %254 = arith.mulf %245, %231 : vector<1x16xf32>
    %255 = arith.addf %253, %254 : vector<1x16xf32>
    %256 = arith.index_cast %c9_i32 : i32 to index
    %c0_71 = arith.constant 0 : index
    %257 = vector.load %arg23[%256, %c0_71] : memref<16x16xf32, #tpu.memory_space<vmem>>, vector<1x16xf32>
    tpu.vector_store %arg23[%256, %c0_71], %255 {strides = array<i32>} : memref<16x16xf32, #tpu.memory_space<vmem>>, vector<1x16xf32>,
    %c10_i32 = arith.constant 10 : i32
    %258 = arith.index_cast %c10_i32 : i32 to index
    %c0_72 = arith.constant 0 : index
    %259 = vector.load %arg22[%258, %c0_72] : memref<16x128xf32, #tpu.memory_space<vmem>>, vector<1x128xf32>
    %cst_73 = arith.constant dense<0.000000e+00> : vector<1x128xf32>
    %260 = tpu.matmul %255, %15, %cst_73 {dimension_numbers = #tpu.dot_dimension_numbers<[1], [0], [0], [1], [0, 0, 1, 1], [], []>} : vector<1x16xf32>, vector<16x128xf32>, vector<1x128xf32> -> vector<1x128xf32>
    %261 = arith.addf %260, %16 : vector<1x128xf32>
    %262 = arith.addf %259, %261 : vector<1x128xf32>
    %263 = arith.negf %262 : vector<1x128xf32>
    %264 = math.exp %263 : vector<1x128xf32>
    %cst_74 = arith.constant 1.000000e+00 : f32
    %265 = vector.broadcast %cst_74 : f32 to vector<1x128xf32>
    %266 = arith.addf %265, %264 : vector<1x128xf32>
    %267 = arith.divf %265, %266 : vector<1x128xf32>
    %268 = vector.extract_strided_slice %267 {offsets = [0, 0], sizes = [1, 16], strides = [1, 1]} : vector<1x128xf32> to vector<1x16xf32>
    %269 = vector.extract_strided_slice %267 {offsets = [0, 16], sizes = [1, 16], strides = [1, 1]} : vector<1x128xf32> to vector<1x16xf32>
    %270 = vector.extract_strided_slice %259 {offsets = [0, 32], sizes = [1, 16], strides = [1, 1]} : vector<1x128xf32> to vector<1x16xf32>
    %271 = vector.extract_strided_slice %261 {offsets = [0, 32], sizes = [1, 16], strides = [1, 1]} : vector<1x128xf32> to vector<1x16xf32>
    %272 = arith.mulf %268, %271 : vector<1x16xf32>
    %273 = arith.addf %270, %272 : vector<1x16xf32>
    %274 = math.tanh %273 : vector<1x16xf32>
    %cst_75 = arith.constant 1.000000e+00 : f32
    %275 = vector.broadcast %cst_75 : f32 to vector<1x16xf32>
    %276 = arith.subf %275, %269 : vector<1x16xf32>
    %277 = arith.mulf %276, %274 : vector<1x16xf32>
    %278 = arith.mulf %269, %255 : vector<1x16xf32>
    %279 = arith.addf %277, %278 : vector<1x16xf32>
    %280 = arith.index_cast %c10_i32 : i32 to index
    %c0_76 = arith.constant 0 : index
    %281 = vector.load %arg23[%280, %c0_76] : memref<16x16xf32, #tpu.memory_space<vmem>>, vector<1x16xf32>
    tpu.vector_store %arg23[%280, %c0_76], %279 {strides = array<i32>} : memref<16x16xf32, #tpu.memory_space<vmem>>, vector<1x16xf32>,
    %c11_i32 = arith.constant 11 : i32
    %282 = arith.index_cast %c11_i32 : i32 to index
    %c0_77 = arith.constant 0 : index
    %283 = vector.load %arg22[%282, %c0_77] : memref<16x128xf32, #tpu.memory_space<vmem>>, vector<1x128xf32>
    %cst_78 = arith.constant dense<0.000000e+00> : vector<1x128xf32>
    %284 = tpu.matmul %279, %15, %cst_78 {dimension_numbers = #tpu.dot_dimension_numbers<[1], [0], [0], [1], [0, 0, 1, 1], [], []>} : vector<1x16xf32>, vector<16x128xf32>, vector<1x128xf32> -> vector<1x128xf32>
    %285 = arith.addf %284, %16 : vector<1x128xf32>
    %286 = arith.addf %283, %285 : vector<1x128xf32>
    %287 = arith.negf %286 : vector<1x128xf32>
    %288 = math.exp %287 : vector<1x128xf32>
    %cst_79 = arith.constant 1.000000e+00 : f32
    %289 = vector.broadcast %cst_79 : f32 to vector<1x128xf32>
    %290 = arith.addf %289, %288 : vector<1x128xf32>
    %291 = arith.divf %289, %290 : vector<1x128xf32>
    %292 = vector.extract_strided_slice %291 {offsets = [0, 0], sizes = [1, 16], strides = [1, 1]} : vector<1x128xf32> to vector<1x16xf32>
    %293 = vector.extract_strided_slice %291 {offsets = [0, 16], sizes = [1, 16], strides = [1, 1]} : vector<1x128xf32> to vector<1x16xf32>
    %294 = vector.extract_strided_slice %283 {offsets = [0, 32], sizes = [1, 16], strides = [1, 1]} : vector<1x128xf32> to vector<1x16xf32>
    %295 = vector.extract_strided_slice %285 {offsets = [0, 32], sizes = [1, 16], strides = [1, 1]} : vector<1x128xf32> to vector<1x16xf32>
    %296 = arith.mulf %292, %295 : vector<1x16xf32>
    %297 = arith.addf %294, %296 : vector<1x16xf32>
    %298 = math.tanh %297 : vector<1x16xf32>
    %cst_80 = arith.constant 1.000000e+00 : f32
    %299 = vector.broadcast %cst_80 : f32 to vector<1x16xf32>
    %300 = arith.subf %299, %293 : vector<1x16xf32>
    %301 = arith.mulf %300, %298 : vector<1x16xf32>
    %302 = arith.mulf %293, %279 : vector<1x16xf32>
    %303 = arith.addf %301, %302 : vector<1x16xf32>
    %304 = arith.index_cast %c11_i32 : i32 to index
    %c0_81 = arith.constant 0 : index
    %305 = vector.load %arg23[%304, %c0_81] : memref<16x16xf32, #tpu.memory_space<vmem>>, vector<1x16xf32>
    tpu.vector_store %arg23[%304, %c0_81], %303 {strides = array<i32>} : memref<16x16xf32, #tpu.memory_space<vmem>>, vector<1x16xf32>,
    %c12_i32 = arith.constant 12 : i32
    %306 = arith.index_cast %c12_i32 : i32 to index
    %c0_82 = arith.constant 0 : index
    %307 = vector.load %arg22[%306, %c0_82] : memref<16x128xf32, #tpu.memory_space<vmem>>, vector<1x128xf32>
    %cst_83 = arith.constant dense<0.000000e+00> : vector<1x128xf32>
    %308 = tpu.matmul %303, %15, %cst_83 {dimension_numbers = #tpu.dot_dimension_numbers<[1], [0], [0], [1], [0, 0, 1, 1], [], []>} : vector<1x16xf32>, vector<16x128xf32>, vector<1x128xf32> -> vector<1x128xf32>
    %309 = arith.addf %308, %16 : vector<1x128xf32>
    %310 = arith.addf %307, %309 : vector<1x128xf32>
    %311 = arith.negf %310 : vector<1x128xf32>
    %312 = math.exp %311 : vector<1x128xf32>
    %cst_84 = arith.constant 1.000000e+00 : f32
    %313 = vector.broadcast %cst_84 : f32 to vector<1x128xf32>
    %314 = arith.addf %313, %312 : vector<1x128xf32>
    %315 = arith.divf %313, %314 : vector<1x128xf32>
    %316 = vector.extract_strided_slice %315 {offsets = [0, 0], sizes = [1, 16], strides = [1, 1]} : vector<1x128xf32> to vector<1x16xf32>
    %317 = vector.extract_strided_slice %315 {offsets = [0, 16], sizes = [1, 16], strides = [1, 1]} : vector<1x128xf32> to vector<1x16xf32>
    %318 = vector.extract_strided_slice %307 {offsets = [0, 32], sizes = [1, 16], strides = [1, 1]} : vector<1x128xf32> to vector<1x16xf32>
    %319 = vector.extract_strided_slice %309 {offsets = [0, 32], sizes = [1, 16], strides = [1, 1]} : vector<1x128xf32> to vector<1x16xf32>
    %320 = arith.mulf %316, %319 : vector<1x16xf32>
    %321 = arith.addf %318, %320 : vector<1x16xf32>
    %322 = math.tanh %321 : vector<1x16xf32>
    %cst_85 = arith.constant 1.000000e+00 : f32
    %323 = vector.broadcast %cst_85 : f32 to vector<1x16xf32>
    %324 = arith.subf %323, %317 : vector<1x16xf32>
    %325 = arith.mulf %324, %322 : vector<1x16xf32>
    %326 = arith.mulf %317, %303 : vector<1x16xf32>
    %327 = arith.addf %325, %326 : vector<1x16xf32>
    %328 = arith.index_cast %c12_i32 : i32 to index
    %c0_86 = arith.constant 0 : index
    %329 = vector.load %arg23[%328, %c0_86] : memref<16x16xf32, #tpu.memory_space<vmem>>, vector<1x16xf32>
    tpu.vector_store %arg23[%328, %c0_86], %327 {strides = array<i32>} : memref<16x16xf32, #tpu.memory_space<vmem>>, vector<1x16xf32>,
    %c13_i32 = arith.constant 13 : i32
    %330 = arith.index_cast %c13_i32 : i32 to index
    %c0_87 = arith.constant 0 : index
    %331 = vector.load %arg22[%330, %c0_87] : memref<16x128xf32, #tpu.memory_space<vmem>>, vector<1x128xf32>
    %cst_88 = arith.constant dense<0.000000e+00> : vector<1x128xf32>
    %332 = tpu.matmul %327, %15, %cst_88 {dimension_numbers = #tpu.dot_dimension_numbers<[1], [0], [0], [1], [0, 0, 1, 1], [], []>} : vector<1x16xf32>, vector<16x128xf32>, vector<1x128xf32> -> vector<1x128xf32>
    %333 = arith.addf %332, %16 : vector<1x128xf32>
    %334 = arith.addf %331, %333 : vector<1x128xf32>
    %335 = arith.negf %334 : vector<1x128xf32>
    %336 = math.exp %335 : vector<1x128xf32>
    %cst_89 = arith.constant 1.000000e+00 : f32
    %337 = vector.broadcast %cst_89 : f32 to vector<1x128xf32>
    %338 = arith.addf %337, %336 : vector<1x128xf32>
    %339 = arith.divf %337, %338 : vector<1x128xf32>
    %340 = vector.extract_strided_slice %339 {offsets = [0, 0], sizes = [1, 16], strides = [1, 1]} : vector<1x128xf32> to vector<1x16xf32>
    %341 = vector.extract_strided_slice %339 {offsets = [0, 16], sizes = [1, 16], strides = [1, 1]} : vector<1x128xf32> to vector<1x16xf32>
    %342 = vector.extract_strided_slice %331 {offsets = [0, 32], sizes = [1, 16], strides = [1, 1]} : vector<1x128xf32> to vector<1x16xf32>
    %343 = vector.extract_strided_slice %333 {offsets = [0, 32], sizes = [1, 16], strides = [1, 1]} : vector<1x128xf32> to vector<1x16xf32>
    %344 = arith.mulf %340, %343 : vector<1x16xf32>
    %345 = arith.addf %342, %344 : vector<1x16xf32>
    %346 = math.tanh %345 : vector<1x16xf32>
    %cst_90 = arith.constant 1.000000e+00 : f32
    %347 = vector.broadcast %cst_90 : f32 to vector<1x16xf32>
    %348 = arith.subf %347, %341 : vector<1x16xf32>
    %349 = arith.mulf %348, %346 : vector<1x16xf32>
    %350 = arith.mulf %341, %327 : vector<1x16xf32>
    %351 = arith.addf %349, %350 : vector<1x16xf32>
    %352 = arith.index_cast %c13_i32 : i32 to index
    %c0_91 = arith.constant 0 : index
    %353 = vector.load %arg23[%352, %c0_91] : memref<16x16xf32, #tpu.memory_space<vmem>>, vector<1x16xf32>
    tpu.vector_store %arg23[%352, %c0_91], %351 {strides = array<i32>} : memref<16x16xf32, #tpu.memory_space<vmem>>, vector<1x16xf32>,
    %c14_i32 = arith.constant 14 : i32
    %354 = arith.index_cast %c14_i32 : i32 to index
    %c0_92 = arith.constant 0 : index
    %355 = vector.load %arg22[%354, %c0_92] : memref<16x128xf32, #tpu.memory_space<vmem>>, vector<1x128xf32>
    %cst_93 = arith.constant dense<0.000000e+00> : vector<1x128xf32>
    %356 = tpu.matmul %351, %15, %cst_93 {dimension_numbers = #tpu.dot_dimension_numbers<[1], [0], [0], [1], [0, 0, 1, 1], [], []>} : vector<1x16xf32>, vector<16x128xf32>, vector<1x128xf32> -> vector<1x128xf32>
    %357 = arith.addf %356, %16 : vector<1x128xf32>
    %358 = arith.addf %355, %357 : vector<1x128xf32>
    %359 = arith.negf %358 : vector<1x128xf32>
    %360 = math.exp %359 : vector<1x128xf32>
    %cst_94 = arith.constant 1.000000e+00 : f32
    %361 = vector.broadcast %cst_94 : f32 to vector<1x128xf32>
    %362 = arith.addf %361, %360 : vector<1x128xf32>
    %363 = arith.divf %361, %362 : vector<1x128xf32>
    %364 = vector.extract_strided_slice %363 {offsets = [0, 0], sizes = [1, 16], strides = [1, 1]} : vector<1x128xf32> to vector<1x16xf32>
    %365 = vector.extract_strided_slice %363 {offsets = [0, 16], sizes = [1, 16], strides = [1, 1]} : vector<1x128xf32> to vector<1x16xf32>
    %366 = vector.extract_strided_slice %355 {offsets = [0, 32], sizes = [1, 16], strides = [1, 1]} : vector<1x128xf32> to vector<1x16xf32>
    %367 = vector.extract_strided_slice %357 {offsets = [0, 32], sizes = [1, 16], strides = [1, 1]} : vector<1x128xf32> to vector<1x16xf32>
    %368 = arith.mulf %364, %367 : vector<1x16xf32>
    %369 = arith.addf %366, %368 : vector<1x16xf32>
    %370 = math.tanh %369 : vector<1x16xf32>
    %cst_95 = arith.constant 1.000000e+00 : f32
    %371 = vector.broadcast %cst_95 : f32 to vector<1x16xf32>
    %372 = arith.subf %371, %365 : vector<1x16xf32>
    %373 = arith.mulf %372, %370 : vector<1x16xf32>
    %374 = arith.mulf %365, %351 : vector<1x16xf32>
    %375 = arith.addf %373, %374 : vector<1x16xf32>
    %376 = arith.index_cast %c14_i32 : i32 to index
    %c0_96 = arith.constant 0 : index
    %377 = vector.load %arg23[%376, %c0_96] : memref<16x16xf32, #tpu.memory_space<vmem>>, vector<1x16xf32>
    tpu.vector_store %arg23[%376, %c0_96], %375 {strides = array<i32>} : memref<16x16xf32, #tpu.memory_space<vmem>>, vector<1x16xf32>,
    %c15_i32 = arith.constant 15 : i32
    %378 = arith.index_cast %c15_i32 : i32 to index
    %c0_97 = arith.constant 0 : index
    %379 = vector.load %arg22[%378, %c0_97] : memref<16x128xf32, #tpu.memory_space<vmem>>, vector<1x128xf32>
    %cst_98 = arith.constant dense<0.000000e+00> : vector<1x128xf32>
    %380 = tpu.matmul %375, %15, %cst_98 {dimension_numbers = #tpu.dot_dimension_numbers<[1], [0], [0], [1], [0, 0, 1, 1], [], []>} : vector<1x16xf32>, vector<16x128xf32>, vector<1x128xf32> -> vector<1x128xf32>
    %381 = arith.addf %380, %16 : vector<1x128xf32>
    %382 = arith.addf %379, %381 : vector<1x128xf32>
    %383 = arith.negf %382 : vector<1x128xf32>
    %384 = math.exp %383 : vector<1x128xf32>
    %cst_99 = arith.constant 1.000000e+00 : f32
    %385 = vector.broadcast %cst_99 : f32 to vector<1x128xf32>
    %386 = arith.addf %385, %384 : vector<1x128xf32>
    %387 = arith.divf %385, %386 : vector<1x128xf32>
    %388 = vector.extract_strided_slice %387 {offsets = [0, 0], sizes = [1, 16], strides = [1, 1]} : vector<1x128xf32> to vector<1x16xf32>
    %389 = vector.extract_strided_slice %387 {offsets = [0, 16], sizes = [1, 16], strides = [1, 1]} : vector<1x128xf32> to vector<1x16xf32>
    %390 = vector.extract_strided_slice %379 {offsets = [0, 32], sizes = [1, 16], strides = [1, 1]} : vector<1x128xf32> to vector<1x16xf32>
    %391 = vector.extract_strided_slice %381 {offsets = [0, 32], sizes = [1, 16], strides = [1, 1]} : vector<1x128xf32> to vector<1x16xf32>
    %392 = arith.mulf %388, %391 : vector<1x16xf32>
    %393 = arith.addf %390, %392 : vector<1x16xf32>
    %394 = math.tanh %393 : vector<1x16xf32>
    %cst_100 = arith.constant 1.000000e+00 : f32
    %395 = vector.broadcast %cst_100 : f32 to vector<1x16xf32>
    %396 = arith.subf %395, %389 : vector<1x16xf32>
    %397 = arith.mulf %396, %394 : vector<1x16xf32>
    %398 = arith.mulf %389, %375 : vector<1x16xf32>
    %399 = arith.addf %397, %398 : vector<1x16xf32>
    %400 = arith.index_cast %c15_i32 : i32 to index
    %c0_101 = arith.constant 0 : index
    %401 = vector.load %arg23[%400, %c0_101] : memref<16x16xf32, #tpu.memory_space<vmem>>, vector<1x16xf32>
    tpu.vector_store %arg23[%400, %c0_101], %399 {strides = array<i32>} : memref<16x16xf32, #tpu.memory_space<vmem>>, vector<1x16xf32>,
    %c16_i32 = arith.constant 16 : i32
    %c0_102 = arith.constant 0 : index
    %c0_103 = arith.constant 0 : index
    %402 = vector.load %arg26[%c0_102, %c0_103] : memref<1x16xf32, #tpu.memory_space<vmem>>, vector<1x16xf32>
    tpu.vector_store %arg26[%c0_102, %c0_103], %399 {strides = array<i32>} : memref<1x16xf32, #tpu.memory_space<vmem>>, vector<1x16xf32>,
    %c0_104 = arith.constant 0 : index
    %c0_105 = arith.constant 0 : index
    %403 = vector.load %arg21[%c0_104, %c0_105] : memref<16x128xf32, #tpu.memory_space<vmem>>, vector<16x128xf32>
    %c0_106 = arith.constant 0 : index
    %c0_107 = arith.constant 0 : index
    %404 = vector.load %arg7[%c0_106, %c0_107] : memref<128x128xf32, #tpu.memory_space<vmem>>, vector<128x128xf32>
    %cst_108 = arith.constant dense<0.000000e+00> : vector<16x128xf32>
    %405 = tpu.matmul %403, %404, %cst_108 {dimension_numbers = #tpu.dot_dimension_numbers<[1], [0], [0], [1], [0, 0, 1, 1], [], []>} : vector<16x128xf32>, vector<128x128xf32>, vector<16x128xf32> -> vector<16x128xf32>
    %c0_109 = arith.constant 0 : index
    %c0_110 = arith.constant 0 : index
    %406 = vector.load %arg23[%c0_109, %c0_110] : memref<16x16xf32, #tpu.memory_space<vmem>>, vector<16x16xf32>
    %c0_111 = arith.constant 0 : index
    %c0_112 = arith.constant 0 : index
    %407 = vector.load %arg8[%c0_111, %c0_112] : memref<16x128xf32, #tpu.memory_space<vmem>>, vector<16x128xf32>
    %cst_113 = arith.constant dense<0.000000e+00> : vector<16x128xf32>
    %408 = tpu.matmul %406, %407, %cst_113 {dimension_numbers = #tpu.dot_dimension_numbers<[1], [0], [0], [1], [0, 0, 1, 1], [], []>} : vector<16x16xf32>, vector<16x128xf32>, vector<16x128xf32> -> vector<16x128xf32>
    %409 = arith.addf %405, %408 : vector<16x128xf32>
    %c0_114 = arith.constant 0 : index
    %c0_115 = arith.constant 0 : index
    %410 = vector.load %arg10[%c0_114, %c0_115] : memref<1x128xf32, #tpu.memory_space<vmem>>, vector<1x128xf32>
    %411 = vector.broadcast %410 : vector<1x128xf32> to vector<16x128xf32>
    %412 = arith.addf %409, %411 : vector<16x128xf32>
    %c0_116 = arith.constant 0 : index
    %c0_117 = arith.constant 0 : index
    %413 = vector.load %arg22[%c0_116, %c0_117] : memref<16x128xf32, #tpu.memory_space<vmem>>, vector<16x128xf32>
    tpu.vector_store %arg22[%c0_116, %c0_117], %412 {strides = array<i32>} : memref<16x128xf32, #tpu.memory_space<vmem>>, vector<16x128xf32>,
    %c0_118 = arith.constant 0 : index
    %c0_119 = arith.constant 0 : index
    %414 = vector.load %arg9[%c0_118, %c0_119] : memref<16x128xf32, #tpu.memory_space<vmem>>, vector<16x128xf32>
    %c0_120 = arith.constant 0 : index
    %c0_121 = arith.constant 0 : index
    %415 = vector.load %arg11[%c0_120, %c0_121] : memref<1x128xf32, #tpu.memory_space<vmem>>, vector<1x128xf32>
    %c0_122 = arith.constant 0 : index
    %c0_123 = arith.constant 0 : index
    %416 = vector.load %arg27[%c0_122, %c0_123] : memref<1x16xf32, #tpu.memory_space<vmem>>, vector<1x16xf32>
    %c0_i32_124 = arith.constant 0 : i32
    %417 = arith.index_cast %c0_i32_124 : i32 to index
    %c0_125 = arith.constant 0 : index
    %418 = vector.load %arg22[%417, %c0_125] : memref<16x128xf32, #tpu.memory_space<vmem>>, vector<1x128xf32>
    %cst_126 = arith.constant dense<0.000000e+00> : vector<1x128xf32>
    %419 = tpu.matmul %416, %414, %cst_126 {dimension_numbers = #tpu.dot_dimension_numbers<[1], [0], [0], [1], [0, 0, 1, 1], [], []>} : vector<1x16xf32>, vector<16x128xf32>, vector<1x128xf32> -> vector<1x128xf32>
    %420 = arith.addf %419, %415 : vector<1x128xf32>
    %421 = arith.addf %418, %420 : vector<1x128xf32>
    %422 = arith.negf %421 : vector<1x128xf32>
    %423 = math.exp %422 : vector<1x128xf32>
    %cst_127 = arith.constant 1.000000e+00 : f32
    %424 = vector.broadcast %cst_127 : f32 to vector<1x128xf32>
    %425 = arith.addf %424, %423 : vector<1x128xf32>
    %426 = arith.divf %424, %425 : vector<1x128xf32>
    %427 = vector.extract_strided_slice %426 {offsets = [0, 0], sizes = [1, 16], strides = [1, 1]} : vector<1x128xf32> to vector<1x16xf32>
    %428 = vector.extract_strided_slice %426 {offsets = [0, 16], sizes = [1, 16], strides = [1, 1]} : vector<1x128xf32> to vector<1x16xf32>
    %429 = vector.extract_strided_slice %418 {offsets = [0, 32], sizes = [1, 16], strides = [1, 1]} : vector<1x128xf32> to vector<1x16xf32>
    %430 = vector.extract_strided_slice %420 {offsets = [0, 32], sizes = [1, 16], strides = [1, 1]} : vector<1x128xf32> to vector<1x16xf32>
    %431 = arith.mulf %427, %430 : vector<1x16xf32>
    %432 = arith.addf %429, %431 : vector<1x16xf32>
    %433 = math.tanh %432 : vector<1x16xf32>
    %cst_128 = arith.constant 1.000000e+00 : f32
    %434 = vector.broadcast %cst_128 : f32 to vector<1x16xf32>
    %435 = arith.subf %434, %428 : vector<1x16xf32>
    %436 = arith.mulf %435, %433 : vector<1x16xf32>
    %437 = arith.mulf %428, %416 : vector<1x16xf32>
    %438 = arith.addf %436, %437 : vector<1x16xf32>
    %439 = arith.index_cast %c0_i32_124 : i32 to index
    %c0_129 = arith.constant 0 : index
    %440 = vector.load %arg24[%439, %c0_129] : memref<16x16xf32, #tpu.memory_space<vmem>>, vector<1x16xf32>
    tpu.vector_store %arg24[%439, %c0_129], %438 {strides = array<i32>} : memref<16x16xf32, #tpu.memory_space<vmem>>, vector<1x16xf32>,
    %c1_i32_130 = arith.constant 1 : i32
    %441 = arith.index_cast %c1_i32_130 : i32 to index
    %c0_131 = arith.constant 0 : index
    %442 = vector.load %arg22[%441, %c0_131] : memref<16x128xf32, #tpu.memory_space<vmem>>, vector<1x128xf32>
    %cst_132 = arith.constant dense<0.000000e+00> : vector<1x128xf32>
    %443 = tpu.matmul %438, %414, %cst_132 {dimension_numbers = #tpu.dot_dimension_numbers<[1], [0], [0], [1], [0, 0, 1, 1], [], []>} : vector<1x16xf32>, vector<16x128xf32>, vector<1x128xf32> -> vector<1x128xf32>
    %444 = arith.addf %443, %415 : vector<1x128xf32>
    %445 = arith.addf %442, %444 : vector<1x128xf32>
    %446 = arith.negf %445 : vector<1x128xf32>
    %447 = math.exp %446 : vector<1x128xf32>
    %cst_133 = arith.constant 1.000000e+00 : f32
    %448 = vector.broadcast %cst_133 : f32 to vector<1x128xf32>
    %449 = arith.addf %448, %447 : vector<1x128xf32>
    %450 = arith.divf %448, %449 : vector<1x128xf32>
    %451 = vector.extract_strided_slice %450 {offsets = [0, 0], sizes = [1, 16], strides = [1, 1]} : vector<1x128xf32> to vector<1x16xf32>
    %452 = vector.extract_strided_slice %450 {offsets = [0, 16], sizes = [1, 16], strides = [1, 1]} : vector<1x128xf32> to vector<1x16xf32>
    %453 = vector.extract_strided_slice %442 {offsets = [0, 32], sizes = [1, 16], strides = [1, 1]} : vector<1x128xf32> to vector<1x16xf32>
    %454 = vector.extract_strided_slice %444 {offsets = [0, 32], sizes = [1, 16], strides = [1, 1]} : vector<1x128xf32> to vector<1x16xf32>
    %455 = arith.mulf %451, %454 : vector<1x16xf32>
    %456 = arith.addf %453, %455 : vector<1x16xf32>
    %457 = math.tanh %456 : vector<1x16xf32>
    %cst_134 = arith.constant 1.000000e+00 : f32
    %458 = vector.broadcast %cst_134 : f32 to vector<1x16xf32>
    %459 = arith.subf %458, %452 : vector<1x16xf32>
    %460 = arith.mulf %459, %457 : vector<1x16xf32>
    %461 = arith.mulf %452, %438 : vector<1x16xf32>
    %462 = arith.addf %460, %461 : vector<1x16xf32>
    %463 = arith.index_cast %c1_i32_130 : i32 to index
    %c0_135 = arith.constant 0 : index
    %464 = vector.load %arg24[%463, %c0_135] : memref<16x16xf32, #tpu.memory_space<vmem>>, vector<1x16xf32>
    tpu.vector_store %arg24[%463, %c0_135], %462 {strides = array<i32>} : memref<16x16xf32, #tpu.memory_space<vmem>>, vector<1x16xf32>,
    %c2_i32_136 = arith.constant 2 : i32
    %465 = arith.index_cast %c2_i32_136 : i32 to index
    %c0_137 = arith.constant 0 : index
    %466 = vector.load %arg22[%465, %c0_137] : memref<16x128xf32, #tpu.memory_space<vmem>>, vector<1x128xf32>
    %cst_138 = arith.constant dense<0.000000e+00> : vector<1x128xf32>
    %467 = tpu.matmul %462, %414, %cst_138 {dimension_numbers = #tpu.dot_dimension_numbers<[1], [0], [0], [1], [0, 0, 1, 1], [], []>} : vector<1x16xf32>, vector<16x128xf32>, vector<1x128xf32> -> vector<1x128xf32>
    %468 = arith.addf %467, %415 : vector<1x128xf32>
    %469 = arith.addf %466, %468 : vector<1x128xf32>
    %470 = arith.negf %469 : vector<1x128xf32>
    %471 = math.exp %470 : vector<1x128xf32>
    %cst_139 = arith.constant 1.000000e+00 : f32
    %472 = vector.broadcast %cst_139 : f32 to vector<1x128xf32>
    %473 = arith.addf %472, %471 : vector<1x128xf32>
    %474 = arith.divf %472, %473 : vector<1x128xf32>
    %475 = vector.extract_strided_slice %474 {offsets = [0, 0], sizes = [1, 16], strides = [1, 1]} : vector<1x128xf32> to vector<1x16xf32>
    %476 = vector.extract_strided_slice %474 {offsets = [0, 16], sizes = [1, 16], strides = [1, 1]} : vector<1x128xf32> to vector<1x16xf32>
    %477 = vector.extract_strided_slice %466 {offsets = [0, 32], sizes = [1, 16], strides = [1, 1]} : vector<1x128xf32> to vector<1x16xf32>
    %478 = vector.extract_strided_slice %468 {offsets = [0, 32], sizes = [1, 16], strides = [1, 1]} : vector<1x128xf32> to vector<1x16xf32>
    %479 = arith.mulf %475, %478 : vector<1x16xf32>
    %480 = arith.addf %477, %479 : vector<1x16xf32>
    %481 = math.tanh %480 : vector<1x16xf32>
    %cst_140 = arith.constant 1.000000e+00 : f32
    %482 = vector.broadcast %cst_140 : f32 to vector<1x16xf32>
    %483 = arith.subf %482, %476 : vector<1x16xf32>
    %484 = arith.mulf %483, %481 : vector<1x16xf32>
    %485 = arith.mulf %476, %462 : vector<1x16xf32>
    %486 = arith.addf %484, %485 : vector<1x16xf32>
    %487 = arith.index_cast %c2_i32_136 : i32 to index
    %c0_141 = arith.constant 0 : index
    %488 = vector.load %arg24[%487, %c0_141] : memref<16x16xf32, #tpu.memory_space<vmem>>, vector<1x16xf32>
    tpu.vector_store %arg24[%487, %c0_141], %486 {strides = array<i32>} : memref<16x16xf32, #tpu.memory_space<vmem>>, vector<1x16xf32>,
    %c3_i32_142 = arith.constant 3 : i32
    %489 = arith.index_cast %c3_i32_142 : i32 to index
    %c0_143 = arith.constant 0 : index
    %490 = vector.load %arg22[%489, %c0_143] : memref<16x128xf32, #tpu.memory_space<vmem>>, vector<1x128xf32>
    %cst_144 = arith.constant dense<0.000000e+00> : vector<1x128xf32>
    %491 = tpu.matmul %486, %414, %cst_144 {dimension_numbers = #tpu.dot_dimension_numbers<[1], [0], [0], [1], [0, 0, 1, 1], [], []>} : vector<1x16xf32>, vector<16x128xf32>, vector<1x128xf32> -> vector<1x128xf32>
    %492 = arith.addf %491, %415 : vector<1x128xf32>
    %493 = arith.addf %490, %492 : vector<1x128xf32>
    %494 = arith.negf %493 : vector<1x128xf32>
    %495 = math.exp %494 : vector<1x128xf32>
    %cst_145 = arith.constant 1.000000e+00 : f32
    %496 = vector.broadcast %cst_145 : f32 to vector<1x128xf32>
    %497 = arith.addf %496, %495 : vector<1x128xf32>
    %498 = arith.divf %496, %497 : vector<1x128xf32>
    %499 = vector.extract_strided_slice %498 {offsets = [0, 0], sizes = [1, 16], strides = [1, 1]} : vector<1x128xf32> to vector<1x16xf32>
    %500 = vector.extract_strided_slice %498 {offsets = [0, 16], sizes = [1, 16], strides = [1, 1]} : vector<1x128xf32> to vector<1x16xf32>
    %501 = vector.extract_strided_slice %490 {offsets = [0, 32], sizes = [1, 16], strides = [1, 1]} : vector<1x128xf32> to vector<1x16xf32>
    %502 = vector.extract_strided_slice %492 {offsets = [0, 32], sizes = [1, 16], strides = [1, 1]} : vector<1x128xf32> to vector<1x16xf32>
    %503 = arith.mulf %499, %502 : vector<1x16xf32>
    %504 = arith.addf %501, %503 : vector<1x16xf32>
    %505 = math.tanh %504 : vector<1x16xf32>
    %cst_146 = arith.constant 1.000000e+00 : f32
    %506 = vector.broadcast %cst_146 : f32 to vector<1x16xf32>
    %507 = arith.subf %506, %500 : vector<1x16xf32>
    %508 = arith.mulf %507, %505 : vector<1x16xf32>
    %509 = arith.mulf %500, %486 : vector<1x16xf32>
    %510 = arith.addf %508, %509 : vector<1x16xf32>
    %511 = arith.index_cast %c3_i32_142 : i32 to index
    %c0_147 = arith.constant 0 : index
    %512 = vector.load %arg24[%511, %c0_147] : memref<16x16xf32, #tpu.memory_space<vmem>>, vector<1x16xf32>
    tpu.vector_store %arg24[%511, %c0_147], %510 {strides = array<i32>} : memref<16x16xf32, #tpu.memory_space<vmem>>, vector<1x16xf32>,
    %c4_i32_148 = arith.constant 4 : i32
    %513 = arith.index_cast %c4_i32_148 : i32 to index
    %c0_149 = arith.constant 0 : index
    %514 = vector.load %arg22[%513, %c0_149] : memref<16x128xf32, #tpu.memory_space<vmem>>, vector<1x128xf32>
    %cst_150 = arith.constant dense<0.000000e+00> : vector<1x128xf32>
    %515 = tpu.matmul %510, %414, %cst_150 {dimension_numbers = #tpu.dot_dimension_numbers<[1], [0], [0], [1], [0, 0, 1, 1], [], []>} : vector<1x16xf32>, vector<16x128xf32>, vector<1x128xf32> -> vector<1x128xf32>
    %516 = arith.addf %515, %415 : vector<1x128xf32>
    %517 = arith.addf %514, %516 : vector<1x128xf32>
    %518 = arith.negf %517 : vector<1x128xf32>
    %519 = math.exp %518 : vector<1x128xf32>
    %cst_151 = arith.constant 1.000000e+00 : f32
    %520 = vector.broadcast %cst_151 : f32 to vector<1x128xf32>
    %521 = arith.addf %520, %519 : vector<1x128xf32>
    %522 = arith.divf %520, %521 : vector<1x128xf32>
    %523 = vector.extract_strided_slice %522 {offsets = [0, 0], sizes = [1, 16], strides = [1, 1]} : vector<1x128xf32> to vector<1x16xf32>
    %524 = vector.extract_strided_slice %522 {offsets = [0, 16], sizes = [1, 16], strides = [1, 1]} : vector<1x128xf32> to vector<1x16xf32>
    %525 = vector.extract_strided_slice %514 {offsets = [0, 32], sizes = [1, 16], strides = [1, 1]} : vector<1x128xf32> to vector<1x16xf32>
    %526 = vector.extract_strided_slice %516 {offsets = [0, 32], sizes = [1, 16], strides = [1, 1]} : vector<1x128xf32> to vector<1x16xf32>
    %527 = arith.mulf %523, %526 : vector<1x16xf32>
    %528 = arith.addf %525, %527 : vector<1x16xf32>
    %529 = math.tanh %528 : vector<1x16xf32>
    %cst_152 = arith.constant 1.000000e+00 : f32
    %530 = vector.broadcast %cst_152 : f32 to vector<1x16xf32>
    %531 = arith.subf %530, %524 : vector<1x16xf32>
    %532 = arith.mulf %531, %529 : vector<1x16xf32>
    %533 = arith.mulf %524, %510 : vector<1x16xf32>
    %534 = arith.addf %532, %533 : vector<1x16xf32>
    %535 = arith.index_cast %c4_i32_148 : i32 to index
    %c0_153 = arith.constant 0 : index
    %536 = vector.load %arg24[%535, %c0_153] : memref<16x16xf32, #tpu.memory_space<vmem>>, vector<1x16xf32>
    tpu.vector_store %arg24[%535, %c0_153], %534 {strides = array<i32>} : memref<16x16xf32, #tpu.memory_space<vmem>>, vector<1x16xf32>,
    %c5_i32_154 = arith.constant 5 : i32
    %537 = arith.index_cast %c5_i32_154 : i32 to index
    %c0_155 = arith.constant 0 : index
    %538 = vector.load %arg22[%537, %c0_155] : memref<16x128xf32, #tpu.memory_space<vmem>>, vector<1x128xf32>
    %cst_156 = arith.constant dense<0.000000e+00> : vector<1x128xf32>
    %539 = tpu.matmul %534, %414, %cst_156 {dimension_numbers = #tpu.dot_dimension_numbers<[1], [0], [0], [1], [0, 0, 1, 1], [], []>} : vector<1x16xf32>, vector<16x128xf32>, vector<1x128xf32> -> vector<1x128xf32>
    %540 = arith.addf %539, %415 : vector<1x128xf32>
    %541 = arith.addf %538, %540 : vector<1x128xf32>
    %542 = arith.negf %541 : vector<1x128xf32>
    %543 = math.exp %542 : vector<1x128xf32>
    %cst_157 = arith.constant 1.000000e+00 : f32
    %544 = vector.broadcast %cst_157 : f32 to vector<1x128xf32>
    %545 = arith.addf %544, %543 : vector<1x128xf32>
    %546 = arith.divf %544, %545 : vector<1x128xf32>
    %547 = vector.extract_strided_slice %546 {offsets = [0, 0], sizes = [1, 16], strides = [1, 1]} : vector<1x128xf32> to vector<1x16xf32>
    %548 = vector.extract_strided_slice %546 {offsets = [0, 16], sizes = [1, 16], strides = [1, 1]} : vector<1x128xf32> to vector<1x16xf32>
    %549 = vector.extract_strided_slice %538 {offsets = [0, 32], sizes = [1, 16], strides = [1, 1]} : vector<1x128xf32> to vector<1x16xf32>
    %550 = vector.extract_strided_slice %540 {offsets = [0, 32], sizes = [1, 16], strides = [1, 1]} : vector<1x128xf32> to vector<1x16xf32>
    %551 = arith.mulf %547, %550 : vector<1x16xf32>
    %552 = arith.addf %549, %551 : vector<1x16xf32>
    %553 = math.tanh %552 : vector<1x16xf32>
    %cst_158 = arith.constant 1.000000e+00 : f32
    %554 = vector.broadcast %cst_158 : f32 to vector<1x16xf32>
    %555 = arith.subf %554, %548 : vector<1x16xf32>
    %556 = arith.mulf %555, %553 : vector<1x16xf32>
    %557 = arith.mulf %548, %534 : vector<1x16xf32>
    %558 = arith.addf %556, %557 : vector<1x16xf32>
    %559 = arith.index_cast %c5_i32_154 : i32 to index
    %c0_159 = arith.constant 0 : index
    %560 = vector.load %arg24[%559, %c0_159] : memref<16x16xf32, #tpu.memory_space<vmem>>, vector<1x16xf32>
    tpu.vector_store %arg24[%559, %c0_159], %558 {strides = array<i32>} : memref<16x16xf32, #tpu.memory_space<vmem>>, vector<1x16xf32>,
    %c6_i32_160 = arith.constant 6 : i32
    %561 = arith.index_cast %c6_i32_160 : i32 to index
    %c0_161 = arith.constant 0 : index
    %562 = vector.load %arg22[%561, %c0_161] : memref<16x128xf32, #tpu.memory_space<vmem>>, vector<1x128xf32>
    %cst_162 = arith.constant dense<0.000000e+00> : vector<1x128xf32>
    %563 = tpu.matmul %558, %414, %cst_162 {dimension_numbers = #tpu.dot_dimension_numbers<[1], [0], [0], [1], [0, 0, 1, 1], [], []>} : vector<1x16xf32>, vector<16x128xf32>, vector<1x128xf32> -> vector<1x128xf32>
    %564 = arith.addf %563, %415 : vector<1x128xf32>
    %565 = arith.addf %562, %564 : vector<1x128xf32>
    %566 = arith.negf %565 : vector<1x128xf32>
    %567 = math.exp %566 : vector<1x128xf32>
    %cst_163 = arith.constant 1.000000e+00 : f32
    %568 = vector.broadcast %cst_163 : f32 to vector<1x128xf32>
    %569 = arith.addf %568, %567 : vector<1x128xf32>
    %570 = arith.divf %568, %569 : vector<1x128xf32>
    %571 = vector.extract_strided_slice %570 {offsets = [0, 0], sizes = [1, 16], strides = [1, 1]} : vector<1x128xf32> to vector<1x16xf32>
    %572 = vector.extract_strided_slice %570 {offsets = [0, 16], sizes = [1, 16], strides = [1, 1]} : vector<1x128xf32> to vector<1x16xf32>
    %573 = vector.extract_strided_slice %562 {offsets = [0, 32], sizes = [1, 16], strides = [1, 1]} : vector<1x128xf32> to vector<1x16xf32>
    %574 = vector.extract_strided_slice %564 {offsets = [0, 32], sizes = [1, 16], strides = [1, 1]} : vector<1x128xf32> to vector<1x16xf32>
    %575 = arith.mulf %571, %574 : vector<1x16xf32>
    %576 = arith.addf %573, %575 : vector<1x16xf32>
    %577 = math.tanh %576 : vector<1x16xf32>
    %cst_164 = arith.constant 1.000000e+00 : f32
    %578 = vector.broadcast %cst_164 : f32 to vector<1x16xf32>
    %579 = arith.subf %578, %572 : vector<1x16xf32>
    %580 = arith.mulf %579, %577 : vector<1x16xf32>
    %581 = arith.mulf %572, %558 : vector<1x16xf32>
    %582 = arith.addf %580, %581 : vector<1x16xf32>
    %583 = arith.index_cast %c6_i32_160 : i32 to index
    %c0_165 = arith.constant 0 : index
    %584 = vector.load %arg24[%583, %c0_165] : memref<16x16xf32, #tpu.memory_space<vmem>>, vector<1x16xf32>
    tpu.vector_store %arg24[%583, %c0_165], %582 {strides = array<i32>} : memref<16x16xf32, #tpu.memory_space<vmem>>, vector<1x16xf32>,
    %c7_i32_166 = arith.constant 7 : i32
    %585 = arith.index_cast %c7_i32_166 : i32 to index
    %c0_167 = arith.constant 0 : index
    %586 = vector.load %arg22[%585, %c0_167] : memref<16x128xf32, #tpu.memory_space<vmem>>, vector<1x128xf32>
    %cst_168 = arith.constant dense<0.000000e+00> : vector<1x128xf32>
    %587 = tpu.matmul %582, %414, %cst_168 {dimension_numbers = #tpu.dot_dimension_numbers<[1], [0], [0], [1], [0, 0, 1, 1], [], []>} : vector<1x16xf32>, vector<16x128xf32>, vector<1x128xf32> -> vector<1x128xf32>
    %588 = arith.addf %587, %415 : vector<1x128xf32>
    %589 = arith.addf %586, %588 : vector<1x128xf32>
    %590 = arith.negf %589 : vector<1x128xf32>
    %591 = math.exp %590 : vector<1x128xf32>
    %cst_169 = arith.constant 1.000000e+00 : f32
    %592 = vector.broadcast %cst_169 : f32 to vector<1x128xf32>
    %593 = arith.addf %592, %591 : vector<1x128xf32>
    %594 = arith.divf %592, %593 : vector<1x128xf32>
    %595 = vector.extract_strided_slice %594 {offsets = [0, 0], sizes = [1, 16], strides = [1, 1]} : vector<1x128xf32> to vector<1x16xf32>
    %596 = vector.extract_strided_slice %594 {offsets = [0, 16], sizes = [1, 16], strides = [1, 1]} : vector<1x128xf32> to vector<1x16xf32>
    %597 = vector.extract_strided_slice %586 {offsets = [0, 32], sizes = [1, 16], strides = [1, 1]} : vector<1x128xf32> to vector<1x16xf32>
    %598 = vector.extract_strided_slice %588 {offsets = [0, 32], sizes = [1, 16], strides = [1, 1]} : vector<1x128xf32> to vector<1x16xf32>
    %599 = arith.mulf %595, %598 : vector<1x16xf32>
    %600 = arith.addf %597, %599 : vector<1x16xf32>
    %601 = math.tanh %600 : vector<1x16xf32>
    %cst_170 = arith.constant 1.000000e+00 : f32
    %602 = vector.broadcast %cst_170 : f32 to vector<1x16xf32>
    %603 = arith.subf %602, %596 : vector<1x16xf32>
    %604 = arith.mulf %603, %601 : vector<1x16xf32>
    %605 = arith.mulf %596, %582 : vector<1x16xf32>
    %606 = arith.addf %604, %605 : vector<1x16xf32>
    %607 = arith.index_cast %c7_i32_166 : i32 to index
    %c0_171 = arith.constant 0 : index
    %608 = vector.load %arg24[%607, %c0_171] : memref<16x16xf32, #tpu.memory_space<vmem>>, vector<1x16xf32>
    tpu.vector_store %arg24[%607, %c0_171], %606 {strides = array<i32>} : memref<16x16xf32, #tpu.memory_space<vmem>>, vector<1x16xf32>,
    %c8_i32_172 = arith.constant 8 : i32
    %609 = arith.index_cast %c8_i32_172 : i32 to index
    %c0_173 = arith.constant 0 : index
    %610 = vector.load %arg22[%609, %c0_173] : memref<16x128xf32, #tpu.memory_space<vmem>>, vector<1x128xf32>
    %cst_174 = arith.constant dense<0.000000e+00> : vector<1x128xf32>
    %611 = tpu.matmul %606, %414, %cst_174 {dimension_numbers = #tpu.dot_dimension_numbers<[1], [0], [0], [1], [0, 0, 1, 1], [], []>} : vector<1x16xf32>, vector<16x128xf32>, vector<1x128xf32> -> vector<1x128xf32>
    %612 = arith.addf %611, %415 : vector<1x128xf32>
    %613 = arith.addf %610, %612 : vector<1x128xf32>
    %614 = arith.negf %613 : vector<1x128xf32>
    %615 = math.exp %614 : vector<1x128xf32>
    %cst_175 = arith.constant 1.000000e+00 : f32
    %616 = vector.broadcast %cst_175 : f32 to vector<1x128xf32>
    %617 = arith.addf %616, %615 : vector<1x128xf32>
    %618 = arith.divf %616, %617 : vector<1x128xf32>
    %619 = vector.extract_strided_slice %618 {offsets = [0, 0], sizes = [1, 16], strides = [1, 1]} : vector<1x128xf32> to vector<1x16xf32>
    %620 = vector.extract_strided_slice %618 {offsets = [0, 16], sizes = [1, 16], strides = [1, 1]} : vector<1x128xf32> to vector<1x16xf32>
    %621 = vector.extract_strided_slice %610 {offsets = [0, 32], sizes = [1, 16], strides = [1, 1]} : vector<1x128xf32> to vector<1x16xf32>
    %622 = vector.extract_strided_slice %612 {offsets = [0, 32], sizes = [1, 16], strides = [1, 1]} : vector<1x128xf32> to vector<1x16xf32>
    %623 = arith.mulf %619, %622 : vector<1x16xf32>
    %624 = arith.addf %621, %623 : vector<1x16xf32>
    %625 = math.tanh %624 : vector<1x16xf32>
    %cst_176 = arith.constant 1.000000e+00 : f32
    %626 = vector.broadcast %cst_176 : f32 to vector<1x16xf32>
    %627 = arith.subf %626, %620 : vector<1x16xf32>
    %628 = arith.mulf %627, %625 : vector<1x16xf32>
    %629 = arith.mulf %620, %606 : vector<1x16xf32>
    %630 = arith.addf %628, %629 : vector<1x16xf32>
    %631 = arith.index_cast %c8_i32_172 : i32 to index
    %c0_177 = arith.constant 0 : index
    %632 = vector.load %arg24[%631, %c0_177] : memref<16x16xf32, #tpu.memory_space<vmem>>, vector<1x16xf32>
    tpu.vector_store %arg24[%631, %c0_177], %630 {strides = array<i32>} : memref<16x16xf32, #tpu.memory_space<vmem>>, vector<1x16xf32>,
    %c9_i32_178 = arith.constant 9 : i32
    %633 = arith.index_cast %c9_i32_178 : i32 to index
    %c0_179 = arith.constant 0 : index
    %634 = vector.load %arg22[%633, %c0_179] : memref<16x128xf32, #tpu.memory_space<vmem>>, vector<1x128xf32>
    %cst_180 = arith.constant dense<0.000000e+00> : vector<1x128xf32>
    %635 = tpu.matmul %630, %414, %cst_180 {dimension_numbers = #tpu.dot_dimension_numbers<[1], [0], [0], [1], [0, 0, 1, 1], [], []>} : vector<1x16xf32>, vector<16x128xf32>, vector<1x128xf32> -> vector<1x128xf32>
    %636 = arith.addf %635, %415 : vector<1x128xf32>
    %637 = arith.addf %634, %636 : vector<1x128xf32>
    %638 = arith.negf %637 : vector<1x128xf32>
    %639 = math.exp %638 : vector<1x128xf32>
    %cst_181 = arith.constant 1.000000e+00 : f32
    %640 = vector.broadcast %cst_181 : f32 to vector<1x128xf32>
    %641 = arith.addf %640, %639 : vector<1x128xf32>
    %642 = arith.divf %640, %641 : vector<1x128xf32>
    %643 = vector.extract_strided_slice %642 {offsets = [0, 0], sizes = [1, 16], strides = [1, 1]} : vector<1x128xf32> to vector<1x16xf32>
    %644 = vector.extract_strided_slice %642 {offsets = [0, 16], sizes = [1, 16], strides = [1, 1]} : vector<1x128xf32> to vector<1x16xf32>
    %645 = vector.extract_strided_slice %634 {offsets = [0, 32], sizes = [1, 16], strides = [1, 1]} : vector<1x128xf32> to vector<1x16xf32>
    %646 = vector.extract_strided_slice %636 {offsets = [0, 32], sizes = [1, 16], strides = [1, 1]} : vector<1x128xf32> to vector<1x16xf32>
    %647 = arith.mulf %643, %646 : vector<1x16xf32>
    %648 = arith.addf %645, %647 : vector<1x16xf32>
    %649 = math.tanh %648 : vector<1x16xf32>
    %cst_182 = arith.constant 1.000000e+00 : f32
    %650 = vector.broadcast %cst_182 : f32 to vector<1x16xf32>
    %651 = arith.subf %650, %644 : vector<1x16xf32>
    %652 = arith.mulf %651, %649 : vector<1x16xf32>
    %653 = arith.mulf %644, %630 : vector<1x16xf32>
    %654 = arith.addf %652, %653 : vector<1x16xf32>
    %655 = arith.index_cast %c9_i32_178 : i32 to index
    %c0_183 = arith.constant 0 : index
    %656 = vector.load %arg24[%655, %c0_183] : memref<16x16xf32, #tpu.memory_space<vmem>>, vector<1x16xf32>
    tpu.vector_store %arg24[%655, %c0_183], %654 {strides = array<i32>} : memref<16x16xf32, #tpu.memory_space<vmem>>, vector<1x16xf32>,
    %c10_i32_184 = arith.constant 10 : i32
    %657 = arith.index_cast %c10_i32_184 : i32 to index
    %c0_185 = arith.constant 0 : index
    %658 = vector.load %arg22[%657, %c0_185] : memref<16x128xf32, #tpu.memory_space<vmem>>, vector<1x128xf32>
    %cst_186 = arith.constant dense<0.000000e+00> : vector<1x128xf32>
    %659 = tpu.matmul %654, %414, %cst_186 {dimension_numbers = #tpu.dot_dimension_numbers<[1], [0], [0], [1], [0, 0, 1, 1], [], []>} : vector<1x16xf32>, vector<16x128xf32>, vector<1x128xf32> -> vector<1x128xf32>
    %660 = arith.addf %659, %415 : vector<1x128xf32>
    %661 = arith.addf %658, %660 : vector<1x128xf32>
    %662 = arith.negf %661 : vector<1x128xf32>
    %663 = math.exp %662 : vector<1x128xf32>
    %cst_187 = arith.constant 1.000000e+00 : f32
    %664 = vector.broadcast %cst_187 : f32 to vector<1x128xf32>
    %665 = arith.addf %664, %663 : vector<1x128xf32>
    %666 = arith.divf %664, %665 : vector<1x128xf32>
    %667 = vector.extract_strided_slice %666 {offsets = [0, 0], sizes = [1, 16], strides = [1, 1]} : vector<1x128xf32> to vector<1x16xf32>
    %668 = vector.extract_strided_slice %666 {offsets = [0, 16], sizes = [1, 16], strides = [1, 1]} : vector<1x128xf32> to vector<1x16xf32>
    %669 = vector.extract_strided_slice %658 {offsets = [0, 32], sizes = [1, 16], strides = [1, 1]} : vector<1x128xf32> to vector<1x16xf32>
    %670 = vector.extract_strided_slice %660 {offsets = [0, 32], sizes = [1, 16], strides = [1, 1]} : vector<1x128xf32> to vector<1x16xf32>
    %671 = arith.mulf %667, %670 : vector<1x16xf32>
    %672 = arith.addf %669, %671 : vector<1x16xf32>
    %673 = math.tanh %672 : vector<1x16xf32>
    %cst_188 = arith.constant 1.000000e+00 : f32
    %674 = vector.broadcast %cst_188 : f32 to vector<1x16xf32>
    %675 = arith.subf %674, %668 : vector<1x16xf32>
    %676 = arith.mulf %675, %673 : vector<1x16xf32>
    %677 = arith.mulf %668, %654 : vector<1x16xf32>
    %678 = arith.addf %676, %677 : vector<1x16xf32>
    %679 = arith.index_cast %c10_i32_184 : i32 to index
    %c0_189 = arith.constant 0 : index
    %680 = vector.load %arg24[%679, %c0_189] : memref<16x16xf32, #tpu.memory_space<vmem>>, vector<1x16xf32>
    tpu.vector_store %arg24[%679, %c0_189], %678 {strides = array<i32>} : memref<16x16xf32, #tpu.memory_space<vmem>>, vector<1x16xf32>,
    %c11_i32_190 = arith.constant 11 : i32
    %681 = arith.index_cast %c11_i32_190 : i32 to index
    %c0_191 = arith.constant 0 : index
    %682 = vector.load %arg22[%681, %c0_191] : memref<16x128xf32, #tpu.memory_space<vmem>>, vector<1x128xf32>
    %cst_192 = arith.constant dense<0.000000e+00> : vector<1x128xf32>
    %683 = tpu.matmul %678, %414, %cst_192 {dimension_numbers = #tpu.dot_dimension_numbers<[1], [0], [0], [1], [0, 0, 1, 1], [], []>} : vector<1x16xf32>, vector<16x128xf32>, vector<1x128xf32> -> vector<1x128xf32>
    %684 = arith.addf %683, %415 : vector<1x128xf32>
    %685 = arith.addf %682, %684 : vector<1x128xf32>
    %686 = arith.negf %685 : vector<1x128xf32>
    %687 = math.exp %686 : vector<1x128xf32>
    %cst_193 = arith.constant 1.000000e+00 : f32
    %688 = vector.broadcast %cst_193 : f32 to vector<1x128xf32>
    %689 = arith.addf %688, %687 : vector<1x128xf32>
    %690 = arith.divf %688, %689 : vector<1x128xf32>
    %691 = vector.extract_strided_slice %690 {offsets = [0, 0], sizes = [1, 16], strides = [1, 1]} : vector<1x128xf32> to vector<1x16xf32>
    %692 = vector.extract_strided_slice %690 {offsets = [0, 16], sizes = [1, 16], strides = [1, 1]} : vector<1x128xf32> to vector<1x16xf32>
    %693 = vector.extract_strided_slice %682 {offsets = [0, 32], sizes = [1, 16], strides = [1, 1]} : vector<1x128xf32> to vector<1x16xf32>
    %694 = vector.extract_strided_slice %684 {offsets = [0, 32], sizes = [1, 16], strides = [1, 1]} : vector<1x128xf32> to vector<1x16xf32>
    %695 = arith.mulf %691, %694 : vector<1x16xf32>
    %696 = arith.addf %693, %695 : vector<1x16xf32>
    %697 = math.tanh %696 : vector<1x16xf32>
    %cst_194 = arith.constant 1.000000e+00 : f32
    %698 = vector.broadcast %cst_194 : f32 to vector<1x16xf32>
    %699 = arith.subf %698, %692 : vector<1x16xf32>
    %700 = arith.mulf %699, %697 : vector<1x16xf32>
    %701 = arith.mulf %692, %678 : vector<1x16xf32>
    %702 = arith.addf %700, %701 : vector<1x16xf32>
    %703 = arith.index_cast %c11_i32_190 : i32 to index
    %c0_195 = arith.constant 0 : index
    %704 = vector.load %arg24[%703, %c0_195] : memref<16x16xf32, #tpu.memory_space<vmem>>, vector<1x16xf32>
    tpu.vector_store %arg24[%703, %c0_195], %702 {strides = array<i32>} : memref<16x16xf32, #tpu.memory_space<vmem>>, vector<1x16xf32>,
    %c12_i32_196 = arith.constant 12 : i32
    %705 = arith.index_cast %c12_i32_196 : i32 to index
    %c0_197 = arith.constant 0 : index
    %706 = vector.load %arg22[%705, %c0_197] : memref<16x128xf32, #tpu.memory_space<vmem>>, vector<1x128xf32>
    %cst_198 = arith.constant dense<0.000000e+00> : vector<1x128xf32>
    %707 = tpu.matmul %702, %414, %cst_198 {dimension_numbers = #tpu.dot_dimension_numbers<[1], [0], [0], [1], [0, 0, 1, 1], [], []>} : vector<1x16xf32>, vector<16x128xf32>, vector<1x128xf32> -> vector<1x128xf32>
    %708 = arith.addf %707, %415 : vector<1x128xf32>
    %709 = arith.addf %706, %708 : vector<1x128xf32>
    %710 = arith.negf %709 : vector<1x128xf32>
    %711 = math.exp %710 : vector<1x128xf32>
    %cst_199 = arith.constant 1.000000e+00 : f32
    %712 = vector.broadcast %cst_199 : f32 to vector<1x128xf32>
    %713 = arith.addf %712, %711 : vector<1x128xf32>
    %714 = arith.divf %712, %713 : vector<1x128xf32>
    %715 = vector.extract_strided_slice %714 {offsets = [0, 0], sizes = [1, 16], strides = [1, 1]} : vector<1x128xf32> to vector<1x16xf32>
    %716 = vector.extract_strided_slice %714 {offsets = [0, 16], sizes = [1, 16], strides = [1, 1]} : vector<1x128xf32> to vector<1x16xf32>
    %717 = vector.extract_strided_slice %706 {offsets = [0, 32], sizes = [1, 16], strides = [1, 1]} : vector<1x128xf32> to vector<1x16xf32>
    %718 = vector.extract_strided_slice %708 {offsets = [0, 32], sizes = [1, 16], strides = [1, 1]} : vector<1x128xf32> to vector<1x16xf32>
    %719 = arith.mulf %715, %718 : vector<1x16xf32>
    %720 = arith.addf %717, %719 : vector<1x16xf32>
    %721 = math.tanh %720 : vector<1x16xf32>
    %cst_200 = arith.constant 1.000000e+00 : f32
    %722 = vector.broadcast %cst_200 : f32 to vector<1x16xf32>
    %723 = arith.subf %722, %716 : vector<1x16xf32>
    %724 = arith.mulf %723, %721 : vector<1x16xf32>
    %725 = arith.mulf %716, %702 : vector<1x16xf32>
    %726 = arith.addf %724, %725 : vector<1x16xf32>
    %727 = arith.index_cast %c12_i32_196 : i32 to index
    %c0_201 = arith.constant 0 : index
    %728 = vector.load %arg24[%727, %c0_201] : memref<16x16xf32, #tpu.memory_space<vmem>>, vector<1x16xf32>
    tpu.vector_store %arg24[%727, %c0_201], %726 {strides = array<i32>} : memref<16x16xf32, #tpu.memory_space<vmem>>, vector<1x16xf32>,
    %c13_i32_202 = arith.constant 13 : i32
    %729 = arith.index_cast %c13_i32_202 : i32 to index
    %c0_203 = arith.constant 0 : index
    %730 = vector.load %arg22[%729, %c0_203] : memref<16x128xf32, #tpu.memory_space<vmem>>, vector<1x128xf32>
    %cst_204 = arith.constant dense<0.000000e+00> : vector<1x128xf32>
    %731 = tpu.matmul %726, %414, %cst_204 {dimension_numbers = #tpu.dot_dimension_numbers<[1], [0], [0], [1], [0, 0, 1, 1], [], []>} : vector<1x16xf32>, vector<16x128xf32>, vector<1x128xf32> -> vector<1x128xf32>
    %732 = arith.addf %731, %415 : vector<1x128xf32>
    %733 = arith.addf %730, %732 : vector<1x128xf32>
    %734 = arith.negf %733 : vector<1x128xf32>
    %735 = math.exp %734 : vector<1x128xf32>
    %cst_205 = arith.constant 1.000000e+00 : f32
    %736 = vector.broadcast %cst_205 : f32 to vector<1x128xf32>
    %737 = arith.addf %736, %735 : vector<1x128xf32>
    %738 = arith.divf %736, %737 : vector<1x128xf32>
    %739 = vector.extract_strided_slice %738 {offsets = [0, 0], sizes = [1, 16], strides = [1, 1]} : vector<1x128xf32> to vector<1x16xf32>
    %740 = vector.extract_strided_slice %738 {offsets = [0, 16], sizes = [1, 16], strides = [1, 1]} : vector<1x128xf32> to vector<1x16xf32>
    %741 = vector.extract_strided_slice %730 {offsets = [0, 32], sizes = [1, 16], strides = [1, 1]} : vector<1x128xf32> to vector<1x16xf32>
    %742 = vector.extract_strided_slice %732 {offsets = [0, 32], sizes = [1, 16], strides = [1, 1]} : vector<1x128xf32> to vector<1x16xf32>
    %743 = arith.mulf %739, %742 : vector<1x16xf32>
    %744 = arith.addf %741, %743 : vector<1x16xf32>
    %745 = math.tanh %744 : vector<1x16xf32>
    %cst_206 = arith.constant 1.000000e+00 : f32
    %746 = vector.broadcast %cst_206 : f32 to vector<1x16xf32>
    %747 = arith.subf %746, %740 : vector<1x16xf32>
    %748 = arith.mulf %747, %745 : vector<1x16xf32>
    %749 = arith.mulf %740, %726 : vector<1x16xf32>
    %750 = arith.addf %748, %749 : vector<1x16xf32>
    %751 = arith.index_cast %c13_i32_202 : i32 to index
    %c0_207 = arith.constant 0 : index
    %752 = vector.load %arg24[%751, %c0_207] : memref<16x16xf32, #tpu.memory_space<vmem>>, vector<1x16xf32>
    tpu.vector_store %arg24[%751, %c0_207], %750 {strides = array<i32>} : memref<16x16xf32, #tpu.memory_space<vmem>>, vector<1x16xf32>,
    %c14_i32_208 = arith.constant 14 : i32
    %753 = arith.index_cast %c14_i32_208 : i32 to index
    %c0_209 = arith.constant 0 : index
    %754 = vector.load %arg22[%753, %c0_209] : memref<16x128xf32, #tpu.memory_space<vmem>>, vector<1x128xf32>
    %cst_210 = arith.constant dense<0.000000e+00> : vector<1x128xf32>
    %755 = tpu.matmul %750, %414, %cst_210 {dimension_numbers = #tpu.dot_dimension_numbers<[1], [0], [0], [1], [0, 0, 1, 1], [], []>} : vector<1x16xf32>, vector<16x128xf32>, vector<1x128xf32> -> vector<1x128xf32>
    %756 = arith.addf %755, %415 : vector<1x128xf32>
    %757 = arith.addf %754, %756 : vector<1x128xf32>
    %758 = arith.negf %757 : vector<1x128xf32>
    %759 = math.exp %758 : vector<1x128xf32>
    %cst_211 = arith.constant 1.000000e+00 : f32
    %760 = vector.broadcast %cst_211 : f32 to vector<1x128xf32>
    %761 = arith.addf %760, %759 : vector<1x128xf32>
    %762 = arith.divf %760, %761 : vector<1x128xf32>
    %763 = vector.extract_strided_slice %762 {offsets = [0, 0], sizes = [1, 16], strides = [1, 1]} : vector<1x128xf32> to vector<1x16xf32>
    %764 = vector.extract_strided_slice %762 {offsets = [0, 16], sizes = [1, 16], strides = [1, 1]} : vector<1x128xf32> to vector<1x16xf32>
    %765 = vector.extract_strided_slice %754 {offsets = [0, 32], sizes = [1, 16], strides = [1, 1]} : vector<1x128xf32> to vector<1x16xf32>
    %766 = vector.extract_strided_slice %756 {offsets = [0, 32], sizes = [1, 16], strides = [1, 1]} : vector<1x128xf32> to vector<1x16xf32>
    %767 = arith.mulf %763, %766 : vector<1x16xf32>
    %768 = arith.addf %765, %767 : vector<1x16xf32>
    %769 = math.tanh %768 : vector<1x16xf32>
    %cst_212 = arith.constant 1.000000e+00 : f32
    %770 = vector.broadcast %cst_212 : f32 to vector<1x16xf32>
    %771 = arith.subf %770, %764 : vector<1x16xf32>
    %772 = arith.mulf %771, %769 : vector<1x16xf32>
    %773 = arith.mulf %764, %750 : vector<1x16xf32>
    %774 = arith.addf %772, %773 : vector<1x16xf32>
    %775 = arith.index_cast %c14_i32_208 : i32 to index
    %c0_213 = arith.constant 0 : index
    %776 = vector.load %arg24[%775, %c0_213] : memref<16x16xf32, #tpu.memory_space<vmem>>, vector<1x16xf32>
    tpu.vector_store %arg24[%775, %c0_213], %774 {strides = array<i32>} : memref<16x16xf32, #tpu.memory_space<vmem>>, vector<1x16xf32>,
    %c15_i32_214 = arith.constant 15 : i32
    %777 = arith.index_cast %c15_i32_214 : i32 to index
    %c0_215 = arith.constant 0 : index
    %778 = vector.load %arg22[%777, %c0_215] : memref<16x128xf32, #tpu.memory_space<vmem>>, vector<1x128xf32>
    %cst_216 = arith.constant dense<0.000000e+00> : vector<1x128xf32>
    %779 = tpu.matmul %774, %414, %cst_216 {dimension_numbers = #tpu.dot_dimension_numbers<[1], [0], [0], [1], [0, 0, 1, 1], [], []>} : vector<1x16xf32>, vector<16x128xf32>, vector<1x128xf32> -> vector<1x128xf32>
    %780 = arith.addf %779, %415 : vector<1x128xf32>
    %781 = arith.addf %778, %780 : vector<1x128xf32>
    %782 = arith.negf %781 : vector<1x128xf32>
    %783 = math.exp %782 : vector<1x128xf32>
    %cst_217 = arith.constant 1.000000e+00 : f32
    %784 = vector.broadcast %cst_217 : f32 to vector<1x128xf32>
    %785 = arith.addf %784, %783 : vector<1x128xf32>
    %786 = arith.divf %784, %785 : vector<1x128xf32>
    %787 = vector.extract_strided_slice %786 {offsets = [0, 0], sizes = [1, 16], strides = [1, 1]} : vector<1x128xf32> to vector<1x16xf32>
    %788 = vector.extract_strided_slice %786 {offsets = [0, 16], sizes = [1, 16], strides = [1, 1]} : vector<1x128xf32> to vector<1x16xf32>
    %789 = vector.extract_strided_slice %778 {offsets = [0, 32], sizes = [1, 16], strides = [1, 1]} : vector<1x128xf32> to vector<1x16xf32>
    %790 = vector.extract_strided_slice %780 {offsets = [0, 32], sizes = [1, 16], strides = [1, 1]} : vector<1x128xf32> to vector<1x16xf32>
    %791 = arith.mulf %787, %790 : vector<1x16xf32>
    %792 = arith.addf %789, %791 : vector<1x16xf32>
    %793 = math.tanh %792 : vector<1x16xf32>
    %cst_218 = arith.constant 1.000000e+00 : f32
    %794 = vector.broadcast %cst_218 : f32 to vector<1x16xf32>
    %795 = arith.subf %794, %788 : vector<1x16xf32>
    %796 = arith.mulf %795, %793 : vector<1x16xf32>
    %797 = arith.mulf %788, %774 : vector<1x16xf32>
    %798 = arith.addf %796, %797 : vector<1x16xf32>
    %799 = arith.index_cast %c15_i32_214 : i32 to index
    %c0_219 = arith.constant 0 : index
    %800 = vector.load %arg24[%799, %c0_219] : memref<16x16xf32, #tpu.memory_space<vmem>>, vector<1x16xf32>
    tpu.vector_store %arg24[%799, %c0_219], %798 {strides = array<i32>} : memref<16x16xf32, #tpu.memory_space<vmem>>, vector<1x16xf32>,
    %c16_i32_220 = arith.constant 16 : i32
    %c0_221 = arith.constant 0 : index
    %c0_222 = arith.constant 0 : index
    %801 = vector.load %arg27[%c0_221, %c0_222] : memref<1x16xf32, #tpu.memory_space<vmem>>, vector<1x16xf32>
    tpu.vector_store %arg27[%c0_221, %c0_222], %798 {strides = array<i32>} : memref<1x16xf32, #tpu.memory_space<vmem>>, vector<1x16xf32>,
    %c0_223 = arith.constant 0 : index
    %c0_224 = arith.constant 0 : index
    %802 = vector.load %arg21[%c0_223, %c0_224] : memref<16x128xf32, #tpu.memory_space<vmem>>, vector<16x128xf32>
    %c0_225 = arith.constant 0 : index
    %c0_226 = arith.constant 0 : index
    %803 = vector.load %arg12[%c0_225, %c0_226] : memref<128x128xf32, #tpu.memory_space<vmem>>, vector<128x128xf32>
    %cst_227 = arith.constant dense<0.000000e+00> : vector<16x128xf32>
    %804 = tpu.matmul %802, %803, %cst_227 {dimension_numbers = #tpu.dot_dimension_numbers<[1], [0], [0], [1], [0, 0, 1, 1], [], []>} : vector<16x128xf32>, vector<128x128xf32>, vector<16x128xf32> -> vector<16x128xf32>
    %c0_228 = arith.constant 0 : index
    %c0_229 = arith.constant 0 : index
    %805 = vector.load %arg24[%c0_228, %c0_229] : memref<16x16xf32, #tpu.memory_space<vmem>>, vector<16x16xf32>
    %c0_230 = arith.constant 0 : index
    %c0_231 = arith.constant 0 : index
    %806 = vector.load %arg13[%c0_230, %c0_231] : memref<16x128xf32, #tpu.memory_space<vmem>>, vector<16x128xf32>
    %cst_232 = arith.constant dense<0.000000e+00> : vector<16x128xf32>
    %807 = tpu.matmul %805, %806, %cst_232 {dimension_numbers = #tpu.dot_dimension_numbers<[1], [0], [0], [1], [0, 0, 1, 1], [], []>} : vector<16x16xf32>, vector<16x128xf32>, vector<16x128xf32> -> vector<16x128xf32>
    %808 = arith.addf %804, %807 : vector<16x128xf32>
    %c0_233 = arith.constant 0 : index
    %c0_234 = arith.constant 0 : index
    %809 = vector.load %arg23[%c0_233, %c0_234] : memref<16x16xf32, #tpu.memory_space<vmem>>, vector<16x16xf32>
    %c0_235 = arith.constant 0 : index
    %c0_236 = arith.constant 0 : index
    %810 = vector.load %arg14[%c0_235, %c0_236] : memref<16x128xf32, #tpu.memory_space<vmem>>, vector<16x128xf32>
    %cst_237 = arith.constant dense<0.000000e+00> : vector<16x128xf32>
    %811 = tpu.matmul %809, %810, %cst_237 {dimension_numbers = #tpu.dot_dimension_numbers<[1], [0], [0], [1], [0, 0, 1, 1], [], []>} : vector<16x16xf32>, vector<16x128xf32>, vector<16x128xf32> -> vector<16x128xf32>
    %812 = arith.addf %808, %811 : vector<16x128xf32>
    %c0_238 = arith.constant 0 : index
    %c0_239 = arith.constant 0 : index
    %813 = vector.load %arg16[%c0_238, %c0_239] : memref<1x128xf32, #tpu.memory_space<vmem>>, vector<1x128xf32>
    %814 = vector.broadcast %813 : vector<1x128xf32> to vector<16x128xf32>
    %815 = arith.addf %812, %814 : vector<16x128xf32>
    %c0_240 = arith.constant 0 : index
    %c0_241 = arith.constant 0 : index
    %816 = vector.load %arg22[%c0_240, %c0_241] : memref<16x128xf32, #tpu.memory_space<vmem>>, vector<16x128xf32>
    tpu.vector_store %arg22[%c0_240, %c0_241], %815 {strides = array<i32>} : memref<16x128xf32, #tpu.memory_space<vmem>>, vector<16x128xf32>,
    %c0_242 = arith.constant 0 : index
    %c0_243 = arith.constant 0 : index
    %817 = vector.load %arg15[%c0_242, %c0_243] : memref<32x128xf32, #tpu.memory_space<vmem>>, vector<32x128xf32>
    %c0_244 = arith.constant 0 : index
    %c0_245 = arith.constant 0 : index
    %818 = vector.load %arg17[%c0_244, %c0_245] : memref<1x128xf32, #tpu.memory_space<vmem>>, vector<1x128xf32>
    %c0_246 = arith.constant 0 : index
    %c0_247 = arith.constant 0 : index
    %819 = vector.load %arg28[%c0_246, %c0_247] : memref<1x32xf32, #tpu.memory_space<vmem>>, vector<1x32xf32>
    %c0_i32_248 = arith.constant 0 : i32
    %820 = arith.index_cast %c0_i32_248 : i32 to index
    %c0_249 = arith.constant 0 : index
    %821 = vector.load %arg22[%820, %c0_249] : memref<16x128xf32, #tpu.memory_space<vmem>>, vector<1x128xf32>
    %cst_250 = arith.constant dense<0.000000e+00> : vector<1x128xf32>
    %822 = tpu.matmul %819, %817, %cst_250 {dimension_numbers = #tpu.dot_dimension_numbers<[1], [0], [0], [1], [0, 0, 1, 1], [], []>} : vector<1x32xf32>, vector<32x128xf32>, vector<1x128xf32> -> vector<1x128xf32>
    %823 = arith.addf %822, %818 : vector<1x128xf32>
    %824 = arith.addf %821, %823 : vector<1x128xf32>
    %825 = arith.negf %824 : vector<1x128xf32>
    %826 = math.exp %825 : vector<1x128xf32>
    %cst_251 = arith.constant 1.000000e+00 : f32
    %827 = vector.broadcast %cst_251 : f32 to vector<1x128xf32>
    %828 = arith.addf %827, %826 : vector<1x128xf32>
    %829 = arith.divf %827, %828 : vector<1x128xf32>
    %830 = vector.extract_strided_slice %829 {offsets = [0, 0], sizes = [1, 32], strides = [1, 1]} : vector<1x128xf32> to vector<1x32xf32>
    %831 = vector.extract_strided_slice %829 {offsets = [0, 32], sizes = [1, 32], strides = [1, 1]} : vector<1x128xf32> to vector<1x32xf32>
    %832 = vector.extract_strided_slice %821 {offsets = [0, 64], sizes = [1, 32], strides = [1, 1]} : vector<1x128xf32> to vector<1x32xf32>
    %833 = vector.extract_strided_slice %823 {offsets = [0, 64], sizes = [1, 32], strides = [1, 1]} : vector<1x128xf32> to vector<1x32xf32>
    %834 = arith.mulf %830, %833 : vector<1x32xf32>
    %835 = arith.addf %832, %834 : vector<1x32xf32>
    %836 = math.tanh %835 : vector<1x32xf32>
    %cst_252 = arith.constant 1.000000e+00 : f32
    %837 = vector.broadcast %cst_252 : f32 to vector<1x32xf32>
    %838 = arith.subf %837, %831 : vector<1x32xf32>
    %839 = arith.mulf %838, %836 : vector<1x32xf32>
    %840 = arith.mulf %831, %819 : vector<1x32xf32>
    %841 = arith.addf %839, %840 : vector<1x32xf32>
    %842 = arith.index_cast %c0_i32_248 : i32 to index
    %c0_253 = arith.constant 0 : index
    %843 = vector.load %arg25[%842, %c0_253] : memref<16x32xf32, #tpu.memory_space<vmem>>, vector<1x32xf32>
    tpu.vector_store %arg25[%842, %c0_253], %841 {strides = array<i32>} : memref<16x32xf32, #tpu.memory_space<vmem>>, vector<1x32xf32>,
    %c1_i32_254 = arith.constant 1 : i32
    %844 = arith.index_cast %c1_i32_254 : i32 to index
    %c0_255 = arith.constant 0 : index
    %845 = vector.load %arg22[%844, %c0_255] : memref<16x128xf32, #tpu.memory_space<vmem>>, vector<1x128xf32>
    %cst_256 = arith.constant dense<0.000000e+00> : vector<1x128xf32>
    %846 = tpu.matmul %841, %817, %cst_256 {dimension_numbers = #tpu.dot_dimension_numbers<[1], [0], [0], [1], [0, 0, 1, 1], [], []>} : vector<1x32xf32>, vector<32x128xf32>, vector<1x128xf32> -> vector<1x128xf32>
    %847 = arith.addf %846, %818 : vector<1x128xf32>
    %848 = arith.addf %845, %847 : vector<1x128xf32>
    %849 = arith.negf %848 : vector<1x128xf32>
    %850 = math.exp %849 : vector<1x128xf32>
    %cst_257 = arith.constant 1.000000e+00 : f32
    %851 = vector.broadcast %cst_257 : f32 to vector<1x128xf32>
    %852 = arith.addf %851, %850 : vector<1x128xf32>
    %853 = arith.divf %851, %852 : vector<1x128xf32>
    %854 = vector.extract_strided_slice %853 {offsets = [0, 0], sizes = [1, 32], strides = [1, 1]} : vector<1x128xf32> to vector<1x32xf32>
    %855 = vector.extract_strided_slice %853 {offsets = [0, 32], sizes = [1, 32], strides = [1, 1]} : vector<1x128xf32> to vector<1x32xf32>
    %856 = vector.extract_strided_slice %845 {offsets = [0, 64], sizes = [1, 32], strides = [1, 1]} : vector<1x128xf32> to vector<1x32xf32>
    %857 = vector.extract_strided_slice %847 {offsets = [0, 64], sizes = [1, 32], strides = [1, 1]} : vector<1x128xf32> to vector<1x32xf32>
    %858 = arith.mulf %854, %857 : vector<1x32xf32>
    %859 = arith.addf %856, %858 : vector<1x32xf32>
    %860 = math.tanh %859 : vector<1x32xf32>
    %cst_258 = arith.constant 1.000000e+00 : f32
    %861 = vector.broadcast %cst_258 : f32 to vector<1x32xf32>
    %862 = arith.subf %861, %855 : vector<1x32xf32>
    %863 = arith.mulf %862, %860 : vector<1x32xf32>
    %864 = arith.mulf %855, %841 : vector<1x32xf32>
    %865 = arith.addf %863, %864 : vector<1x32xf32>
    %866 = arith.index_cast %c1_i32_254 : i32 to index
    %c0_259 = arith.constant 0 : index
    %867 = vector.load %arg25[%866, %c0_259] : memref<16x32xf32, #tpu.memory_space<vmem>>, vector<1x32xf32>
    tpu.vector_store %arg25[%866, %c0_259], %865 {strides = array<i32>} : memref<16x32xf32, #tpu.memory_space<vmem>>, vector<1x32xf32>,
    %c2_i32_260 = arith.constant 2 : i32
    %868 = arith.index_cast %c2_i32_260 : i32 to index
    %c0_261 = arith.constant 0 : index
    %869 = vector.load %arg22[%868, %c0_261] : memref<16x128xf32, #tpu.memory_space<vmem>>, vector<1x128xf32>
    %cst_262 = arith.constant dense<0.000000e+00> : vector<1x128xf32>
    %870 = tpu.matmul %865, %817, %cst_262 {dimension_numbers = #tpu.dot_dimension_numbers<[1], [0], [0], [1], [0, 0, 1, 1], [], []>} : vector<1x32xf32>, vector<32x128xf32>, vector<1x128xf32> -> vector<1x128xf32>
    %871 = arith.addf %870, %818 : vector<1x128xf32>
    %872 = arith.addf %869, %871 : vector<1x128xf32>
    %873 = arith.negf %872 : vector<1x128xf32>
    %874 = math.exp %873 : vector<1x128xf32>
    %cst_263 = arith.constant 1.000000e+00 : f32
    %875 = vector.broadcast %cst_263 : f32 to vector<1x128xf32>
    %876 = arith.addf %875, %874 : vector<1x128xf32>
    %877 = arith.divf %875, %876 : vector<1x128xf32>
    %878 = vector.extract_strided_slice %877 {offsets = [0, 0], sizes = [1, 32], strides = [1, 1]} : vector<1x128xf32> to vector<1x32xf32>
    %879 = vector.extract_strided_slice %877 {offsets = [0, 32], sizes = [1, 32], strides = [1, 1]} : vector<1x128xf32> to vector<1x32xf32>
    %880 = vector.extract_strided_slice %869 {offsets = [0, 64], sizes = [1, 32], strides = [1, 1]} : vector<1x128xf32> to vector<1x32xf32>
    %881 = vector.extract_strided_slice %871 {offsets = [0, 64], sizes = [1, 32], strides = [1, 1]} : vector<1x128xf32> to vector<1x32xf32>
    %882 = arith.mulf %878, %881 : vector<1x32xf32>
    %883 = arith.addf %880, %882 : vector<1x32xf32>
    %884 = math.tanh %883 : vector<1x32xf32>
    %cst_264 = arith.constant 1.000000e+00 : f32
    %885 = vector.broadcast %cst_264 : f32 to vector<1x32xf32>
    %886 = arith.subf %885, %879 : vector<1x32xf32>
    %887 = arith.mulf %886, %884 : vector<1x32xf32>
    %888 = arith.mulf %879, %865 : vector<1x32xf32>
    %889 = arith.addf %887, %888 : vector<1x32xf32>
    %890 = arith.index_cast %c2_i32_260 : i32 to index
    %c0_265 = arith.constant 0 : index
    %891 = vector.load %arg25[%890, %c0_265] : memref<16x32xf32, #tpu.memory_space<vmem>>, vector<1x32xf32>
    tpu.vector_store %arg25[%890, %c0_265], %889 {strides = array<i32>} : memref<16x32xf32, #tpu.memory_space<vmem>>, vector<1x32xf32>,
    %c3_i32_266 = arith.constant 3 : i32
    %892 = arith.index_cast %c3_i32_266 : i32 to index
    %c0_267 = arith.constant 0 : index
    %893 = vector.load %arg22[%892, %c0_267] : memref<16x128xf32, #tpu.memory_space<vmem>>, vector<1x128xf32>
    %cst_268 = arith.constant dense<0.000000e+00> : vector<1x128xf32>
    %894 = tpu.matmul %889, %817, %cst_268 {dimension_numbers = #tpu.dot_dimension_numbers<[1], [0], [0], [1], [0, 0, 1, 1], [], []>} : vector<1x32xf32>, vector<32x128xf32>, vector<1x128xf32> -> vector<1x128xf32>
    %895 = arith.addf %894, %818 : vector<1x128xf32>
    %896 = arith.addf %893, %895 : vector<1x128xf32>
    %897 = arith.negf %896 : vector<1x128xf32>
    %898 = math.exp %897 : vector<1x128xf32>
    %cst_269 = arith.constant 1.000000e+00 : f32
    %899 = vector.broadcast %cst_269 : f32 to vector<1x128xf32>
    %900 = arith.addf %899, %898 : vector<1x128xf32>
    %901 = arith.divf %899, %900 : vector<1x128xf32>
    %902 = vector.extract_strided_slice %901 {offsets = [0, 0], sizes = [1, 32], strides = [1, 1]} : vector<1x128xf32> to vector<1x32xf32>
    %903 = vector.extract_strided_slice %901 {offsets = [0, 32], sizes = [1, 32], strides = [1, 1]} : vector<1x128xf32> to vector<1x32xf32>
    %904 = vector.extract_strided_slice %893 {offsets = [0, 64], sizes = [1, 32], strides = [1, 1]} : vector<1x128xf32> to vector<1x32xf32>
    %905 = vector.extract_strided_slice %895 {offsets = [0, 64], sizes = [1, 32], strides = [1, 1]} : vector<1x128xf32> to vector<1x32xf32>
    %906 = arith.mulf %902, %905 : vector<1x32xf32>
    %907 = arith.addf %904, %906 : vector<1x32xf32>
    %908 = math.tanh %907 : vector<1x32xf32>
    %cst_270 = arith.constant 1.000000e+00 : f32
    %909 = vector.broadcast %cst_270 : f32 to vector<1x32xf32>
    %910 = arith.subf %909, %903 : vector<1x32xf32>
    %911 = arith.mulf %910, %908 : vector<1x32xf32>
    %912 = arith.mulf %903, %889 : vector<1x32xf32>
    %913 = arith.addf %911, %912 : vector<1x32xf32>
    %914 = arith.index_cast %c3_i32_266 : i32 to index
    %c0_271 = arith.constant 0 : index
    %915 = vector.load %arg25[%914, %c0_271] : memref<16x32xf32, #tpu.memory_space<vmem>>, vector<1x32xf32>
    tpu.vector_store %arg25[%914, %c0_271], %913 {strides = array<i32>} : memref<16x32xf32, #tpu.memory_space<vmem>>, vector<1x32xf32>,
    %c4_i32_272 = arith.constant 4 : i32
    %916 = arith.index_cast %c4_i32_272 : i32 to index
    %c0_273 = arith.constant 0 : index
    %917 = vector.load %arg22[%916, %c0_273] : memref<16x128xf32, #tpu.memory_space<vmem>>, vector<1x128xf32>
    %cst_274 = arith.constant dense<0.000000e+00> : vector<1x128xf32>
    %918 = tpu.matmul %913, %817, %cst_274 {dimension_numbers = #tpu.dot_dimension_numbers<[1], [0], [0], [1], [0, 0, 1, 1], [], []>} : vector<1x32xf32>, vector<32x128xf32>, vector<1x128xf32> -> vector<1x128xf32>
    %919 = arith.addf %918, %818 : vector<1x128xf32>
    %920 = arith.addf %917, %919 : vector<1x128xf32>
    %921 = arith.negf %920 : vector<1x128xf32>
    %922 = math.exp %921 : vector<1x128xf32>
    %cst_275 = arith.constant 1.000000e+00 : f32
    %923 = vector.broadcast %cst_275 : f32 to vector<1x128xf32>
    %924 = arith.addf %923, %922 : vector<1x128xf32>
    %925 = arith.divf %923, %924 : vector<1x128xf32>
    %926 = vector.extract_strided_slice %925 {offsets = [0, 0], sizes = [1, 32], strides = [1, 1]} : vector<1x128xf32> to vector<1x32xf32>
    %927 = vector.extract_strided_slice %925 {offsets = [0, 32], sizes = [1, 32], strides = [1, 1]} : vector<1x128xf32> to vector<1x32xf32>
    %928 = vector.extract_strided_slice %917 {offsets = [0, 64], sizes = [1, 32], strides = [1, 1]} : vector<1x128xf32> to vector<1x32xf32>
    %929 = vector.extract_strided_slice %919 {offsets = [0, 64], sizes = [1, 32], strides = [1, 1]} : vector<1x128xf32> to vector<1x32xf32>
    %930 = arith.mulf %926, %929 : vector<1x32xf32>
    %931 = arith.addf %928, %930 : vector<1x32xf32>
    %932 = math.tanh %931 : vector<1x32xf32>
    %cst_276 = arith.constant 1.000000e+00 : f32
    %933 = vector.broadcast %cst_276 : f32 to vector<1x32xf32>
    %934 = arith.subf %933, %927 : vector<1x32xf32>
    %935 = arith.mulf %934, %932 : vector<1x32xf32>
    %936 = arith.mulf %927, %913 : vector<1x32xf32>
    %937 = arith.addf %935, %936 : vector<1x32xf32>
    %938 = arith.index_cast %c4_i32_272 : i32 to index
    %c0_277 = arith.constant 0 : index
    %939 = vector.load %arg25[%938, %c0_277] : memref<16x32xf32, #tpu.memory_space<vmem>>, vector<1x32xf32>
    tpu.vector_store %arg25[%938, %c0_277], %937 {strides = array<i32>} : memref<16x32xf32, #tpu.memory_space<vmem>>, vector<1x32xf32>,
    %c5_i32_278 = arith.constant 5 : i32
    %940 = arith.index_cast %c5_i32_278 : i32 to index
    %c0_279 = arith.constant 0 : index
    %941 = vector.load %arg22[%940, %c0_279] : memref<16x128xf32, #tpu.memory_space<vmem>>, vector<1x128xf32>
    %cst_280 = arith.constant dense<0.000000e+00> : vector<1x128xf32>
    %942 = tpu.matmul %937, %817, %cst_280 {dimension_numbers = #tpu.dot_dimension_numbers<[1], [0], [0], [1], [0, 0, 1, 1], [], []>} : vector<1x32xf32>, vector<32x128xf32>, vector<1x128xf32> -> vector<1x128xf32>
    %943 = arith.addf %942, %818 : vector<1x128xf32>
    %944 = arith.addf %941, %943 : vector<1x128xf32>
    %945 = arith.negf %944 : vector<1x128xf32>
    %946 = math.exp %945 : vector<1x128xf32>
    %cst_281 = arith.constant 1.000000e+00 : f32
    %947 = vector.broadcast %cst_281 : f32 to vector<1x128xf32>
    %948 = arith.addf %947, %946 : vector<1x128xf32>
    %949 = arith.divf %947, %948 : vector<1x128xf32>
    %950 = vector.extract_strided_slice %949 {offsets = [0, 0], sizes = [1, 32], strides = [1, 1]} : vector<1x128xf32> to vector<1x32xf32>
    %951 = vector.extract_strided_slice %949 {offsets = [0, 32], sizes = [1, 32], strides = [1, 1]} : vector<1x128xf32> to vector<1x32xf32>
    %952 = vector.extract_strided_slice %941 {offsets = [0, 64], sizes = [1, 32], strides = [1, 1]} : vector<1x128xf32> to vector<1x32xf32>
    %953 = vector.extract_strided_slice %943 {offsets = [0, 64], sizes = [1, 32], strides = [1, 1]} : vector<1x128xf32> to vector<1x32xf32>
    %954 = arith.mulf %950, %953 : vector<1x32xf32>
    %955 = arith.addf %952, %954 : vector<1x32xf32>
    %956 = math.tanh %955 : vector<1x32xf32>
    %cst_282 = arith.constant 1.000000e+00 : f32
    %957 = vector.broadcast %cst_282 : f32 to vector<1x32xf32>
    %958 = arith.subf %957, %951 : vector<1x32xf32>
    %959 = arith.mulf %958, %956 : vector<1x32xf32>
    %960 = arith.mulf %951, %937 : vector<1x32xf32>
    %961 = arith.addf %959, %960 : vector<1x32xf32>
    %962 = arith.index_cast %c5_i32_278 : i32 to index
    %c0_283 = arith.constant 0 : index
    %963 = vector.load %arg25[%962, %c0_283] : memref<16x32xf32, #tpu.memory_space<vmem>>, vector<1x32xf32>
    tpu.vector_store %arg25[%962, %c0_283], %961 {strides = array<i32>} : memref<16x32xf32, #tpu.memory_space<vmem>>, vector<1x32xf32>,
    %c6_i32_284 = arith.constant 6 : i32
    %964 = arith.index_cast %c6_i32_284 : i32 to index
    %c0_285 = arith.constant 0 : index
    %965 = vector.load %arg22[%964, %c0_285] : memref<16x128xf32, #tpu.memory_space<vmem>>, vector<1x128xf32>
    %cst_286 = arith.constant dense<0.000000e+00> : vector<1x128xf32>
    %966 = tpu.matmul %961, %817, %cst_286 {dimension_numbers = #tpu.dot_dimension_numbers<[1], [0], [0], [1], [0, 0, 1, 1], [], []>} : vector<1x32xf32>, vector<32x128xf32>, vector<1x128xf32> -> vector<1x128xf32>
    %967 = arith.addf %966, %818 : vector<1x128xf32>
    %968 = arith.addf %965, %967 : vector<1x128xf32>
    %969 = arith.negf %968 : vector<1x128xf32>
    %970 = math.exp %969 : vector<1x128xf32>
    %cst_287 = arith.constant 1.000000e+00 : f32
    %971 = vector.broadcast %cst_287 : f32 to vector<1x128xf32>
    %972 = arith.addf %971, %970 : vector<1x128xf32>
    %973 = arith.divf %971, %972 : vector<1x128xf32>
    %974 = vector.extract_strided_slice %973 {offsets = [0, 0], sizes = [1, 32], strides = [1, 1]} : vector<1x128xf32> to vector<1x32xf32>
    %975 = vector.extract_strided_slice %973 {offsets = [0, 32], sizes = [1, 32], strides = [1, 1]} : vector<1x128xf32> to vector<1x32xf32>
    %976 = vector.extract_strided_slice %965 {offsets = [0, 64], sizes = [1, 32], strides = [1, 1]} : vector<1x128xf32> to vector<1x32xf32>
    %977 = vector.extract_strided_slice %967 {offsets = [0, 64], sizes = [1, 32], strides = [1, 1]} : vector<1x128xf32> to vector<1x32xf32>
    %978 = arith.mulf %974, %977 : vector<1x32xf32>
    %979 = arith.addf %976, %978 : vector<1x32xf32>
    %980 = math.tanh %979 : vector<1x32xf32>
    %cst_288 = arith.constant 1.000000e+00 : f32
    %981 = vector.broadcast %cst_288 : f32 to vector<1x32xf32>
    %982 = arith.subf %981, %975 : vector<1x32xf32>
    %983 = arith.mulf %982, %980 : vector<1x32xf32>
    %984 = arith.mulf %975, %961 : vector<1x32xf32>
    %985 = arith.addf %983, %984 : vector<1x32xf32>
    %986 = arith.index_cast %c6_i32_284 : i32 to index
    %c0_289 = arith.constant 0 : index
    %987 = vector.load %arg25[%986, %c0_289] : memref<16x32xf32, #tpu.memory_space<vmem>>, vector<1x32xf32>
    tpu.vector_store %arg25[%986, %c0_289], %985 {strides = array<i32>} : memref<16x32xf32, #tpu.memory_space<vmem>>, vector<1x32xf32>,
    %c7_i32_290 = arith.constant 7 : i32
    %988 = arith.index_cast %c7_i32_290 : i32 to index
    %c0_291 = arith.constant 0 : index
    %989 = vector.load %arg22[%988, %c0_291] : memref<16x128xf32, #tpu.memory_space<vmem>>, vector<1x128xf32>
    %cst_292 = arith.constant dense<0.000000e+00> : vector<1x128xf32>
    %990 = tpu.matmul %985, %817, %cst_292 {dimension_numbers = #tpu.dot_dimension_numbers<[1], [0], [0], [1], [0, 0, 1, 1], [], []>} : vector<1x32xf32>, vector<32x128xf32>, vector<1x128xf32> -> vector<1x128xf32>
    %991 = arith.addf %990, %818 : vector<1x128xf32>
    %992 = arith.addf %989, %991 : vector<1x128xf32>
    %993 = arith.negf %992 : vector<1x128xf32>
    %994 = math.exp %993 : vector<1x128xf32>
    %cst_293 = arith.constant 1.000000e+00 : f32
    %995 = vector.broadcast %cst_293 : f32 to vector<1x128xf32>
    %996 = arith.addf %995, %994 : vector<1x128xf32>
    %997 = arith.divf %995, %996 : vector<1x128xf32>
    %998 = vector.extract_strided_slice %997 {offsets = [0, 0], sizes = [1, 32], strides = [1, 1]} : vector<1x128xf32> to vector<1x32xf32>
    %999 = vector.extract_strided_slice %997 {offsets = [0, 32], sizes = [1, 32], strides = [1, 1]} : vector<1x128xf32> to vector<1x32xf32>
    %1000 = vector.extract_strided_slice %989 {offsets = [0, 64], sizes = [1, 32], strides = [1, 1]} : vector<1x128xf32> to vector<1x32xf32>
    %1001 = vector.extract_strided_slice %991 {offsets = [0, 64], sizes = [1, 32], strides = [1, 1]} : vector<1x128xf32> to vector<1x32xf32>
    %1002 = arith.mulf %998, %1001 : vector<1x32xf32>
    %1003 = arith.addf %1000, %1002 : vector<1x32xf32>
    %1004 = math.tanh %1003 : vector<1x32xf32>
    %cst_294 = arith.constant 1.000000e+00 : f32
    %1005 = vector.broadcast %cst_294 : f32 to vector<1x32xf32>
    %1006 = arith.subf %1005, %999 : vector<1x32xf32>
    %1007 = arith.mulf %1006, %1004 : vector<1x32xf32>
    %1008 = arith.mulf %999, %985 : vector<1x32xf32>
    %1009 = arith.addf %1007, %1008 : vector<1x32xf32>
    %1010 = arith.index_cast %c7_i32_290 : i32 to index
    %c0_295 = arith.constant 0 : index
    %1011 = vector.load %arg25[%1010, %c0_295] : memref<16x32xf32, #tpu.memory_space<vmem>>, vector<1x32xf32>
    tpu.vector_store %arg25[%1010, %c0_295], %1009 {strides = array<i32>} : memref<16x32xf32, #tpu.memory_space<vmem>>, vector<1x32xf32>,
    %c8_i32_296 = arith.constant 8 : i32
    %1012 = arith.index_cast %c8_i32_296 : i32 to index
    %c0_297 = arith.constant 0 : index
    %1013 = vector.load %arg22[%1012, %c0_297] : memref<16x128xf32, #tpu.memory_space<vmem>>, vector<1x128xf32>
    %cst_298 = arith.constant dense<0.000000e+00> : vector<1x128xf32>
    %1014 = tpu.matmul %1009, %817, %cst_298 {dimension_numbers = #tpu.dot_dimension_numbers<[1], [0], [0], [1], [0, 0, 1, 1], [], []>} : vector<1x32xf32>, vector<32x128xf32>, vector<1x128xf32> -> vector<1x128xf32>
    %1015 = arith.addf %1014, %818 : vector<1x128xf32>
    %1016 = arith.addf %1013, %1015 : vector<1x128xf32>
    %1017 = arith.negf %1016 : vector<1x128xf32>
    %1018 = math.exp %1017 : vector<1x128xf32>
    %cst_299 = arith.constant 1.000000e+00 : f32
    %1019 = vector.broadcast %cst_299 : f32 to vector<1x128xf32>
    %1020 = arith.addf %1019, %1018 : vector<1x128xf32>
    %1021 = arith.divf %1019, %1020 : vector<1x128xf32>
    %1022 = vector.extract_strided_slice %1021 {offsets = [0, 0], sizes = [1, 32], strides = [1, 1]} : vector<1x128xf32> to vector<1x32xf32>
    %1023 = vector.extract_strided_slice %1021 {offsets = [0, 32], sizes = [1, 32], strides = [1, 1]} : vector<1x128xf32> to vector<1x32xf32>
    %1024 = vector.extract_strided_slice %1013 {offsets = [0, 64], sizes = [1, 32], strides = [1, 1]} : vector<1x128xf32> to vector<1x32xf32>
    %1025 = vector.extract_strided_slice %1015 {offsets = [0, 64], sizes = [1, 32], strides = [1, 1]} : vector<1x128xf32> to vector<1x32xf32>
    %1026 = arith.mulf %1022, %1025 : vector<1x32xf32>
    %1027 = arith.addf %1024, %1026 : vector<1x32xf32>
    %1028 = math.tanh %1027 : vector<1x32xf32>
    %cst_300 = arith.constant 1.000000e+00 : f32
    %1029 = vector.broadcast %cst_300 : f32 to vector<1x32xf32>
    %1030 = arith.subf %1029, %1023 : vector<1x32xf32>
    %1031 = arith.mulf %1030, %1028 : vector<1x32xf32>
    %1032 = arith.mulf %1023, %1009 : vector<1x32xf32>
    %1033 = arith.addf %1031, %1032 : vector<1x32xf32>
    %1034 = arith.index_cast %c8_i32_296 : i32 to index
    %c0_301 = arith.constant 0 : index
    %1035 = vector.load %arg25[%1034, %c0_301] : memref<16x32xf32, #tpu.memory_space<vmem>>, vector<1x32xf32>
    tpu.vector_store %arg25[%1034, %c0_301], %1033 {strides = array<i32>} : memref<16x32xf32, #tpu.memory_space<vmem>>, vector<1x32xf32>,
    %c9_i32_302 = arith.constant 9 : i32
    %1036 = arith.index_cast %c9_i32_302 : i32 to index
    %c0_303 = arith.constant 0 : index
    %1037 = vector.load %arg22[%1036, %c0_303] : memref<16x128xf32, #tpu.memory_space<vmem>>, vector<1x128xf32>
    %cst_304 = arith.constant dense<0.000000e+00> : vector<1x128xf32>
    %1038 = tpu.matmul %1033, %817, %cst_304 {dimension_numbers = #tpu.dot_dimension_numbers<[1], [0], [0], [1], [0, 0, 1, 1], [], []>} : vector<1x32xf32>, vector<32x128xf32>, vector<1x128xf32> -> vector<1x128xf32>
    %1039 = arith.addf %1038, %818 : vector<1x128xf32>
    %1040 = arith.addf %1037, %1039 : vector<1x128xf32>
    %1041 = arith.negf %1040 : vector<1x128xf32>
    %1042 = math.exp %1041 : vector<1x128xf32>
    %cst_305 = arith.constant 1.000000e+00 : f32
    %1043 = vector.broadcast %cst_305 : f32 to vector<1x128xf32>
    %1044 = arith.addf %1043, %1042 : vector<1x128xf32>
    %1045 = arith.divf %1043, %1044 : vector<1x128xf32>
    %1046 = vector.extract_strided_slice %1045 {offsets = [0, 0], sizes = [1, 32], strides = [1, 1]} : vector<1x128xf32> to vector<1x32xf32>
    %1047 = vector.extract_strided_slice %1045 {offsets = [0, 32], sizes = [1, 32], strides = [1, 1]} : vector<1x128xf32> to vector<1x32xf32>
    %1048 = vector.extract_strided_slice %1037 {offsets = [0, 64], sizes = [1, 32], strides = [1, 1]} : vector<1x128xf32> to vector<1x32xf32>
    %1049 = vector.extract_strided_slice %1039 {offsets = [0, 64], sizes = [1, 32], strides = [1, 1]} : vector<1x128xf32> to vector<1x32xf32>
    %1050 = arith.mulf %1046, %1049 : vector<1x32xf32>
    %1051 = arith.addf %1048, %1050 : vector<1x32xf32>
    %1052 = math.tanh %1051 : vector<1x32xf32>
    %cst_306 = arith.constant 1.000000e+00 : f32
    %1053 = vector.broadcast %cst_306 : f32 to vector<1x32xf32>
    %1054 = arith.subf %1053, %1047 : vector<1x32xf32>
    %1055 = arith.mulf %1054, %1052 : vector<1x32xf32>
    %1056 = arith.mulf %1047, %1033 : vector<1x32xf32>
    %1057 = arith.addf %1055, %1056 : vector<1x32xf32>
    %1058 = arith.index_cast %c9_i32_302 : i32 to index
    %c0_307 = arith.constant 0 : index
    %1059 = vector.load %arg25[%1058, %c0_307] : memref<16x32xf32, #tpu.memory_space<vmem>>, vector<1x32xf32>
    tpu.vector_store %arg25[%1058, %c0_307], %1057 {strides = array<i32>} : memref<16x32xf32, #tpu.memory_space<vmem>>, vector<1x32xf32>,
    %c10_i32_308 = arith.constant 10 : i32
    %1060 = arith.index_cast %c10_i32_308 : i32 to index
    %c0_309 = arith.constant 0 : index
    %1061 = vector.load %arg22[%1060, %c0_309] : memref<16x128xf32, #tpu.memory_space<vmem>>, vector<1x128xf32>
    %cst_310 = arith.constant dense<0.000000e+00> : vector<1x128xf32>
    %1062 = tpu.matmul %1057, %817, %cst_310 {dimension_numbers = #tpu.dot_dimension_numbers<[1], [0], [0], [1], [0, 0, 1, 1], [], []>} : vector<1x32xf32>, vector<32x128xf32>, vector<1x128xf32> -> vector<1x128xf32>
    %1063 = arith.addf %1062, %818 : vector<1x128xf32>
    %1064 = arith.addf %1061, %1063 : vector<1x128xf32>
    %1065 = arith.negf %1064 : vector<1x128xf32>
    %1066 = math.exp %1065 : vector<1x128xf32>
    %cst_311 = arith.constant 1.000000e+00 : f32
    %1067 = vector.broadcast %cst_311 : f32 to vector<1x128xf32>
    %1068 = arith.addf %1067, %1066 : vector<1x128xf32>
    %1069 = arith.divf %1067, %1068 : vector<1x128xf32>
    %1070 = vector.extract_strided_slice %1069 {offsets = [0, 0], sizes = [1, 32], strides = [1, 1]} : vector<1x128xf32> to vector<1x32xf32>
    %1071 = vector.extract_strided_slice %1069 {offsets = [0, 32], sizes = [1, 32], strides = [1, 1]} : vector<1x128xf32> to vector<1x32xf32>
    %1072 = vector.extract_strided_slice %1061 {offsets = [0, 64], sizes = [1, 32], strides = [1, 1]} : vector<1x128xf32> to vector<1x32xf32>
    %1073 = vector.extract_strided_slice %1063 {offsets = [0, 64], sizes = [1, 32], strides = [1, 1]} : vector<1x128xf32> to vector<1x32xf32>
    %1074 = arith.mulf %1070, %1073 : vector<1x32xf32>
    %1075 = arith.addf %1072, %1074 : vector<1x32xf32>
    %1076 = math.tanh %1075 : vector<1x32xf32>
    %cst_312 = arith.constant 1.000000e+00 : f32
    %1077 = vector.broadcast %cst_312 : f32 to vector<1x32xf32>
    %1078 = arith.subf %1077, %1071 : vector<1x32xf32>
    %1079 = arith.mulf %1078, %1076 : vector<1x32xf32>
    %1080 = arith.mulf %1071, %1057 : vector<1x32xf32>
    %1081 = arith.addf %1079, %1080 : vector<1x32xf32>
    %1082 = arith.index_cast %c10_i32_308 : i32 to index
    %c0_313 = arith.constant 0 : index
    %1083 = vector.load %arg25[%1082, %c0_313] : memref<16x32xf32, #tpu.memory_space<vmem>>, vector<1x32xf32>
    tpu.vector_store %arg25[%1082, %c0_313], %1081 {strides = array<i32>} : memref<16x32xf32, #tpu.memory_space<vmem>>, vector<1x32xf32>,
    %c11_i32_314 = arith.constant 11 : i32
    %1084 = arith.index_cast %c11_i32_314 : i32 to index
    %c0_315 = arith.constant 0 : index
    %1085 = vector.load %arg22[%1084, %c0_315] : memref<16x128xf32, #tpu.memory_space<vmem>>, vector<1x128xf32>
    %cst_316 = arith.constant dense<0.000000e+00> : vector<1x128xf32>
    %1086 = tpu.matmul %1081, %817, %cst_316 {dimension_numbers = #tpu.dot_dimension_numbers<[1], [0], [0], [1], [0, 0, 1, 1], [], []>} : vector<1x32xf32>, vector<32x128xf32>, vector<1x128xf32> -> vector<1x128xf32>
    %1087 = arith.addf %1086, %818 : vector<1x128xf32>
    %1088 = arith.addf %1085, %1087 : vector<1x128xf32>
    %1089 = arith.negf %1088 : vector<1x128xf32>
    %1090 = math.exp %1089 : vector<1x128xf32>
    %cst_317 = arith.constant 1.000000e+00 : f32
    %1091 = vector.broadcast %cst_317 : f32 to vector<1x128xf32>
    %1092 = arith.addf %1091, %1090 : vector<1x128xf32>
    %1093 = arith.divf %1091, %1092 : vector<1x128xf32>
    %1094 = vector.extract_strided_slice %1093 {offsets = [0, 0], sizes = [1, 32], strides = [1, 1]} : vector<1x128xf32> to vector<1x32xf32>
    %1095 = vector.extract_strided_slice %1093 {offsets = [0, 32], sizes = [1, 32], strides = [1, 1]} : vector<1x128xf32> to vector<1x32xf32>
    %1096 = vector.extract_strided_slice %1085 {offsets = [0, 64], sizes = [1, 32], strides = [1, 1]} : vector<1x128xf32> to vector<1x32xf32>
    %1097 = vector.extract_strided_slice %1087 {offsets = [0, 64], sizes = [1, 32], strides = [1, 1]} : vector<1x128xf32> to vector<1x32xf32>
    %1098 = arith.mulf %1094, %1097 : vector<1x32xf32>
    %1099 = arith.addf %1096, %1098 : vector<1x32xf32>
    %1100 = math.tanh %1099 : vector<1x32xf32>
    %cst_318 = arith.constant 1.000000e+00 : f32
    %1101 = vector.broadcast %cst_318 : f32 to vector<1x32xf32>
    %1102 = arith.subf %1101, %1095 : vector<1x32xf32>
    %1103 = arith.mulf %1102, %1100 : vector<1x32xf32>
    %1104 = arith.mulf %1095, %1081 : vector<1x32xf32>
    %1105 = arith.addf %1103, %1104 : vector<1x32xf32>
    %1106 = arith.index_cast %c11_i32_314 : i32 to index
    %c0_319 = arith.constant 0 : index
    %1107 = vector.load %arg25[%1106, %c0_319] : memref<16x32xf32, #tpu.memory_space<vmem>>, vector<1x32xf32>
    tpu.vector_store %arg25[%1106, %c0_319], %1105 {strides = array<i32>} : memref<16x32xf32, #tpu.memory_space<vmem>>, vector<1x32xf32>,
    %c12_i32_320 = arith.constant 12 : i32
    %1108 = arith.index_cast %c12_i32_320 : i32 to index
    %c0_321 = arith.constant 0 : index
    %1109 = vector.load %arg22[%1108, %c0_321] : memref<16x128xf32, #tpu.memory_space<vmem>>, vector<1x128xf32>
    %cst_322 = arith.constant dense<0.000000e+00> : vector<1x128xf32>
    %1110 = tpu.matmul %1105, %817, %cst_322 {dimension_numbers = #tpu.dot_dimension_numbers<[1], [0], [0], [1], [0, 0, 1, 1], [], []>} : vector<1x32xf32>, vector<32x128xf32>, vector<1x128xf32> -> vector<1x128xf32>
    %1111 = arith.addf %1110, %818 : vector<1x128xf32>
    %1112 = arith.addf %1109, %1111 : vector<1x128xf32>
    %1113 = arith.negf %1112 : vector<1x128xf32>
    %1114 = math.exp %1113 : vector<1x128xf32>
    %cst_323 = arith.constant 1.000000e+00 : f32
    %1115 = vector.broadcast %cst_323 : f32 to vector<1x128xf32>
    %1116 = arith.addf %1115, %1114 : vector<1x128xf32>
    %1117 = arith.divf %1115, %1116 : vector<1x128xf32>
    %1118 = vector.extract_strided_slice %1117 {offsets = [0, 0], sizes = [1, 32], strides = [1, 1]} : vector<1x128xf32> to vector<1x32xf32>
    %1119 = vector.extract_strided_slice %1117 {offsets = [0, 32], sizes = [1, 32], strides = [1, 1]} : vector<1x128xf32> to vector<1x32xf32>
    %1120 = vector.extract_strided_slice %1109 {offsets = [0, 64], sizes = [1, 32], strides = [1, 1]} : vector<1x128xf32> to vector<1x32xf32>
    %1121 = vector.extract_strided_slice %1111 {offsets = [0, 64], sizes = [1, 32], strides = [1, 1]} : vector<1x128xf32> to vector<1x32xf32>
    %1122 = arith.mulf %1118, %1121 : vector<1x32xf32>
    %1123 = arith.addf %1120, %1122 : vector<1x32xf32>
    %1124 = math.tanh %1123 : vector<1x32xf32>
    %cst_324 = arith.constant 1.000000e+00 : f32
    %1125 = vector.broadcast %cst_324 : f32 to vector<1x32xf32>
    %1126 = arith.subf %1125, %1119 : vector<1x32xf32>
    %1127 = arith.mulf %1126, %1124 : vector<1x32xf32>
    %1128 = arith.mulf %1119, %1105 : vector<1x32xf32>
    %1129 = arith.addf %1127, %1128 : vector<1x32xf32>
    %1130 = arith.index_cast %c12_i32_320 : i32 to index
    %c0_325 = arith.constant 0 : index
    %1131 = vector.load %arg25[%1130, %c0_325] : memref<16x32xf32, #tpu.memory_space<vmem>>, vector<1x32xf32>
    tpu.vector_store %arg25[%1130, %c0_325], %1129 {strides = array<i32>} : memref<16x32xf32, #tpu.memory_space<vmem>>, vector<1x32xf32>,
    %c13_i32_326 = arith.constant 13 : i32
    %1132 = arith.index_cast %c13_i32_326 : i32 to index
    %c0_327 = arith.constant 0 : index
    %1133 = vector.load %arg22[%1132, %c0_327] : memref<16x128xf32, #tpu.memory_space<vmem>>, vector<1x128xf32>
    %cst_328 = arith.constant dense<0.000000e+00> : vector<1x128xf32>
    %1134 = tpu.matmul %1129, %817, %cst_328 {dimension_numbers = #tpu.dot_dimension_numbers<[1], [0], [0], [1], [0, 0, 1, 1], [], []>} : vector<1x32xf32>, vector<32x128xf32>, vector<1x128xf32> -> vector<1x128xf32>
    %1135 = arith.addf %1134, %818 : vector<1x128xf32>
    %1136 = arith.addf %1133, %1135 : vector<1x128xf32>
    %1137 = arith.negf %1136 : vector<1x128xf32>
    %1138 = math.exp %1137 : vector<1x128xf32>
    %cst_329 = arith.constant 1.000000e+00 : f32
    %1139 = vector.broadcast %cst_329 : f32 to vector<1x128xf32>
    %1140 = arith.addf %1139, %1138 : vector<1x128xf32>
    %1141 = arith.divf %1139, %1140 : vector<1x128xf32>
    %1142 = vector.extract_strided_slice %1141 {offsets = [0, 0], sizes = [1, 32], strides = [1, 1]} : vector<1x128xf32> to vector<1x32xf32>
    %1143 = vector.extract_strided_slice %1141 {offsets = [0, 32], sizes = [1, 32], strides = [1, 1]} : vector<1x128xf32> to vector<1x32xf32>
    %1144 = vector.extract_strided_slice %1133 {offsets = [0, 64], sizes = [1, 32], strides = [1, 1]} : vector<1x128xf32> to vector<1x32xf32>
    %1145 = vector.extract_strided_slice %1135 {offsets = [0, 64], sizes = [1, 32], strides = [1, 1]} : vector<1x128xf32> to vector<1x32xf32>
    %1146 = arith.mulf %1142, %1145 : vector<1x32xf32>
    %1147 = arith.addf %1144, %1146 : vector<1x32xf32>
    %1148 = math.tanh %1147 : vector<1x32xf32>
    %cst_330 = arith.constant 1.000000e+00 : f32
    %1149 = vector.broadcast %cst_330 : f32 to vector<1x32xf32>
    %1150 = arith.subf %1149, %1143 : vector<1x32xf32>
    %1151 = arith.mulf %1150, %1148 : vector<1x32xf32>
    %1152 = arith.mulf %1143, %1129 : vector<1x32xf32>
    %1153 = arith.addf %1151, %1152 : vector<1x32xf32>
    %1154 = arith.index_cast %c13_i32_326 : i32 to index
    %c0_331 = arith.constant 0 : index
    %1155 = vector.load %arg25[%1154, %c0_331] : memref<16x32xf32, #tpu.memory_space<vmem>>, vector<1x32xf32>
    tpu.vector_store %arg25[%1154, %c0_331], %1153 {strides = array<i32>} : memref<16x32xf32, #tpu.memory_space<vmem>>, vector<1x32xf32>,
    %c14_i32_332 = arith.constant 14 : i32
    %1156 = arith.index_cast %c14_i32_332 : i32 to index
    %c0_333 = arith.constant 0 : index
    %1157 = vector.load %arg22[%1156, %c0_333] : memref<16x128xf32, #tpu.memory_space<vmem>>, vector<1x128xf32>
    %cst_334 = arith.constant dense<0.000000e+00> : vector<1x128xf32>
    %1158 = tpu.matmul %1153, %817, %cst_334 {dimension_numbers = #tpu.dot_dimension_numbers<[1], [0], [0], [1], [0, 0, 1, 1], [], []>} : vector<1x32xf32>, vector<32x128xf32>, vector<1x128xf32> -> vector<1x128xf32>
    %1159 = arith.addf %1158, %818 : vector<1x128xf32>
    %1160 = arith.addf %1157, %1159 : vector<1x128xf32>
    %1161 = arith.negf %1160 : vector<1x128xf32>
    %1162 = math.exp %1161 : vector<1x128xf32>
    %cst_335 = arith.constant 1.000000e+00 : f32
    %1163 = vector.broadcast %cst_335 : f32 to vector<1x128xf32>
    %1164 = arith.addf %1163, %1162 : vector<1x128xf32>
    %1165 = arith.divf %1163, %1164 : vector<1x128xf32>
    %1166 = vector.extract_strided_slice %1165 {offsets = [0, 0], sizes = [1, 32], strides = [1, 1]} : vector<1x128xf32> to vector<1x32xf32>
    %1167 = vector.extract_strided_slice %1165 {offsets = [0, 32], sizes = [1, 32], strides = [1, 1]} : vector<1x128xf32> to vector<1x32xf32>
    %1168 = vector.extract_strided_slice %1157 {offsets = [0, 64], sizes = [1, 32], strides = [1, 1]} : vector<1x128xf32> to vector<1x32xf32>
    %1169 = vector.extract_strided_slice %1159 {offsets = [0, 64], sizes = [1, 32], strides = [1, 1]} : vector<1x128xf32> to vector<1x32xf32>
    %1170 = arith.mulf %1166, %1169 : vector<1x32xf32>
    %1171 = arith.addf %1168, %1170 : vector<1x32xf32>
    %1172 = math.tanh %1171 : vector<1x32xf32>
    %cst_336 = arith.constant 1.000000e+00 : f32
    %1173 = vector.broadcast %cst_336 : f32 to vector<1x32xf32>
    %1174 = arith.subf %1173, %1167 : vector<1x32xf32>
    %1175 = arith.mulf %1174, %1172 : vector<1x32xf32>
    %1176 = arith.mulf %1167, %1153 : vector<1x32xf32>
    %1177 = arith.addf %1175, %1176 : vector<1x32xf32>
    %1178 = arith.index_cast %c14_i32_332 : i32 to index
    %c0_337 = arith.constant 0 : index
    %1179 = vector.load %arg25[%1178, %c0_337] : memref<16x32xf32, #tpu.memory_space<vmem>>, vector<1x32xf32>
    tpu.vector_store %arg25[%1178, %c0_337], %1177 {strides = array<i32>} : memref<16x32xf32, #tpu.memory_space<vmem>>, vector<1x32xf32>,
    %c15_i32_338 = arith.constant 15 : i32
    %1180 = arith.index_cast %c15_i32_338 : i32 to index
    %c0_339 = arith.constant 0 : index
    %1181 = vector.load %arg22[%1180, %c0_339] : memref<16x128xf32, #tpu.memory_space<vmem>>, vector<1x128xf32>
    %cst_340 = arith.constant dense<0.000000e+00> : vector<1x128xf32>
    %1182 = tpu.matmul %1177, %817, %cst_340 {dimension_numbers = #tpu.dot_dimension_numbers<[1], [0], [0], [1], [0, 0, 1, 1], [], []>} : vector<1x32xf32>, vector<32x128xf32>, vector<1x128xf32> -> vector<1x128xf32>
    %1183 = arith.addf %1182, %818 : vector<1x128xf32>
    %1184 = arith.addf %1181, %1183 : vector<1x128xf32>
    %1185 = arith.negf %1184 : vector<1x128xf32>
    %1186 = math.exp %1185 : vector<1x128xf32>
    %cst_341 = arith.constant 1.000000e+00 : f32
    %1187 = vector.broadcast %cst_341 : f32 to vector<1x128xf32>
    %1188 = arith.addf %1187, %1186 : vector<1x128xf32>
    %1189 = arith.divf %1187, %1188 : vector<1x128xf32>
    %1190 = vector.extract_strided_slice %1189 {offsets = [0, 0], sizes = [1, 32], strides = [1, 1]} : vector<1x128xf32> to vector<1x32xf32>
    %1191 = vector.extract_strided_slice %1189 {offsets = [0, 32], sizes = [1, 32], strides = [1, 1]} : vector<1x128xf32> to vector<1x32xf32>
    %1192 = vector.extract_strided_slice %1181 {offsets = [0, 64], sizes = [1, 32], strides = [1, 1]} : vector<1x128xf32> to vector<1x32xf32>
    %1193 = vector.extract_strided_slice %1183 {offsets = [0, 64], sizes = [1, 32], strides = [1, 1]} : vector<1x128xf32> to vector<1x32xf32>
    %1194 = arith.mulf %1190, %1193 : vector<1x32xf32>
    %1195 = arith.addf %1192, %1194 : vector<1x32xf32>
    %1196 = math.tanh %1195 : vector<1x32xf32>
    %cst_342 = arith.constant 1.000000e+00 : f32
    %1197 = vector.broadcast %cst_342 : f32 to vector<1x32xf32>
    %1198 = arith.subf %1197, %1191 : vector<1x32xf32>
    %1199 = arith.mulf %1198, %1196 : vector<1x32xf32>
    %1200 = arith.mulf %1191, %1177 : vector<1x32xf32>
    %1201 = arith.addf %1199, %1200 : vector<1x32xf32>
    %1202 = arith.index_cast %c15_i32_338 : i32 to index
    %c0_343 = arith.constant 0 : index
    %1203 = vector.load %arg25[%1202, %c0_343] : memref<16x32xf32, #tpu.memory_space<vmem>>, vector<1x32xf32>
    tpu.vector_store %arg25[%1202, %c0_343], %1201 {strides = array<i32>} : memref<16x32xf32, #tpu.memory_space<vmem>>, vector<1x32xf32>,
    %c16_i32_344 = arith.constant 16 : i32
    %c0_345 = arith.constant 0 : index
    %c0_346 = arith.constant 0 : index
    %1204 = vector.load %arg28[%c0_345, %c0_346] : memref<1x32xf32, #tpu.memory_space<vmem>>, vector<1x32xf32>
    tpu.vector_store %arg28[%c0_345, %c0_346], %1201 {strides = array<i32>} : memref<1x32xf32, #tpu.memory_space<vmem>>, vector<1x32xf32>,
    %c0_347 = arith.constant 0 : index
    %c0_348 = arith.constant 0 : index
    %1205 = vector.load %arg25[%c0_347, %c0_348] : memref<16x32xf32, #tpu.memory_space<vmem>>, vector<16x32xf32>
    %c0_349 = arith.constant 0 : index
    %c0_350 = arith.constant 0 : index
    %1206 = vector.load %arg18[%c0_349, %c0_350] : memref<32x128xf32, #tpu.memory_space<vmem>>, vector<32x128xf32>
    %cst_351 = arith.constant dense<0.000000e+00> : vector<16x128xf32>
    %1207 = tpu.matmul %1205, %1206, %cst_351 {dimension_numbers = #tpu.dot_dimension_numbers<[1], [0], [0], [1], [0, 0, 1, 1], [], []>} : vector<16x32xf32>, vector<32x128xf32>, vector<16x128xf32> -> vector<16x128xf32>
    %c0_352 = arith.constant 0 : index
    %c0_353 = arith.constant 0 : index
    %1208 = vector.load %arg19[%c0_352, %c0_353] : memref<1x128xf32, #tpu.memory_space<vmem>>, vector<1x128xf32>
    %1209 = vector.broadcast %1208 : vector<1x128xf32> to vector<16x128xf32>
    %1210 = arith.addf %1207, %1209 : vector<16x128xf32>
    %1211 = arith.negf %1210 : vector<16x128xf32>
    %1212 = math.exp %1211 : vector<16x128xf32>
    %cst_354 = arith.constant 1.000000e+00 : f32
    %1213 = vector.broadcast %cst_354 : f32 to vector<16x128xf32>
    %1214 = arith.addf %1213, %1212 : vector<16x128xf32>
    %1215 = arith.divf %1213, %1214 : vector<16x128xf32>
    %c0_355 = arith.constant 0 : index
    %c0_356 = arith.constant 0 : index
    %1216 = vector.load %arg1[%c0_355, %c0_356] : memref<16x128xf32, #tpu.memory_space<vmem>>, vector<16x128xf32>
    %1217 = arith.mulf %1216, %1215 : vector<16x128xf32>
    %c0_357 = arith.constant 0 : index
    %c0_358 = arith.constant 0 : index
    %1218 = vector.load %arg20[%c0_357, %c0_358] : memref<16x128xf32, #tpu.memory_space<vmem>>, vector<16x128xf32>
    tpu.vector_store %arg20[%c0_357, %c0_358], %1217 {strides = array<i32>} : memref<16x128xf32, #tpu.memory_space<vmem>>, vector<16x128xf32>,
    return
  }
  func.func @transform_0(%arg0: i32) -> (i32, i32) {
    %c0_i32 = arith.constant 0 : i32
    %c0_i32_0 = arith.constant 0 : i32
    return %arg0, %c0_i32 : i32, i32
  }
  func.func @transform_1(%arg0: i32) -> (i32, i32) {
    %c0_i32 = arith.constant 0 : i32
    %c0_i32_0 = arith.constant 0 : i32
    %c0_i32_1 = arith.constant 0 : i32
    return %c0_i32, %c0_i32_0 : i32, i32
  }
  func.func @transform_2(%arg0: i32) -> (i32, i32) {
    %c0_i32 = arith.constant 0 : i32
    %c0_i32_0 = arith.constant 0 : i32
    %c0_i32_1 = arith.constant 0 : i32
    return %c0_i32, %c0_i32_0 : i32, i32
  }
  func.func @transform_3(%arg0: i32) -> (i32, i32) {
    %c0_i32 = arith.constant 0 : i32
    %c0_i32_0 = arith.constant 0 : i32
    %c0_i32_1 = arith.constant 0 : i32
    return %c0_i32, %c0_i32_0 : i32, i32
  }
  func.func @transform_4(%arg0: i32) -> (i32, i32) {
    %c0_i32 = arith.constant 0 : i32
    %c0_i32_0 = arith.constant 0 : i32
    %c0_i32_1 = arith.constant 0 : i32
    return %c0_i32, %c0_i32_0 : i32, i32
  }
  func.func @transform_5(%arg0: i32) -> (i32, i32) {
    %c0_i32 = arith.constant 0 : i32
    %c0_i32_0 = arith.constant 0 : i32
    %c0_i32_1 = arith.constant 0 : i32
    return %c0_i32, %c0_i32_0 : i32, i32
  }
  func.func @transform_6(%arg0: i32) -> (i32, i32) {
    %c0_i32 = arith.constant 0 : i32
    %c0_i32_0 = arith.constant 0 : i32
    %c0_i32_1 = arith.constant 0 : i32
    return %c0_i32, %c0_i32_0 : i32, i32
  }
  func.func @transform_7(%arg0: i32) -> (i32, i32) {
    %c0_i32 = arith.constant 0 : i32
    %c0_i32_0 = arith.constant 0 : i32
    %c0_i32_1 = arith.constant 0 : i32
    return %c0_i32, %c0_i32_0 : i32, i32
  }
  func.func @transform_8(%arg0: i32) -> (i32, i32) {
    %c0_i32 = arith.constant 0 : i32
    %c0_i32_0 = arith.constant 0 : i32
    %c0_i32_1 = arith.constant 0 : i32
    return %c0_i32, %c0_i32_0 : i32, i32
  }
  func.func @transform_9(%arg0: i32) -> (i32, i32) {
    %c0_i32 = arith.constant 0 : i32
    %c0_i32_0 = arith.constant 0 : i32
    %c0_i32_1 = arith.constant 0 : i32
    return %c0_i32, %c0_i32_0 : i32, i32
  }
  func.func @transform_10(%arg0: i32) -> (i32, i32) {
    %c0_i32 = arith.constant 0 : i32
    %c0_i32_0 = arith.constant 0 : i32
    %c0_i32_1 = arith.constant 0 : i32
    return %c0_i32, %c0_i32_0 : i32, i32
  }
  func.func @transform_11(%arg0: i32) -> (i32, i32) {
    %c0_i32 = arith.constant 0 : i32
    %c0_i32_0 = arith.constant 0 : i32
    %c0_i32_1 = arith.constant 0 : i32
    return %c0_i32, %c0_i32_0 : i32, i32
  }
  func.func @transform_12(%arg0: i32) -> (i32, i32) {
    %c0_i32 = arith.constant 0 : i32
    %c0_i32_0 = arith.constant 0 : i32
    %c0_i32_1 = arith.constant 0 : i32
    return %c0_i32, %c0_i32_0 : i32, i32
  }
  func.func @transform_13(%arg0: i32) -> (i32, i32) {
    %c0_i32 = arith.constant 0 : i32
    %c0_i32_0 = arith.constant 0 : i32
    %c0_i32_1 = arith.constant 0 : i32
    return %c0_i32, %c0_i32_0 : i32, i32
  }
  func.func @transform_14(%arg0: i32) -> (i32, i32) {
    %c0_i32 = arith.constant 0 : i32
    %c0_i32_0 = arith.constant 0 : i32
    %c0_i32_1 = arith.constant 0 : i32
    return %c0_i32, %c0_i32_0 : i32, i32
  }
  func.func @transform_15(%arg0: i32) -> (i32, i32) {
    %c0_i32 = arith.constant 0 : i32
    %c0_i32_0 = arith.constant 0 : i32
    %c0_i32_1 = arith.constant 0 : i32
    return %c0_i32, %c0_i32_0 : i32, i32
  }
  func.func @transform_16(%arg0: i32) -> (i32, i32) {
    %c0_i32 = arith.constant 0 : i32
    %c0_i32_0 = arith.constant 0 : i32
    %c0_i32_1 = arith.constant 0 : i32
    return %c0_i32, %c0_i32_0 : i32, i32
  }
  func.func @transform_17(%arg0: i32) -> (i32, i32) {
    %c0_i32 = arith.constant 0 : i32
    %c0_i32_0 = arith.constant 0 : i32
    %c0_i32_1 = arith.constant 0 : i32
    return %c0_i32, %c0_i32_0 : i32, i32
  }
  func.func @transform_18(%arg0: i32) -> (i32, i32) {
    %c0_i32 = arith.constant 0 : i32
    %c0_i32_0 = arith.constant 0 : i32
    %c0_i32_1 = arith.constant 0 : i32
    return %c0_i32, %c0_i32_0 : i32, i32
  }
  func.func @transform_19(%arg0: i32) -> (i32, i32) {
    %c0_i32 = arith.constant 0 : i32
    %c0_i32_0 = arith.constant 0 : i32
    return %arg0, %c0_i32 : i32, i32
  }
}

</mosaic_0001>

<llo_original>
// kernel: tpu_custom_call.1
$region0: #{tpu_custom_call.1}
  #allocation0 [shape = 'u32[]', space=smem, size = 0x4, offset = 0x4, fixed_abs, tag = 'smem constant byte address 0x4 - core index']
  #allocation1 [shape = 'u32[144,128]{1,0:T(1,128)}', space=vmem, size = 0x12000, scoped, tag = 'internal scratch']
  #allocation2 [shape = 'f32[16,128]{1,0:T(8,128)}', space=vmem, size = 0x2000, scoped, tag = 'scratch operand']
  #allocation3 [shape = 'f32[16,128]{1,0:T(8,128)}', space=vmem, size = 0x2000, scoped, tag = 'scratch operand']
  #allocation4 [shape = 'f32[16,16]{1,0:T(8,128)}', space=vmem, size = 0x2000, scoped, tag = 'scratch operand']
  #allocation5 [shape = 'f32[16,16]{1,0:T(8,128)}', space=vmem, size = 0x2000, scoped, tag = 'scratch operand']
  #allocation6 [shape = 'f32[16,32]{1,0:T(8,128)}', space=vmem, size = 0x2000, scoped, tag = 'scratch operand']
  #allocation7 [shape = 'f32[1,16]{1,0:T(1,128)}', space=vmem, size = 0x200, scoped, tag = 'scratch operand']
  #allocation8 [shape = 'f32[1,16]{1,0:T(1,128)}', space=vmem, size = 0x200, scoped, tag = 'scratch operand']
  #allocation9 [shape = 'f32[1,32]{1,0:T(1,128)}', space=vmem, size = 0x200, scoped, tag = 'scratch operand']
  %s0 = inlined_call_operand.hbm [shape: f32[48,128], index: 0, kind: input, shape index: {}]
  %s1 = inlined_call_operand.hbm [shape: f32[128,128], index: 1, kind: input, shape index: {}]
  %s2 = inlined_call_operand.hbm [shape: f32[128,128], index: 2, kind: input, shape index: {}]
  %s3 = inlined_call_operand.hbm [shape: f32[16,128], index: 3, kind: input, shape index: {}]
  %s4 = inlined_call_operand.vmem [shape: f32[1,128], index: 4, kind: input, shape index: {}]
  %s5 = inlined_call_operand.vmem [shape: f32[1,128], index: 5, kind: input, shape index: {}]
  %s6 = inlined_call_operand.hbm [shape: f32[128,128], index: 6, kind: input, shape index: {}]
  %s7 = inlined_call_operand.hbm [shape: f32[16,128], index: 7, kind: input, shape index: {}]
  %s8 = inlined_call_operand.hbm [shape: f32[16,128], index: 8, kind: input, shape index: {}]
  %s9 = inlined_call_operand.vmem [shape: f32[1,128], index: 9, kind: input, shape index: {}]
  %s10 = inlined_call_operand.vmem [shape: f32[1,128], index: 10, kind: input, shape index: {}]
  %s11 = inlined_call_operand.hbm [shape: f32[128,128], index: 11, kind: input, shape index: {}]
  %s12 = inlined_call_operand.vmem [shape: f32[16,128], index: 12, kind: input, shape index: {}]
  %s13 = inlined_call_operand.hbm [shape: f32[16,128], index: 13, kind: input, shape index: {}]
  %s14 = inlined_call_operand.hbm [shape: f32[32,128], index: 14, kind: input, shape index: {}]
  %s15 = inlined_call_operand.vmem [shape: f32[1,128], index: 15, kind: input, shape index: {}]
  %s16 = inlined_call_operand.vmem [shape: f32[1,128], index: 16, kind: input, shape index: {}]
  %s17 = inlined_call_operand.hbm [shape: f32[32,128], index: 17, kind: input, shape index: {}]
  %s18 = inlined_call_operand.vmem [shape: f32[1,128], index: 18, kind: input, shape index: {}]
  %s19 = inlined_call_operand.hbm [shape: f32[48,128], index: 19, kind: output, shape index: {}]
  %s20 = sld [smem:[#allocation0]]
  $region157: #{tpu_custom_call.1} parent=0
    _
  %s22 = ssub.s32 1, %s20
  %s23 = scalar_select 0, %s22, %s20
  $region1: #{tpu_custom_call.1} parent=0
    #allocation10 [shape = 'u8[16384]{0}', space=vmem, size = 0x4000, scoped, tag = 'input window, operand 0']
    #allocation11 [shape = 's32[2]{0}', space=sflag, size = 0x8, scoped, tag = 'scoped memory for tpu_custom_call.1']
    #allocation12 [shape = 's32[2]{0}', space=sflag, size = 0x8, scoped, tag = 'scoped memory for tpu_custom_call.1']
    #allocation13 [shape = 'u8[65536]{0}', space=vmem, size = 0x10000, scoped, tag = 'input window, operand 1, single buffered']
    #allocation14 [shape = 's32[1]{0}', space=sflag, size = 0x4, scoped, tag = 'scoped memory for tpu_custom_call.1']
    #allocation15 [shape = 'u8[65536]{0}', space=vmem, size = 0x10000, scoped, tag = 'input window, operand 2, single buffered']
    #allocation16 [shape = 'u8[8192]{0}', space=vmem, size = 0x2000, scoped, tag = 'input window, operand 3, single buffered']
    #allocation17 [shape = 's32[1]{0}', space=sflag, size = 0x4, scoped, tag = 'scoped memory for tpu_custom_call.1']
    #allocation18 [shape = 'u8[65536]{0}', space=vmem, size = 0x10000, scoped, tag = 'input window, operand 6, single buffered']
    #allocation19 [shape = 'u8[8192]{0}', space=vmem, size = 0x2000, scoped, tag = 'input window, operand 7, single buffered']
    #allocation20 [shape = 's32[1]{0}', space=sflag, size = 0x4, scoped, tag = 'scoped memory for tpu_custom_call.1']
    #allocation21 [shape = 'u8[8192]{0}', space=vmem, size = 0x2000, scoped, tag = 'input window, operand 8, single buffered']
    #allocation22 [shape = 'u8[65536]{0}', space=vmem, size = 0x10000, scoped, tag = 'input window, operand 11, single buffered']
    #allocation23 [shape = 's32[1]{0}', space=sflag, size = 0x4, scoped, tag = 'scoped memory for tpu_custom_call.1']
    #allocation24 [shape = 'u8[8192]{0}', space=vmem, size = 0x2000, scoped, tag = 'input window, operand 13, single buffered']
    #allocation25 [shape = 'u8[16384]{0}', space=vmem, size = 0x4000, scoped, tag = 'input window, operand 14, single buffered']
    #allocation26 [shape = 's32[1]{0}', space=sflag, size = 0x4, scoped, tag = 'scoped memory for tpu_custom_call.1']
    #allocation27 [shape = 'u8[16384]{0}', space=vmem, size = 0x4000, scoped, tag = 'input window, operand 17, single buffered']
    #allocation28 [shape = 'u8[16384]{0}', space=vmem, size = 0x4000, scoped, tag = 'output window, operand 0']
    %24 = vsyncpa [#allocation11], 0
    %s25 = scalar_lea.sflag [#allocation11], 1
    %26 = vsyncpa %s25, 0
    %27 = vsyncpa [#allocation14], 0
    %28 = vsyncpa [#allocation17], 0
    %29 = vsyncpa [#allocation20], 0
    %30 = vsyncpa [#allocation23], 0
    %31 = vsyncpa [#allocation26], 0
    %32 = vsyncpa [#allocation12], 0
    %s33 = scalar_lea.sflag [#allocation12], 1
    %34 = vsyncpa %s33, 0
    loop: start=0, step=1, limit=5
    $region2: #{tpu_custom_call.1} parent=1 // loop_pre_header
      _
    $region3: #{tpu_custom_call.1} parent=1 // loop_header
      %s36 = sphi 0, %s40
      %p37 = scmp.ge.s32.totalorder %s36, 5
      %s46 = sphi 0, %s48
      %s49 = sphi 0, %s46
      %s50 = sphi 0, %s49
      %s66 = sphi 0, %s50
      %s70 = sphi 0, %s70
      %s72 = sphi 0, %s70
      %s73 = sphi 0, %s72
      %s87 = sphi 0, %s73
      %s91 = sphi 0, %s91
      %s93 = sphi 0, %s91
      %s94 = sphi 0, %s93
      %s108 = sphi 0, %s94
      %s112 = sphi 0, %s112
      %s114 = sphi 0, %s112
      %s115 = sphi 0, %s114
      %s129 = sphi 0, %s115
      %s133 = sphi 0, %s133
      %s135 = sphi 0, %s133
      %s136 = sphi 0, %s135
      %s150 = sphi 0, %s136
      %s154 = sphi 0, %s154
      %s156 = sphi 0, %s154
      %s157 = sphi 0, %s156
      %s171 = sphi 0, %s157
      %s175 = sphi 0, %s175
      %s177 = sphi 0, %s175
      %s178 = sphi 0, %s177
      %s192 = sphi 0, %s178
      %s196 = sphi 0, %s196
      %s198 = sphi 0, %s196
      %s199 = sphi 0, %s198
      %s213 = sphi 0, %s199
      %s217 = sphi 0, %s217
      %s219 = sphi 0, %s217
      %s220 = sphi 0, %s219
      %s234 = sphi 0, %s220
      %s238 = sphi 0, %s238
      %s240 = sphi 0, %s238
      %s241 = sphi 0, %s240
      %s255 = sphi 0, %s241
      %s259 = sphi 0, %s259
      %s261 = sphi 0, %s259
      %s262 = sphi 0, %s261
      %s276 = sphi 0, %s262
      %s280 = sphi 0, %s280
      %s282 = sphi 0, %s280
      %s283 = sphi 0, %s282
      %s297 = sphi 0, %s283
      %s301 = sphi 0, %s301
      %s303 = sphi 0, %s301
      %s304 = sphi 0, %s303
      %s318 = sphi 0, %s304
      %s322 = sphi 0, %s322
      %s324 = sphi 0, %s322
      %s325 = sphi 0, %s324
      %s339 = sphi 0, %s325
      %s343 = sphi 0, %s343
      %s345 = sphi 0, %s343
      %s346 = sphi 0, %s345
      %s360 = sphi 0, %s346
      %s364 = sphi 0, %s364
      %s366 = sphi 0, %s364
      %s367 = sphi 0, %s366
      %s381 = sphi 0, %s367
      %s385 = sphi 0, %s385
      %s387 = sphi 0, %s385
      %s388 = sphi 0, %s387
      %s402 = sphi 0, %s388
      %s406 = sphi 0, %s406
      %s408 = sphi 0, %s406
      %s409 = sphi 0, %s408
      %s423 = sphi 0, %s409
      %s427 = sphi 0, %s427
      %s429 = sphi 0, %s427
      %s430 = sphi 0, %s429
      %s444 = sphi 0, %s430
      %s450 = sphi 0, %s452
      %s453 = sphi 0, %s450
      %s454 = sphi 0, %s453
      %s470 = sphi 0, %s454
    $region4: #{tpu_custom_call.1} parent=1 // loop_header_branch
      %39 = sbr.rel (%p37) target = $region8
    $region5: #{tpu_custom_call.1} parent=1 // loop_body
      %s41 = ssub.s32 %s36, 1
      %s42 = ssub.s32 %s36, 2
      %s43 = sadd.s32 %s36, 1
      %s44 = ssub.s32 %s36, %s43
      %p45 = scmp.eq.s32.totalorder %s44, 0
      %s47 = sadd.s32 %s46, 1
      %s48 = scalar_select %p45, %s46, %s47
      %p51 = pneg %p45
      %p52 = scmp.eq.s32.totalorder %s36, 2
      %p53 = por %p51, %p52
      %p54 = scmp.ne.s32.totalorder %s46, %s49
      %p55 = scmp.eq.s32.totalorder %s36, 0
      %p56 = por %p54, %p55
      %p57 = scmp.ne.s32.totalorder %s46, %s49
      %p58 = scmp.eq.s32.totalorder %s41, 2
      %p59 = por %p57, %p58
      %p60 = scmp.ne.s32.totalorder %s49, %s50
      %p61 = scmp.eq.s32.totalorder %s41, 0
      %p62 = por %p60, %p61
      %p63 = scmp.ne.s32.totalorder %s49, %s50
      %p64 = scmp.eq.s32.totalorder %s42, 2
      %p65 = por %p63, %p64
      %p67 = scmp.ne.s32.totalorder %s50, %s66
      %p68 = scmp.eq.s32.totalorder %s42, 0
      %p69 = por %p67, %p68
      %s71 = sadd.s32 %s70, 1
      %p74 = scmp.eq.s32.totalorder %s36, 2
      %p75 = scmp.ne.s32.totalorder %s70, %s72
      %p76 = scmp.eq.s32.totalorder %s36, 0
      %p77 = por %p75, %p76
      %p78 = scmp.ne.s32.totalorder %s70, %s72
      %p79 = scmp.eq.s32.totalorder %s41, 2
      %p80 = por %p78, %p79
      %p81 = scmp.ne.s32.totalorder %s72, %s73
      %p82 = scmp.eq.s32.totalorder %s41, 0
      %p83 = por %p81, %p82
      %p84 = scmp.ne.s32.totalorder %s72, %s73
      %p85 = scmp.eq.s32.totalorder %s42, 2
      %p86 = por %p84, %p85
      %p88 = scmp.ne.s32.totalorder %s73, %s87
      %p89 = scmp.eq.s32.totalorder %s42, 0
      %p90 = por %p88, %p89
      %s92 = sadd.s32 %s91, 1
      %p95 = scmp.eq.s32.totalorder %s36, 2
      %p96 = scmp.ne.s32.totalorder %s91, %s93
      %p97 = scmp.eq.s32.totalorder %s36, 0
      %p98 = por %p96, %p97
      %p99 = scmp.ne.s32.totalorder %s91, %s93
      %p100 = scmp.eq.s32.totalorder %s41, 2
      %p101 = por %p99, %p100
      %p102 = scmp.ne.s32.totalorder %s93, %s94
      %p103 = scmp.eq.s32.totalorder %s41, 0
      %p104 = por %p102, %p103
      %p105 = scmp.ne.s32.totalorder %s93, %s94
      %p106 = scmp.eq.s32.totalorder %s42, 2
      %p107 = por %p105, %p106
      %p109 = scmp.ne.s32.totalorder %s94, %s108
      %p110 = scmp.eq.s32.totalorder %s42, 0
      %p111 = por %p109, %p110
      %s113 = sadd.s32 %s112, 1
      %p116 = scmp.eq.s32.totalorder %s36, 2
      %p117 = scmp.ne.s32.totalorder %s112, %s114
      %p118 = scmp.eq.s32.totalorder %s36, 0
      %p119 = por %p117, %p118
      %p120 = scmp.ne.s32.totalorder %s112, %s114
      %p121 = scmp.eq.s32.totalorder %s41, 2
      %p122 = por %p120, %p121
      %p123 = scmp.ne.s32.totalorder %s114, %s115
      %p124 = scmp.eq.s32.totalorder %s41, 0
      %p125 = por %p123, %p124
      %p126 = scmp.ne.s32.totalorder %s114, %s115
      %p127 = scmp.eq.s32.totalorder %s42, 2
      %p128 = por %p126, %p127
      %p130 = scmp.ne.s32.totalorder %s115, %s129
      %p131 = scmp.eq.s32.totalorder %s42, 0
      %p132 = por %p130, %p131
      %s134 = sadd.s32 %s133, 1
      %p137 = scmp.eq.s32.totalorder %s36, 2
      %p138 = scmp.ne.s32.totalorder %s133, %s135
      %p139 = scmp.eq.s32.totalorder %s36, 0
      %p140 = por %p138, %p139
      %p141 = scmp.ne.s32.totalorder %s133, %s135
      %p142 = scmp.eq.s32.totalorder %s41, 2
      %p143 = por %p141, %p142
      %p144 = scmp.ne.s32.totalorder %s135, %s136
      %p145 = scmp.eq.s32.totalorder %s41, 0
      %p146 = por %p144, %p145
      %p147 = scmp.ne.s32.totalorder %s135, %s136
      %p148 = scmp.eq.s32.totalorder %s42, 2
      %p149 = por %p147, %p148
      %p151 = scmp.ne.s32.totalorder %s136, %s150
      %p152 = scmp.eq.s32.totalorder %s42, 0
      %p153 = por %p151, %p152
      %s155 = sadd.s32 %s154, 1
      %p158 = scmp.eq.s32.totalorder %s36, 2
      %p159 = scmp.ne.s32.totalorder %s154, %s156
      %p160 = scmp.eq.s32.totalorder %s36, 0
      %p161 = por %p159, %p160
      %p162 = scmp.ne.s32.totalorder %s154, %s156
      %p163 = scmp.eq.s32.totalorder %s41, 2
      %p164 = por %p162, %p163
      %p165 = scmp.ne.s32.totalorder %s156, %s157
      %p166 = scmp.eq.s32.totalorder %s41, 0
      %p167 = por %p165, %p166
      %p168 = scmp.ne.s32.totalorder %s156, %s157
      %p169 = scmp.eq.s32.totalorder %s42, 2
      %p170 = por %p168, %p169
      %p172 = scmp.ne.s32.totalorder %s157, %s171
      %p173 = scmp.eq.s32.totalorder %s42, 0
      %p174 = por %p172, %p173
      %s176 = sadd.s32 %s175, 1
      %p179 = scmp.eq.s32.totalorder %s36, 2
      %p180 = scmp.ne.s32.totalorder %s175, %s177
      %p181 = scmp.eq.s32.totalorder %s36, 0
      %p182 = por %p180, %p181
      %p183 = scmp.ne.s32.totalorder %s175, %s177
      %p184 = scmp.eq.s32.totalorder %s41, 2
      %p185 = por %p183, %p184
      %p186 = scmp.ne.s32.totalorder %s177, %s178
      %p187 = scmp.eq.s32.totalorder %s41, 0
      %p188 = por %p186, %p187
      %p189 = scmp.ne.s32.totalorder %s177, %s178
      %p190 = scmp.eq.s32.totalorder %s42, 2
      %p191 = por %p189, %p190
      %p193 = scmp.ne.s32.totalorder %s178, %s192
      %p194 = scmp.eq.s32.totalorder %s42, 0
      %p195 = por %p193, %p194
      %s197 = sadd.s32 %s196, 1
      %p200 = scmp.eq.s32.totalorder %s36, 2
      %p201 = scmp.ne.s32.totalorder %s196, %s198
      %p202 = scmp.eq.s32.totalorder %s36, 0
      %p203 = por %p201, %p202
      %p204 = scmp.ne.s32.totalorder %s196, %s198
      %p205 = scmp.eq.s32.totalorder %s41, 2
      %p206 = por %p204, %p205
      %p207 = scmp.ne.s32.totalorder %s198, %s199
      %p208 = scmp.eq.s32.totalorder %s41, 0
      %p209 = por %p207, %p208
      %p210 = scmp.ne.s32.totalorder %s198, %s199
      %p211 = scmp.eq.s32.totalorder %s42, 2
      %p212 = por %p210, %p211
      %p214 = scmp.ne.s32.totalorder %s199, %s213
      %p215 = scmp.eq.s32.totalorder %s42, 0
      %p216 = por %p214, %p215
      %s218 = sadd.s32 %s217, 1
      %p221 = scmp.eq.s32.totalorder %s36, 2
      %p222 = scmp.ne.s32.totalorder %s217, %s219
      %p223 = scmp.eq.s32.totalorder %s36, 0
      %p224 = por %p222, %p223
      %p225 = scmp.ne.s32.totalorder %s217, %s219
      %p226 = scmp.eq.s32.totalorder %s41, 2
      %p227 = por %p225, %p226
      %p228 = scmp.ne.s32.totalorder %s219, %s220
      %p229 = scmp.eq.s32.totalorder %s41, 0
      %p230 = por %p228, %p229
      %p231 = scmp.ne.s32.totalorder %s219, %s220
      %p232 = scmp.eq.s32.totalorder %s42, 2
      %p233 = por %p231, %p232
      %p235 = scmp.ne.s32.totalorder %s220, %s234
      %p236 = scmp.eq.s32.totalorder %s42, 0
      %p237 = por %p235, %p236
      %s239 = sadd.s32 %s238, 1
      %p242 = scmp.eq.s32.totalorder %s36, 2
      %p243 = scmp.ne.s32.totalorder %s238, %s240
      %p244 = scmp.eq.s32.totalorder %s36, 0
      %p245 = por %p243, %p244
      %p246 = scmp.ne.s32.totalorder %s238, %s240
      %p247 = scmp.eq.s32.totalorder %s41, 2
      %p248 = por %p246, %p247
      %p249 = scmp.ne.s32.totalorder %s240, %s241
      %p250 = scmp.eq.s32.totalorder %s41, 0
      %p251 = por %p249, %p250
      %p252 = scmp.ne.s32.totalorder %s240, %s241
      %p253 = scmp.eq.s32.totalorder %s42, 2
      %p254 = por %p252, %p253
      %p256 = scmp.ne.s32.totalorder %s241, %s255
      %p257 = scmp.eq.s32.totalorder %s42, 0
      %p258 = por %p256, %p257
      %s260 = sadd.s32 %s259, 1
      %p263 = scmp.eq.s32.totalorder %s36, 2
      %p264 = scmp.ne.s32.totalorder %s259, %s261
      %p265 = scmp.eq.s32.totalorder %s36, 0
      %p266 = por %p264, %p265
      %p267 = scmp.ne.s32.totalorder %s259, %s261
      %p268 = scmp.eq.s32.totalorder %s41, 2
      %p269 = por %p267, %p268
      %p270 = scmp.ne.s32.totalorder %s261, %s262
      %p271 = scmp.eq.s32.totalorder %s41, 0
      %p272 = por %p270, %p271
      %p273 = scmp.ne.s32.totalorder %s261, %s262
      %p274 = scmp.eq.s32.totalorder %s42, 2
      %p275 = por %p273, %p274
      %p277 = scmp.ne.s32.totalorder %s262, %s276
      %p278 = scmp.eq.s32.totalorder %s42, 0
      %p279 = por %p277, %p278
      %s281 = sadd.s32 %s280, 1
      %p284 = scmp.eq.s32.totalorder %s36, 2
      %p285 = scmp.ne.s32.totalorder %s280, %s282
      %p286 = scmp.eq.s32.totalorder %s36, 0
      %p287 = por %p285, %p286
      %p288 = scmp.ne.s32.totalorder %s280, %s282
      %p289 = scmp.eq.s32.totalorder %s41, 2
      %p290 = por %p288, %p289
      %p291 = scmp.ne.s32.totalorder %s282, %s283
      %p292 = scmp.eq.s32.totalorder %s41, 0
      %p293 = por %p291, %p292
      %p294 = scmp.ne.s32.totalorder %s282, %s283
      %p295 = scmp.eq.s32.totalorder %s42, 2
      %p296 = por %p294, %p295
      %p298 = scmp.ne.s32.totalorder %s283, %s297
      %p299 = scmp.eq.s32.totalorder %s42, 0
      %p300 = por %p298, %p299
      %s302 = sadd.s32 %s301, 1
      %p305 = scmp.eq.s32.totalorder %s36, 2
      %p306 = scmp.ne.s32.totalorder %s301, %s303
      %p307 = scmp.eq.s32.totalorder %s36, 0
      %p308 = por %p306, %p307
      %p309 = scmp.ne.s32.totalorder %s301, %s303
      %p310 = scmp.eq.s32.totalorder %s41, 2
      %p311 = por %p309, %p310
      %p312 = scmp.ne.s32.totalorder %s303, %s304
      %p313 = scmp.eq.s32.totalorder %s41, 0
      %p314 = por %p312, %p313
      %p315 = scmp.ne.s32.totalorder %s303, %s304
      %p316 = scmp.eq.s32.totalorder %s42, 2
      %p317 = por %p315, %p316
      %p319 = scmp.ne.s32.totalorder %s304, %s318
      %p320 = scmp.eq.s32.totalorder %s42, 0
      %p321 = por %p319, %p320
      %s323 = sadd.s32 %s322, 1
      %p326 = scmp.eq.s32.totalorder %s36, 2
      %p327 = scmp.ne.s32.totalorder %s322, %s324
      %p328 = scmp.eq.s32.totalorder %s36, 0
      %p329 = por %p327, %p328
      %p330 = scmp.ne.s32.totalorder %s322, %s324
      %p331 = scmp.eq.s32.totalorder %s41, 2
      %p332 = por %p330, %p331
      %p333 = scmp.ne.s32.totalorder %s324, %s325
      %p334 = scmp.eq.s32.totalorder %s41, 0
      %p335 = por %p333, %p334
      %p336 = scmp.ne.s32.totalorder %s324, %s325
      %p337 = scmp.eq.s32.totalorder %s42, 2
      %p338 = por %p336, %p337
      %p340 = scmp.ne.s32.totalorder %s325, %s339
      %p341 = scmp.eq.s32.totalorder %s42, 0
      %p342 = por %p340, %p341
      %s344 = sadd.s32 %s343, 1
      %p347 = scmp.eq.s32.totalorder %s36, 2
      %p348 = scmp.ne.s32.totalorder %s343, %s345
      %p349 = scmp.eq.s32.totalorder %s36, 0
      %p350 = por %p348, %p349
      %p351 = scmp.ne.s32.totalorder %s343, %s345
      %p352 = scmp.eq.s32.totalorder %s41, 2
      %p353 = por %p351, %p352
      %p354 = scmp.ne.s32.totalorder %s345, %s346
      %p355 = scmp.eq.s32.totalorder %s41, 0
      %p356 = por %p354, %p355
      %p357 = scmp.ne.s32.totalorder %s345, %s346
      %p358 = scmp.eq.s32.totalorder %s42, 2
      %p359 = por %p357, %p358
      %p361 = scmp.ne.s32.totalorder %s346, %s360
      %p362 = scmp.eq.s32.totalorder %s42, 0
      %p363 = por %p361, %p362
      %s365 = sadd.s32 %s364, 1
      %p368 = scmp.eq.s32.totalorder %s36, 2
      %p369 = scmp.ne.s32.totalorder %s364, %s366
      %p370 = scmp.eq.s32.totalorder %s36, 0
      %p371 = por %p369, %p370
      %p372 = scmp.ne.s32.totalorder %s364, %s366
      %p373 = scmp.eq.s32.totalorder %s41, 2
      %p374 = por %p372, %p373
      %p375 = scmp.ne.s32.totalorder %s366, %s367
      %p376 = scmp.eq.s32.totalorder %s41, 0
      %p377 = por %p375, %p376
      %p378 = scmp.ne.s32.totalorder %s366, %s367
      %p379 = scmp.eq.s32.totalorder %s42, 2
      %p380 = por %p378, %p379
      %p382 = scmp.ne.s32.totalorder %s367, %s381
      %p383 = scmp.eq.s32.totalorder %s42, 0
      %p384 = por %p382, %p383
      %s386 = sadd.s32 %s385, 1
      %p389 = scmp.eq.s32.totalorder %s36, 2
      %p390 = scmp.ne.s32.totalorder %s385, %s387
      %p391 = scmp.eq.s32.totalorder %s36, 0
      %p392 = por %p390, %p391
      %p393 = scmp.ne.s32.totalorder %s385, %s387
      %p394 = scmp.eq.s32.totalorder %s41, 2
      %p395 = por %p393, %p394
      %p396 = scmp.ne.s32.totalorder %s387, %s388
      %p397 = scmp.eq.s32.totalorder %s41, 0
      %p398 = por %p396, %p397
      %p399 = scmp.ne.s32.totalorder %s387, %s388
      %p400 = scmp.eq.s32.totalorder %s42, 2
      %p401 = por %p399, %p400
      %p403 = scmp.ne.s32.totalorder %s388, %s402
      %p404 = scmp.eq.s32.totalorder %s42, 0
      %p405 = por %p403, %p404
      %s407 = sadd.s32 %s406, 1
      %p410 = scmp.eq.s32.totalorder %s36, 2
      %p411 = scmp.ne.s32.totalorder %s406, %s408
      %p412 = scmp.eq.s32.totalorder %s36, 0
      %p413 = por %p411, %p412
      %p414 = scmp.ne.s32.totalorder %s406, %s408
      %p415 = scmp.eq.s32.totalorder %s41, 2
      %p416 = por %p414, %p415
      %p417 = scmp.ne.s32.totalorder %s408, %s409
      %p418 = scmp.eq.s32.totalorder %s41, 0
      %p419 = por %p417, %p418
      %p420 = scmp.ne.s32.totalorder %s408, %s409
      %p421 = scmp.eq.s32.totalorder %s42, 2
      %p422 = por %p420, %p421
      %p424 = scmp.ne.s32.totalorder %s409, %s423
      %p425 = scmp.eq.s32.totalorder %s42, 0
      %p426 = por %p424, %p425
      %s428 = sadd.s32 %s427, 1
      %p431 = scmp.eq.s32.totalorder %s36, 2
      %p432 = scmp.ne.s32.totalorder %s427, %s429
      %p433 = scmp.eq.s32.totalorder %s36, 0
      %p434 = por %p432, %p433
      %p435 = scmp.ne.s32.totalorder %s427, %s429
      %p436 = scmp.eq.s32.totalorder %s41, 2
      %p437 = por %p435, %p436
      %p438 = scmp.ne.s32.totalorder %s429, %s430
      %p439 = scmp.eq.s32.totalorder %s41, 0
      %p440 = por %p438, %p439
      %p441 = scmp.ne.s32.totalorder %s429, %s430
      %p442 = scmp.eq.s32.totalorder %s42, 2
      %p443 = por %p441, %p442
      %p445 = scmp.ne.s32.totalorder %s430, %s444
      %p446 = scmp.eq.s32.totalorder %s42, 0
      %p447 = por %p445, %p446
      %s448 = ssub.s32 %s36, %s43
      %p449 = scmp.eq.s32.totalorder %s448, 0
      %s451 = sadd.s32 %s450, 1
      %s452 = scalar_select %p449, %s450, %s451
      %p455 = pneg %p449
      %p456 = scmp.eq.s32.totalorder %s36, 2
      %p457 = por %p455, %p456
      %p458 = scmp.ne.s32.totalorder %s450, %s453
      %p459 = scmp.eq.s32.totalorder %s36, 0
      %p460 = por %p458, %p459
      %p461 = scmp.ne.s32.totalorder %s450, %s453
      %p462 = scmp.eq.s32.totalorder %s41, 2
      %p463 = por %p461, %p462
      %p464 = scmp.ne.s32.totalorder %s453, %s454
      %p465 = scmp.eq.s32.totalorder %s41, 0
      %p466 = por %p464, %p465
      %p467 = scmp.ne.s32.totalorder %s453, %s454
      %p468 = scmp.eq.s32.totalorder %s42, 2
      %p469 = por %p467, %p468
      %p471 = scmp.ne.s32.totalorder %s454, %s470
      %p472 = scmp.eq.s32.totalorder %s42, 0
      %p473 = por %p471, %p472
      %p474 = scmp.le.s32.totalorder 1, %s36
      %p475 = scmp.lt.s32.totalorder %s36, 4
      %p476 = pnand %p474, %p475
      %p477 = pneg %p476
      // Predicated region
      $region9: #{tpu_custom_call.1} parent=5 // pred_check
        _
      $region10: #{tpu_custom_call.1} parent=5 // pred_check_branch
        %479 = sbr.rel (%p476) target = $region12
      $region11: #{tpu_custom_call.1} parent=5 // pred_region
        %s480 = ssub.s32 %s36, 1
        // Predicated region
        $region13: #{tpu_custom_call.1} parent=11 // pred_check
          %p481 = pneg %p83
        $region14: #{tpu_custom_call.1} parent=11 // pred_check_branch
          %483 = sbr.rel (%p481) target = $region16
        $region15: #{tpu_custom_call.1} parent=11 // pred_region
          %s485 = ssub.s32 2048, 2048
          %486 = vsyncadd [#allocation14], %s485
          %s487 = sshll.u32 [#allocation13], 4
          %s488 = int_to_ptr.vmem [resolvable:$true] %s487
          %493 = dma.hbm_to_vmem [thread:$0]  %s1, 2048, %s488, [#allocation14], 128, 128, 8
        $region16: #{tpu_custom_call.1} parent=11 // pred_fallthru
          _
        // Predicated region
        $region17: #{tpu_custom_call.1} parent=11 // pred_check
          %p494 = pneg %p104
        $region18: #{tpu_custom_call.1} parent=11 // pred_check_branch
          %496 = sbr.rel (%p494) target = $region20
        $region19: #{tpu_custom_call.1} parent=11 // pred_region
          %s498 = ssub.s32 2048, 2048
          %499 = vsyncadd [#allocation14], %s498
          %s500 = sshll.u32 [#allocation15], 4
          %s501 = int_to_ptr.vmem [resolvable:$true] %s500
          %506 = dma.hbm_to_vmem [thread:$0]  %s2, 2048, %s501, [#allocation14], 128, 128, 8
        $region20: #{tpu_custom_call.1} parent=11 // pred_fallthru
          _
        // Predicated region
        $region21: #{tpu_custom_call.1} parent=11 // pred_check
          %p507 = pneg %p125
        $region22: #{tpu_custom_call.1} parent=11 // pred_check_branch
          %509 = sbr.rel (%p507) target = $region24
        $region23: #{tpu_custom_call.1} parent=11 // pred_region
          %s511 = ssub.s32 256, 256
          %512 = vsyncadd [#allocation17], %s511
          %s513 = sshll.u32 [#allocation16], 4
          %s514 = int_to_ptr.vmem [resolvable:$true] %s513
          %519 = dma.hbm_to_vmem [thread:$0]  %s3, 256, %s514, [#allocation17], 128, 128, 8
        $region24: #{tpu_custom_call.1} parent=11 // pred_fallthru
          _
        // Predicated region
        $region25: #{tpu_custom_call.1} parent=11 // pred_check
          %p520 = pneg %p146
        $region26: #{tpu_custom_call.1} parent=11 // pred_check_branch
          %522 = sbr.rel (%p520) target = $region28
        $region27: #{tpu_custom_call.1} parent=11 // pred_region
          _
        $region28: #{tpu_custom_call.1} parent=11 // pred_fallthru
          _
        // Predicated region
        $region29: #{tpu_custom_call.1} parent=11 // pred_check
          %p523 = pneg %p167
        $region30: #{tpu_custom_call.1} parent=11 // pred_check_branch
          %525 = sbr.rel (%p523) target = $region32
        $region31: #{tpu_custom_call.1} parent=11 // pred_region
          _
        $region32: #{tpu_custom_call.1} parent=11 // pred_fallthru
          _
        // Predicated region
        $region33: #{tpu_custom_call.1} parent=11 // pred_check
          %p526 = pneg %p188
        $region34: #{tpu_custom_call.1} parent=11 // pred_check_branch
          %528 = sbr.rel (%p526) target = $region36
        $region35: #{tpu_custom_call.1} parent=11 // pred_region
          %s530 = ssub.s32 2048, 2048
          %531 = vsyncadd [#allocation17], %s530
          %s532 = sshll.u32 [#allocation18], 4
          %s533 = int_to_ptr.vmem [resolvable:$true] %s532
          %538 = dma.hbm_to_vmem [thread:$0]  %s6, 2048, %s533, [#allocation17], 128, 128, 8
        $region36: #{tpu_custom_call.1} parent=11 // pred_fallthru
          _
        // Predicated region
        $region37: #{tpu_custom_call.1} parent=11 // pred_check
          %p539 = pneg %p209
        $region38: #{tpu_custom_call.1} parent=11 // pred_check_branch
          %541 = sbr.rel (%p539) target = $region40
        $region39: #{tpu_custom_call.1} parent=11 // pred_region
          %s543 = ssub.s32 256, 256
          %544 = vsyncadd [#allocation20], %s543
          %s545 = sshll.u32 [#allocation19], 4
          %s546 = int_to_ptr.vmem [resolvable:$true] %s545
          %551 = dma.hbm_to_vmem [thread:$0]  %s7, 256, %s546, [#allocation20], 128, 128, 8
        $region40: #{tpu_custom_call.1} parent=11 // pred_fallthru
          _
        // Predicated region
        $region41: #{tpu_custom_call.1} parent=11 // pred_check
          %p552 = pneg %p230
        $region42: #{tpu_custom_call.1} parent=11 // pred_check_branch
          %554 = sbr.rel (%p552) target = $region44
        $region43: #{tpu_custom_call.1} parent=11 // pred_region
          %s556 = ssub.s32 256, 256
          %557 = vsyncadd [#allocation20], %s556
          %s558 = sshll.u32 [#allocation21], 4
          %s559 = int_to_ptr.vmem [resolvable:$true] %s558
          %564 = dma.hbm_to_vmem [thread:$0]  %s8, 256, %s559, [#allocation20], 128, 128, 8
        $region44: #{tpu_custom_call.1} parent=11 // pred_fallthru
          _
        // Predicated region
        $region45: #{tpu_custom_call.1} parent=11 // pred_check
          %p565 = pneg %p251
        $region46: #{tpu_custom_call.1} parent=11 // pred_check_branch
          %567 = sbr.rel (%p565) target = $region48
        $region47: #{tpu_custom_call.1} parent=11 // pred_region
          _
        $region48: #{tpu_custom_call.1} parent=11 // pred_fallthru
          _
        // Predicated region
        $region49: #{tpu_custom_call.1} parent=11 // pred_check
          %p568 = pneg %p272
        $region50: #{tpu_custom_call.1} parent=11 // pred_check_branch
          %570 = sbr.rel (%p568) target = $region52
        $region51: #{tpu_custom_call.1} parent=11 // pred_region
          _
        $region52: #{tpu_custom_call.1} parent=11 // pred_fallthru
          _
        // Predicated region
        $region53: #{tpu_custom_call.1} parent=11 // pred_check
          %p571 = pneg %p293
        $region54: #{tpu_custom_call.1} parent=11 // pred_check_branch
          %573 = sbr.rel (%p571) target = $region56
        $region55: #{tpu_custom_call.1} parent=11 // pred_region
          %s575 = ssub.s32 2048, 2048
          %576 = vsyncadd [#allocation23], %s575
          %s577 = sshll.u32 [#allocation22], 4
          %s578 = int_to_ptr.vmem [resolvable:$true] %s577
          %583 = dma.hbm_to_vmem [thread:$0]  %s11, 2048, %s578, [#allocation23], 128, 128, 8
        $region56: #{tpu_custom_call.1} parent=11 // pred_fallthru
          _
        // Predicated region
        $region57: #{tpu_custom_call.1} parent=11 // pred_check
          %p584 = pneg %p314
        $region58: #{tpu_custom_call.1} parent=11 // pred_check_branch
          %586 = sbr.rel (%p584) target = $region60
        $region59: #{tpu_custom_call.1} parent=11 // pred_region
          _
        $region60: #{tpu_custom_call.1} parent=11 // pred_fallthru
          _
        // Predicated region
        $region61: #{tpu_custom_call.1} parent=11 // pred_check
          %p587 = pneg %p335
        $region62: #{tpu_custom_call.1} parent=11 // pred_check_branch
          %589 = sbr.rel (%p587) target = $region64
        $region63: #{tpu_custom_call.1} parent=11 // pred_region
          %s591 = ssub.s32 256, 256
          %592 = vsyncadd [#allocation23], %s591
          %s593 = sshll.u32 [#allocation24], 4
          %s594 = int_to_ptr.vmem [resolvable:$true] %s593
          %599 = dma.hbm_to_vmem [thread:$0]  %s13, 256, %s594, [#allocation23], 128, 128, 8
        $region64: #{tpu_custom_call.1} parent=11 // pred_fallthru
          _
        // Predicated region
        $region65: #{tpu_custom_call.1} parent=11 // pred_check
          %p600 = pneg %p356
        $region66: #{tpu_custom_call.1} parent=11 // pred_check_branch
          %602 = sbr.rel (%p600) target = $region68
        $region67: #{tpu_custom_call.1} parent=11 // pred_region
          %s604 = ssub.s32 512, 512
          %605 = vsyncadd [#allocation26], %s604
          %s606 = sshll.u32 [#allocation25], 4
          %s607 = int_to_ptr.vmem [resolvable:$true] %s606
          %612 = dma.hbm_to_vmem [thread:$0]  %s14, 512, %s607, [#allocation26], 128, 128, 8
        $region68: #{tpu_custom_call.1} parent=11 // pred_fallthru
          _
        // Predicated region
        $region69: #{tpu_custom_call.1} parent=11 // pred_check
          %p613 = pneg %p377
        $region70: #{tpu_custom_call.1} parent=11 // pred_check_branch
          %615 = sbr.rel (%p613) target = $region72
        $region71: #{tpu_custom_call.1} parent=11 // pred_region
          _
        $region72: #{tpu_custom_call.1} parent=11 // pred_fallthru
          _
        // Predicated region
        $region73: #{tpu_custom_call.1} parent=11 // pred_check
          %p616 = pneg %p398
        $region74: #{tpu_custom_call.1} parent=11 // pred_check_branch
          %618 = sbr.rel (%p616) target = $region76
        $region75: #{tpu_custom_call.1} parent=11 // pred_region
          _
        $region76: #{tpu_custom_call.1} parent=11 // pred_fallthru
          _
        // Predicated region
        $region77: #{tpu_custom_call.1} parent=11 // pred_check
          %p619 = pneg %p419
        $region78: #{tpu_custom_call.1} parent=11 // pred_check_branch
          %621 = sbr.rel (%p619) target = $region80
        $region79: #{tpu_custom_call.1} parent=11 // pred_region
          %s623 = ssub.s32 512, 512
          %624 = vsyncadd [#allocation26], %s623
          %s625 = sshll.u32 [#allocation27], 4
          %s626 = int_to_ptr.vmem [resolvable:$true] %s625
          %631 = dma.hbm_to_vmem [thread:$0]  %s17, 512, %s626, [#allocation26], 128, 128, 8
        $region80: #{tpu_custom_call.1} parent=11 // pred_fallthru
          _
        // Predicated region
        $region81: #{tpu_custom_call.1} parent=11 // pred_check
          %p632 = pneg %p440
        $region82: #{tpu_custom_call.1} parent=11 // pred_check_branch
          %634 = sbr.rel (%p632) target = $region84
        $region83: #{tpu_custom_call.1} parent=11 // pred_region
          _
        $region84: #{tpu_custom_call.1} parent=11 // pred_fallthru
          _
      $region12: #{tpu_custom_call.1} parent=5 // pred_fallthru
        _
      %p635 = scmp.lt.s32.totalorder %s36, 3
      // Predicated region
      $region85: #{tpu_custom_call.1} parent=5 // pred_check
        %p636 = pneg %p635
      $region86: #{tpu_custom_call.1} parent=5 // pred_check_branch
        %638 = sbr.rel (%p636) target = $region88
      $region87: #{tpu_custom_call.1} parent=5 // pred_region
        // Predicated region
        $region89: #{tpu_custom_call.1} parent=87 // pred_check
          %p639 = pneg %p56
        $region90: #{tpu_custom_call.1} parent=87 // pred_check_branch
          %641 = sbr.rel (%p639) target = $region92
        $region91: #{tpu_custom_call.1} parent=87 // pred_region
          %s642 = sand.u32 %s46, 1
          %s643 = scalar_lea.sflag [#allocation11], %s642
          %s644 = sand.u32 %s46, 1
          %s645 = smul.addr %s644, 16
          %s646 = scalar_lea.vmem [#allocation10], %s645
          %s647 = smul.u32 2, %s36
          %s649 = ssub.s32 256, 256
          %650 = vsyncadd %s643, %s649
          %s651 = smul.addr %s647, 128
          %s652 = scalar_lea.hbm %s0, %s651
          %s653 = sshll.u32 %s646, 4
          %s654 = int_to_ptr.vmem [resolvable:$true] %s653
          %659 = dma.hbm_to_vmem [thread:$0]  %s652, 256, %s654, %s643, 128, 128, 8
        $region92: #{tpu_custom_call.1} parent=87 // pred_fallthru
          _
      $region88: #{tpu_custom_call.1} parent=5 // pred_fallthru
        _
      %p660 = scmp.le.s32.totalorder 1, %s36
      %p661 = scmp.lt.s32.totalorder %s36, 4
      %p662 = pnand %p660, %p661
      %p663 = pneg %p662
      // Predicated region
      $region93: #{tpu_custom_call.1} parent=5 // pred_check
        _
      $region94: #{tpu_custom_call.1} parent=5 // pred_check_branch
        %665 = sbr.rel (%p662) target = $region96
      $region95: #{tpu_custom_call.1} parent=5 // pred_region
        %s666 = ssub.s32 %s36, 1
        %s667 = sand.u32 %s49, 1
        %s668 = scalar_lea.sflag [#allocation11], %s667
        %s669 = sand.u32 %s49, 1
        %s670 = smul.addr %s669, 16
        %s671 = scalar_lea.vmem [#allocation10], %s670
        // Predicated region
        $region97: #{tpu_custom_call.1} parent=95 // pred_check
          %p672 = pneg %p62
        $region98: #{tpu_custom_call.1} parent=95 // pred_check_branch
          %674 = sbr.rel (%p672) target = $region100
        $region99: #{tpu_custom_call.1} parent=95 // pred_region
          %675 = dma.done %s668, 256
        $region100: #{tpu_custom_call.1} parent=95 // pred_fallthru
          _
        // Predicated region
        $region101: #{tpu_custom_call.1} parent=95 // pred_check
          %p676 = pneg %p83
        $region102: #{tpu_custom_call.1} parent=95 // pred_check_branch
          %678 = sbr.rel (%p676) target = $region104
        $region103: #{tpu_custom_call.1} parent=95 // pred_region
          %679 = dma.done [#allocation14], 2048
        $region104: #{tpu_custom_call.1} parent=95 // pred_fallthru
          _
        // Predicated region
        $region105: #{tpu_custom_call.1} parent=95 // pred_check
          %p680 = pneg %p104
        $region106: #{tpu_custom_call.1} parent=95 // pred_check_branch
          %682 = sbr.rel (%p680) target = $region108
        $region107: #{tpu_custom_call.1} parent=95 // pred_region
          %683 = dma.done [#allocation14], 2048
        $region108: #{tpu_custom_call.1} parent=95 // pred_fallthru
          _
        // Predicated region
        $region109: #{tpu_custom_call.1} parent=95 // pred_check
          %p684 = pneg %p125
        $region110: #{tpu_custom_call.1} parent=95 // pred_check_branch
          %686 = sbr.rel (%p684) target = $region112
        $region111: #{tpu_custom_call.1} parent=95 // pred_region
          %687 = dma.done [#allocation17], 256
        $region112: #{tpu_custom_call.1} parent=95 // pred_fallthru
          _
        // Predicated region
        $region113: #{tpu_custom_call.1} parent=95 // pred_check
          %p688 = pneg %p188
        $region114: #{tpu_custom_call.1} parent=95 // pred_check_branch
          %690 = sbr.rel (%p688) target = $region116
        $region115: #{tpu_custom_call.1} parent=95 // pred_region
          %691 = dma.done [#allocation17], 2048
        $region116: #{tpu_custom_call.1} parent=95 // pred_fallthru
          _
        // Predicated region
        $region117: #{tpu_custom_call.1} parent=95 // pred_check
          %p692 = pneg %p209
        $region118: #{tpu_custom_call.1} parent=95 // pred_check_branch
          %694 = sbr.rel (%p692) target = $region120
        $region119: #{tpu_custom_call.1} parent=95 // pred_region
          %695 = dma.done [#allocation20], 256
        $region120: #{tpu_custom_call.1} parent=95 // pred_fallthru
          _
        // Predicated region
        $region121: #{tpu_custom_call.1} parent=95 // pred_check
          %p696 = pneg %p230
        $region122: #{tpu_custom_call.1} parent=95 // pred_check_branch
          %698 = sbr.rel (%p696) target = $region124
        $region123: #{tpu_custom_call.1} parent=95 // pred_region
          %699 = dma.done [#allocation20], 256
        $region124: #{tpu_custom_call.1} parent=95 // pred_fallthru
          _
        // Predicated region
        $region125: #{tpu_custom_call.1} parent=95 // pred_check
          %p700 = pneg %p293
        $region126: #{tpu_custom_call.1} parent=95 // pred_check_branch
          %702 = sbr.rel (%p700) target = $region128
        $region127: #{tpu_custom_call.1} parent=95 // pred_region
          %703 = dma.done [#allocation23], 2048
        $region128: #{tpu_custom_call.1} parent=95 // pred_fallthru
          _
        // Predicated region
        $region129: #{tpu_custom_call.1} parent=95 // pred_check
          %p704 = pneg %p335
        $region130: #{tpu_custom_call.1} parent=95 // pred_check_branch
          %706 = sbr.rel (%p704) target = $region132
        $region131: #{tpu_custom_call.1} parent=95 // pred_region
          %707 = dma.done [#allocation23], 256
        $region132: #{tpu_custom_call.1} parent=95 // pred_fallthru
          _
        // Predicated region
        $region133: #{tpu_custom_call.1} parent=95 // pred_check
          %p708 = pneg %p356
        $region134: #{tpu_custom_call.1} parent=95 // pred_check_branch
          %710 = sbr.rel (%p708) target = $region136
        $region135: #{tpu_custom_call.1} parent=95 // pred_region
          %711 = dma.done [#allocation26], 512
        $region136: #{tpu_custom_call.1} parent=95 // pred_fallthru
          _
        // Predicated region
        $region137: #{tpu_custom_call.1} parent=95 // pred_check
          %p712 = pneg %p419
        $region138: #{tpu_custom_call.1} parent=95 // pred_check_branch
          %714 = sbr.rel (%p712) target = $region140
        $region139: #{tpu_custom_call.1} parent=95 // pred_region
          %715 = dma.done [#allocation26], 512
        $region140: #{tpu_custom_call.1} parent=95 // pred_fallthru
          _
        %s716 = sand.u32 %s49, 1
        %s717 = scalar_lea.sflag [#allocation11], %s716
        %s718 = sand.u32 %s49, 1
        %s719 = smul.addr %s718, 16
        %s720 = scalar_lea.vmem [#allocation10], %s719
        %p721 = pneg %p62
        %p722 = pneg %p59
        %p723 = pneg %p83
        %p724 = pneg %p80
        %p725 = pneg %p104
        %p726 = pneg %p101
        %p727 = pneg %p125
        %p728 = pneg %p122
        %p729 = pneg %p146
        %p730 = pneg %p143
        %p731 = pneg %p167
        %p732 = pneg %p164
        %p733 = pneg %p188
        %p734 = pneg %p185
        %p735 = pneg %p209
        %p736 = pneg %p206
        %p737 = pneg %p230
        %p738 = pneg %p227
        %p739 = pneg %p251
        %p740 = pneg %p248
        %p741 = pneg %p272
        %p742 = pneg %p269
        %p743 = pneg %p293
        %p744 = pneg %p290
        %p745 = pneg %p314
        %p746 = pneg %p311
        %p747 = pneg %p335
        %p748 = pneg %p332
        %p749 = pneg %p356
        %p750 = pneg %p353
        %p751 = pneg %p377
        %p752 = pneg %p374
        %p753 = pneg %p398
        %p754 = pneg %p395
        %p755 = pneg %p419
        %p756 = pneg %p416
        %p757 = pneg %p440
        %p758 = pneg %p437
        %p759 = pneg %p466
        %p760 = pneg %p463
        %s761 = sand.u32 %s453, 1
        %s762 = scalar_lea.sflag [#allocation12], %s761
        %s763 = sand.u32 %s453, 1
        %s764 = smul.addr %s763, 16
        %s765 = scalar_lea.vmem [#allocation28], %s764
        %s766 = smul.u32 2, %s41
        %s767 = smul.u32 2, %s41
        %p768 = scmp.eq.s32.totalorder %s41, 0
        // Predicated region
        $region141: #{tpu_custom_call.1} parent=95 // pred_check
          %p769 = pneg %p768
        $region142: #{tpu_custom_call.1} parent=95 // pred_check_branch
          %771 = sbr.rel (%p769) target = $region144
        $region143: #{tpu_custom_call.1} parent=95 // pred_region
          %vm772 = vcmask 122880
          %773 = vst.msk [vmem:[#allocation7] sm:$0x1] %vm772, 0.0
          %774 = vst.msk [vmem:[#allocation8] sm:$0x1] %vm772, 0.0
          %vm775 = vcmask 253952
          %776 = vst.msk [vmem:[#allocation9] sm:$0x1] %vm775, 0.0
        $region144: #{tpu_custom_call.1} parent=95 // pred_fallthru
          _
        %v777 = vld [vmem:[%s671] sm:$0xff]
        %v778 = vld [vmem:[%s671 + $0x8] sm:$0xff]
        %v779 = vmul.f32 %v777, %v777
        %v780 = vmul.f32 %v778, %v778
        %v781 = vld [vmem:[#allocation13] sm:$0xff]
        %v782 = vld [vmem:[#allocation13 + $0x8] sm:$0xff]
        %v783 = vld [vmem:[#allocation13 + $0x10] sm:$0xff]
        %v784 = vld [vmem:[#allocation13 + $0x18] sm:$0xff]
        %v785 = vld [vmem:[#allocation13 + $0x20] sm:$0xff]
        %v786 = vld [vmem:[#allocation13 + $0x28] sm:$0xff]
        %v787 = vld [vmem:[#allocation13 + $0x30] sm:$0xff]
        %v788 = vld [vmem:[#allocation13 + $0x38] sm:$0xff]
        %v789 = vld [vmem:[#allocation13 + $0x40] sm:$0xff]
        %v790 = vld [vmem:[#allocation13 + $0x48] sm:$0xff]
        %v791 = vld [vmem:[#allocation13 + $0x50] sm:$0xff]
        %v792 = vld [vmem:[#allocation13 + $0x58] sm:$0xff]
        %v793 = vld [vmem:[#allocation13 + $0x60] sm:$0xff]
        %v794 = vld [vmem:[#allocation13 + $0x68] sm:$0xff]
        %v795 = vld [vmem:[#allocation13 + $0x70] sm:$0xff]
        %v796 = vld [vmem:[#allocation13 + $0x78] sm:$0xff]
        %797 = vmatprep.subr.mxu0 0.0
        %798 = vmatpush1.msra.mxu0 %v796
        %799 = vmatprep.subr.mxu0 0.0
        %800 = vmatpush1.msra.mxu0 %v795
        %801 = vmatprep.subr.mxu0 0.0
        %802 = vmatpush1.msra.mxu0 %v794
        %803 = vmatprep.subr.mxu0 0.0
        %804 = vmatpush1.msra.mxu0 %v793
        %805 = vmatprep.subr.mxu0 0.0
        %806 = vmatpush1.msra.mxu0 %v792
        %807 = vmatprep.subr.mxu0 0.0
        %808 = vmatpush1.msra.mxu0 %v791
        %809 = vmatprep.subr.mxu0 0.0
        %810 = vmatpush1.msra.mxu0 %v790
        %811 = vmatprep.subr.mxu0 0.0
        %812 = vmatpush1.msra.mxu0 %v789
        %813 = vmatprep.subr.mxu0 0.0
        %814 = vmatpush1.msra.mxu0 %v788
        %815 = vmatprep.subr.mxu0 0.0
        %816 = vmatpush1.msra.mxu0 %v787
        %817 = vmatprep.subr.mxu0 0.0
        %818 = vmatpush1.msra.mxu0 %v786
        %819 = vmatprep.subr.mxu0 0.0
        %820 = vmatpush1.msra.mxu0 %v785
        %821 = vmatprep.subr.mxu0 0.0
        %822 = vmatpush1.msra.mxu0 %v784
        %823 = vmatprep.subr.mxu0 0.0
        %824 = vmatpush1.msra.mxu0 %v783
        %825 = vmatprep.subr.mxu0 0.0
        %826 = vmatpush1.msra.mxu0 %v782
        %827 = vmatprep.subr.mxu0 0.0
        %828 = vmatpush1.msra.mxu0 %v781
        %829 = vmatprep.subr.mxu0 0.0
        %830 = vmatpush2.msra.mxu0 0.0
        %831 = vmatprep.subr.mxu0 0.0
        %832 = vmatpush2.msra.mxu0 0.0
        %833 = vmatprep.subr.mxu0 0.0
        %834 = vmatpush2.msra.mxu0 0.0
        %835 = vmatprep.subr.mxu0 0.0
        %836 = vmatpush2.msra.mxu0 0.0
        %837 = vmatprep.subr.mxu0 0.0
        %838 = vmatpush2.msra.mxu0 0.0
        %839 = vmatprep.subr.mxu0 0.0
        %840 = vmatpush2.msra.mxu0 0.0
        %841 = vmatprep.subr.mxu0 0.0
        %842 = vmatpush2.msra.mxu0 0.0
        %843 = vmatprep.subr.mxu0 0.0
        %844 = vmatpush2.msra.mxu0 0.0
        %845 = vmatprep.subr.mxu0 0.0
        %846 = vmatpush2.msra.mxu0 0.0
        %847 = vmatprep.subr.mxu0 0.0
        %848 = vmatpush2.msra.mxu0 0.0
        %849 = vmatprep.subr.mxu0 0.0
        %850 = vmatpush2.msra.mxu0 0.0
        %851 = vmatprep.subr.mxu0 0.0
        %852 = vmatpush2.msra.mxu0 0.0
        %853 = vmatprep.subr.mxu0 0.0
        %854 = vmatpush2.msra.mxu0 0.0
        %855 = vmatprep.subr.mxu0 0.0
        %856 = vmatpush2.msra.mxu0 0.0
        %857 = vmatprep.subr.mxu0 0.0
        %858 = vmatpush2.msra.mxu0 0.0
        %859 = vmatprep.subr.mxu0 0.0
        %860 = vmatpush2.msra.mxu0 0.0
        %861 = vmatprep.mubr.f32.mxu0 0.0
        %862 = vmatmul.mubr.f32.gmra.mxu0 %v779
        %v863 = vpop.f32.mrf.mxu0
        %v864 = vadd.f32 0.0, %v863
        %v865 = vpop.f32.mrf.mxu0
        %866 = vmatprep.mubr.f32.mxu0 0.0
        %867 = vmatmul.mubr.f32.gmra.mxu0 %v780
        %v868 = vpop.f32.mrf.mxu0
        %v869 = vadd.f32 0.0, %v868
        %v870 = vpop.f32.mrf.mxu0
        %871 = vdwg.mxu0
        %872 = vst [vmem:[#allocation2] sm:$0xff] %v864
        %873 = vst [vmem:[#allocation2 + $0x8] sm:$0xff] %v869
        %v874 = vld [vmem:[#allocation2] sm:$0xff]
        %v875 = vld [vmem:[#allocation2 + $0x8] sm:$0xff]
        %v876 = vld [vmem:[#allocation15] sm:$0xff]
        %v877 = vld [vmem:[#allocation15 + $0x8] sm:$0xff]
        %v878 = vld [vmem:[#allocation15 + $0x10] sm:$0xff]
        %v879 = vld [vmem:[#allocation15 + $0x18] sm:$0xff]
        %v880 = vld [vmem:[#allocation15 + $0x20] sm:$0xff]
        %v881 = vld [vmem:[#allocation15 + $0x28] sm:$0xff]
        %v882 = vld [vmem:[#allocation15 + $0x30] sm:$0xff]
        %v883 = vld [vmem:[#allocation15 + $0x38] sm:$0xff]
        %v884 = vld [vmem:[#allocation15 + $0x40] sm:$0xff]
        %v885 = vld [vmem:[#allocation15 + $0x48] sm:$0xff]
        %v886 = vld [vmem:[#allocation15 + $0x50] sm:$0xff]
        %v887 = vld [vmem:[#allocation15 + $0x58] sm:$0xff]
        %v888 = vld [vmem:[#allocation15 + $0x60] sm:$0xff]
        %v889 = vld [vmem:[#allocation15 + $0x68] sm:$0xff]
        %v890 = vld [vmem:[#allocation15 + $0x70] sm:$0xff]
        %v891 = vld [vmem:[#allocation15 + $0x78] sm:$0xff]
        %v892 = vld [vmem:[%s4] sm:$0x1]
        %v894 = vlaneseq
        %v895 = vshrl.u32 %v894, 7
        %v896 = vsub.s32 0, %v895
        %v897 = vrot.slane %v892, %v896
        %899 = vmatprep.subr.mxu0 0.0
        %900 = vmatpush1.msra.mxu0 %v891
        %901 = vmatprep.subr.mxu0 0.0
        %902 = vmatpush1.msra.mxu0 %v890
        %903 = vmatprep.subr.mxu0 0.0
        %904 = vmatpush1.msra.mxu0 %v889
        %905 = vmatprep.subr.mxu0 0.0
        %906 = vmatpush1.msra.mxu0 %v888
        %907 = vmatprep.subr.mxu0 0.0
        %908 = vmatpush1.msra.mxu0 %v887
        %909 = vmatprep.subr.mxu0 0.0
        %910 = vmatpush1.msra.mxu0 %v886
        %911 = vmatprep.subr.mxu0 0.0
        %912 = vmatpush1.msra.mxu0 %v885
        %913 = vmatprep.subr.mxu0 0.0
        %914 = vmatpush1.msra.mxu0 %v884
        %915 = vmatprep.subr.mxu0 0.0
        %916 = vmatpush1.msra.mxu0 %v883
        %917 = vmatprep.subr.mxu0 0.0
        %918 = vmatpush1.msra.mxu0 %v882
        %919 = vmatprep.subr.mxu0 0.0
        %920 = vmatpush1.msra.mxu0 %v881
        %921 = vmatprep.subr.mxu0 0.0
        %922 = vmatpush1.msra.mxu0 %v880
        %923 = vmatprep.subr.mxu0 0.0
        %924 = vmatpush1.msra.mxu0 %v879
        %925 = vmatprep.subr.mxu0 0.0
        %926 = vmatpush1.msra.mxu0 %v878
        %927 = vmatprep.subr.mxu0 0.0
        %928 = vmatpush1.msra.mxu0 %v877
        %929 = vmatprep.subr.mxu0 0.0
        %930 = vmatpush1.msra.mxu0 %v876
        %931 = vmatprep.subr.mxu0 0.0
        %932 = vmatpush2.msra.mxu0 0.0
        %933 = vmatprep.subr.mxu0 0.0
        %934 = vmatpush2.msra.mxu0 0.0
        %935 = vmatprep.subr.mxu0 0.0
        %936 = vmatpush2.msra.mxu0 0.0
        %937 = vmatprep.subr.mxu0 0.0
        %938 = vmatpush2.msra.mxu0 0.0
        %939 = vmatprep.subr.mxu0 0.0
        %940 = vmatpush2.msra.mxu0 0.0
        %941 = vmatprep.subr.mxu0 0.0
        %942 = vmatpush2.msra.mxu0 0.0
        %943 = vmatprep.subr.mxu0 0.0
        %944 = vmatpush2.msra.mxu0 0.0
        %945 = vmatprep.subr.mxu0 0.0
        %946 = vmatpush2.msra.mxu0 0.0
        %947 = vmatprep.subr.mxu0 0.0
        %948 = vmatpush2.msra.mxu0 0.0
        %949 = vmatprep.subr.mxu0 0.0
        %950 = vmatpush2.msra.mxu0 0.0
        %951 = vmatprep.subr.mxu0 0.0
        %952 = vmatpush2.msra.mxu0 0.0
        %953 = vmatprep.subr.mxu0 0.0
        %954 = vmatpush2.msra.mxu0 0.0
        %955 = vmatprep.subr.mxu0 0.0
        %956 = vmatpush2.msra.mxu0 0.0
        %957 = vmatprep.subr.mxu0 0.0
        %958 = vmatpush2.msra.mxu0 0.0
        %959 = vmatprep.subr.mxu0 0.0
        %960 = vmatpush2.msra.mxu0 0.0
        %961 = vmatprep.subr.mxu0 0.0
        %962 = vmatpush2.msra.mxu0 0.0
        %963 = vmatprep.mubr.f32.mxu0 0.0
        %964 = vmatmul.mubr.f32.gmra.mxu0 %v874
        %v965 = vpop.f32.mrf.mxu0
        %v966 = vadd.f32 %v897, %v965
        %v967 = vpop.f32.mrf.mxu0
        %968 = vmatprep.mubr.f32.mxu0 0.0
        %969 = vmatmul.mubr.f32.gmra.mxu0 %v875
        %v970 = vpop.f32.mrf.mxu0
        %v971 = vadd.f32 %v897, %v970
        %v972 = vpop.f32.mrf.mxu0
        %973 = vdwg.mxu0
        %974 = vst [vmem:[#allocation3] sm:$0xff] %v966
        %975 = vst [vmem:[#allocation3 + $0x8] sm:$0xff] %v971
        %v976 = vld [vmem:[#allocation16] sm:$0xff]
        %v977 = vld [vmem:[#allocation16 + $0x8] sm:$0xff]
        %v978 = vld [vmem:[%s5] sm:$0x1]
        %v979 = vld [vmem:[#allocation7] sm:$0x1]
        %v980 = vld [vmem:[#allocation3] sm:$0x1]
        %vm981 = vcmask 130048
        %v983 = vsel %vm981, %v979, 0
        %985 = vmatprep.subr.mxu0 0.0
        %986 = vmatpush1.msra.mxu0 0.0
        %987 = vmatprep.subr.mxu0 0.0
        %988 = vmatpush1.msra.mxu0 0.0
        %989 = vmatprep.subr.mxu0 0.0
        %990 = vmatpush1.msra.mxu0 0.0
        %991 = vmatprep.subr.mxu0 0.0
        %992 = vmatpush1.msra.mxu0 0.0
        %993 = vmatprep.subr.mxu0 0.0
        %994 = vmatpush1.msra.mxu0 0.0
        %995 = vmatprep.subr.mxu0 0.0
        %996 = vmatpush1.msra.mxu0 0.0
        %997 = vmatprep.subr.mxu0 0.0
        %998 = vmatpush1.msra.mxu0 0.0
        %999 = vmatprep.subr.mxu0 0.0
        %1000 = vmatpush1.msra.mxu0 0.0
        %1001 = vmatprep.subr.mxu0 0.0
        %1002 = vmatpush1.msra.mxu0 0.0
        %1003 = vmatprep.subr.mxu0 0.0
        %1004 = vmatpush1.msra.mxu0 0.0
        %1005 = vmatprep.subr.mxu0 0.0
        %1006 = vmatpush1.msra.mxu0 0.0
        %1007 = vmatprep.subr.mxu0 0.0
        %1008 = vmatpush1.msra.mxu0 0.0
        %1009 = vmatprep.subr.mxu0 0.0
        %1010 = vmatpush1.msra.mxu0 0.0
        %1011 = vmatprep.subr.mxu0 0.0
        %1012 = vmatpush1.msra.mxu0 0.0
        %1013 = vmatprep.subr.mxu0 0.0
        %1014 = vmatpush1.msra.mxu0 %v977
        %1015 = vmatprep.subr.mxu0 0.0
        %1016 = vmatpush1.msra.mxu0 %v976
        %1017 = vmatprep.subr.mxu0 0.0
        %1018 = vmatpush2.msra.mxu0 0.0
        %1019 = vmatprep.subr.mxu0 0.0
        %1020 = vmatpush2.msra.mxu0 0.0
        %1021 = vmatprep.subr.mxu0 0.0
        %1022 = vmatpush2.msra.mxu0 0.0
        %1023 = vmatprep.subr.mxu0 0.0
        %1024 = vmatpush2.msra.mxu0 0.0
        %1025 = vmatprep.subr.mxu0 0.0
        %1026 = vmatpush2.msra.mxu0 0.0
        %1027 = vmatprep.subr.mxu0 0.0
        %1028 = vmatpush2.msra.mxu0 0.0
        %1029 = vmatprep.subr.mxu0 0.0
        %1030 = vmatpush2.msra.mxu0 0.0
        %1031 = vmatprep.subr.mxu0 0.0
        %1032 = vmatpush2.msra.mxu0 0.0
        %1033 = vmatprep.subr.mxu0 0.0
        %1034 = vmatpush2.msra.mxu0 0.0
        %1035 = vmatprep.subr.mxu0 0.0
        %1036 = vmatpush2.msra.mxu0 0.0
        %1037 = vmatprep.subr.mxu0 0.0
        %1038 = vmatpush2.msra.mxu0 0.0
        %1039 = vmatprep.subr.mxu0 0.0
        %1040 = vmatpush2.msra.mxu0 0.0
        %1041 = vmatprep.subr.mxu0 0.0
        %1042 = vmatpush2.msra.mxu0 0.0
        %1043 = vmatprep.subr.mxu0 0.0
        %1044 = vmatpush2.msra.mxu0 0.0
        %1045 = vmatprep.subr.mxu0 0.0
        %1046 = vmatpush2.msra.mxu0 0.0
        %1047 = vmatprep.subr.mxu0 0.0
        %1048 = vmatpush2.msra.mxu0 0.0
        %1049 = vmatprep.mubr.f32.mxu0 0.0
        %1050 = vmatmul.mubr.f32.gmra.mxu0 %v983
        %v1051 = vpop.f32.mrf.mxu0
        %v1052 = vadd.f32 %v978, %v1051
        %v1053 = vpop.f32.mrf.mxu0
        %1054 = vdwg.mxu0
        %v1055 = vadd.f32 %v980, %v1052
        %v1056 = vxor.u32 %v1055, 2147483648
        %v1057 = vmul.f32 %v1056, 1.442695
        %v1058 = vpow.pop %v1057
        %v1059 = vadd.f32 %v1058, 1.0
        %v1060 = vrcp.pop %v1059
        %v1061 = vmul.f32 1.0, %v1060
        %1063 = vrot.lane.b32.xlu0 %v1052, 96
        %v1064 = vpop.permute.xlu0 %1063
        %v1066 = vmul.f32 %v1061, %v1064
        %1068 = vrot.lane.b32.xlu0 %v1066, 32
        %v1069 = vpop.permute.xlu0 %1068
        %v1071 = vadd.f32 %v980, %v1069
        %v1072 = vtanh.pop %v1071
        %v1073 = vsub.f32 1.0, %v1061
        %1075 = vrot.lane.b32.xlu0 %v1072, 112
        %v1076 = vpop.permute.xlu0 %1075
        %v1078 = vmul.f32 %v1073, %v1076
        %v1079 = vlaneseq
        %v1080 = vshrl.u32 %v1079, 7
        %v1081 = vsub.s32 0, %v1080
        %v1082 = vrot.slane %v979, %v1081
        %1083 = vrot.lane.b32.xlu0 %v1082, 16
        %v1084 = vpop.permute.xlu0 %1083
        %v1086 = vmul.f32 %v1061, %v1084
        %v1087 = vadd.f32 %v1078, %v1086
        %1089 = vrot.lane.b32.xlu0 %v1087, 112
        %v1090 = vpop.permute.xlu0 %1089
        %vm1092 = vcmask 122880
        %1093 = vst.msk [vmem:[#allocation4] sm:$0x1] %vm1092, %v1090
        %v1094 = vld [vmem:[#allocation3 + $0x1] sm:$0x1]
        %v1095 = vsel %vm981, %v1090, 0
        %1097 = vmatprep.subr.mxu0 0.0
        %1098 = vmatpush1.msra.mxu0 0.0
        %1099 = vmatprep.subr.mxu0 0.0
        %1100 = vmatpush1.msra.mxu0 0.0
        %1101 = vmatprep.subr.mxu0 0.0
        %1102 = vmatpush1.msra.mxu0 0.0
        %1103 = vmatprep.subr.mxu0 0.0
        %1104 = vmatpush1.msra.mxu0 0.0
        %1105 = vmatprep.subr.mxu0 0.0
        %1106 = vmatpush1.msra.mxu0 0.0
        %1107 = vmatprep.subr.mxu0 0.0
        %1108 = vmatpush1.msra.mxu0 0.0
        %1109 = vmatprep.subr.mxu0 0.0
        %1110 = vmatpush1.msra.mxu0 0.0
        %1111 = vmatprep.subr.mxu0 0.0
        %1112 = vmatpush1.msra.mxu0 0.0
        %1113 = vmatprep.subr.mxu0 0.0
        %1114 = vmatpush1.msra.mxu0 0.0
        %1115 = vmatprep.subr.mxu0 0.0
        %1116 = vmatpush1.msra.mxu0 0.0
        %1117 = vmatprep.subr.mxu0 0.0
        %1118 = vmatpush1.msra.mxu0 0.0
        %1119 = vmatprep.subr.mxu0 0.0
        %1120 = vmatpush1.msra.mxu0 0.0
        %1121 = vmatprep.subr.mxu0 0.0
        %1122 = vmatpush1.msra.mxu0 0.0
        %1123 = vmatprep.subr.mxu0 0.0
        %1124 = vmatpush1.msra.mxu0 0.0
        %1125 = vmatprep.subr.mxu0 0.0
        %1126 = vmatpush1.msra.mxu0 %v977
        %1127 = vmatprep.subr.mxu0 0.0
        %1128 = vmatpush1.msra.mxu0 %v976
        %1129 = vmatprep.subr.mxu0 0.0
        %1130 = vmatpush2.msra.mxu0 0.0
        %1131 = vmatprep.subr.mxu0 0.0
        %1132 = vmatpush2.msra.mxu0 0.0
        %1133 = vmatprep.subr.mxu0 0.0
        %1134 = vmatpush2.msra.mxu0 0.0
        %1135 = vmatprep.subr.mxu0 0.0
        %1136 = vmatpush2.msra.mxu0 0.0
        %1137 = vmatprep.subr.mxu0 0.0
        %1138 = vmatpush2.msra.mxu0 0.0
        %1139 = vmatprep.subr.mxu0 0.0
        %1140 = vmatpush2.msra.mxu0 0.0
        %1141 = vmatprep.subr.mxu0 0.0
        %1142 = vmatpush2.msra.mxu0 0.0
        %1143 = vmatprep.subr.mxu0 0.0
        %1144 = vmatpush2.msra.mxu0 0.0
        %1145 = vmatprep.subr.mxu0 0.0
        %1146 = vmatpush2.msra.mxu0 0.0
        %1147 = vmatprep.subr.mxu0 0.0
        %1148 = vmatpush2.msra.mxu0 0.0
        %1149 = vmatprep.subr.mxu0 0.0
        %1150 = vmatpush2.msra.mxu0 0.0
        %1151 = vmatprep.subr.mxu0 0.0
        %1152 = vmatpush2.msra.mxu0 0.0
        %1153 = vmatprep.subr.mxu0 0.0
        %1154 = vmatpush2.msra.mxu0 0.0
        %1155 = vmatprep.subr.mxu0 0.0
        %1156 = vmatpush2.msra.mxu0 0.0
        %1157 = vmatprep.subr.mxu0 0.0
        %1158 = vmatpush2.msra.mxu0 0.0
        %1159 = vmatprep.subr.mxu0 0.0
        %1160 = vmatpush2.msra.mxu0 0.0
        %1161 = vmatprep.mubr.f32.mxu0 0.0
        %1162 = vmatmul.mubr.f32.gmra.mxu0 %v1095
        %v1163 = vpop.f32.mrf.mxu0
        %v1164 = vadd.f32 %v978, %v1163
        %v1165 = vpop.f32.mrf.mxu0
        %1166 = vdwg.mxu0
        %v1167 = vadd.f32 %v1094, %v1164
        %v1168 = vxor.u32 %v1167, 2147483648
        %v1169 = vmul.f32 %v1168, 1.442695
        %v1170 = vpow.pop %v1169
        %v1171 = vadd.f32 %v1170, 1.0
        %v1172 = vrcp.pop %v1171
        %v1173 = vmul.f32 1.0, %v1172
        %1175 = vrot.lane.b32.xlu0 %v1164, 96
        %v1176 = vpop.permute.xlu0 %1175
        %v1178 = vmul.f32 %v1173, %v1176
        %1180 = vrot.lane.b32.xlu0 %v1178, 32
        %v1181 = vpop.permute.xlu0 %1180
        %v1183 = vadd.f32 %v1094, %v1181
        %v1184 = vtanh.pop %v1183
        %v1185 = vsub.f32 1.0, %v1173
        %1187 = vrot.lane.b32.xlu0 %v1184, 112
        %v1188 = vpop.permute.xlu0 %1187
        %v1190 = vmul.f32 %v1185, %v1188
        %v1191 = vmul.f32 %v1173, %v1087
        %v1192 = vadd.f32 %v1190, %v1191
        %1194 = vrot.lane.b32.xlu0 %v1192, 112
        %v1195 = vpop.permute.xlu0 %1194
        %1197 = vst.msk [vmem:[#allocation4 + $0x1] sm:$0x1] %vm1092, %v1195
        %v1198 = vld [vmem:[#allocation3 + $0x2] sm:$0x1]
        %v1199 = vsel %vm981, %v1195, 0
        %1201 = vmatprep.subr.mxu0 0.0
        %1202 = vmatpush1.msra.mxu0 0.0
        %1203 = vmatprep.subr.mxu0 0.0
        %1204 = vmatpush1.msra.mxu0 0.0
        %1205 = vmatprep.subr.mxu0 0.0
        %1206 = vmatpush1.msra.mxu0 0.0
        %1207 = vmatprep.subr.mxu0 0.0
        %1208 = vmatpush1.msra.mxu0 0.0
        %1209 = vmatprep.subr.mxu0 0.0
        %1210 = vmatpush1.msra.mxu0 0.0
        %1211 = vmatprep.subr.mxu0 0.0
        %1212 = vmatpush1.msra.mxu0 0.0
        %1213 = vmatprep.subr.mxu0 0.0
        %1214 = vmatpush1.msra.mxu0 0.0
        %1215 = vmatprep.subr.mxu0 0.0
        %1216 = vmatpush1.msra.mxu0 0.0
        %1217 = vmatprep.subr.mxu0 0.0
        %1218 = vmatpush1.msra.mxu0 0.0
        %1219 = vmatprep.subr.mxu0 0.0
        %1220 = vmatpush1.msra.mxu0 0.0
        %1221 = vmatprep.subr.mxu0 0.0
        %1222 = vmatpush1.msra.mxu0 0.0
        %1223 = vmatprep.subr.mxu0 0.0
        %1224 = vmatpush1.msra.mxu0 0.0
        %1225 = vmatprep.subr.mxu0 0.0
        %1226 = vmatpush1.msra.mxu0 0.0
        %1227 = vmatprep.subr.mxu0 0.0
        %1228 = vmatpush1.msra.mxu0 0.0
        %1229 = vmatprep.subr.mxu0 0.0
        %1230 = vmatpush1.msra.mxu0 %v977
        %1231 = vmatprep.subr.mxu0 0.0
        %1232 = vmatpush1.msra.mxu0 %v976
        %1233 = vmatprep.subr.mxu0 0.0
        %1234 = vmatpush2.msra.mxu0 0.0
        %1235 = vmatprep.subr.mxu0 0.0
        %1236 = vmatpush2.msra.mxu0 0.0
        %1237 = vmatprep.subr.mxu0 0.0
        %1238 = vmatpush2.msra.mxu0 0.0
        %1239 = vmatprep.subr.mxu0 0.0
        %1240 = vmatpush2.msra.mxu0 0.0
        %1241 = vmatprep.subr.mxu0 0.0
        %1242 = vmatpush2.msra.mxu0 0.0
        %1243 = vmatprep.subr.mxu0 0.0
        %1244 = vmatpush2.msra.mxu0 0.0
        %1245 = vmatprep.subr.mxu0 0.0
        %1246 = vmatpush2.msra.mxu0 0.0
        %1247 = vmatprep.subr.mxu0 0.0
        %1248 = vmatpush2.msra.mxu0 0.0
        %1249 = vmatprep.subr.mxu0 0.0
        %1250 = vmatpush2.msra.mxu0 0.0
        %1251 = vmatprep.subr.mxu0 0.0
        %1252 = vmatpush2.msra.mxu0 0.0
        %1253 = vmatprep.subr.mxu0 0.0
        %1254 = vmatpush2.msra.mxu0 0.0
        %1255 = vmatprep.subr.mxu0 0.0
        %1256 = vmatpush2.msra.mxu0 0.0
        %1257 = vmatprep.subr.mxu0 0.0
        %1258 = vmatpush2.msra.mxu0 0.0
        %1259 = vmatprep.subr.mxu0 0.0
        %1260 = vmatpush2.msra.mxu0 0.0
        %1261 = vmatprep.subr.mxu0 0.0
        %1262 = vmatpush2.msra.mxu0 0.0
        %1263 = vmatprep.subr.mxu0 0.0
        %1264 = vmatpush2.msra.mxu0 0.0
        %1265 = vmatprep.mubr.f32.mxu0 0.0
        %1266 = vmatmul.mubr.f32.gmra.mxu0 %v1199
        %v1267 = vpop.f32.mrf.mxu0
        %v1268 = vadd.f32 %v978, %v1267
        %v1269 = vpop.f32.mrf.mxu0
        %1270 = vdwg.mxu0
        %v1271 = vadd.f32 %v1198, %v1268
        %v1272 = vxor.u32 %v1271, 2147483648
        %v1273 = vmul.f32 %v1272, 1.442695
        %v1274 = vpow.pop %v1273
        %v1275 = vadd.f32 %v1274, 1.0
        %v1276 = vrcp.pop %v1275
        %v1277 = vmul.f32 1.0, %v1276
        %1279 = vrot.lane.b32.xlu0 %v1268, 96
        %v1280 = vpop.permute.xlu0 %1279
        %v1282 = vmul.f32 %v1277, %v1280
        %1284 = vrot.lane.b32.xlu0 %v1282, 32
        %v1285 = vpop.permute.xlu0 %1284
        %v1287 = vadd.f32 %v1198, %v1285
        %v1288 = vtanh.pop %v1287
        %v1289 = vsub.f32 1.0, %v1277
        %1291 = vrot.lane.b32.xlu0 %v1288, 112
        %v1292 = vpop.permute.xlu0 %1291
        %v1294 = vmul.f32 %v1289, %v1292
        %v1295 = vmul.f32 %v1277, %v1192
        %v1296 = vadd.f32 %v1294, %v1295
        %1298 = vrot.lane.b32.xlu0 %v1296, 112
        %v1299 = vpop.permute.xlu0 %1298
        %1301 = vst.msk [vmem:[#allocation4 + $0x2] sm:$0x1] %vm1092, %v1299
        %v1302 = vld [vmem:[#allocation3 + $0x3] sm:$0x1]
        %v1303 = vsel %vm981, %v1299, 0
        %1305 = vmatprep.subr.mxu0 0.0
        %1306 = vmatpush1.msra.mxu0 0.0
        %1307 = vmatprep.subr.mxu0 0.0
        %1308 = vmatpush1.msra.mxu0 0.0
        %1309 = vmatprep.subr.mxu0 0.0
        %1310 = vmatpush1.msra.mxu0 0.0
        %1311 = vmatprep.subr.mxu0 0.0
        %1312 = vmatpush1.msra.mxu0 0.0
        %1313 = vmatprep.subr.mxu0 0.0
        %1314 = vmatpush1.msra.mxu0 0.0
        %1315 = vmatprep.subr.mxu0 0.0
        %1316 = vmatpush1.msra.mxu0 0.0
        %1317 = vmatprep.subr.mxu0 0.0
        %1318 = vmatpush1.msra.mxu0 0.0
        %1319 = vmatprep.subr.mxu0 0.0
        %1320 = vmatpush1.msra.mxu0 0.0
        %1321 = vmatprep.subr.mxu0 0.0
        %1322 = vmatpush1.msra.mxu0 0.0
        %1323 = vmatprep.subr.mxu0 0.0
        %1324 = vmatpush1.msra.mxu0 0.0
        %1325 = vmatprep.subr.mxu0 0.0
        %1326 = vmatpush1.msra.mxu0 0.0
        %1327 = vmatprep.subr.mxu0 0.0
        %1328 = vmatpush1.msra.mxu0 0.0
        %1329 = vmatprep.subr.mxu0 0.0
        %1330 = vmatpush1.msra.mxu0 0.0
        %1331 = vmatprep.subr.mxu0 0.0
        %1332 = vmatpush1.msra.mxu0 0.0
        %1333 = vmatprep.subr.mxu0 0.0
        %1334 = vmatpush1.msra.mxu0 %v977
        %1335 = vmatprep.subr.mxu0 0.0
        %1336 = vmatpush1.msra.mxu0 %v976
        %1337 = vmatprep.subr.mxu0 0.0
        %1338 = vmatpush2.msra.mxu0 0.0
        %1339 = vmatprep.subr.mxu0 0.0
        %1340 = vmatpush2.msra.mxu0 0.0
        %1341 = vmatprep.subr.mxu0 0.0
        %1342 = vmatpush2.msra.mxu0 0.0
        %1343 = vmatprep.subr.mxu0 0.0
        %1344 = vmatpush2.msra.mxu0 0.0
        %1345 = vmatprep.subr.mxu0 0.0
        %1346 = vmatpush2.msra.mxu0 0.0
        %1347 = vmatprep.subr.mxu0 0.0
        %1348 = vmatpush2.msra.mxu0 0.0
        %1349 = vmatprep.subr.mxu0 0.0
        %1350 = vmatpush2.msra.mxu0 0.0
        %1351 = vmatprep.subr.mxu0 0.0
        %1352 = vmatpush2.msra.mxu0 0.0
        %1353 = vmatprep.subr.mxu0 0.0
        %1354 = vmatpush2.msra.mxu0 0.0
        %1355 = vmatprep.subr.mxu0 0.0
        %1356 = vmatpush2.msra.mxu0 0.0
        %1357 = vmatprep.subr.mxu0 0.0
        %1358 = vmatpush2.msra.mxu0 0.0
        %1359 = vmatprep.subr.mxu0 0.0
        %1360 = vmatpush2.msra.mxu0 0.0
        %1361 = vmatprep.subr.mxu0 0.0
        %1362 = vmatpush2.msra.mxu0 0.0
        %1363 = vmatprep.subr.mxu0 0.0
        %1364 = vmatpush2.msra.mxu0 0.0
        %1365 = vmatprep.subr.mxu0 0.0
        %1366 = vmatpush2.msra.mxu0 0.0
        %1367 = vmatprep.subr.mxu0 0.0
        %1368 = vmatpush2.msra.mxu0 0.0
        %1369 = vmatprep.mubr.f32.mxu0 0.0
        %1370 = vmatmul.mubr.f32.gmra.mxu0 %v1303
        %v1371 = vpop.f32.mrf.mxu0
        %v1372 = vadd.f32 %v978, %v1371
        %v1373 = vpop.f32.mrf.mxu0
        %1374 = vdwg.mxu0
        %v1375 = vadd.f32 %v1302, %v1372
        %v1376 = vxor.u32 %v1375, 2147483648
        %v1377 = vmul.f32 %v1376, 1.442695
        %v1378 = vpow.pop %v1377
        %v1379 = vadd.f32 %v1378, 1.0
        %v1380 = vrcp.pop %v1379
        %v1381 = vmul.f32 1.0, %v1380
        %1383 = vrot.lane.b32.xlu0 %v1372, 96
        %v1384 = vpop.permute.xlu0 %1383
        %v1386 = vmul.f32 %v1381, %v1384
        %1388 = vrot.lane.b32.xlu0 %v1386, 32
        %v1389 = vpop.permute.xlu0 %1388
        %v1391 = vadd.f32 %v1302, %v1389
        %v1392 = vtanh.pop %v1391
        %v1393 = vsub.f32 1.0, %v1381
        %1395 = vrot.lane.b32.xlu0 %v1392, 112
        %v1396 = vpop.permute.xlu0 %1395
        %v1398 = vmul.f32 %v1393, %v1396
        %v1399 = vmul.f32 %v1381, %v1296
        %v1400 = vadd.f32 %v1398, %v1399
        %1402 = vrot.lane.b32.xlu0 %v1400, 112
        %v1403 = vpop.permute.xlu0 %1402
        %1405 = vst.msk [vmem:[#allocation4 + $0x3] sm:$0x1] %vm1092, %v1403
        %v1406 = vld [vmem:[#allocation3 + $0x4] sm:$0x1]
        %v1407 = vsel %vm981, %v1403, 0
        %1409 = vmatprep.subr.mxu0 0.0
        %1410 = vmatpush1.msra.mxu0 0.0
        %1411 = vmatprep.subr.mxu0 0.0
        %1412 = vmatpush1.msra.mxu0 0.0
        %1413 = vmatprep.subr.mxu0 0.0
        %1414 = vmatpush1.msra.mxu0 0.0
        %1415 = vmatprep.subr.mxu0 0.0
        %1416 = vmatpush1.msra.mxu0 0.0
        %1417 = vmatprep.subr.mxu0 0.0
        %1418 = vmatpush1.msra.mxu0 0.0
        %1419 = vmatprep.subr.mxu0 0.0
        %1420 = vmatpush1.msra.mxu0 0.0
        %1421 = vmatprep.subr.mxu0 0.0
        %1422 = vmatpush1.msra.mxu0 0.0
        %1423 = vmatprep.subr.mxu0 0.0
        %1424 = vmatpush1.msra.mxu0 0.0
        %1425 = vmatprep.subr.mxu0 0.0
        %1426 = vmatpush1.msra.mxu0 0.0
        %1427 = vmatprep.subr.mxu0 0.0
        %1428 = vmatpush1.msra.mxu0 0.0
        %1429 = vmatprep.subr.mxu0 0.0
        %1430 = vmatpush1.msra.mxu0 0.0
        %1431 = vmatprep.subr.mxu0 0.0
        %1432 = vmatpush1.msra.mxu0 0.0
        %1433 = vmatprep.subr.mxu0 0.0
        %1434 = vmatpush1.msra.mxu0 0.0
        %1435 = vmatprep.subr.mxu0 0.0
        %1436 = vmatpush1.msra.mxu0 0.0
        %1437 = vmatprep.subr.mxu0 0.0
        %1438 = vmatpush1.msra.mxu0 %v977
        %1439 = vmatprep.subr.mxu0 0.0
        %1440 = vmatpush1.msra.mxu0 %v976
        %1441 = vmatprep.subr.mxu0 0.0
        %1442 = vmatpush2.msra.mxu0 0.0
        %1443 = vmatprep.subr.mxu0 0.0
        %1444 = vmatpush2.msra.mxu0 0.0
        %1445 = vmatprep.subr.mxu0 0.0
        %1446 = vmatpush2.msra.mxu0 0.0
        %1447 = vmatprep.subr.mxu0 0.0
        %1448 = vmatpush2.msra.mxu0 0.0
        %1449 = vmatprep.subr.mxu0 0.0
        %1450 = vmatpush2.msra.mxu0 0.0
        %1451 = vmatprep.subr.mxu0 0.0
        %1452 = vmatpush2.msra.mxu0 0.0
        %1453 = vmatprep.subr.mxu0 0.0
        %1454 = vmatpush2.msra.mxu0 0.0
        %1455 = vmatprep.subr.mxu0 0.0
        %1456 = vmatpush2.msra.mxu0 0.0
        %1457 = vmatprep.subr.mxu0 0.0
        %1458 = vmatpush2.msra.mxu0 0.0
        %1459 = vmatprep.subr.mxu0 0.0
        %1460 = vmatpush2.msra.mxu0 0.0
        %1461 = vmatprep.subr.mxu0 0.0
        %1462 = vmatpush2.msra.mxu0 0.0
        %1463 = vmatprep.subr.mxu0 0.0
        %1464 = vmatpush2.msra.mxu0 0.0
        %1465 = vmatprep.subr.mxu0 0.0
        %1466 = vmatpush2.msra.mxu0 0.0
        %1467 = vmatprep.subr.mxu0 0.0
        %1468 = vmatpush2.msra.mxu0 0.0
        %1469 = vmatprep.subr.mxu0 0.0
        %1470 = vmatpush2.msra.mxu0 0.0
        %1471 = vmatprep.subr.mxu0 0.0
        %1472 = vmatpush2.msra.mxu0 0.0
        %1473 = vmatprep.mubr.f32.mxu0 0.0
        %1474 = vmatmul.mubr.f32.gmra.mxu0 %v1407
        %v1475 = vpop.f32.mrf.mxu0
        %v1476 = vadd.f32 %v978, %v1475
        %v1477 = vpop.f32.mrf.mxu0
        %1478 = vdwg.mxu0
        %v1479 = vadd.f32 %v1406, %v1476
        %v1480 = vxor.u32 %v1479, 2147483648
        %v1481 = vmul.f32 %v1480, 1.442695
        %v1482 = vpow.pop %v1481
        %v1483 = vadd.f32 %v1482, 1.0
        %v1484 = vrcp.pop %v1483
        %v1485 = vmul.f32 1.0, %v1484
        %1487 = vrot.lane.b32.xlu0 %v1476, 96
        %v1488 = vpop.permute.xlu0 %1487
        %v1490 = vmul.f32 %v1485, %v1488
        %1492 = vrot.lane.b32.xlu0 %v1490, 32
        %v1493 = vpop.permute.xlu0 %1492
        %v1495 = vadd.f32 %v1406, %v1493
        %v1496 = vtanh.pop %v1495
        %v1497 = vsub.f32 1.0, %v1485
        %1499 = vrot.lane.b32.xlu0 %v1496, 112
        %v1500 = vpop.permute.xlu0 %1499
        %v1502 = vmul.f32 %v1497, %v1500
        %v1503 = vmul.f32 %v1485, %v1400
        %v1504 = vadd.f32 %v1502, %v1503
        %1506 = vrot.lane.b32.xlu0 %v1504, 112
        %v1507 = vpop.permute.xlu0 %1506
        %1509 = vst.msk [vmem:[#allocation4 + $0x4] sm:$0x1] %vm1092, %v1507
        %v1510 = vld [vmem:[#allocation3 + $0x5] sm:$0x1]
        %v1511 = vsel %vm981, %v1507, 0
        %1513 = vmatprep.subr.mxu0 0.0
        %1514 = vmatpush1.msra.mxu0 0.0
        %1515 = vmatprep.subr.mxu0 0.0
        %1516 = vmatpush1.msra.mxu0 0.0
        %1517 = vmatprep.subr.mxu0 0.0
        %1518 = vmatpush1.msra.mxu0 0.0
        %1519 = vmatprep.subr.mxu0 0.0
        %1520 = vmatpush1.msra.mxu0 0.0
        %1521 = vmatprep.subr.mxu0 0.0
        %1522 = vmatpush1.msra.mxu0 0.0
        %1523 = vmatprep.subr.mxu0 0.0
        %1524 = vmatpush1.msra.mxu0 0.0
        %1525 = vmatprep.subr.mxu0 0.0
        %1526 = vmatpush1.msra.mxu0 0.0
        %1527 = vmatprep.subr.mxu0 0.0
        %1528 = vmatpush1.msra.mxu0 0.0
        %1529 = vmatprep.subr.mxu0 0.0
        %1530 = vmatpush1.msra.mxu0 0.0
        %1531 = vmatprep.subr.mxu0 0.0
        %1532 = vmatpush1.msra.mxu0 0.0
        %1533 = vmatprep.subr.mxu0 0.0
        %1534 = vmatpush1.msra.mxu0 0.0
        %1535 = vmatprep.subr.mxu0 0.0
        %1536 = vmatpush1.msra.mxu0 0.0
        %1537 = vmatprep.subr.mxu0 0.0
        %1538 = vmatpush1.msra.mxu0 0.0
        %1539 = vmatprep.subr.mxu0 0.0
        %1540 = vmatpush1.msra.mxu0 0.0
        %1541 = vmatprep.subr.mxu0 0.0
        %1542 = vmatpush1.msra.mxu0 %v977
        %1543 = vmatprep.subr.mxu0 0.0
        %1544 = vmatpush1.msra.mxu0 %v976
        %1545 = vmatprep.subr.mxu0 0.0
        %1546 = vmatpush2.msra.mxu0 0.0
        %1547 = vmatprep.subr.mxu0 0.0
        %1548 = vmatpush2.msra.mxu0 0.0
        %1549 = vmatprep.subr.mxu0 0.0
        %1550 = vmatpush2.msra.mxu0 0.0
        %1551 = vmatprep.subr.mxu0 0.0
        %1552 = vmatpush2.msra.mxu0 0.0
        %1553 = vmatprep.subr.mxu0 0.0
        %1554 = vmatpush2.msra.mxu0 0.0
        %1555 = vmatprep.subr.mxu0 0.0
        %1556 = vmatpush2.msra.mxu0 0.0
        %1557 = vmatprep.subr.mxu0 0.0
        %1558 = vmatpush2.msra.mxu0 0.0
        %1559 = vmatprep.subr.mxu0 0.0
        %1560 = vmatpush2.msra.mxu0 0.0
        %1561 = vmatprep.subr.mxu0 0.0
        %1562 = vmatpush2.msra.mxu0 0.0
        %1563 = vmatprep.subr.mxu0 0.0
        %1564 = vmatpush2.msra.mxu0 0.0
        %1565 = vmatprep.subr.mxu0 0.0
        %1566 = vmatpush2.msra.mxu0 0.0
        %1567 = vmatprep.subr.mxu0 0.0
        %1568 = vmatpush2.msra.mxu0 0.0
        %1569 = vmatprep.subr.mxu0 0.0
        %1570 = vmatpush2.msra.mxu0 0.0
        %1571 = vmatprep.subr.mxu0 0.0
        %1572 = vmatpush2.msra.mxu0 0.0
        %1573 = vmatprep.subr.mxu0 0.0
        %1574 = vmatpush2.msra.mxu0 0.0
        %1575 = vmatprep.subr.mxu0 0.0
        %1576 = vmatpush2.msra.mxu0 0.0
        %1577 = vmatprep.mubr.f32.mxu0 0.0
        %1578 = vmatmul.mubr.f32.gmra.mxu0 %v1511
        %v1579 = vpop.f32.mrf.mxu0
        %v1580 = vadd.f32 %v978, %v1579
        %v1581 = vpop.f32.mrf.mxu0
        %1582 = vdwg.mxu0
        %v1583 = vadd.f32 %v1510, %v1580
        %v1584 = vxor.u32 %v1583, 2147483648
        %v1585 = vmul.f32 %v1584, 1.442695
        %v1586 = vpow.pop %v1585
        %v1587 = vadd.f32 %v1586, 1.0
        %v1588 = vrcp.pop %v1587
        %v1589 = vmul.f32 1.0, %v1588
        %1591 = vrot.lane.b32.xlu0 %v1580, 96
        %v1592 = vpop.permute.xlu0 %1591
        %v1594 = vmul.f32 %v1589, %v1592
        %1596 = vrot.lane.b32.xlu0 %v1594, 32
        %v1597 = vpop.permute.xlu0 %1596
        %v1599 = vadd.f32 %v1510, %v1597
        %v1600 = vtanh.pop %v1599
        %v1601 = vsub.f32 1.0, %v1589
        %1603 = vrot.lane.b32.xlu0 %v1600, 112
        %v1604 = vpop.permute.xlu0 %1603
        %v1606 = vmul.f32 %v1601, %v1604
        %v1607 = vmul.f32 %v1589, %v1504
        %v1608 = vadd.f32 %v1606, %v1607
        %1610 = vrot.lane.b32.xlu0 %v1608, 112
        %v1611 = vpop.permute.xlu0 %1610
        %1613 = vst.msk [vmem:[#allocation4 + $0x5] sm:$0x1] %vm1092, %v1611
        %v1614 = vld [vmem:[#allocation3 + $0x6] sm:$0x1]
        %v1615 = vsel %vm981, %v1611, 0
        %1617 = vmatprep.subr.mxu0 0.0
        %1618 = vmatpush1.msra.mxu0 0.0
        %1619 = vmatprep.subr.mxu0 0.0
        %1620 = vmatpush1.msra.mxu0 0.0
        %1621 = vmatprep.subr.mxu0 0.0
        %1622 = vmatpush1.msra.mxu0 0.0
        %1623 = vmatprep.subr.mxu0 0.0
        %1624 = vmatpush1.msra.mxu0 0.0
        %1625 = vmatprep.subr.mxu0 0.0
        %1626 = vmatpush1.msra.mxu0 0.0
        %1627 = vmatprep.subr.mxu0 0.0
        %1628 = vmatpush1.msra.mxu0 0.0
        %1629 = vmatprep.subr.mxu0 0.0
        %1630 = vmatpush1.msra.mxu0 0.0
        %1631 = vmatprep.subr.mxu0 0.0
        %1632 = vmatpush1.msra.mxu0 0.0
        %1633 = vmatprep.subr.mxu0 0.0
        %1634 = vmatpush1.msra.mxu0 0.0
        %1635 = vmatprep.subr.mxu0 0.0
        %1636 = vmatpush1.msra.mxu0 0.0
        %1637 = vmatprep.subr.mxu0 0.0
        %1638 = vmatpush1.msra.mxu0 0.0
        %1639 = vmatprep.subr.mxu0 0.0
        %1640 = vmatpush1.msra.mxu0 0.0
        %1641 = vmatprep.subr.mxu0 0.0
        %1642 = vmatpush1.msra.mxu0 0.0
        %1643 = vmatprep.subr.mxu0 0.0
        %1644 = vmatpush1.msra.mxu0 0.0
        %1645 = vmatprep.subr.mxu0 0.0
        %1646 = vmatpush1.msra.mxu0 %v977
        %1647 = vmatprep.subr.mxu0 0.0
        %1648 = vmatpush1.msra.mxu0 %v976
        %1649 = vmatprep.subr.mxu0 0.0
        %1650 = vmatpush2.msra.mxu0 0.0
        %1651 = vmatprep.subr.mxu0 0.0
        %1652 = vmatpush2.msra.mxu0 0.0
        %1653 = vmatprep.subr.mxu0 0.0
        %1654 = vmatpush2.msra.mxu0 0.0
        %1655 = vmatprep.subr.mxu0 0.0
        %1656 = vmatpush2.msra.mxu0 0.0
        %1657 = vmatprep.subr.mxu0 0.0
        %1658 = vmatpush2.msra.mxu0 0.0
        %1659 = vmatprep.subr.mxu0 0.0
        %1660 = vmatpush2.msra.mxu0 0.0
        %1661 = vmatprep.subr.mxu0 0.0
        %1662 = vmatpush2.msra.mxu0 0.0
        %1663 = vmatprep.subr.mxu0 0.0
        %1664 = vmatpush2.msra.mxu0 0.0
        %1665 = vmatprep.subr.mxu0 0.0
        %1666 = vmatpush2.msra.mxu0 0.0
        %1667 = vmatprep.subr.mxu0 0.0
        %1668 = vmatpush2.msra.mxu0 0.0
        %1669 = vmatprep.subr.mxu0 0.0
        %1670 = vmatpush2.msra.mxu0 0.0
        %1671 = vmatprep.subr.mxu0 0.0
        %1672 = vmatpush2.msra.mxu0 0.0
        %1673 = vmatprep.subr.mxu0 0.0
        %1674 = vmatpush2.msra.mxu0 0.0
        %1675 = vmatprep.subr.mxu0 0.0
        %1676 = vmatpush2.msra.mxu0 0.0
        %1677 = vmatprep.subr.mxu0 0.0
        %1678 = vmatpush2.msra.mxu0 0.0
        %1679 = vmatprep.subr.mxu0 0.0
        %1680 = vmatpush2.msra.mxu0 0.0
        %1681 = vmatprep.mubr.f32.mxu0 0.0
        %1682 = vmatmul.mubr.f32.gmra.mxu0 %v1615
        %v1683 = vpop.f32.mrf.mxu0
        %v1684 = vadd.f32 %v978, %v1683
        %v1685 = vpop.f32.mrf.mxu0
        %1686 = vdwg.mxu0
        %v1687 = vadd.f32 %v1614, %v1684
        %v1688 = vxor.u32 %v1687, 2147483648
        %v1689 = vmul.f32 %v1688, 1.442695
        %v1690 = vpow.pop %v1689
        %v1691 = vadd.f32 %v1690, 1.0
        %v1692 = vrcp.pop %v1691
        %v1693 = vmul.f32 1.0, %v1692
        %1695 = vrot.lane.b32.xlu0 %v1684, 96
        %v1696 = vpop.permute.xlu0 %1695
        %v1698 = vmul.f32 %v1693, %v1696
        %1700 = vrot.lane.b32.xlu0 %v1698, 32
        %v1701 = vpop.permute.xlu0 %1700
        %v1703 = vadd.f32 %v1614, %v1701
        %v1704 = vtanh.pop %v1703
        %v1705 = vsub.f32 1.0, %v1693
        %1707 = vrot.lane.b32.xlu0 %v1704, 112
        %v1708 = vpop.permute.xlu0 %1707
        %v1710 = vmul.f32 %v1705, %v1708
        %v1711 = vmul.f32 %v1693, %v1608
        %v1712 = vadd.f32 %v1710, %v1711
        %1714 = vrot.lane.b32.xlu0 %v1712, 112
        %v1715 = vpop.permute.xlu0 %1714
        %1717 = vst.msk [vmem:[#allocation4 + $0x6] sm:$0x1] %vm1092, %v1715
        %v1718 = vld [vmem:[#allocation3 + $0x7] sm:$0x1]
        %v1719 = vsel %vm981, %v1715, 0
        %1721 = vmatprep.subr.mxu0 0.0
        %1722 = vmatpush1.msra.mxu0 0.0
        %1723 = vmatprep.subr.mxu0 0.0
        %1724 = vmatpush1.msra.mxu0 0.0
        %1725 = vmatprep.subr.mxu0 0.0
        %1726 = vmatpush1.msra.mxu0 0.0
        %1727 = vmatprep.subr.mxu0 0.0
        %1728 = vmatpush1.msra.mxu0 0.0
        %1729 = vmatprep.subr.mxu0 0.0
        %1730 = vmatpush1.msra.mxu0 0.0
        %1731 = vmatprep.subr.mxu0 0.0
        %1732 = vmatpush1.msra.mxu0 0.0
        %1733 = vmatprep.subr.mxu0 0.0
        %1734 = vmatpush1.msra.mxu0 0.0
        %1735 = vmatprep.subr.mxu0 0.0
        %1736 = vmatpush1.msra.mxu0 0.0
        %1737 = vmatprep.subr.mxu0 0.0
        %1738 = vmatpush1.msra.mxu0 0.0
        %1739 = vmatprep.subr.mxu0 0.0
        %1740 = vmatpush1.msra.mxu0 0.0
        %1741 = vmatprep.subr.mxu0 0.0
        %1742 = vmatpush1.msra.mxu0 0.0
        %1743 = vmatprep.subr.mxu0 0.0
        %1744 = vmatpush1.msra.mxu0 0.0
        %1745 = vmatprep.subr.mxu0 0.0
        %1746 = vmatpush1.msra.mxu0 0.0
        %1747 = vmatprep.subr.mxu0 0.0
        %1748 = vmatpush1.msra.mxu0 0.0
        %1749 = vmatprep.subr.mxu0 0.0
        %1750 = vmatpush1.msra.mxu0 %v977
        %1751 = vmatprep.subr.mxu0 0.0
        %1752 = vmatpush1.msra.mxu0 %v976
        %1753 = vmatprep.subr.mxu0 0.0
        %1754 = vmatpush2.msra.mxu0 0.0
        %1755 = vmatprep.subr.mxu0 0.0
        %1756 = vmatpush2.msra.mxu0 0.0
        %1757 = vmatprep.subr.mxu0 0.0
        %1758 = vmatpush2.msra.mxu0 0.0
        %1759 = vmatprep.subr.mxu0 0.0
        %1760 = vmatpush2.msra.mxu0 0.0
        %1761 = vmatprep.subr.mxu0 0.0
        %1762 = vmatpush2.msra.mxu0 0.0
        %1763 = vmatprep.subr.mxu0 0.0
        %1764 = vmatpush2.msra.mxu0 0.0
        %1765 = vmatprep.subr.mxu0 0.0
        %1766 = vmatpush2.msra.mxu0 0.0
        %1767 = vmatprep.subr.mxu0 0.0
        %1768 = vmatpush2.msra.mxu0 0.0
        %1769 = vmatprep.subr.mxu0 0.0
        %1770 = vmatpush2.msra.mxu0 0.0
        %1771 = vmatprep.subr.mxu0 0.0
        %1772 = vmatpush2.msra.mxu0 0.0
        %1773 = vmatprep.subr.mxu0 0.0
        %1774 = vmatpush2.msra.mxu0 0.0
        %1775 = vmatprep.subr.mxu0 0.0
        %1776 = vmatpush2.msra.mxu0 0.0
        %1777 = vmatprep.subr.mxu0 0.0
        %1778 = vmatpush2.msra.mxu0 0.0
        %1779 = vmatprep.subr.mxu0 0.0
        %1780 = vmatpush2.msra.mxu0 0.0
        %1781 = vmatprep.subr.mxu0 0.0
        %1782 = vmatpush2.msra.mxu0 0.0
        %1783 = vmatprep.subr.mxu0 0.0
        %1784 = vmatpush2.msra.mxu0 0.0
        %1785 = vmatprep.mubr.f32.mxu0 0.0
        %1786 = vmatmul.mubr.f32.gmra.mxu0 %v1719
        %v1787 = vpop.f32.mrf.mxu0
        %v1788 = vadd.f32 %v978, %v1787
        %v1789 = vpop.f32.mrf.mxu0
        %1790 = vdwg.mxu0
        %v1791 = vadd.f32 %v1718, %v1788
        %v1792 = vxor.u32 %v1791, 2147483648
        %v1793 = vmul.f32 %v1792, 1.442695
        %v1794 = vpow.pop %v1793
        %v1795 = vadd.f32 %v1794, 1.0
        %v1796 = vrcp.pop %v1795
        %v1797 = vmul.f32 1.0, %v1796
        %1799 = vrot.lane.b32.xlu0 %v1788, 96
        %v1800 = vpop.permute.xlu0 %1799
        %v1802 = vmul.f32 %v1797, %v1800
        %1804 = vrot.lane.b32.xlu0 %v1802, 32
        %v1805 = vpop.permute.xlu0 %1804
        %v1807 = vadd.f32 %v1718, %v1805
        %v1808 = vtanh.pop %v1807
        %v1809 = vsub.f32 1.0, %v1797
        %1811 = vrot.lane.b32.xlu0 %v1808, 112
        %v1812 = vpop.permute.xlu0 %1811
        %v1814 = vmul.f32 %v1809, %v1812
        %v1815 = vmul.f32 %v1797, %v1712
        %v1816 = vadd.f32 %v1814, %v1815
        %1818 = vrot.lane.b32.xlu0 %v1816, 112
        %v1819 = vpop.permute.xlu0 %1818
        %1821 = vst.msk [vmem:[#allocation4 + $0x7] sm:$0x1] %vm1092, %v1819
        %v1822 = vld [vmem:[#allocation3 + $0x8] sm:$0x1]
        %v1823 = vsel %vm981, %v1819, 0
        %1825 = vmatprep.subr.mxu0 0.0
        %1826 = vmatpush1.msra.mxu0 0.0
        %1827 = vmatprep.subr.mxu0 0.0
        %1828 = vmatpush1.msra.mxu0 0.0
        %1829 = vmatprep.subr.mxu0 0.0
        %1830 = vmatpush1.msra.mxu0 0.0
        %1831 = vmatprep.subr.mxu0 0.0
        %1832 = vmatpush1.msra.mxu0 0.0
        %1833 = vmatprep.subr.mxu0 0.0
        %1834 = vmatpush1.msra.mxu0 0.0
        %1835 = vmatprep.subr.mxu0 0.0
        %1836 = vmatpush1.msra.mxu0 0.0
        %1837 = vmatprep.subr.mxu0 0.0
        %1838 = vmatpush1.msra.mxu0 0.0
        %1839 = vmatprep.subr.mxu0 0.0
        %1840 = vmatpush1.msra.mxu0 0.0
        %1841 = vmatprep.subr.mxu0 0.0
        %1842 = vmatpush1.msra.mxu0 0.0
        %1843 = vmatprep.subr.mxu0 0.0
        %1844 = vmatpush1.msra.mxu0 0.0
        %1845 = vmatprep.subr.mxu0 0.0
        %1846 = vmatpush1.msra.mxu0 0.0
        %1847 = vmatprep.subr.mxu0 0.0
        %1848 = vmatpush1.msra.mxu0 0.0
        %1849 = vmatprep.subr.mxu0 0.0
        %1850 = vmatpush1.msra.mxu0 0.0
        %1851 = vmatprep.subr.mxu0 0.0
        %1852 = vmatpush1.msra.mxu0 0.0
        %1853 = vmatprep.subr.mxu0 0.0
        %1854 = vmatpush1.msra.mxu0 %v977
        %1855 = vmatprep.subr.mxu0 0.0
        %1856 = vmatpush1.msra.mxu0 %v976
        %1857 = vmatprep.subr.mxu0 0.0
        %1858 = vmatpush2.msra.mxu0 0.0
        %1859 = vmatprep.subr.mxu0 0.0
        %1860 = vmatpush2.msra.mxu0 0.0
        %1861 = vmatprep.subr.mxu0 0.0
        %1862 = vmatpush2.msra.mxu0 0.0
        %1863 = vmatprep.subr.mxu0 0.0
        %1864 = vmatpush2.msra.mxu0 0.0
        %1865 = vmatprep.subr.mxu0 0.0
        %1866 = vmatpush2.msra.mxu0 0.0
        %1867 = vmatprep.subr.mxu0 0.0
        %1868 = vmatpush2.msra.mxu0 0.0
        %1869 = vmatprep.subr.mxu0 0.0
        %1870 = vmatpush2.msra.mxu0 0.0
        %1871 = vmatprep.subr.mxu0 0.0
        %1872 = vmatpush2.msra.mxu0 0.0
        %1873 = vmatprep.subr.mxu0 0.0
        %1874 = vmatpush2.msra.mxu0 0.0
        %1875 = vmatprep.subr.mxu0 0.0
        %1876 = vmatpush2.msra.mxu0 0.0
        %1877 = vmatprep.subr.mxu0 0.0
        %1878 = vmatpush2.msra.mxu0 0.0
        %1879 = vmatprep.subr.mxu0 0.0
        %1880 = vmatpush2.msra.mxu0 0.0
        %1881 = vmatprep.subr.mxu0 0.0
        %1882 = vmatpush2.msra.mxu0 0.0
        %1883 = vmatprep.subr.mxu0 0.0
        %1884 = vmatpush2.msra.mxu0 0.0
        %1885 = vmatprep.subr.mxu0 0.0
        %1886 = vmatpush2.msra.mxu0 0.0
        %1887 = vmatprep.subr.mxu0 0.0
        %1888 = vmatpush2.msra.mxu0 0.0
        %1889 = vmatprep.mubr.f32.mxu0 0.0
        %1890 = vmatmul.mubr.f32.gmra.mxu0 %v1823
        %v1891 = vpop.f32.mrf.mxu0
        %v1892 = vadd.f32 %v978, %v1891
        %v1893 = vpop.f32.mrf.mxu0
        %1894 = vdwg.mxu0
        %v1895 = vadd.f32 %v1822, %v1892
        %v1896 = vxor.u32 %v1895, 2147483648
        %v1897 = vmul.f32 %v1896, 1.442695
        %v1898 = vpow.pop %v1897
        %v1899 = vadd.f32 %v1898, 1.0
        %v1900 = vrcp.pop %v1899
        %v1901 = vmul.f32 1.0, %v1900
        %1903 = vrot.lane.b32.xlu0 %v1892, 96
        %v1904 = vpop.permute.xlu0 %1903
        %v1906 = vmul.f32 %v1901, %v1904
        %1908 = vrot.lane.b32.xlu0 %v1906, 32
        %v1909 = vpop.permute.xlu0 %1908
        %v1911 = vadd.f32 %v1822, %v1909
        %v1912 = vtanh.pop %v1911
        %v1913 = vsub.f32 1.0, %v1901
        %1915 = vrot.lane.b32.xlu0 %v1912, 112
        %v1916 = vpop.permute.xlu0 %1915
        %v1918 = vmul.f32 %v1913, %v1916
        %v1919 = vmul.f32 %v1901, %v1816
        %v1920 = vadd.f32 %v1918, %v1919
        %1922 = vrot.lane.b32.xlu0 %v1920, 112
        %v1923 = vpop.permute.xlu0 %1922
        %1925 = vst.msk [vmem:[#allocation4 + $0x8] sm:$0x1] %vm1092, %v1923
        %v1926 = vld [vmem:[#allocation3 + $0x9] sm:$0x1]
        %v1927 = vsel %vm981, %v1923, 0
        %1929 = vmatprep.subr.mxu0 0.0
        %1930 = vmatpush1.msra.mxu0 0.0
        %1931 = vmatprep.subr.mxu0 0.0
        %1932 = vmatpush1.msra.mxu0 0.0
        %1933 = vmatprep.subr.mxu0 0.0
        %1934 = vmatpush1.msra.mxu0 0.0
        %1935 = vmatprep.subr.mxu0 0.0
        %1936 = vmatpush1.msra.mxu0 0.0
        %1937 = vmatprep.subr.mxu0 0.0
        %1938 = vmatpush1.msra.mxu0 0.0
        %1939 = vmatprep.subr.mxu0 0.0
        %1940 = vmatpush1.msra.mxu0 0.0
        %1941 = vmatprep.subr.mxu0 0.0
        %1942 = vmatpush1.msra.mxu0 0.0
        %1943 = vmatprep.subr.mxu0 0.0
        %1944 = vmatpush1.msra.mxu0 0.0
        %1945 = vmatprep.subr.mxu0 0.0
        %1946 = vmatpush1.msra.mxu0 0.0
        %1947 = vmatprep.subr.mxu0 0.0
        %1948 = vmatpush1.msra.mxu0 0.0
        %1949 = vmatprep.subr.mxu0 0.0
        %1950 = vmatpush1.msra.mxu0 0.0
        %1951 = vmatprep.subr.mxu0 0.0
        %1952 = vmatpush1.msra.mxu0 0.0
        %1953 = vmatprep.subr.mxu0 0.0
        %1954 = vmatpush1.msra.mxu0 0.0
        %1955 = vmatprep.subr.mxu0 0.0
        %1956 = vmatpush1.msra.mxu0 0.0
        %1957 = vmatprep.subr.mxu0 0.0
        %1958 = vmatpush1.msra.mxu0 %v977
        %1959 = vmatprep.subr.mxu0 0.0
        %1960 = vmatpush1.msra.mxu0 %v976
        %1961 = vmatprep.subr.mxu0 0.0
        %1962 = vmatpush2.msra.mxu0 0.0
        %1963 = vmatprep.subr.mxu0 0.0
        %1964 = vmatpush2.msra.mxu0 0.0
        %1965 = vmatprep.subr.mxu0 0.0
        %1966 = vmatpush2.msra.mxu0 0.0
        %1967 = vmatprep.subr.mxu0 0.0
        %1968 = vmatpush2.msra.mxu0 0.0
        %1969 = vmatprep.subr.mxu0 0.0
        %1970 = vmatpush2.msra.mxu0 0.0
        %1971 = vmatprep.subr.mxu0 0.0
        %1972 = vmatpush2.msra.mxu0 0.0
        %1973 = vmatprep.subr.mxu0 0.0
        %1974 = vmatpush2.msra.mxu0 0.0
        %1975 = vmatprep.subr.mxu0 0.0
        %1976 = vmatpush2.msra.mxu0 0.0
        %1977 = vmatprep.subr.mxu0 0.0
        %1978 = vmatpush2.msra.mxu0 0.0
        %1979 = vmatprep.subr.mxu0 0.0
        %1980 = vmatpush2.msra.mxu0 0.0
        %1981 = vmatprep.subr.mxu0 0.0
        %1982 = vmatpush2.msra.mxu0 0.0
        %1983 = vmatprep.subr.mxu0 0.0
        %1984 = vmatpush2.msra.mxu0 0.0
        %1985 = vmatprep.subr.mxu0 0.0
        %1986 = vmatpush2.msra.mxu0 0.0
        %1987 = vmatprep.subr.mxu0 0.0
        %1988 = vmatpush2.msra.mxu0 0.0
        %1989 = vmatprep.subr.mxu0 0.0
        %1990 = vmatpush2.msra.mxu0 0.0
        %1991 = vmatprep.subr.mxu0 0.0
        %1992 = vmatpush2.msra.mxu0 0.0
        %1993 = vmatprep.mubr.f32.mxu0 0.0
        %1994 = vmatmul.mubr.f32.gmra.mxu0 %v1927
        %v1995 = vpop.f32.mrf.mxu0
        %v1996 = vadd.f32 %v978, %v1995
        %v1997 = vpop.f32.mrf.mxu0
        %1998 = vdwg.mxu0
        %v1999 = vadd.f32 %v1926, %v1996
        %v2000 = vxor.u32 %v1999, 2147483648
        %v2001 = vmul.f32 %v2000, 1.442695
        %v2002 = vpow.pop %v2001
        %v2003 = vadd.f32 %v2002, 1.0
        %v2004 = vrcp.pop %v2003
        %v2005 = vmul.f32 1.0, %v2004
        %2007 = vrot.lane.b32.xlu0 %v1996, 96
        %v2008 = vpop.permute.xlu0 %2007
        %v2010 = vmul.f32 %v2005, %v2008
        %2012 = vrot.lane.b32.xlu0 %v2010, 32
        %v2013 = vpop.permute.xlu0 %2012
        %v2015 = vadd.f32 %v1926, %v2013
        %v2016 = vtanh.pop %v2015
        %v2017 = vsub.f32 1.0, %v2005
        %2019 = vrot.lane.b32.xlu0 %v2016, 112
        %v2020 = vpop.permute.xlu0 %2019
        %v2022 = vmul.f32 %v2017, %v2020
        %v2023 = vmul.f32 %v2005, %v1920
        %v2024 = vadd.f32 %v2022, %v2023
        %2026 = vrot.lane.b32.xlu0 %v2024, 112
        %v2027 = vpop.permute.xlu0 %2026
        %2029 = vst.msk [vmem:[#allocation4 + $0x9] sm:$0x1] %vm1092, %v2027
        %v2030 = vld [vmem:[#allocation3 + $0xa] sm:$0x1]
        %v2031 = vsel %vm981, %v2027, 0
        %2033 = vmatprep.subr.mxu0 0.0
        %2034 = vmatpush1.msra.mxu0 0.0
        %2035 = vmatprep.subr.mxu0 0.0
        %2036 = vmatpush1.msra.mxu0 0.0
        %2037 = vmatprep.subr.mxu0 0.0
        %2038 = vmatpush1.msra.mxu0 0.0
        %2039 = vmatprep.subr.mxu0 0.0
        %2040 = vmatpush1.msra.mxu0 0.0
        %2041 = vmatprep.subr.mxu0 0.0
        %2042 = vmatpush1.msra.mxu0 0.0
        %2043 = vmatprep.subr.mxu0 0.0
        %2044 = vmatpush1.msra.mxu0 0.0
        %2045 = vmatprep.subr.mxu0 0.0
        %2046 = vmatpush1.msra.mxu0 0.0
        %2047 = vmatprep.subr.mxu0 0.0
        %2048 = vmatpush1.msra.mxu0 0.0
        %2049 = vmatprep.subr.mxu0 0.0
        %2050 = vmatpush1.msra.mxu0 0.0
        %2051 = vmatprep.subr.mxu0 0.0
        %2052 = vmatpush1.msra.mxu0 0.0
        %2053 = vmatprep.subr.mxu0 0.0
        %2054 = vmatpush1.msra.mxu0 0.0
        %2055 = vmatprep.subr.mxu0 0.0
        %2056 = vmatpush1.msra.mxu0 0.0
        %2057 = vmatprep.subr.mxu0 0.0
        %2058 = vmatpush1.msra.mxu0 0.0
        %2059 = vmatprep.subr.mxu0 0.0
        %2060 = vmatpush1.msra.mxu0 0.0
        %2061 = vmatprep.subr.mxu0 0.0
        %2062 = vmatpush1.msra.mxu0 %v977
        %2063 = vmatprep.subr.mxu0 0.0
        %2064 = vmatpush1.msra.mxu0 %v976
        %2065 = vmatprep.subr.mxu0 0.0
        %2066 = vmatpush2.msra.mxu0 0.0
        %2067 = vmatprep.subr.mxu0 0.0
        %2068 = vmatpush2.msra.mxu0 0.0
        %2069 = vmatprep.subr.mxu0 0.0
        %2070 = vmatpush2.msra.mxu0 0.0
        %2071 = vmatprep.subr.mxu0 0.0
        %2072 = vmatpush2.msra.mxu0 0.0
        %2073 = vmatprep.subr.mxu0 0.0
        %2074 = vmatpush2.msra.mxu0 0.0
        %2075 = vmatprep.subr.mxu0 0.0
        %2076 = vmatpush2.msra.mxu0 0.0
        %2077 = vmatprep.subr.mxu0 0.0
        %2078 = vmatpush2.msra.mxu0 0.0
        %2079 = vmatprep.subr.mxu0 0.0
        %2080 = vmatpush2.msra.mxu0 0.0
        %2081 = vmatprep.subr.mxu0 0.0
        %2082 = vmatpush2.msra.mxu0 0.0
        %2083 = vmatprep.subr.mxu0 0.0
        %2084 = vmatpush2.msra.mxu0 0.0
        %2085 = vmatprep.subr.mxu0 0.0
        %2086 = vmatpush2.msra.mxu0 0.0
        %2087 = vmatprep.subr.mxu0 0.0
        %2088 = vmatpush2.msra.mxu0 0.0
        %2089 = vmatprep.subr.mxu0 0.0
        %2090 = vmatpush2.msra.mxu0 0.0
        %2091 = vmatprep.subr.mxu0 0.0
        %2092 = vmatpush2.msra.mxu0 0.0
        %2093 = vmatprep.subr.mxu0 0.0
        %2094 = vmatpush2.msra.mxu0 0.0
        %2095 = vmatprep.subr.mxu0 0.0
        %2096 = vmatpush2.msra.mxu0 0.0
        %2097 = vmatprep.mubr.f32.mxu0 0.0
        %2098 = vmatmul.mubr.f32.gmra.mxu0 %v2031
        %v2099 = vpop.f32.mrf.mxu0
        %v2100 = vadd.f32 %v978, %v2099
        %v2101 = vpop.f32.mrf.mxu0
        %2102 = vdwg.mxu0
        %v2103 = vadd.f32 %v2030, %v2100
        %v2104 = vxor.u32 %v2103, 2147483648
        %v2105 = vmul.f32 %v2104, 1.442695
        %v2106 = vpow.pop %v2105
        %v2107 = vadd.f32 %v2106, 1.0
        %v2108 = vrcp.pop %v2107
        %v2109 = vmul.f32 1.0, %v2108
        %2111 = vrot.lane.b32.xlu0 %v2100, 96
        %v2112 = vpop.permute.xlu0 %2111
        %v2114 = vmul.f32 %v2109, %v2112
        %2116 = vrot.lane.b32.xlu0 %v2114, 32
        %v2117 = vpop.permute.xlu0 %2116
        %v2119 = vadd.f32 %v2030, %v2117
        %v2120 = vtanh.pop %v2119
        %v2121 = vsub.f32 1.0, %v2109
        %2123 = vrot.lane.b32.xlu0 %v2120, 112
        %v2124 = vpop.permute.xlu0 %2123
        %v2126 = vmul.f32 %v2121, %v2124
        %v2127 = vmul.f32 %v2109, %v2024
        %v2128 = vadd.f32 %v2126, %v2127
        %2130 = vrot.lane.b32.xlu0 %v2128, 112
        %v2131 = vpop.permute.xlu0 %2130
        %2133 = vst.msk [vmem:[#allocation4 + $0xa] sm:$0x1] %vm1092, %v2131
        %v2134 = vld [vmem:[#allocation3 + $0xb] sm:$0x1]
        %v2135 = vsel %vm981, %v2131, 0
        %2137 = vmatprep.subr.mxu0 0.0
        %2138 = vmatpush1.msra.mxu0 0.0
        %2139 = vmatprep.subr.mxu0 0.0
        %2140 = vmatpush1.msra.mxu0 0.0
        %2141 = vmatprep.subr.mxu0 0.0
        %2142 = vmatpush1.msra.mxu0 0.0
        %2143 = vmatprep.subr.mxu0 0.0
        %2144 = vmatpush1.msra.mxu0 0.0
        %2145 = vmatprep.subr.mxu0 0.0
        %2146 = vmatpush1.msra.mxu0 0.0
        %2147 = vmatprep.subr.mxu0 0.0
        %2148 = vmatpush1.msra.mxu0 0.0
        %2149 = vmatprep.subr.mxu0 0.0
        %2150 = vmatpush1.msra.mxu0 0.0
        %2151 = vmatprep.subr.mxu0 0.0
        %2152 = vmatpush1.msra.mxu0 0.0
        %2153 = vmatprep.subr.mxu0 0.0
        %2154 = vmatpush1.msra.mxu0 0.0
        %2155 = vmatprep.subr.mxu0 0.0
        %2156 = vmatpush1.msra.mxu0 0.0
        %2157 = vmatprep.subr.mxu0 0.0
        %2158 = vmatpush1.msra.mxu0 0.0
        %2159 = vmatprep.subr.mxu0 0.0
        %2160 = vmatpush1.msra.mxu0 0.0
        %2161 = vmatprep.subr.mxu0 0.0
        %2162 = vmatpush1.msra.mxu0 0.0
        %2163 = vmatprep.subr.mxu0 0.0
        %2164 = vmatpush1.msra.mxu0 0.0
        %2165 = vmatprep.subr.mxu0 0.0
        %2166 = vmatpush1.msra.mxu0 %v977
        %2167 = vmatprep.subr.mxu0 0.0
        %2168 = vmatpush1.msra.mxu0 %v976
        %2169 = vmatprep.subr.mxu0 0.0
        %2170 = vmatpush2.msra.mxu0 0.0
        %2171 = vmatprep.subr.mxu0 0.0
        %2172 = vmatpush2.msra.mxu0 0.0
        %2173 = vmatprep.subr.mxu0 0.0
        %2174 = vmatpush2.msra.mxu0 0.0
        %2175 = vmatprep.subr.mxu0 0.0
        %2176 = vmatpush2.msra.mxu0 0.0
        %2177 = vmatprep.subr.mxu0 0.0
        %2178 = vmatpush2.msra.mxu0 0.0
        %2179 = vmatprep.subr.mxu0 0.0
        %2180 = vmatpush2.msra.mxu0 0.0
        %2181 = vmatprep.subr.mxu0 0.0
        %2182 = vmatpush2.msra.mxu0 0.0
        %2183 = vmatprep.subr.mxu0 0.0
        %2184 = vmatpush2.msra.mxu0 0.0
        %2185 = vmatprep.subr.mxu0 0.0
        %2186 = vmatpush2.msra.mxu0 0.0
        %2187 = vmatprep.subr.mxu0 0.0
        %2188 = vmatpush2.msra.mxu0 0.0
        %2189 = vmatprep.subr.mxu0 0.0
        %2190 = vmatpush2.msra.mxu0 0.0
        %2191 = vmatprep.subr.mxu0 0.0
        %2192 = vmatpush2.msra.mxu0 0.0
        %2193 = vmatprep.subr.mxu0 0.0
        %2194 = vmatpush2.msra.mxu0 0.0
        %2195 = vmatprep.subr.mxu0 0.0
        %2196 = vmatpush2.msra.mxu0 0.0
        %2197 = vmatprep.subr.mxu0 0.0
        %2198 = vmatpush2.msra.mxu0 0.0
        %2199 = vmatprep.subr.mxu0 0.0
        %2200 = vmatpush2.msra.mxu0 0.0
        %2201 = vmatprep.mubr.f32.mxu0 0.0
        %2202 = vmatmul.mubr.f32.gmra.mxu0 %v2135
        %v2203 = vpop.f32.mrf.mxu0
        %v2204 = vadd.f32 %v978, %v2203
        %v2205 = vpop.f32.mrf.mxu0
        %2206 = vdwg.mxu0
        %v2207 = vadd.f32 %v2134, %v2204
        %v2208 = vxor.u32 %v2207, 2147483648
        %v2209 = vmul.f32 %v2208, 1.442695
        %v2210 = vpow.pop %v2209
        %v2211 = vadd.f32 %v2210, 1.0
        %v2212 = vrcp.pop %v2211
        %v2213 = vmul.f32 1.0, %v2212
        %2215 = vrot.lane.b32.xlu0 %v2204, 96
        %v2216 = vpop.permute.xlu0 %2215
        %v2218 = vmul.f32 %v2213, %v2216
        %2220 = vrot.lane.b32.xlu0 %v2218, 32
        %v2221 = vpop.permute.xlu0 %2220
        %v2223 = vadd.f32 %v2134, %v2221
        %v2224 = vtanh.pop %v2223
        %v2225 = vsub.f32 1.0, %v2213
        %2227 = vrot.lane.b32.xlu0 %v2224, 112
        %v2228 = vpop.permute.xlu0 %2227
        %v2230 = vmul.f32 %v2225, %v2228
        %v2231 = vmul.f32 %v2213, %v2128
        %v2232 = vadd.f32 %v2230, %v2231
        %2234 = vrot.lane.b32.xlu0 %v2232, 112
        %v2235 = vpop.permute.xlu0 %2234
        %2237 = vst.msk [vmem:[#allocation4 + $0xb] sm:$0x1] %vm1092, %v2235
        %v2238 = vld [vmem:[#allocation3 + $0xc] sm:$0x1]
        %v2239 = vsel %vm981, %v2235, 0
        %2241 = vmatprep.subr.mxu0 0.0
        %2242 = vmatpush1.msra.mxu0 0.0
        %2243 = vmatprep.subr.mxu0 0.0
        %2244 = vmatpush1.msra.mxu0 0.0
        %2245 = vmatprep.subr.mxu0 0.0
        %2246 = vmatpush1.msra.mxu0 0.0
        %2247 = vmatprep.subr.mxu0 0.0
        %2248 = vmatpush1.msra.mxu0 0.0
        %2249 = vmatprep.subr.mxu0 0.0
        %2250 = vmatpush1.msra.mxu0 0.0
        %2251 = vmatprep.subr.mxu0 0.0
        %2252 = vmatpush1.msra.mxu0 0.0
        %2253 = vmatprep.subr.mxu0 0.0
        %2254 = vmatpush1.msra.mxu0 0.0
        %2255 = vmatprep.subr.mxu0 0.0
        %2256 = vmatpush1.msra.mxu0 0.0
        %2257 = vmatprep.subr.mxu0 0.0
        %2258 = vmatpush1.msra.mxu0 0.0
        %2259 = vmatprep.subr.mxu0 0.0
        %2260 = vmatpush1.msra.mxu0 0.0
        %2261 = vmatprep.subr.mxu0 0.0
        %2262 = vmatpush1.msra.mxu0 0.0
        %2263 = vmatprep.subr.mxu0 0.0
        %2264 = vmatpush1.msra.mxu0 0.0
        %2265 = vmatprep.subr.mxu0 0.0
        %2266 = vmatpush1.msra.mxu0 0.0
        %2267 = vmatprep.subr.mxu0 0.0
        %2268 = vmatpush1.msra.mxu0 0.0
        %2269 = vmatprep.subr.mxu0 0.0
        %2270 = vmatpush1.msra.mxu0 %v977
        %2271 = vmatprep.subr.mxu0 0.0
        %2272 = vmatpush1.msra.mxu0 %v976
        %2273 = vmatprep.subr.mxu0 0.0
        %2274 = vmatpush2.msra.mxu0 0.0
        %2275 = vmatprep.subr.mxu0 0.0
        %2276 = vmatpush2.msra.mxu0 0.0
        %2277 = vmatprep.subr.mxu0 0.0
        %2278 = vmatpush2.msra.mxu0 0.0
        %2279 = vmatprep.subr.mxu0 0.0
        %2280 = vmatpush2.msra.mxu0 0.0
        %2281 = vmatprep.subr.mxu0 0.0
        %2282 = vmatpush2.msra.mxu0 0.0
        %2283 = vmatprep.subr.mxu0 0.0
        %2284 = vmatpush2.msra.mxu0 0.0
        %2285 = vmatprep.subr.mxu0 0.0
        %2286 = vmatpush2.msra.mxu0 0.0
        %2287 = vmatprep.subr.mxu0 0.0
        %2288 = vmatpush2.msra.mxu0 0.0
        %2289 = vmatprep.subr.mxu0 0.0
        %2290 = vmatpush2.msra.mxu0 0.0
        %2291 = vmatprep.subr.mxu0 0.0
        %2292 = vmatpush2.msra.mxu0 0.0
        %2293 = vmatprep.subr.mxu0 0.0
        %2294 = vmatpush2.msra.mxu0 0.0
        %2295 = vmatprep.subr.mxu0 0.0
        %2296 = vmatpush2.msra.mxu0 0.0
        %2297 = vmatprep.subr.mxu0 0.0
        %2298 = vmatpush2.msra.mxu0 0.0
        %2299 = vmatprep.subr.mxu0 0.0
        %2300 = vmatpush2.msra.mxu0 0.0
        %2301 = vmatprep.subr.mxu0 0.0
        %2302 = vmatpush2.msra.mxu0 0.0
        %2303 = vmatprep.subr.mxu0 0.0
        %2304 = vmatpush2.msra.mxu0 0.0
        %2305 = vmatprep.mubr.f32.mxu0 0.0
        %2306 = vmatmul.mubr.f32.gmra.mxu0 %v2239
        %v2307 = vpop.f32.mrf.mxu0
        %v2308 = vadd.f32 %v978, %v2307
        %v2309 = vpop.f32.mrf.mxu0
        %2310 = vdwg.mxu0
        %v2311 = vadd.f32 %v2238, %v2308
        %v2312 = vxor.u32 %v2311, 2147483648
        %v2313 = vmul.f32 %v2312, 1.442695
        %v2314 = vpow.pop %v2313
        %v2315 = vadd.f32 %v2314, 1.0
        %v2316 = vrcp.pop %v2315
        %v2317 = vmul.f32 1.0, %v2316
        %2319 = vrot.lane.b32.xlu0 %v2308, 96
        %v2320 = vpop.permute.xlu0 %2319
        %v2322 = vmul.f32 %v2317, %v2320
        %2324 = vrot.lane.b32.xlu0 %v2322, 32
        %v2325 = vpop.permute.xlu0 %2324
        %v2327 = vadd.f32 %v2238, %v2325
        %v2328 = vtanh.pop %v2327
        %v2329 = vsub.f32 1.0, %v2317
        %2331 = vrot.lane.b32.xlu0 %v2328, 112
        %v2332 = vpop.permute.xlu0 %2331
        %v2334 = vmul.f32 %v2329, %v2332
        %v2335 = vmul.f32 %v2317, %v2232
        %v2336 = vadd.f32 %v2334, %v2335
        %2338 = vrot.lane.b32.xlu0 %v2336, 112
        %v2339 = vpop.permute.xlu0 %2338
        %2341 = vst.msk [vmem:[#allocation4 + $0xc] sm:$0x1] %vm1092, %v2339
        %v2342 = vld [vmem:[#allocation3 + $0xd] sm:$0x1]
        %v2343 = vsel %vm981, %v2339, 0
        %2345 = vmatprep.subr.mxu0 0.0
        %2346 = vmatpush1.msra.mxu0 0.0
        %2347 = vmatprep.subr.mxu0 0.0
        %2348 = vmatpush1.msra.mxu0 0.0
        %2349 = vmatprep.subr.mxu0 0.0
        %2350 = vmatpush1.msra.mxu0 0.0
        %2351 = vmatprep.subr.mxu0 0.0
        %2352 = vmatpush1.msra.mxu0 0.0
        %2353 = vmatprep.subr.mxu0 0.0
        %2354 = vmatpush1.msra.mxu0 0.0
        %2355 = vmatprep.subr.mxu0 0.0
        %2356 = vmatpush1.msra.mxu0 0.0
        %2357 = vmatprep.subr.mxu0 0.0
        %2358 = vmatpush1.msra.mxu0 0.0
        %2359 = vmatprep.subr.mxu0 0.0
        %2360 = vmatpush1.msra.mxu0 0.0
        %2361 = vmatprep.subr.mxu0 0.0
        %2362 = vmatpush1.msra.mxu0 0.0
        %2363 = vmatprep.subr.mxu0 0.0
        %2364 = vmatpush1.msra.mxu0 0.0
        %2365 = vmatprep.subr.mxu0 0.0
        %2366 = vmatpush1.msra.mxu0 0.0
        %2367 = vmatprep.subr.mxu0 0.0
        %2368 = vmatpush1.msra.mxu0 0.0
        %2369 = vmatprep.subr.mxu0 0.0
        %2370 = vmatpush1.msra.mxu0 0.0
        %2371 = vmatprep.subr.mxu0 0.0
        %2372 = vmatpush1.msra.mxu0 0.0
        %2373 = vmatprep.subr.mxu0 0.0
        %2374 = vmatpush1.msra.mxu0 %v977
        %2375 = vmatprep.subr.mxu0 0.0
        %2376 = vmatpush1.msra.mxu0 %v976
        %2377 = vmatprep.subr.mxu0 0.0
        %2378 = vmatpush2.msra.mxu0 0.0
        %2379 = vmatprep.subr.mxu0 0.0
        %2380 = vmatpush2.msra.mxu0 0.0
        %2381 = vmatprep.subr.mxu0 0.0
        %2382 = vmatpush2.msra.mxu0 0.0
        %2383 = vmatprep.subr.mxu0 0.0
        %2384 = vmatpush2.msra.mxu0 0.0
        %2385 = vmatprep.subr.mxu0 0.0
        %2386 = vmatpush2.msra.mxu0 0.0
        %2387 = vmatprep.subr.mxu0 0.0
        %2388 = vmatpush2.msra.mxu0 0.0
        %2389 = vmatprep.subr.mxu0 0.0
        %2390 = vmatpush2.msra.mxu0 0.0
        %2391 = vmatprep.subr.mxu0 0.0
        %2392 = vmatpush2.msra.mxu0 0.0
        %2393 = vmatprep.subr.mxu0 0.0
        %2394 = vmatpush2.msra.mxu0 0.0
        %2395 = vmatprep.subr.mxu0 0.0
        %2396 = vmatpush2.msra.mxu0 0.0
        %2397 = vmatprep.subr.mxu0 0.0
        %2398 = vmatpush2.msra.mxu0 0.0
        %2399 = vmatprep.subr.mxu0 0.0
        %2400 = vmatpush2.msra.mxu0 0.0
        %2401 = vmatprep.subr.mxu0 0.0
        %2402 = vmatpush2.msra.mxu0 0.0
        %2403 = vmatprep.subr.mxu0 0.0
        %2404 = vmatpush2.msra.mxu0 0.0
        %2405 = vmatprep.subr.mxu0 0.0
        %2406 = vmatpush2.msra.mxu0 0.0
        %2407 = vmatprep.subr.mxu0 0.0
        %2408 = vmatpush2.msra.mxu0 0.0
        %2409 = vmatprep.mubr.f32.mxu0 0.0
        %2410 = vmatmul.mubr.f32.gmra.mxu0 %v2343
        %v2411 = vpop.f32.mrf.mxu0
        %v2412 = vadd.f32 %v978, %v2411
        %v2413 = vpop.f32.mrf.mxu0
        %2414 = vdwg.mxu0
        %v2415 = vadd.f32 %v2342, %v2412
        %v2416 = vxor.u32 %v2415, 2147483648
        %v2417 = vmul.f32 %v2416, 1.442695
        %v2418 = vpow.pop %v2417
        %v2419 = vadd.f32 %v2418, 1.0
        %v2420 = vrcp.pop %v2419
        %v2421 = vmul.f32 1.0, %v2420
        %2423 = vrot.lane.b32.xlu0 %v2412, 96
        %v2424 = vpop.permute.xlu0 %2423
        %v2426 = vmul.f32 %v2421, %v2424
        %2428 = vrot.lane.b32.xlu0 %v2426, 32
        %v2429 = vpop.permute.xlu0 %2428
        %v2431 = vadd.f32 %v2342, %v2429
        %v2432 = vtanh.pop %v2431
        %v2433 = vsub.f32 1.0, %v2421
        %2435 = vrot.lane.b32.xlu0 %v2432, 112
        %v2436 = vpop.permute.xlu0 %2435
        %v2438 = vmul.f32 %v2433, %v2436
        %v2439 = vmul.f32 %v2421, %v2336
        %v2440 = vadd.f32 %v2438, %v2439
        %2442 = vrot.lane.b32.xlu0 %v2440, 112
        %v2443 = vpop.permute.xlu0 %2442
        %2445 = vst.msk [vmem:[#allocation4 + $0xd] sm:$0x1] %vm1092, %v2443
        %v2446 = vld [vmem:[#allocation3 + $0xe] sm:$0x1]
        %v2447 = vsel %vm981, %v2443, 0
        %2449 = vmatprep.subr.mxu0 0.0
        %2450 = vmatpush1.msra.mxu0 0.0
        %2451 = vmatprep.subr.mxu0 0.0
        %2452 = vmatpush1.msra.mxu0 0.0
        %2453 = vmatprep.subr.mxu0 0.0
        %2454 = vmatpush1.msra.mxu0 0.0
        %2455 = vmatprep.subr.mxu0 0.0
        %2456 = vmatpush1.msra.mxu0 0.0
        %2457 = vmatprep.subr.mxu0 0.0
        %2458 = vmatpush1.msra.mxu0 0.0
        %2459 = vmatprep.subr.mxu0 0.0
        %2460 = vmatpush1.msra.mxu0 0.0
        %2461 = vmatprep.subr.mxu0 0.0
        %2462 = vmatpush1.msra.mxu0 0.0
        %2463 = vmatprep.subr.mxu0 0.0
        %2464 = vmatpush1.msra.mxu0 0.0
        %2465 = vmatprep.subr.mxu0 0.0
        %2466 = vmatpush1.msra.mxu0 0.0
        %2467 = vmatprep.subr.mxu0 0.0
        %2468 = vmatpush1.msra.mxu0 0.0
        %2469 = vmatprep.subr.mxu0 0.0
        %2470 = vmatpush1.msra.mxu0 0.0
        %2471 = vmatprep.subr.mxu0 0.0
        %2472 = vmatpush1.msra.mxu0 0.0
        %2473 = vmatprep.subr.mxu0 0.0
        %2474 = vmatpush1.msra.mxu0 0.0
        %2475 = vmatprep.subr.mxu0 0.0
        %2476 = vmatpush1.msra.mxu0 0.0
        %2477 = vmatprep.subr.mxu0 0.0
        %2478 = vmatpush1.msra.mxu0 %v977
        %2479 = vmatprep.subr.mxu0 0.0
        %2480 = vmatpush1.msra.mxu0 %v976
        %2481 = vmatprep.subr.mxu0 0.0
        %2482 = vmatpush2.msra.mxu0 0.0
        %2483 = vmatprep.subr.mxu0 0.0
        %2484 = vmatpush2.msra.mxu0 0.0
        %2485 = vmatprep.subr.mxu0 0.0
        %2486 = vmatpush2.msra.mxu0 0.0
        %2487 = vmatprep.subr.mxu0 0.0
        %2488 = vmatpush2.msra.mxu0 0.0
        %2489 = vmatprep.subr.mxu0 0.0
        %2490 = vmatpush2.msra.mxu0 0.0
        %2491 = vmatprep.subr.mxu0 0.0
        %2492 = vmatpush2.msra.mxu0 0.0
        %2493 = vmatprep.subr.mxu0 0.0
        %2494 = vmatpush2.msra.mxu0 0.0
        %2495 = vmatprep.subr.mxu0 0.0
        %2496 = vmatpush2.msra.mxu0 0.0
        %2497 = vmatprep.subr.mxu0 0.0
        %2498 = vmatpush2.msra.mxu0 0.0
        %2499 = vmatprep.subr.mxu0 0.0
        %2500 = vmatpush2.msra.mxu0 0.0
        %2501 = vmatprep.subr.mxu0 0.0
        %2502 = vmatpush2.msra.mxu0 0.0
        %2503 = vmatprep.subr.mxu0 0.0
        %2504 = vmatpush2.msra.mxu0 0.0
        %2505 = vmatprep.subr.mxu0 0.0
        %2506 = vmatpush2.msra.mxu0 0.0
        %2507 = vmatprep.subr.mxu0 0.0
        %2508 = vmatpush2.msra.mxu0 0.0
        %2509 = vmatprep.subr.mxu0 0.0
        %2510 = vmatpush2.msra.mxu0 0.0
        %2511 = vmatprep.subr.mxu0 0.0
        %2512 = vmatpush2.msra.mxu0 0.0
        %2513 = vmatprep.mubr.f32.mxu0 0.0
        %2514 = vmatmul.mubr.f32.gmra.mxu0 %v2447
        %v2515 = vpop.f32.mrf.mxu0
        %v2516 = vadd.f32 %v978, %v2515
        %v2517 = vpop.f32.mrf.mxu0
        %2518 = vdwg.mxu0
        %v2519 = vadd.f32 %v2446, %v2516
        %v2520 = vxor.u32 %v2519, 2147483648
        %v2521 = vmul.f32 %v2520, 1.442695
        %v2522 = vpow.pop %v2521
        %v2523 = vadd.f32 %v2522, 1.0
        %v2524 = vrcp.pop %v2523
        %v2525 = vmul.f32 1.0, %v2524
        %2527 = vrot.lane.b32.xlu0 %v2516, 96
        %v2528 = vpop.permute.xlu0 %2527
        %v2530 = vmul.f32 %v2525, %v2528
        %2532 = vrot.lane.b32.xlu0 %v2530, 32
        %v2533 = vpop.permute.xlu0 %2532
        %v2535 = vadd.f32 %v2446, %v2533
        %v2536 = vtanh.pop %v2535
        %v2537 = vsub.f32 1.0, %v2525
        %2539 = vrot.lane.b32.xlu0 %v2536, 112
        %v2540 = vpop.permute.xlu0 %2539
        %v2542 = vmul.f32 %v2537, %v2540
        %v2543 = vmul.f32 %v2525, %v2440
        %v2544 = vadd.f32 %v2542, %v2543
        %2546 = vrot.lane.b32.xlu0 %v2544, 112
        %v2547 = vpop.permute.xlu0 %2546
        %2549 = vst.msk [vmem:[#allocation4 + $0xe] sm:$0x1] %vm1092, %v2547
        %v2550 = vld [vmem:[#allocation3 + $0xf] sm:$0x1]
        %v2551 = vsel %vm981, %v2547, 0
        %2553 = vmatprep.subr.mxu0 0.0
        %2554 = vmatpush1.msra.mxu0 0.0
        %2555 = vmatprep.subr.mxu0 0.0
        %2556 = vmatpush1.msra.mxu0 0.0
        %2557 = vmatprep.subr.mxu0 0.0
        %2558 = vmatpush1.msra.mxu0 0.0
        %2559 = vmatprep.subr.mxu0 0.0
        %2560 = vmatpush1.msra.mxu0 0.0
        %2561 = vmatprep.subr.mxu0 0.0
        %2562 = vmatpush1.msra.mxu0 0.0
        %2563 = vmatprep.subr.mxu0 0.0
        %2564 = vmatpush1.msra.mxu0 0.0
        %2565 = vmatprep.subr.mxu0 0.0
        %2566 = vmatpush1.msra.mxu0 0.0
        %2567 = vmatprep.subr.mxu0 0.0
        %2568 = vmatpush1.msra.mxu0 0.0
        %2569 = vmatprep.subr.mxu0 0.0
        %2570 = vmatpush1.msra.mxu0 0.0
        %2571 = vmatprep.subr.mxu0 0.0
        %2572 = vmatpush1.msra.mxu0 0.0
        %2573 = vmatprep.subr.mxu0 0.0
        %2574 = vmatpush1.msra.mxu0 0.0
        %2575 = vmatprep.subr.mxu0 0.0
        %2576 = vmatpush1.msra.mxu0 0.0
        %2577 = vmatprep.subr.mxu0 0.0
        %2578 = vmatpush1.msra.mxu0 0.0
        %2579 = vmatprep.subr.mxu0 0.0
        %2580 = vmatpush1.msra.mxu0 0.0
        %2581 = vmatprep.subr.mxu0 0.0
        %2582 = vmatpush1.msra.mxu0 %v977
        %2583 = vmatprep.subr.mxu0 0.0
        %2584 = vmatpush1.msra.mxu0 %v976
        %2585 = vmatprep.subr.mxu0 0.0
        %2586 = vmatpush2.msra.mxu0 0.0
        %2587 = vmatprep.subr.mxu0 0.0
        %2588 = vmatpush2.msra.mxu0 0.0
        %2589 = vmatprep.subr.mxu0 0.0
        %2590 = vmatpush2.msra.mxu0 0.0
        %2591 = vmatprep.subr.mxu0 0.0
        %2592 = vmatpush2.msra.mxu0 0.0
        %2593 = vmatprep.subr.mxu0 0.0
        %2594 = vmatpush2.msra.mxu0 0.0
        %2595 = vmatprep.subr.mxu0 0.0
        %2596 = vmatpush2.msra.mxu0 0.0
        %2597 = vmatprep.subr.mxu0 0.0
        %2598 = vmatpush2.msra.mxu0 0.0
        %2599 = vmatprep.subr.mxu0 0.0
        %2600 = vmatpush2.msra.mxu0 0.0
        %2601 = vmatprep.subr.mxu0 0.0
        %2602 = vmatpush2.msra.mxu0 0.0
        %2603 = vmatprep.subr.mxu0 0.0
        %2604 = vmatpush2.msra.mxu0 0.0
        %2605 = vmatprep.subr.mxu0 0.0
        %2606 = vmatpush2.msra.mxu0 0.0
        %2607 = vmatprep.subr.mxu0 0.0
        %2608 = vmatpush2.msra.mxu0 0.0
        %2609 = vmatprep.subr.mxu0 0.0
        %2610 = vmatpush2.msra.mxu0 0.0
        %2611 = vmatprep.subr.mxu0 0.0
        %2612 = vmatpush2.msra.mxu0 0.0
        %2613 = vmatprep.subr.mxu0 0.0
        %2614 = vmatpush2.msra.mxu0 0.0
        %2615 = vmatprep.subr.mxu0 0.0
        %2616 = vmatpush2.msra.mxu0 0.0
        %2617 = vmatprep.mubr.f32.mxu0 0.0
        %2618 = vmatmul.mubr.f32.gmra.mxu0 %v2551
        %v2619 = vpop.f32.mrf.mxu0
        %v2620 = vadd.f32 %v978, %v2619
        %v2621 = vpop.f32.mrf.mxu0
        %2622 = vdwg.mxu0
        %v2623 = vadd.f32 %v2550, %v2620
        %v2624 = vxor.u32 %v2623, 2147483648
        %v2625 = vmul.f32 %v2624, 1.442695
        %v2626 = vpow.pop %v2625
        %v2627 = vadd.f32 %v2626, 1.0
        %v2628 = vrcp.pop %v2627
        %v2629 = vmul.f32 1.0, %v2628
        %2631 = vrot.lane.b32.xlu0 %v2620, 96
        %v2632 = vpop.permute.xlu0 %2631
        %v2634 = vmul.f32 %v2629, %v2632
        %2636 = vrot.lane.b32.xlu0 %v2634, 32
        %v2637 = vpop.permute.xlu0 %2636
        %v2639 = vadd.f32 %v2550, %v2637
        %v2640 = vtanh.pop %v2639
        %v2641 = vsub.f32 1.0, %v2629
        %2643 = vrot.lane.b32.xlu0 %v2640, 112
        %v2644 = vpop.permute.xlu0 %2643
        %v2646 = vmul.f32 %v2641, %v2644
        %v2647 = vmul.f32 %v2629, %v2544
        %v2648 = vadd.f32 %v2646, %v2647
        %2650 = vrot.lane.b32.xlu0 %v2648, 112
        %v2651 = vpop.permute.xlu0 %2650
        %2653 = vst.msk [vmem:[#allocation4 + $0xf] sm:$0x1] %vm1092, %v2651
        %2654 = vst.msk [vmem:[#allocation7] sm:$0x1] %vm1092, %v2651
        %v2655 = vld [vmem:[#allocation2] sm:$0xff]
        %v2656 = vld [vmem:[#allocation2 + $0x8] sm:$0xff]
        %v2657 = vld [vmem:[#allocation18] sm:$0xff]
        %v2658 = vld [vmem:[#allocation18 + $0x8] sm:$0xff]
        %v2659 = vld [vmem:[#allocation18 + $0x10] sm:$0xff]
        %v2660 = vld [vmem:[#allocation18 + $0x18] sm:$0xff]
        %v2661 = vld [vmem:[#allocation18 + $0x20] sm:$0xff]
        %v2662 = vld [vmem:[#allocation18 + $0x28] sm:$0xff]
        %v2663 = vld [vmem:[#allocation18 + $0x30] sm:$0xff]
        %v2664 = vld [vmem:[#allocation18 + $0x38] sm:$0xff]
        %v2665 = vld [vmem:[#allocation18 + $0x40] sm:$0xff]
        %v2666 = vld [vmem:[#allocation18 + $0x48] sm:$0xff]
        %v2667 = vld [vmem:[#allocation18 + $0x50] sm:$0xff]
        %v2668 = vld [vmem:[#allocation18 + $0x58] sm:$0xff]
        %v2669 = vld [vmem:[#allocation18 + $0x60] sm:$0xff]
        %v2670 = vld [vmem:[#allocation18 + $0x68] sm:$0xff]
        %v2671 = vld [vmem:[#allocation18 + $0x70] sm:$0xff]
        %v2672 = vld [vmem:[#allocation18 + $0x78] sm:$0xff]
        %v2673 = vld [vmem:[#allocation4] sm:$0xff]
        %v2674 = vld [vmem:[#allocation4 + $0x8] sm:$0xff]
        %v2675 = vld [vmem:[#allocation19] sm:$0xff]
        %v2676 = vld [vmem:[#allocation19 + $0x8] sm:$0xff]
        %v2678 = vsel %vm981, %v2673, 0
        %v2681 = vsel %vm981, %v2674, 0
        %2683 = vmatprep.subr.mxu0 0.0
        %2684 = vmatpush1.msra.mxu0 0.0
        %2685 = vmatprep.subr.mxu0 0.0
        %2686 = vmatpush1.msra.mxu0 0.0
        %2687 = vmatprep.subr.mxu0 0.0
        %2688 = vmatpush1.msra.mxu0 0.0
        %2689 = vmatprep.subr.mxu0 0.0
        %2690 = vmatpush1.msra.mxu0 0.0
        %2691 = vmatprep.subr.mxu0 0.0
        %2692 = vmatpush1.msra.mxu0 0.0
        %2693 = vmatprep.subr.mxu0 0.0
        %2694 = vmatpush1.msra.mxu0 0.0
        %2695 = vmatprep.subr.mxu0 0.0
        %2696 = vmatpush1.msra.mxu0 0.0
        %2697 = vmatprep.subr.mxu0 0.0
        %2698 = vmatpush1.msra.mxu0 0.0
        %2699 = vmatprep.subr.mxu0 0.0
        %2700 = vmatpush1.msra.mxu0 0.0
        %2701 = vmatprep.subr.mxu0 0.0
        %2702 = vmatpush1.msra.mxu0 0.0
        %2703 = vmatprep.subr.mxu0 0.0
        %2704 = vmatpush1.msra.mxu0 0.0
        %2705 = vmatprep.subr.mxu0 0.0
        %2706 = vmatpush1.msra.mxu0 0.0
        %2707 = vmatprep.subr.mxu0 0.0
        %2708 = vmatpush1.msra.mxu0 0.0
        %2709 = vmatprep.subr.mxu0 0.0
        %2710 = vmatpush1.msra.mxu0 0.0
        %2711 = vmatprep.subr.mxu0 0.0
        %2712 = vmatpush1.msra.mxu0 %v2676
        %2713 = vmatprep.subr.mxu0 0.0
        %2714 = vmatpush1.msra.mxu0 %v2675
        %2715 = vmatprep.subr.mxu0 0.0
        %2716 = vmatpush2.msra.mxu0 0.0
        %2717 = vmatprep.subr.mxu0 0.0
        %2718 = vmatpush2.msra.mxu0 0.0
        %2719 = vmatprep.subr.mxu0 0.0
        %2720 = vmatpush2.msra.mxu0 0.0
        %2721 = vmatprep.subr.mxu0 0.0
        %2722 = vmatpush2.msra.mxu0 0.0
        %2723 = vmatprep.subr.mxu0 0.0
        %2724 = vmatpush2.msra.mxu0 0.0
        %2725 = vmatprep.subr.mxu0 0.0
        %2726 = vmatpush2.msra.mxu0 0.0
        %2727 = vmatprep.subr.mxu0 0.0
        %2728 = vmatpush2.msra.mxu0 0.0
        %2729 = vmatprep.subr.mxu0 0.0
        %2730 = vmatpush2.msra.mxu0 0.0
        %2731 = vmatprep.subr.mxu0 0.0
        %2732 = vmatpush2.msra.mxu0 0.0
        %2733 = vmatprep.subr.mxu0 0.0
        %2734 = vmatpush2.msra.mxu0 0.0
        %2735 = vmatprep.subr.mxu0 0.0
        %2736 = vmatpush2.msra.mxu0 0.0
        %2737 = vmatprep.subr.mxu0 0.0
        %2738 = vmatpush2.msra.mxu0 0.0
        %2739 = vmatprep.subr.mxu0 0.0
        %2740 = vmatpush2.msra.mxu0 0.0
        %2741 = vmatprep.subr.mxu0 0.0
        %2742 = vmatpush2.msra.mxu0 0.0
        %2743 = vmatprep.subr.mxu0 0.0
        %2744 = vmatpush2.msra.mxu0 0.0
        %2745 = vmatprep.subr.mxu0 0.0
        %2746 = vmatpush2.msra.mxu0 0.0
        %2747 = vmatprep.mubr.f32.mxu0 0.0
        %2748 = vmatmul.mubr.f32.gmra.mxu0 %v2678
        %v2749 = vpop.f32.mrf.mxu0
        %v2750 = vadd.f32 0.0, %v2749
        %v2751 = vpop.f32.mrf.mxu0
        %2752 = vmatprep.mubr.f32.mxu0 0.0
        %2753 = vmatmul.mubr.f32.gmra.mxu0 %v2681
        %v2754 = vpop.f32.mrf.mxu0
        %v2755 = vadd.f32 0.0, %v2754
        %v2756 = vpop.f32.mrf.mxu0
        %2757 = vdwg.mxu0
        %2758 = vmatprep.subr.mxu0 0.0
        %2759 = vmatpush1.msra.mxu0 %v2672
        %2760 = vmatprep.subr.mxu0 0.0
        %2761 = vmatpush1.msra.mxu0 %v2671
        %2762 = vmatprep.subr.mxu0 0.0
        %2763 = vmatpush1.msra.mxu0 %v2670
        %2764 = vmatprep.subr.mxu0 0.0
        %2765 = vmatpush1.msra.mxu0 %v2669
        %2766 = vmatprep.subr.mxu0 0.0
        %2767 = vmatpush1.msra.mxu0 %v2668
        %2768 = vmatprep.subr.mxu0 0.0
        %2769 = vmatpush1.msra.mxu0 %v2667
        %2770 = vmatprep.subr.mxu0 0.0
        %2771 = vmatpush1.msra.mxu0 %v2666
        %2772 = vmatprep.subr.mxu0 0.0
        %2773 = vmatpush1.msra.mxu0 %v2665
        %2774 = vmatprep.subr.mxu0 0.0
        %2775 = vmatpush1.msra.mxu0 %v2664
        %2776 = vmatprep.subr.mxu0 0.0
        %2777 = vmatpush1.msra.mxu0 %v2663
        %2778 = vmatprep.subr.mxu0 0.0
        %2779 = vmatpush1.msra.mxu0 %v2662
        %2780 = vmatprep.subr.mxu0 0.0
        %2781 = vmatpush1.msra.mxu0 %v2661
        %2782 = vmatprep.subr.mxu0 0.0
        %2783 = vmatpush1.msra.mxu0 %v2660
        %2784 = vmatprep.subr.mxu0 0.0
        %2785 = vmatpush1.msra.mxu0 %v2659
        %2786 = vmatprep.subr.mxu0 0.0
        %2787 = vmatpush1.msra.mxu0 %v2658
        %2788 = vmatprep.subr.mxu0 0.0
        %2789 = vmatpush1.msra.mxu0 %v2657
        %2790 = vmatprep.subr.mxu0 0.0
        %2791 = vmatpush2.msra.mxu0 0.0
        %2792 = vmatprep.subr.mxu0 0.0
        %2793 = vmatpush2.msra.mxu0 0.0
        %2794 = vmatprep.subr.mxu0 0.0
        %2795 = vmatpush2.msra.mxu0 0.0
        %2796 = vmatprep.subr.mxu0 0.0
        %2797 = vmatpush2.msra.mxu0 0.0
        %2798 = vmatprep.subr.mxu0 0.0
        %2799 = vmatpush2.msra.mxu0 0.0
        %2800 = vmatprep.subr.mxu0 0.0
        %2801 = vmatpush2.msra.mxu0 0.0
        %2802 = vmatprep.subr.mxu0 0.0
        %2803 = vmatpush2.msra.mxu0 0.0
        %2804 = vmatprep.subr.mxu0 0.0
        %2805 = vmatpush2.msra.mxu0 0.0
        %2806 = vmatprep.subr.mxu0 0.0
        %2807 = vmatpush2.msra.mxu0 0.0
        %2808 = vmatprep.subr.mxu0 0.0
        %2809 = vmatpush2.msra.mxu0 0.0
        %2810 = vmatprep.subr.mxu0 0.0
        %2811 = vmatpush2.msra.mxu0 0.0
        %2812 = vmatprep.subr.mxu0 0.0
        %2813 = vmatpush2.msra.mxu0 0.0
        %2814 = vmatprep.subr.mxu0 0.0
        %2815 = vmatpush2.msra.mxu0 0.0
        %2816 = vmatprep.subr.mxu0 0.0
        %2817 = vmatpush2.msra.mxu0 0.0
        %2818 = vmatprep.subr.mxu0 0.0
        %2819 = vmatpush2.msra.mxu0 0.0
        %2820 = vmatprep.subr.mxu0 0.0
        %2821 = vmatpush2.msra.mxu0 0.0
        %2822 = vmatprep.mubr.f32.mxu0 0.0
        %2823 = vmatmul.mubr.f32.gmra.mxu0 %v2655
        %v2824 = vpop.f32.mrf.mxu0
        %v2825 = vadd.f32 %v2750, %v2824
        %v2826 = vpop.f32.mrf.mxu0
        %2827 = vmatprep.mubr.f32.mxu0 0.0
        %2828 = vmatmul.mubr.f32.gmra.mxu0 %v2656
        %v2829 = vpop.f32.mrf.mxu0
        %v2830 = vadd.f32 %v2755, %v2829
        %v2831 = vpop.f32.mrf.mxu0
        %2832 = vdwg.mxu0
        %v2833 = vld [vmem:[%s9] sm:$0x1]
        %v2835 = vlaneseq
        %v2836 = vshrl.u32 %v2835, 7
        %v2837 = vsub.s32 0, %v2836
        %v2838 = vrot.slane %v2833, %v2837
        %v2840 = vadd.f32 %v2825, %v2838
        %v2841 = vadd.f32 %v2830, %v2838
        %2842 = vst [vmem:[#allocation3] sm:$0xff] %v2840
        %2843 = vst [vmem:[#allocation3 + $0x8] sm:$0xff] %v2841
        %v2844 = vld [vmem:[#allocation21] sm:$0xff]
        %v2845 = vld [vmem:[#allocation21 + $0x8] sm:$0xff]
        %v2846 = vld [vmem:[%s10] sm:$0x1]
        %v2847 = vld [vmem:[#allocation8] sm:$0x1]
        %v2848 = vld [vmem:[#allocation3] sm:$0x1]
        %v2850 = vsel %vm981, %v2847, 0
        %2852 = vmatprep.subr.mxu0 0.0
        %2853 = vmatpush1.msra.mxu0 0.0
        %2854 = vmatprep.subr.mxu0 0.0
        %2855 = vmatpush1.msra.mxu0 0.0
        %2856 = vmatprep.subr.mxu0 0.0
        %2857 = vmatpush1.msra.mxu0 0.0
        %2858 = vmatprep.subr.mxu0 0.0
        %2859 = vmatpush1.msra.mxu0 0.0
        %2860 = vmatprep.subr.mxu0 0.0
        %2861 = vmatpush1.msra.mxu0 0.0
        %2862 = vmatprep.subr.mxu0 0.0
        %2863 = vmatpush1.msra.mxu0 0.0
        %2864 = vmatprep.subr.mxu0 0.0
        %2865 = vmatpush1.msra.mxu0 0.0
        %2866 = vmatprep.subr.mxu0 0.0
        %2867 = vmatpush1.msra.mxu0 0.0
        %2868 = vmatprep.subr.mxu0 0.0
        %2869 = vmatpush1.msra.mxu0 0.0
        %2870 = vmatprep.subr.mxu0 0.0
        %2871 = vmatpush1.msra.mxu0 0.0
        %2872 = vmatprep.subr.mxu0 0.0
        %2873 = vmatpush1.msra.mxu0 0.0
        %2874 = vmatprep.subr.mxu0 0.0
        %2875 = vmatpush1.msra.mxu0 0.0
        %2876 = vmatprep.subr.mxu0 0.0
        %2877 = vmatpush1.msra.mxu0 0.0
        %2878 = vmatprep.subr.mxu0 0.0
        %2879 = vmatpush1.msra.mxu0 0.0
        %2880 = vmatprep.subr.mxu0 0.0
        %2881 = vmatpush1.msra.mxu0 %v2845
        %2882 = vmatprep.subr.mxu0 0.0
        %2883 = vmatpush1.msra.mxu0 %v2844
        %2884 = vmatprep.subr.mxu0 0.0
        %2885 = vmatpush2.msra.mxu0 0.0
        %2886 = vmatprep.subr.mxu0 0.0
        %2887 = vmatpush2.msra.mxu0 0.0
        %2888 = vmatprep.subr.mxu0 0.0
        %2889 = vmatpush2.msra.mxu0 0.0
        %2890 = vmatprep.subr.mxu0 0.0
        %2891 = vmatpush2.msra.mxu0 0.0
        %2892 = vmatprep.subr.mxu0 0.0
        %2893 = vmatpush2.msra.mxu0 0.0
        %2894 = vmatprep.subr.mxu0 0.0
        %2895 = vmatpush2.msra.mxu0 0.0
        %2896 = vmatprep.subr.mxu0 0.0
        %2897 = vmatpush2.msra.mxu0 0.0
        %2898 = vmatprep.subr.mxu0 0.0
        %2899 = vmatpush2.msra.mxu0 0.0
        %2900 = vmatprep.subr.mxu0 0.0
        %2901 = vmatpush2.msra.mxu0 0.0
        %2902 = vmatprep.subr.mxu0 0.0
        %2903 = vmatpush2.msra.mxu0 0.0
        %2904 = vmatprep.subr.mxu0 0.0
        %2905 = vmatpush2.msra.mxu0 0.0
        %2906 = vmatprep.subr.mxu0 0.0
        %2907 = vmatpush2.msra.mxu0 0.0
        %2908 = vmatprep.subr.mxu0 0.0
        %2909 = vmatpush2.msra.mxu0 0.0
        %2910 = vmatprep.subr.mxu0 0.0
        %2911 = vmatpush2.msra.mxu0 0.0
        %2912 = vmatprep.subr.mxu0 0.0
        %2913 = vmatpush2.msra.mxu0 0.0
        %2914 = vmatprep.subr.mxu0 0.0
        %2915 = vmatpush2.msra.mxu0 0.0
        %2916 = vmatprep.mubr.f32.mxu0 0.0
        %2917 = vmatmul.mubr.f32.gmra.mxu0 %v2850
        %v2918 = vpop.f32.mrf.mxu0
        %v2919 = vadd.f32 %v2846, %v2918
        %v2920 = vpop.f32.mrf.mxu0
        %2921 = vdwg.mxu0
        %v2922 = vadd.f32 %v2848, %v2919
        %v2923 = vxor.u32 %v2922, 2147483648
        %v2924 = vmul.f32 %v2923, 1.442695
        %v2925 = vpow.pop %v2924
        %v2926 = vadd.f32 %v2925, 1.0
        %v2927 = vrcp.pop %v2926
        %v2928 = vmul.f32 1.0, %v2927
        %2930 = vrot.lane.b32.xlu0 %v2919, 96
        %v2931 = vpop.permute.xlu0 %2930
        %v2933 = vmul.f32 %v2928, %v2931
        %2935 = vrot.lane.b32.xlu0 %v2933, 32
        %v2936 = vpop.permute.xlu0 %2935
        %v2938 = vadd.f32 %v2848, %v2936
        %v2939 = vtanh.pop %v2938
        %v2940 = vsub.f32 1.0, %v2928
        %2942 = vrot.lane.b32.xlu0 %v2939, 112
        %v2943 = vpop.permute.xlu0 %2942
        %v2945 = vmul.f32 %v2940, %v2943
        %v2946 = vlaneseq
        %v2947 = vshrl.u32 %v2946, 7
        %v2948 = vsub.s32 0, %v2947
        %v2949 = vrot.slane %v2847, %v2948
        %2950 = vrot.lane.b32.xlu0 %v2949, 16
        %v2951 = vpop.permute.xlu0 %2950
        %v2953 = vmul.f32 %v2928, %v2951
        %v2954 = vadd.f32 %v2945, %v2953
        %2956 = vrot.lane.b32.xlu0 %v2954, 112
        %v2957 = vpop.permute.xlu0 %2956
        %2959 = vst.msk [vmem:[#allocation5] sm:$0x1] %vm1092, %v2957
        %v2960 = vld [vmem:[#allocation3 + $0x1] sm:$0x1]
        %v2961 = vsel %vm981, %v2957, 0
        %2963 = vmatprep.subr.mxu0 0.0
        %2964 = vmatpush1.msra.mxu0 0.0
        %2965 = vmatprep.subr.mxu0 0.0
        %2966 = vmatpush1.msra.mxu0 0.0
        %2967 = vmatprep.subr.mxu0 0.0
        %2968 = vmatpush1.msra.mxu0 0.0
        %2969 = vmatprep.subr.mxu0 0.0
        %2970 = vmatpush1.msra.mxu0 0.0
        %2971 = vmatprep.subr.mxu0 0.0
        %2972 = vmatpush1.msra.mxu0 0.0
        %2973 = vmatprep.subr.mxu0 0.0
        %2974 = vmatpush1.msra.mxu0 0.0
        %2975 = vmatprep.subr.mxu0 0.0
        %2976 = vmatpush1.msra.mxu0 0.0
        %2977 = vmatprep.subr.mxu0 0.0
        %2978 = vmatpush1.msra.mxu0 0.0
        %2979 = vmatprep.subr.mxu0 0.0
        %2980 = vmatpush1.msra.mxu0 0.0
        %2981 = vmatprep.subr.mxu0 0.0
        %2982 = vmatpush1.msra.mxu0 0.0
        %2983 = vmatprep.subr.mxu0 0.0
        %2984 = vmatpush1.msra.mxu0 0.0
        %2985 = vmatprep.subr.mxu0 0.0
        %2986 = vmatpush1.msra.mxu0 0.0
        %2987 = vmatprep.subr.mxu0 0.0
        %2988 = vmatpush1.msra.mxu0 0.0
        %2989 = vmatprep.subr.mxu0 0.0
        %2990 = vmatpush1.msra.mxu0 0.0
        %2991 = vmatprep.subr.mxu0 0.0
        %2992 = vmatpush1.msra.mxu0 %v2845
        %2993 = vmatprep.subr.mxu0 0.0
        %2994 = vmatpush1.msra.mxu0 %v2844
        %2995 = vmatprep.subr.mxu0 0.0
        %2996 = vmatpush2.msra.mxu0 0.0
        %2997 = vmatprep.subr.mxu0 0.0
        %2998 = vmatpush2.msra.mxu0 0.0
        %2999 = vmatprep.subr.mxu0 0.0
        %3000 = vmatpush2.msra.mxu0 0.0
        %3001 = vmatprep.subr.mxu0 0.0
        %3002 = vmatpush2.msra.mxu0 0.0
        %3003 = vmatprep.subr.mxu0 0.0
        %3004 = vmatpush2.msra.mxu0 0.0
        %3005 = vmatprep.subr.mxu0 0.0
        %3006 = vmatpush2.msra.mxu0 0.0
        %3007 = vmatprep.subr.mxu0 0.0
        %3008 = vmatpush2.msra.mxu0 0.0
        %3009 = vmatprep.subr.mxu0 0.0
        %3010 = vmatpush2.msra.mxu0 0.0
        %3011 = vmatprep.subr.mxu0 0.0
        %3012 = vmatpush2.msra.mxu0 0.0
        %3013 = vmatprep.subr.mxu0 0.0
        %3014 = vmatpush2.msra.mxu0 0.0
        %3015 = vmatprep.subr.mxu0 0.0
        %3016 = vmatpush2.msra.mxu0 0.0
        %3017 = vmatprep.subr.mxu0 0.0
        %3018 = vmatpush2.msra.mxu0 0.0
        %3019 = vmatprep.subr.mxu0 0.0
        %3020 = vmatpush2.msra.mxu0 0.0
        %3021 = vmatprep.subr.mxu0 0.0
        %3022 = vmatpush2.msra.mxu0 0.0
        %3023 = vmatprep.subr.mxu0 0.0
        %3024 = vmatpush2.msra.mxu0 0.0
        %3025 = vmatprep.subr.mxu0 0.0
        %3026 = vmatpush2.msra.mxu0 0.0
        %3027 = vmatprep.mubr.f32.mxu0 0.0
        %3028 = vmatmul.mubr.f32.gmra.mxu0 %v2961
        %v3029 = vpop.f32.mrf.mxu0
        %v3030 = vadd.f32 %v2846, %v3029
        %v3031 = vpop.f32.mrf.mxu0
        %3032 = vdwg.mxu0
        %v3033 = vadd.f32 %v2960, %v3030
        %v3034 = vxor.u32 %v3033, 2147483648
        %v3035 = vmul.f32 %v3034, 1.442695
        %v3036 = vpow.pop %v3035
        %v3037 = vadd.f32 %v3036, 1.0
        %v3038 = vrcp.pop %v3037
        %v3039 = vmul.f32 1.0, %v3038
        %3041 = vrot.lane.b32.xlu0 %v3030, 96
        %v3042 = vpop.permute.xlu0 %3041
        %v3044 = vmul.f32 %v3039, %v3042
        %3046 = vrot.lane.b32.xlu0 %v3044, 32
        %v3047 = vpop.permute.xlu0 %3046
        %v3049 = vadd.f32 %v2960, %v3047
        %v3050 = vtanh.pop %v3049
        %v3051 = vsub.f32 1.0, %v3039
        %3053 = vrot.lane.b32.xlu0 %v3050, 112
        %v3054 = vpop.permute.xlu0 %3053
        %v3056 = vmul.f32 %v3051, %v3054
        %v3057 = vmul.f32 %v3039, %v2954
        %v3058 = vadd.f32 %v3056, %v3057
        %3060 = vrot.lane.b32.xlu0 %v3058, 112
        %v3061 = vpop.permute.xlu0 %3060
        %3063 = vst.msk [vmem:[#allocation5 + $0x1] sm:$0x1] %vm1092, %v3061
        %v3064 = vld [vmem:[#allocation3 + $0x2] sm:$0x1]
        %v3065 = vsel %vm981, %v3061, 0
        %3067 = vmatprep.subr.mxu0 0.0
        %3068 = vmatpush1.msra.mxu0 0.0
        %3069 = vmatprep.subr.mxu0 0.0
        %3070 = vmatpush1.msra.mxu0 0.0
        %3071 = vmatprep.subr.mxu0 0.0
        %3072 = vmatpush1.msra.mxu0 0.0
        %3073 = vmatprep.subr.mxu0 0.0
        %3074 = vmatpush1.msra.mxu0 0.0
        %3075 = vmatprep.subr.mxu0 0.0
        %3076 = vmatpush1.msra.mxu0 0.0
        %3077 = vmatprep.subr.mxu0 0.0
        %3078 = vmatpush1.msra.mxu0 0.0
        %3079 = vmatprep.subr.mxu0 0.0
        %3080 = vmatpush1.msra.mxu0 0.0
        %3081 = vmatprep.subr.mxu0 0.0
        %3082 = vmatpush1.msra.mxu0 0.0
        %3083 = vmatprep.subr.mxu0 0.0
        %3084 = vmatpush1.msra.mxu0 0.0
        %3085 = vmatprep.subr.mxu0 0.0
        %3086 = vmatpush1.msra.mxu0 0.0
        %3087 = vmatprep.subr.mxu0 0.0
        %3088 = vmatpush1.msra.mxu0 0.0
        %3089 = vmatprep.subr.mxu0 0.0
        %3090 = vmatpush1.msra.mxu0 0.0
        %3091 = vmatprep.subr.mxu0 0.0
        %3092 = vmatpush1.msra.mxu0 0.0
        %3093 = vmatprep.subr.mxu0 0.0
        %3094 = vmatpush1.msra.mxu0 0.0
        %3095 = vmatprep.subr.mxu0 0.0
        %3096 = vmatpush1.msra.mxu0 %v2845
        %3097 = vmatprep.subr.mxu0 0.0
        %3098 = vmatpush1.msra.mxu0 %v2844
        %3099 = vmatprep.subr.mxu0 0.0
        %3100 = vmatpush2.msra.mxu0 0.0
        %3101 = vmatprep.subr.mxu0 0.0
        %3102 = vmatpush2.msra.mxu0 0.0
        %3103 = vmatprep.subr.mxu0 0.0
        %3104 = vmatpush2.msra.mxu0 0.0
        %3105 = vmatprep.subr.mxu0 0.0
        %3106 = vmatpush2.msra.mxu0 0.0
        %3107 = vmatprep.subr.mxu0 0.0
        %3108 = vmatpush2.msra.mxu0 0.0
        %3109 = vmatprep.subr.mxu0 0.0
        %3110 = vmatpush2.msra.mxu0 0.0
        %3111 = vmatprep.subr.mxu0 0.0
        %3112 = vmatpush2.msra.mxu0 0.0
        %3113 = vmatprep.subr.mxu0 0.0
        %3114 = vmatpush2.msra.mxu0 0.0
        %3115 = vmatprep.subr.mxu0 0.0
        %3116 = vmatpush2.msra.mxu0 0.0
        %3117 = vmatprep.subr.mxu0 0.0
        %3118 = vmatpush2.msra.mxu0 0.0
        %3119 = vmatprep.subr.mxu0 0.0
        %3120 = vmatpush2.msra.mxu0 0.0
        %3121 = vmatprep.subr.mxu0 0.0
        %3122 = vmatpush2.msra.mxu0 0.0
        %3123 = vmatprep.subr.mxu0 0.0
        %3124 = vmatpush2.msra.mxu0 0.0
        %3125 = vmatprep.subr.mxu0 0.0
        %3126 = vmatpush2.msra.mxu0 0.0
        %3127 = vmatprep.subr.mxu0 0.0
        %3128 = vmatpush2.msra.mxu0 0.0
        %3129 = vmatprep.subr.mxu0 0.0
        %3130 = vmatpush2.msra.mxu0 0.0
        %3131 = vmatprep.mubr.f32.mxu0 0.0
        %3132 = vmatmul.mubr.f32.gmra.mxu0 %v3065
        %v3133 = vpop.f32.mrf.mxu0
        %v3134 = vadd.f32 %v2846, %v3133
        %v3135 = vpop.f32.mrf.mxu0
        %3136 = vdwg.mxu0
        %v3137 = vadd.f32 %v3064, %v3134
        %v3138 = vxor.u32 %v3137, 2147483648
        %v3139 = vmul.f32 %v3138, 1.442695
        %v3140 = vpow.pop %v3139
        %v3141 = vadd.f32 %v3140, 1.0
        %v3142 = vrcp.pop %v3141
        %v3143 = vmul.f32 1.0, %v3142
        %3145 = vrot.lane.b32.xlu0 %v3134, 96
        %v3146 = vpop.permute.xlu0 %3145
        %v3148 = vmul.f32 %v3143, %v3146
        %3150 = vrot.lane.b32.xlu0 %v3148, 32
        %v3151 = vpop.permute.xlu0 %3150
        %v3153 = vadd.f32 %v3064, %v3151
        %v3154 = vtanh.pop %v3153
        %v3155 = vsub.f32 1.0, %v3143
        %3157 = vrot.lane.b32.xlu0 %v3154, 112
        %v3158 = vpop.permute.xlu0 %3157
        %v3160 = vmul.f32 %v3155, %v3158
        %v3161 = vmul.f32 %v3143, %v3058
        %v3162 = vadd.f32 %v3160, %v3161
        %3164 = vrot.lane.b32.xlu0 %v3162, 112
        %v3165 = vpop.permute.xlu0 %3164
        %3167 = vst.msk [vmem:[#allocation5 + $0x2] sm:$0x1] %vm1092, %v3165
        %v3168 = vld [vmem:[#allocation3 + $0x3] sm:$0x1]
        %v3169 = vsel %vm981, %v3165, 0
        %3171 = vmatprep.subr.mxu0 0.0
        %3172 = vmatpush1.msra.mxu0 0.0
        %3173 = vmatprep.subr.mxu0 0.0
        %3174 = vmatpush1.msra.mxu0 0.0
        %3175 = vmatprep.subr.mxu0 0.0
        %3176 = vmatpush1.msra.mxu0 0.0
        %3177 = vmatprep.subr.mxu0 0.0
        %3178 = vmatpush1.msra.mxu0 0.0
        %3179 = vmatprep.subr.mxu0 0.0
        %3180 = vmatpush1.msra.mxu0 0.0
        %3181 = vmatprep.subr.mxu0 0.0
        %3182 = vmatpush1.msra.mxu0 0.0
        %3183 = vmatprep.subr.mxu0 0.0
        %3184 = vmatpush1.msra.mxu0 0.0
        %3185 = vmatprep.subr.mxu0 0.0
        %3186 = vmatpush1.msra.mxu0 0.0
        %3187 = vmatprep.subr.mxu0 0.0
        %3188 = vmatpush1.msra.mxu0 0.0
        %3189 = vmatprep.subr.mxu0 0.0
        %3190 = vmatpush1.msra.mxu0 0.0
        %3191 = vmatprep.subr.mxu0 0.0
        %3192 = vmatpush1.msra.mxu0 0.0
        %3193 = vmatprep.subr.mxu0 0.0
        %3194 = vmatpush1.msra.mxu0 0.0
        %3195 = vmatprep.subr.mxu0 0.0
        %3196 = vmatpush1.msra.mxu0 0.0
        %3197 = vmatprep.subr.mxu0 0.0
        %3198 = vmatpush1.msra.mxu0 0.0
        %3199 = vmatprep.subr.mxu0 0.0
        %3200 = vmatpush1.msra.mxu0 %v2845
        %3201 = vmatprep.subr.mxu0 0.0
        %3202 = vmatpush1.msra.mxu0 %v2844
        %3203 = vmatprep.subr.mxu0 0.0
        %3204 = vmatpush2.msra.mxu0 0.0
        %3205 = vmatprep.subr.mxu0 0.0
        %3206 = vmatpush2.msra.mxu0 0.0
        %3207 = vmatprep.subr.mxu0 0.0
        %3208 = vmatpush2.msra.mxu0 0.0
        %3209 = vmatprep.subr.mxu0 0.0
        %3210 = vmatpush2.msra.mxu0 0.0
        %3211 = vmatprep.subr.mxu0 0.0
        %3212 = vmatpush2.msra.mxu0 0.0
        %3213 = vmatprep.subr.mxu0 0.0
        %3214 = vmatpush2.msra.mxu0 0.0
        %3215 = vmatprep.subr.mxu0 0.0
        %3216 = vmatpush2.msra.mxu0 0.0
        %3217 = vmatprep.subr.mxu0 0.0
        %3218 = vmatpush2.msra.mxu0 0.0
        %3219 = vmatprep.subr.mxu0 0.0
        %3220 = vmatpush2.msra.mxu0 0.0
        %3221 = vmatprep.subr.mxu0 0.0
        %3222 = vmatpush2.msra.mxu0 0.0
        %3223 = vmatprep.subr.mxu0 0.0
        %3224 = vmatpush2.msra.mxu0 0.0
        %3225 = vmatprep.subr.mxu0 0.0
        %3226 = vmatpush2.msra.mxu0 0.0
        %3227 = vmatprep.subr.mxu0 0.0
        %3228 = vmatpush2.msra.mxu0 0.0
        %3229 = vmatprep.subr.mxu0 0.0
        %3230 = vmatpush2.msra.mxu0 0.0
        %3231 = vmatprep.subr.mxu0 0.0
        %3232 = vmatpush2.msra.mxu0 0.0
        %3233 = vmatprep.subr.mxu0 0.0
        %3234 = vmatpush2.msra.mxu0 0.0
        %3235 = vmatprep.mubr.f32.mxu0 0.0
        %3236 = vmatmul.mubr.f32.gmra.mxu0 %v3169
        %v3237 = vpop.f32.mrf.mxu0
        %v3238 = vadd.f32 %v2846, %v3237
        %v3239 = vpop.f32.mrf.mxu0
        %3240 = vdwg.mxu0
        %v3241 = vadd.f32 %v3168, %v3238
        %v3242 = vxor.u32 %v3241, 2147483648
        %v3243 = vmul.f32 %v3242, 1.442695
        %v3244 = vpow.pop %v3243
        %v3245 = vadd.f32 %v3244, 1.0
        %v3246 = vrcp.pop %v3245
        %v3247 = vmul.f32 1.0, %v3246
        %3249 = vrot.lane.b32.xlu0 %v3238, 96
        %v3250 = vpop.permute.xlu0 %3249
        %v3252 = vmul.f32 %v3247, %v3250
        %3254 = vrot.lane.b32.xlu0 %v3252, 32
        %v3255 = vpop.permute.xlu0 %3254
        %v3257 = vadd.f32 %v3168, %v3255
        %v3258 = vtanh.pop %v3257
        %v3259 = vsub.f32 1.0, %v3247
        %3261 = vrot.lane.b32.xlu0 %v3258, 112
        %v3262 = vpop.permute.xlu0 %3261
        %v3264 = vmul.f32 %v3259, %v3262
        %v3265 = vmul.f32 %v3247, %v3162
        %v3266 = vadd.f32 %v3264, %v3265
        %3268 = vrot.lane.b32.xlu0 %v3266, 112
        %v3269 = vpop.permute.xlu0 %3268
        %3271 = vst.msk [vmem:[#allocation5 + $0x3] sm:$0x1] %vm1092, %v3269
        %v3272 = vld [vmem:[#allocation3 + $0x4] sm:$0x1]
        %v3273 = vsel %vm981, %v3269, 0
        %3275 = vmatprep.subr.mxu0 0.0
        %3276 = vmatpush1.msra.mxu0 0.0
        %3277 = vmatprep.subr.mxu0 0.0
        %3278 = vmatpush1.msra.mxu0 0.0
        %3279 = vmatprep.subr.mxu0 0.0
        %3280 = vmatpush1.msra.mxu0 0.0
        %3281 = vmatprep.subr.mxu0 0.0
        %3282 = vmatpush1.msra.mxu0 0.0
        %3283 = vmatprep.subr.mxu0 0.0
        %3284 = vmatpush1.msra.mxu0 0.0
        %3285 = vmatprep.subr.mxu0 0.0
        %3286 = vmatpush1.msra.mxu0 0.0
        %3287 = vmatprep.subr.mxu0 0.0
        %3288 = vmatpush1.msra.mxu0 0.0
        %3289 = vmatprep.subr.mxu0 0.0
        %3290 = vmatpush1.msra.mxu0 0.0
        %3291 = vmatprep.subr.mxu0 0.0
        %3292 = vmatpush1.msra.mxu0 0.0
        %3293 = vmatprep.subr.mxu0 0.0
        %3294 = vmatpush1.msra.mxu0 0.0
        %3295 = vmatprep.subr.mxu0 0.0
        %3296 = vmatpush1.msra.mxu0 0.0
        %3297 = vmatprep.subr.mxu0 0.0
        %3298 = vmatpush1.msra.mxu0 0.0
        %3299 = vmatprep.subr.mxu0 0.0
        %3300 = vmatpush1.msra.mxu0 0.0
        %3301 = vmatprep.subr.mxu0 0.0
        %3302 = vmatpush1.msra.mxu0 0.0
        %3303 = vmatprep.subr.mxu0 0.0
        %3304 = vmatpush1.msra.mxu0 %v2845
        %3305 = vmatprep.subr.mxu0 0.0
        %3306 = vmatpush1.msra.mxu0 %v2844
        %3307 = vmatprep.subr.mxu0 0.0
        %3308 = vmatpush2.msra.mxu0 0.0
        %3309 = vmatprep.subr.mxu0 0.0
        %3310 = vmatpush2.msra.mxu0 0.0
        %3311 = vmatprep.subr.mxu0 0.0
        %3312 = vmatpush2.msra.mxu0 0.0
        %3313 = vmatprep.subr.mxu0 0.0
        %3314 = vmatpush2.msra.mxu0 0.0
        %3315 = vmatprep.subr.mxu0 0.0
        %3316 = vmatpush2.msra.mxu0 0.0
        %3317 = vmatprep.subr.mxu0 0.0
        %3318 = vmatpush2.msra.mxu0 0.0
        %3319 = vmatprep.subr.mxu0 0.0
        %3320 = vmatpush2.msra.mxu0 0.0
        %3321 = vmatprep.subr.mxu0 0.0
        %3322 = vmatpush2.msra.mxu0 0.0
        %3323 = vmatprep.subr.mxu0 0.0
        %3324 = vmatpush2.msra.mxu0 0.0
        %3325 = vmatprep.subr.mxu0 0.0
        %3326 = vmatpush2.msra.mxu0 0.0
        %3327 = vmatprep.subr.mxu0 0.0
        %3328 = vmatpush2.msra.mxu0 0.0
        %3329 = vmatprep.subr.mxu0 0.0
        %3330 = vmatpush2.msra.mxu0 0.0
        %3331 = vmatprep.subr.mxu0 0.0
        %3332 = vmatpush2.msra.mxu0 0.0
        %3333 = vmatprep.subr.mxu0 0.0
        %3334 = vmatpush2.msra.mxu0 0.0
        %3335 = vmatprep.subr.mxu0 0.0
        %3336 = vmatpush2.msra.mxu0 0.0
        %3337 = vmatprep.subr.mxu0 0.0
        %3338 = vmatpush2.msra.mxu0 0.0
        %3339 = vmatprep.mubr.f32.mxu0 0.0
        %3340 = vmatmul.mubr.f32.gmra.mxu0 %v3273
        %v3341 = vpop.f32.mrf.mxu0
        %v3342 = vadd.f32 %v2846, %v3341
        %v3343 = vpop.f32.mrf.mxu0
        %3344 = vdwg.mxu0
        %v3345 = vadd.f32 %v3272, %v3342
        %v3346 = vxor.u32 %v3345, 2147483648
        %v3347 = vmul.f32 %v3346, 1.442695
        %v3348 = vpow.pop %v3347
        %v3349 = vadd.f32 %v3348, 1.0
        %v3350 = vrcp.pop %v3349
        %v3351 = vmul.f32 1.0, %v3350
        %3353 = vrot.lane.b32.xlu0 %v3342, 96
        %v3354 = vpop.permute.xlu0 %3353
        %v3356 = vmul.f32 %v3351, %v3354
        %3358 = vrot.lane.b32.xlu0 %v3356, 32
        %v3359 = vpop.permute.xlu0 %3358
        %v3361 = vadd.f32 %v3272, %v3359
        %v3362 = vtanh.pop %v3361
        %v3363 = vsub.f32 1.0, %v3351
        %3365 = vrot.lane.b32.xlu0 %v3362, 112
        %v3366 = vpop.permute.xlu0 %3365
        %v3368 = vmul.f32 %v3363, %v3366
        %v3369 = vmul.f32 %v3351, %v3266
        %v3370 = vadd.f32 %v3368, %v3369
        %3372 = vrot.lane.b32.xlu0 %v3370, 112
        %v3373 = vpop.permute.xlu0 %3372
        %3375 = vst.msk [vmem:[#allocation5 + $0x4] sm:$0x1] %vm1092, %v3373
        %v3376 = vld [vmem:[#allocation3 + $0x5] sm:$0x1]
        %v3377 = vsel %vm981, %v3373, 0
        %3379 = vmatprep.subr.mxu0 0.0
        %3380 = vmatpush1.msra.mxu0 0.0
        %3381 = vmatprep.subr.mxu0 0.0
        %3382 = vmatpush1.msra.mxu0 0.0
        %3383 = vmatprep.subr.mxu0 0.0
        %3384 = vmatpush1.msra.mxu0 0.0
        %3385 = vmatprep.subr.mxu0 0.0
        %3386 = vmatpush1.msra.mxu0 0.0
        %3387 = vmatprep.subr.mxu0 0.0
        %3388 = vmatpush1.msra.mxu0 0.0
        %3389 = vmatprep.subr.mxu0 0.0
        %3390 = vmatpush1.msra.mxu0 0.0
        %3391 = vmatprep.subr.mxu0 0.0
        %3392 = vmatpush1.msra.mxu0 0.0
        %3393 = vmatprep.subr.mxu0 0.0
        %3394 = vmatpush1.msra.mxu0 0.0
        %3395 = vmatprep.subr.mxu0 0.0
        %3396 = vmatpush1.msra.mxu0 0.0
        %3397 = vmatprep.subr.mxu0 0.0
        %3398 = vmatpush1.msra.mxu0 0.0
        %3399 = vmatprep.subr.mxu0 0.0
        %3400 = vmatpush1.msra.mxu0 0.0
        %3401 = vmatprep.subr.mxu0 0.0
        %3402 = vmatpush1.msra.mxu0 0.0
        %3403 = vmatprep.subr.mxu0 0.0
        %3404 = vmatpush1.msra.mxu0 0.0
        %3405 = vmatprep.subr.mxu0 0.0
        %3406 = vmatpush1.msra.mxu0 0.0
        %3407 = vmatprep.subr.mxu0 0.0
        %3408 = vmatpush1.msra.mxu0 %v2845
        %3409 = vmatprep.subr.mxu0 0.0
        %3410 = vmatpush1.msra.mxu0 %v2844
        %3411 = vmatprep.subr.mxu0 0.0
        %3412 = vmatpush2.msra.mxu0 0.0
        %3413 = vmatprep.subr.mxu0 0.0
        %3414 = vmatpush2.msra.mxu0 0.0
        %3415 = vmatprep.subr.mxu0 0.0
        %3416 = vmatpush2.msra.mxu0 0.0
        %3417 = vmatprep.subr.mxu0 0.0
        %3418 = vmatpush2.msra.mxu0 0.0
        %3419 = vmatprep.subr.mxu0 0.0
        %3420 = vmatpush2.msra.mxu0 0.0
        %3421 = vmatprep.subr.mxu0 0.0
        %3422 = vmatpush2.msra.mxu0 0.0
        %3423 = vmatprep.subr.mxu0 0.0
        %3424 = vmatpush2.msra.mxu0 0.0
        %3425 = vmatprep.subr.mxu0 0.0
        %3426 = vmatpush2.msra.mxu0 0.0
        %3427 = vmatprep.subr.mxu0 0.0
        %3428 = vmatpush2.msra.mxu0 0.0
        %3429 = vmatprep.subr.mxu0 0.0
        %3430 = vmatpush2.msra.mxu0 0.0
        %3431 = vmatprep.subr.mxu0 0.0
        %3432 = vmatpush2.msra.mxu0 0.0
        %3433 = vmatprep.subr.mxu0 0.0
        %3434 = vmatpush2.msra.mxu0 0.0
        %3435 = vmatprep.subr.mxu0 0.0
        %3436 = vmatpush2.msra.mxu0 0.0
        %3437 = vmatprep.subr.mxu0 0.0
        %3438 = vmatpush2.msra.mxu0 0.0
        %3439 = vmatprep.subr.mxu0 0.0
        %3440 = vmatpush2.msra.mxu0 0.0
        %3441 = vmatprep.subr.mxu0 0.0
        %3442 = vmatpush2.msra.mxu0 0.0
        %3443 = vmatprep.mubr.f32.mxu0 0.0
        %3444 = vmatmul.mubr.f32.gmra.mxu0 %v3377
        %v3445 = vpop.f32.mrf.mxu0
        %v3446 = vadd.f32 %v2846, %v3445
        %v3447 = vpop.f32.mrf.mxu0
        %3448 = vdwg.mxu0
        %v3449 = vadd.f32 %v3376, %v3446
        %v3450 = vxor.u32 %v3449, 2147483648
        %v3451 = vmul.f32 %v3450, 1.442695
        %v3452 = vpow.pop %v3451
        %v3453 = vadd.f32 %v3452, 1.0
        %v3454 = vrcp.pop %v3453
        %v3455 = vmul.f32 1.0, %v3454
        %3457 = vrot.lane.b32.xlu0 %v3446, 96
        %v3458 = vpop.permute.xlu0 %3457
        %v3460 = vmul.f32 %v3455, %v3458
        %3462 = vrot.lane.b32.xlu0 %v3460, 32
        %v3463 = vpop.permute.xlu0 %3462
        %v3465 = vadd.f32 %v3376, %v3463
        %v3466 = vtanh.pop %v3465
        %v3467 = vsub.f32 1.0, %v3455
        %3469 = vrot.lane.b32.xlu0 %v3466, 112
        %v3470 = vpop.permute.xlu0 %3469
        %v3472 = vmul.f32 %v3467, %v3470
        %v3473 = vmul.f32 %v3455, %v3370
        %v3474 = vadd.f32 %v3472, %v3473
        %3476 = vrot.lane.b32.xlu0 %v3474, 112
        %v3477 = vpop.permute.xlu0 %3476
        %3479 = vst.msk [vmem:[#allocation5 + $0x5] sm:$0x1] %vm1092, %v3477
        %v3480 = vld [vmem:[#allocation3 + $0x6] sm:$0x1]
        %v3481 = vsel %vm981, %v3477, 0
        %3483 = vmatprep.subr.mxu0 0.0
        %3484 = vmatpush1.msra.mxu0 0.0
        %3485 = vmatprep.subr.mxu0 0.0
        %3486 = vmatpush1.msra.mxu0 0.0
        %3487 = vmatprep.subr.mxu0 0.0
        %3488 = vmatpush1.msra.mxu0 0.0
        %3489 = vmatprep.subr.mxu0 0.0
        %3490 = vmatpush1.msra.mxu0 0.0
        %3491 = vmatprep.subr.mxu0 0.0
        %3492 = vmatpush1.msra.mxu0 0.0
        %3493 = vmatprep.subr.mxu0 0.0
        %3494 = vmatpush1.msra.mxu0 0.0
        %3495 = vmatprep.subr.mxu0 0.0
        %3496 = vmatpush1.msra.mxu0 0.0
        %3497 = vmatprep.subr.mxu0 0.0
        %3498 = vmatpush1.msra.mxu0 0.0
        %3499 = vmatprep.subr.mxu0 0.0
        %3500 = vmatpush1.msra.mxu0 0.0
        %3501 = vmatprep.subr.mxu0 0.0
        %3502 = vmatpush1.msra.mxu0 0.0
        %3503 = vmatprep.subr.mxu0 0.0
        %3504 = vmatpush1.msra.mxu0 0.0
        %3505 = vmatprep.subr.mxu0 0.0
        %3506 = vmatpush1.msra.mxu0 0.0
        %3507 = vmatprep.subr.mxu0 0.0
        %3508 = vmatpush1.msra.mxu0 0.0
        %3509 = vmatprep.subr.mxu0 0.0
        %3510 = vmatpush1.msra.mxu0 0.0
        %3511 = vmatprep.subr.mxu0 0.0
        %3512 = vmatpush1.msra.mxu0 %v2845
        %3513 = vmatprep.subr.mxu0 0.0
        %3514 = vmatpush1.msra.mxu0 %v2844
        %3515 = vmatprep.subr.mxu0 0.0
        %3516 = vmatpush2.msra.mxu0 0.0
        %3517 = vmatprep.subr.mxu0 0.0
        %3518 = vmatpush2.msra.mxu0 0.0
        %3519 = vmatprep.subr.mxu0 0.0
        %3520 = vmatpush2.msra.mxu0 0.0
        %3521 = vmatprep.subr.mxu0 0.0
        %3522 = vmatpush2.msra.mxu0 0.0
        %3523 = vmatprep.subr.mxu0 0.0
        %3524 = vmatpush2.msra.mxu0 0.0
        %3525 = vmatprep.subr.mxu0 0.0
        %3526 = vmatpush2.msra.mxu0 0.0
        %3527 = vmatprep.subr.mxu0 0.0
        %3528 = vmatpush2.msra.mxu0 0.0
        %3529 = vmatprep.subr.mxu0 0.0
        %3530 = vmatpush2.msra.mxu0 0.0
        %3531 = vmatprep.subr.mxu0 0.0
        %3532 = vmatpush2.msra.mxu0 0.0
        %3533 = vmatprep.subr.mxu0 0.0
        %3534 = vmatpush2.msra.mxu0 0.0
        %3535 = vmatprep.subr.mxu0 0.0
        %3536 = vmatpush2.msra.mxu0 0.0
        %3537 = vmatprep.subr.mxu0 0.0
        %3538 = vmatpush2.msra.mxu0 0.0
        %3539 = vmatprep.subr.mxu0 0.0
        %3540 = vmatpush2.msra.mxu0 0.0
        %3541 = vmatprep.subr.mxu0 0.0
        %3542 = vmatpush2.msra.mxu0 0.0
        %3543 = vmatprep.subr.mxu0 0.0
        %3544 = vmatpush2.msra.mxu0 0.0
        %3545 = vmatprep.subr.mxu0 0.0
        %3546 = vmatpush2.msra.mxu0 0.0
        %3547 = vmatprep.mubr.f32.mxu0 0.0
        %3548 = vmatmul.mubr.f32.gmra.mxu0 %v3481
        %v3549 = vpop.f32.mrf.mxu0
        %v3550 = vadd.f32 %v2846, %v3549
        %v3551 = vpop.f32.mrf.mxu0
        %3552 = vdwg.mxu0
        %v3553 = vadd.f32 %v3480, %v3550
        %v3554 = vxor.u32 %v3553, 2147483648
        %v3555 = vmul.f32 %v3554, 1.442695
        %v3556 = vpow.pop %v3555
        %v3557 = vadd.f32 %v3556, 1.0
        %v3558 = vrcp.pop %v3557
        %v3559 = vmul.f32 1.0, %v3558
        %3561 = vrot.lane.b32.xlu0 %v3550, 96
        %v3562 = vpop.permute.xlu0 %3561
        %v3564 = vmul.f32 %v3559, %v3562
        %3566 = vrot.lane.b32.xlu0 %v3564, 32
        %v3567 = vpop.permute.xlu0 %3566
        %v3569 = vadd.f32 %v3480, %v3567
        %v3570 = vtanh.pop %v3569
        %v3571 = vsub.f32 1.0, %v3559
        %3573 = vrot.lane.b32.xlu0 %v3570, 112
        %v3574 = vpop.permute.xlu0 %3573
        %v3576 = vmul.f32 %v3571, %v3574
        %v3577 = vmul.f32 %v3559, %v3474
        %v3578 = vadd.f32 %v3576, %v3577
        %3580 = vrot.lane.b32.xlu0 %v3578, 112
        %v3581 = vpop.permute.xlu0 %3580
        %3583 = vst.msk [vmem:[#allocation5 + $0x6] sm:$0x1] %vm1092, %v3581
        %v3584 = vld [vmem:[#allocation3 + $0x7] sm:$0x1]
        %v3585 = vsel %vm981, %v3581, 0
        %3587 = vmatprep.subr.mxu0 0.0
        %3588 = vmatpush1.msra.mxu0 0.0
        %3589 = vmatprep.subr.mxu0 0.0
        %3590 = vmatpush1.msra.mxu0 0.0
        %3591 = vmatprep.subr.mxu0 0.0
        %3592 = vmatpush1.msra.mxu0 0.0
        %3593 = vmatprep.subr.mxu0 0.0
        %3594 = vmatpush1.msra.mxu0 0.0
        %3595 = vmatprep.subr.mxu0 0.0
        %3596 = vmatpush1.msra.mxu0 0.0
        %3597 = vmatprep.subr.mxu0 0.0
        %3598 = vmatpush1.msra.mxu0 0.0
        %3599 = vmatprep.subr.mxu0 0.0
        %3600 = vmatpush1.msra.mxu0 0.0
        %3601 = vmatprep.subr.mxu0 0.0
        %3602 = vmatpush1.msra.mxu0 0.0
        %3603 = vmatprep.subr.mxu0 0.0
        %3604 = vmatpush1.msra.mxu0 0.0
        %3605 = vmatprep.subr.mxu0 0.0
        %3606 = vmatpush1.msra.mxu0 0.0
        %3607 = vmatprep.subr.mxu0 0.0
        %3608 = vmatpush1.msra.mxu0 0.0
        %3609 = vmatprep.subr.mxu0 0.0
        %3610 = vmatpush1.msra.mxu0 0.0
        %3611 = vmatprep.subr.mxu0 0.0
        %3612 = vmatpush1.msra.mxu0 0.0
        %3613 = vmatprep.subr.mxu0 0.0
        %3614 = vmatpush1.msra.mxu0 0.0
        %3615 = vmatprep.subr.mxu0 0.0
        %3616 = vmatpush1.msra.mxu0 %v2845
        %3617 = vmatprep.subr.mxu0 0.0
        %3618 = vmatpush1.msra.mxu0 %v2844
        %3619 = vmatprep.subr.mxu0 0.0
        %3620 = vmatpush2.msra.mxu0 0.0
        %3621 = vmatprep.subr.mxu0 0.0
        %3622 = vmatpush2.msra.mxu0 0.0
        %3623 = vmatprep.subr.mxu0 0.0
        %3624 = vmatpush2.msra.mxu0 0.0
        %3625 = vmatprep.subr.mxu0 0.0
        %3626 = vmatpush2.msra.mxu0 0.0
        %3627 = vmatprep.subr.mxu0 0.0
        %3628 = vmatpush2.msra.mxu0 0.0
        %3629 = vmatprep.subr.mxu0 0.0
        %3630 = vmatpush2.msra.mxu0 0.0
        %3631 = vmatprep.subr.mxu0 0.0
        %3632 = vmatpush2.msra.mxu0 0.0
        %3633 = vmatprep.subr.mxu0 0.0
        %3634 = vmatpush2.msra.mxu0 0.0
        %3635 = vmatprep.subr.mxu0 0.0
        %3636 = vmatpush2.msra.mxu0 0.0
        %3637 = vmatprep.subr.mxu0 0.0
        %3638 = vmatpush2.msra.mxu0 0.0
        %3639 = vmatprep.subr.mxu0 0.0
        %3640 = vmatpush2.msra.mxu0 0.0
        %3641 = vmatprep.subr.mxu0 0.0
        %3642 = vmatpush2.msra.mxu0 0.0
        %3643 = vmatprep.subr.mxu0 0.0
        %3644 = vmatpush2.msra.mxu0 0.0
        %3645 = vmatprep.subr.mxu0 0.0
        %3646 = vmatpush2.msra.mxu0 0.0
        %3647 = vmatprep.subr.mxu0 0.0
        %3648 = vmatpush2.msra.mxu0 0.0
        %3649 = vmatprep.subr.mxu0 0.0
        %3650 = vmatpush2.msra.mxu0 0.0
        %3651 = vmatprep.mubr.f32.mxu0 0.0
        %3652 = vmatmul.mubr.f32.gmra.mxu0 %v3585
        %v3653 = vpop.f32.mrf.mxu0
        %v3654 = vadd.f32 %v2846, %v3653
        %v3655 = vpop.f32.mrf.mxu0
        %3656 = vdwg.mxu0
        %v3657 = vadd.f32 %v3584, %v3654
        %v3658 = vxor.u32 %v3657, 2147483648
        %v3659 = vmul.f32 %v3658, 1.442695
        %v3660 = vpow.pop %v3659
        %v3661 = vadd.f32 %v3660, 1.0
        %v3662 = vrcp.pop %v3661
        %v3663 = vmul.f32 1.0, %v3662
        %3665 = vrot.lane.b32.xlu0 %v3654, 96
        %v3666 = vpop.permute.xlu0 %3665
        %v3668 = vmul.f32 %v3663, %v3666
        %3670 = vrot.lane.b32.xlu0 %v3668, 32
        %v3671 = vpop.permute.xlu0 %3670
        %v3673 = vadd.f32 %v3584, %v3671
        %v3674 = vtanh.pop %v3673
        %v3675 = vsub.f32 1.0, %v3663
        %3677 = vrot.lane.b32.xlu0 %v3674, 112
        %v3678 = vpop.permute.xlu0 %3677
        %v3680 = vmul.f32 %v3675, %v3678
        %v3681 = vmul.f32 %v3663, %v3578
        %v3682 = vadd.f32 %v3680, %v3681
        %3684 = vrot.lane.b32.xlu0 %v3682, 112
        %v3685 = vpop.permute.xlu0 %3684
        %3687 = vst.msk [vmem:[#allocation5 + $0x7] sm:$0x1] %vm1092, %v3685
        %v3688 = vld [vmem:[#allocation3 + $0x8] sm:$0x1]
        %v3689 = vsel %vm981, %v3685, 0
        %3691 = vmatprep.subr.mxu0 0.0
        %3692 = vmatpush1.msra.mxu0 0.0
        %3693 = vmatprep.subr.mxu0 0.0
        %3694 = vmatpush1.msra.mxu0 0.0
        %3695 = vmatprep.subr.mxu0 0.0
        %3696 = vmatpush1.msra.mxu0 0.0
        %3697 = vmatprep.subr.mxu0 0.0
        %3698 = vmatpush1.msra.mxu0 0.0
        %3699 = vmatprep.subr.mxu0 0.0
        %3700 = vmatpush1.msra.mxu0 0.0
        %3701 = vmatprep.subr.mxu0 0.0
        %3702 = vmatpush1.msra.mxu0 0.0
        %3703 = vmatprep.subr.mxu0 0.0
        %3704 = vmatpush1.msra.mxu0 0.0
        %3705 = vmatprep.subr.mxu0 0.0
        %3706 = vmatpush1.msra.mxu0 0.0
        %3707 = vmatprep.subr.mxu0 0.0
        %3708 = vmatpush1.msra.mxu0 0.0
        %3709 = vmatprep.subr.mxu0 0.0
        %3710 = vmatpush1.msra.mxu0 0.0
        %3711 = vmatprep.subr.mxu0 0.0
        %3712 = vmatpush1.msra.mxu0 0.0
        %3713 = vmatprep.subr.mxu0 0.0
        %3714 = vmatpush1.msra.mxu0 0.0
        %3715 = vmatprep.subr.mxu0 0.0
        %3716 = vmatpush1.msra.mxu0 0.0
        %3717 = vmatprep.subr.mxu0 0.0
        %3718 = vmatpush1.msra.mxu0 0.0
        %3719 = vmatprep.subr.mxu0 0.0
        %3720 = vmatpush1.msra.mxu0 %v2845
        %3721 = vmatprep.subr.mxu0 0.0
        %3722 = vmatpush1.msra.mxu0 %v2844
        %3723 = vmatprep.subr.mxu0 0.0
        %3724 = vmatpush2.msra.mxu0 0.0
        %3725 = vmatprep.subr.mxu0 0.0
        %3726 = vmatpush2.msra.mxu0 0.0
        %3727 = vmatprep.subr.mxu0 0.0
        %3728 = vmatpush2.msra.mxu0 0.0
        %3729 = vmatprep.subr.mxu0 0.0
        %3730 = vmatpush2.msra.mxu0 0.0
        %3731 = vmatprep.subr.mxu0 0.0
        %3732 = vmatpush2.msra.mxu0 0.0
        %3733 = vmatprep.subr.mxu0 0.0
        %3734 = vmatpush2.msra.mxu0 0.0
        %3735 = vmatprep.subr.mxu0 0.0
        %3736 = vmatpush2.msra.mxu0 0.0
        %3737 = vmatprep.subr.mxu0 0.0
        %3738 = vmatpush2.msra.mxu0 0.0
        %3739 = vmatprep.subr.mxu0 0.0
        %3740 = vmatpush2.msra.mxu0 0.0
        %3741 = vmatprep.subr.mxu0 0.0
        %3742 = vmatpush2.msra.mxu0 0.0
        %3743 = vmatprep.subr.mxu0 0.0
        %3744 = vmatpush2.msra.mxu0 0.0
        %3745 = vmatprep.subr.mxu0 0.0
        %3746 = vmatpush2.msra.mxu0 0.0
        %3747 = vmatprep.subr.mxu0 0.0
        %3748 = vmatpush2.msra.mxu0 0.0
        %3749 = vmatprep.subr.mxu0 0.0
        %3750 = vmatpush2.msra.mxu0 0.0
        %3751 = vmatprep.subr.mxu0 0.0
        %3752 = vmatpush2.msra.mxu0 0.0
        %3753 = vmatprep.subr.mxu0 0.0
        %3754 = vmatpush2.msra.mxu0 0.0
        %3755 = vmatprep.mubr.f32.mxu0 0.0
        %3756 = vmatmul.mubr.f32.gmra.mxu0 %v3689
        %v3757 = vpop.f32.mrf.mxu0
        %v3758 = vadd.f32 %v2846, %v3757
        %v3759 = vpop.f32.mrf.mxu0
        %3760 = vdwg.mxu0
        %v3761 = vadd.f32 %v3688, %v3758
        %v3762 = vxor.u32 %v3761, 2147483648
        %v3763 = vmul.f32 %v3762, 1.442695
        %v3764 = vpow.pop %v3763
        %v3765 = vadd.f32 %v3764, 1.0
        %v3766 = vrcp.pop %v3765
        %v3767 = vmul.f32 1.0, %v3766
        %3769 = vrot.lane.b32.xlu0 %v3758, 96
        %v3770 = vpop.permute.xlu0 %3769
        %v3772 = vmul.f32 %v3767, %v3770
        %3774 = vrot.lane.b32.xlu0 %v3772, 32
        %v3775 = vpop.permute.xlu0 %3774
        %v3777 = vadd.f32 %v3688, %v3775
        %v3778 = vtanh.pop %v3777
        %v3779 = vsub.f32 1.0, %v3767
        %3781 = vrot.lane.b32.xlu0 %v3778, 112
        %v3782 = vpop.permute.xlu0 %3781
        %v3784 = vmul.f32 %v3779, %v3782
        %v3785 = vmul.f32 %v3767, %v3682
        %v3786 = vadd.f32 %v3784, %v3785
        %3788 = vrot.lane.b32.xlu0 %v3786, 112
        %v3789 = vpop.permute.xlu0 %3788
        %3791 = vst.msk [vmem:[#allocation5 + $0x8] sm:$0x1] %vm1092, %v3789
        %v3792 = vld [vmem:[#allocation3 + $0x9] sm:$0x1]
        %v3793 = vsel %vm981, %v3789, 0
        %3795 = vmatprep.subr.mxu0 0.0
        %3796 = vmatpush1.msra.mxu0 0.0
        %3797 = vmatprep.subr.mxu0 0.0
        %3798 = vmatpush1.msra.mxu0 0.0
        %3799 = vmatprep.subr.mxu0 0.0
        %3800 = vmatpush1.msra.mxu0 0.0
        %3801 = vmatprep.subr.mxu0 0.0
        %3802 = vmatpush1.msra.mxu0 0.0
        %3803 = vmatprep.subr.mxu0 0.0
        %3804 = vmatpush1.msra.mxu0 0.0
        %3805 = vmatprep.subr.mxu0 0.0
        %3806 = vmatpush1.msra.mxu0 0.0
        %3807 = vmatprep.subr.mxu0 0.0
        %3808 = vmatpush1.msra.mxu0 0.0
        %3809 = vmatprep.subr.mxu0 0.0
        %3810 = vmatpush1.msra.mxu0 0.0
        %3811 = vmatprep.subr.mxu0 0.0
        %3812 = vmatpush1.msra.mxu0 0.0
        %3813 = vmatprep.subr.mxu0 0.0
        %3814 = vmatpush1.msra.mxu0 0.0
        %3815 = vmatprep.subr.mxu0 0.0
        %3816 = vmatpush1.msra.mxu0 0.0
        %3817 = vmatprep.subr.mxu0 0.0
        %3818 = vmatpush1.msra.mxu0 0.0
        %3819 = vmatprep.subr.mxu0 0.0
        %3820 = vmatpush1.msra.mxu0 0.0
        %3821 = vmatprep.subr.mxu0 0.0
        %3822 = vmatpush1.msra.mxu0 0.0
        %3823 = vmatprep.subr.mxu0 0.0
        %3824 = vmatpush1.msra.mxu0 %v2845
        %3825 = vmatprep.subr.mxu0 0.0
        %3826 = vmatpush1.msra.mxu0 %v2844
        %3827 = vmatprep.subr.mxu0 0.0
        %3828 = vmatpush2.msra.mxu0 0.0
        %3829 = vmatprep.subr.mxu0 0.0
        %3830 = vmatpush2.msra.mxu0 0.0
        %3831 = vmatprep.subr.mxu0 0.0
        %3832 = vmatpush2.msra.mxu0 0.0
        %3833 = vmatprep.subr.mxu0 0.0
        %3834 = vmatpush2.msra.mxu0 0.0
        %3835 = vmatprep.subr.mxu0 0.0
        %3836 = vmatpush2.msra.mxu0 0.0
        %3837 = vmatprep.subr.mxu0 0.0
        %3838 = vmatpush2.msra.mxu0 0.0
        %3839 = vmatprep.subr.mxu0 0.0
        %3840 = vmatpush2.msra.mxu0 0.0
        %3841 = vmatprep.subr.mxu0 0.0
        %3842 = vmatpush2.msra.mxu0 0.0
        %3843 = vmatprep.subr.mxu0 0.0
        %3844 = vmatpush2.msra.mxu0 0.0
        %3845 = vmatprep.subr.mxu0 0.0
        %3846 = vmatpush2.msra.mxu0 0.0
        %3847 = vmatprep.subr.mxu0 0.0
        %3848 = vmatpush2.msra.mxu0 0.0
        %3849 = vmatprep.subr.mxu0 0.0
        %3850 = vmatpush2.msra.mxu0 0.0
        %3851 = vmatprep.subr.mxu0 0.0
        %3852 = vmatpush2.msra.mxu0 0.0
        %3853 = vmatprep.subr.mxu0 0.0
        %3854 = vmatpush2.msra.mxu0 0.0
        %3855 = vmatprep.subr.mxu0 0.0
        %3856 = vmatpush2.msra.mxu0 0.0
        %3857 = vmatprep.subr.mxu0 0.0
        %3858 = vmatpush2.msra.mxu0 0.0
        %3859 = vmatprep.mubr.f32.mxu0 0.0
        %3860 = vmatmul.mubr.f32.gmra.mxu0 %v3793
        %v3861 = vpop.f32.mrf.mxu0
        %v3862 = vadd.f32 %v2846, %v3861
        %v3863 = vpop.f32.mrf.mxu0
        %3864 = vdwg.mxu0
        %v3865 = vadd.f32 %v3792, %v3862
        %v3866 = vxor.u32 %v3865, 2147483648
        %v3867 = vmul.f32 %v3866, 1.442695
        %v3868 = vpow.pop %v3867
        %v3869 = vadd.f32 %v3868, 1.0
        %v3870 = vrcp.pop %v3869
        %v3871 = vmul.f32 1.0, %v3870
        %3873 = vrot.lane.b32.xlu0 %v3862, 96
        %v3874 = vpop.permute.xlu0 %3873
        %v3876 = vmul.f32 %v3871, %v3874
        %3878 = vrot.lane.b32.xlu0 %v3876, 32
        %v3879 = vpop.permute.xlu0 %3878
        %v3881 = vadd.f32 %v3792, %v3879
        %v3882 = vtanh.pop %v3881
        %v3883 = vsub.f32 1.0, %v3871
        %3885 = vrot.lane.b32.xlu0 %v3882, 112
        %v3886 = vpop.permute.xlu0 %3885
        %v3888 = vmul.f32 %v3883, %v3886
        %v3889 = vmul.f32 %v3871, %v3786
        %v3890 = vadd.f32 %v3888, %v3889
        %3892 = vrot.lane.b32.xlu0 %v3890, 112
        %v3893 = vpop.permute.xlu0 %3892
        %3895 = vst.msk [vmem:[#allocation5 + $0x9] sm:$0x1] %vm1092, %v3893
        %v3896 = vld [vmem:[#allocation3 + $0xa] sm:$0x1]
        %v3897 = vsel %vm981, %v3893, 0
        %3899 = vmatprep.subr.mxu0 0.0
        %3900 = vmatpush1.msra.mxu0 0.0
        %3901 = vmatprep.subr.mxu0 0.0
        %3902 = vmatpush1.msra.mxu0 0.0
        %3903 = vmatprep.subr.mxu0 0.0
        %3904 = vmatpush1.msra.mxu0 0.0
        %3905 = vmatprep.subr.mxu0 0.0
        %3906 = vmatpush1.msra.mxu0 0.0
        %3907 = vmatprep.subr.mxu0 0.0
        %3908 = vmatpush1.msra.mxu0 0.0
        %3909 = vmatprep.subr.mxu0 0.0
        %3910 = vmatpush1.msra.mxu0 0.0
        %3911 = vmatprep.subr.mxu0 0.0
        %3912 = vmatpush1.msra.mxu0 0.0
        %3913 = vmatprep.subr.mxu0 0.0
        %3914 = vmatpush1.msra.mxu0 0.0
        %3915 = vmatprep.subr.mxu0 0.0
        %3916 = vmatpush1.msra.mxu0 0.0
        %3917 = vmatprep.subr.mxu0 0.0
        %3918 = vmatpush1.msra.mxu0 0.0
        %3919 = vmatprep.subr.mxu0 0.0
        %3920 = vmatpush1.msra.mxu0 0.0
        %3921 = vmatprep.subr.mxu0 0.0
        %3922 = vmatpush1.msra.mxu0 0.0
        %3923 = vmatprep.subr.mxu0 0.0
        %3924 = vmatpush1.msra.mxu0 0.0
        %3925 = vmatprep.subr.mxu0 0.0
        %3926 = vmatpush1.msra.mxu0 0.0
        %3927 = vmatprep.subr.mxu0 0.0
        %3928 = vmatpush1.msra.mxu0 %v2845
        %3929 = vmatprep.subr.mxu0 0.0
        %3930 = vmatpush1.msra.mxu0 %v2844
        %3931 = vmatprep.subr.mxu0 0.0
        %3932 = vmatpush2.msra.mxu0 0.0
        %3933 = vmatprep.subr.mxu0 0.0
        %3934 = vmatpush2.msra.mxu0 0.0
        %3935 = vmatprep.subr.mxu0 0.0
        %3936 = vmatpush2.msra.mxu0 0.0
        %3937 = vmatprep.subr.mxu0 0.0
        %3938 = vmatpush2.msra.mxu0 0.0
        %3939 = vmatprep.subr.mxu0 0.0
        %3940 = vmatpush2.msra.mxu0 0.0
        %3941 = vmatprep.subr.mxu0 0.0
        %3942 = vmatpush2.msra.mxu0 0.0
        %3943 = vmatprep.subr.mxu0 0.0
        %3944 = vmatpush2.msra.mxu0 0.0
        %3945 = vmatprep.subr.mxu0 0.0
        %3946 = vmatpush2.msra.mxu0 0.0
        %3947 = vmatprep.subr.mxu0 0.0
        %3948 = vmatpush2.msra.mxu0 0.0
        %3949 = vmatprep.subr.mxu0 0.0
        %3950 = vmatpush2.msra.mxu0 0.0
        %3951 = vmatprep.subr.mxu0 0.0
        %3952 = vmatpush2.msra.mxu0 0.0
        %3953 = vmatprep.subr.mxu0 0.0
        %3954 = vmatpush2.msra.mxu0 0.0
        %3955 = vmatprep.subr.mxu0 0.0
        %3956 = vmatpush2.msra.mxu0 0.0
        %3957 = vmatprep.subr.mxu0 0.0
        %3958 = vmatpush2.msra.mxu0 0.0
        %3959 = vmatprep.subr.mxu0 0.0
        %3960 = vmatpush2.msra.mxu0 0.0
        %3961 = vmatprep.subr.mxu0 0.0
        %3962 = vmatpush2.msra.mxu0 0.0
        %3963 = vmatprep.mubr.f32.mxu0 0.0
        %3964 = vmatmul.mubr.f32.gmra.mxu0 %v3897
        %v3965 = vpop.f32.mrf.mxu0
        %v3966 = vadd.f32 %v2846, %v3965
        %v3967 = vpop.f32.mrf.mxu0
        %3968 = vdwg.mxu0
        %v3969 = vadd.f32 %v3896, %v3966
        %v3970 = vxor.u32 %v3969, 2147483648
        %v3971 = vmul.f32 %v3970, 1.442695
        %v3972 = vpow.pop %v3971
        %v3973 = vadd.f32 %v3972, 1.0
        %v3974 = vrcp.pop %v3973
        %v3975 = vmul.f32 1.0, %v3974
        %3977 = vrot.lane.b32.xlu0 %v3966, 96
        %v3978 = vpop.permute.xlu0 %3977
        %v3980 = vmul.f32 %v3975, %v3978
        %3982 = vrot.lane.b32.xlu0 %v3980, 32
        %v3983 = vpop.permute.xlu0 %3982
        %v3985 = vadd.f32 %v3896, %v3983
        %v3986 = vtanh.pop %v3985
        %v3987 = vsub.f32 1.0, %v3975
        %3989 = vrot.lane.b32.xlu0 %v3986, 112
        %v3990 = vpop.permute.xlu0 %3989
        %v3992 = vmul.f32 %v3987, %v3990
        %v3993 = vmul.f32 %v3975, %v3890
        %v3994 = vadd.f32 %v3992, %v3993
        %3996 = vrot.lane.b32.xlu0 %v3994, 112
        %v3997 = vpop.permute.xlu0 %3996
        %3999 = vst.msk [vmem:[#allocation5 + $0xa] sm:$0x1] %vm1092, %v3997
        %v4000 = vld [vmem:[#allocation3 + $0xb] sm:$0x1]
        %v4001 = vsel %vm981, %v3997, 0
        %4003 = vmatprep.subr.mxu0 0.0
        %4004 = vmatpush1.msra.mxu0 0.0
        %4005 = vmatprep.subr.mxu0 0.0
        %4006 = vmatpush1.msra.mxu0 0.0
        %4007 = vmatprep.subr.mxu0 0.0
        %4008 = vmatpush1.msra.mxu0 0.0
        %4009 = vmatprep.subr.mxu0 0.0
        %4010 = vmatpush1.msra.mxu0 0.0
        %4011 = vmatprep.subr.mxu0 0.0
        %4012 = vmatpush1.msra.mxu0 0.0
        %4013 = vmatprep.subr.mxu0 0.0
        %4014 = vmatpush1.msra.mxu0 0.0
        %4015 = vmatprep.subr.mxu0 0.0
        %4016 = vmatpush1.msra.mxu0 0.0
        %4017 = vmatprep.subr.mxu0 0.0
        %4018 = vmatpush1.msra.mxu0 0.0
        %4019 = vmatprep.subr.mxu0 0.0
        %4020 = vmatpush1.msra.mxu0 0.0
        %4021 = vmatprep.subr.mxu0 0.0
        %4022 = vmatpush1.msra.mxu0 0.0
        %4023 = vmatprep.subr.mxu0 0.0
        %4024 = vmatpush1.msra.mxu0 0.0
        %4025 = vmatprep.subr.mxu0 0.0
        %4026 = vmatpush1.msra.mxu0 0.0
        %4027 = vmatprep.subr.mxu0 0.0
        %4028 = vmatpush1.msra.mxu0 0.0
        %4029 = vmatprep.subr.mxu0 0.0
        %4030 = vmatpush1.msra.mxu0 0.0
        %4031 = vmatprep.subr.mxu0 0.0
        %4032 = vmatpush1.msra.mxu0 %v2845
        %4033 = vmatprep.subr.mxu0 0.0
        %4034 = vmatpush1.msra.mxu0 %v2844
        %4035 = vmatprep.subr.mxu0 0.0
        %4036 = vmatpush2.msra.mxu0 0.0
        %4037 = vmatprep.subr.mxu0 0.0
        %4038 = vmatpush2.msra.mxu0 0.0
        %4039 = vmatprep.subr.mxu0 0.0
        %4040 = vmatpush2.msra.mxu0 0.0
        %4041 = vmatprep.subr.mxu0 0.0
        %4042 = vmatpush2.msra.mxu0 0.0
        %4043 = vmatprep.subr.mxu0 0.0
        %4044 = vmatpush2.msra.mxu0 0.0
        %4045 = vmatprep.subr.mxu0 0.0
        %4046 = vmatpush2.msra.mxu0 0.0
        %4047 = vmatprep.subr.mxu0 0.0
        %4048 = vmatpush2.msra.mxu0 0.0
        %4049 = vmatprep.subr.mxu0 0.0
        %4050 = vmatpush2.msra.mxu0 0.0
        %4051 = vmatprep.subr.mxu0 0.0
        %4052 = vmatpush2.msra.mxu0 0.0
        %4053 = vmatprep.subr.mxu0 0.0
        %4054 = vmatpush2.msra.mxu0 0.0
        %4055 = vmatprep.subr.mxu0 0.0
        %4056 = vmatpush2.msra.mxu0 0.0
        %4057 = vmatprep.subr.mxu0 0.0
        %4058 = vmatpush2.msra.mxu0 0.0
        %4059 = vmatprep.subr.mxu0 0.0
        %4060 = vmatpush2.msra.mxu0 0.0
        %4061 = vmatprep.subr.mxu0 0.0
        %4062 = vmatpush2.msra.mxu0 0.0
        %4063 = vmatprep.subr.mxu0 0.0
        %4064 = vmatpush2.msra.mxu0 0.0
        %4065 = vmatprep.subr.mxu0 0.0
        %4066 = vmatpush2.msra.mxu0 0.0
        %4067 = vmatprep.mubr.f32.mxu0 0.0
        %4068 = vmatmul.mubr.f32.gmra.mxu0 %v4001
        %v4069 = vpop.f32.mrf.mxu0
        %v4070 = vadd.f32 %v2846, %v4069
        %v4071 = vpop.f32.mrf.mxu0
        %4072 = vdwg.mxu0
        %v4073 = vadd.f32 %v4000, %v4070
        %v4074 = vxor.u32 %v4073, 2147483648
        %v4075 = vmul.f32 %v4074, 1.442695
        %v4076 = vpow.pop %v4075
        %v4077 = vadd.f32 %v4076, 1.0
        %v4078 = vrcp.pop %v4077
        %v4079 = vmul.f32 1.0, %v4078
        %4081 = vrot.lane.b32.xlu0 %v4070, 96
        %v4082 = vpop.permute.xlu0 %4081
        %v4084 = vmul.f32 %v4079, %v4082
        %4086 = vrot.lane.b32.xlu0 %v4084, 32
        %v4087 = vpop.permute.xlu0 %4086
        %v4089 = vadd.f32 %v4000, %v4087
        %v4090 = vtanh.pop %v4089
        %v4091 = vsub.f32 1.0, %v4079
        %4093 = vrot.lane.b32.xlu0 %v4090, 112
        %v4094 = vpop.permute.xlu0 %4093
        %v4096 = vmul.f32 %v4091, %v4094
        %v4097 = vmul.f32 %v4079, %v3994
        %v4098 = vadd.f32 %v4096, %v4097
        %4100 = vrot.lane.b32.xlu0 %v4098, 112
        %v4101 = vpop.permute.xlu0 %4100
        %4103 = vst.msk [vmem:[#allocation5 + $0xb] sm:$0x1] %vm1092, %v4101
        %v4104 = vld [vmem:[#allocation3 + $0xc] sm:$0x1]
        %v4105 = vsel %vm981, %v4101, 0
        %4107 = vmatprep.subr.mxu0 0.0
        %4108 = vmatpush1.msra.mxu0 0.0
        %4109 = vmatprep.subr.mxu0 0.0
        %4110 = vmatpush1.msra.mxu0 0.0
        %4111 = vmatprep.subr.mxu0 0.0
        %4112 = vmatpush1.msra.mxu0 0.0
        %4113 = vmatprep.subr.mxu0 0.0
        %4114 = vmatpush1.msra.mxu0 0.0
        %4115 = vmatprep.subr.mxu0 0.0
        %4116 = vmatpush1.msra.mxu0 0.0
        %4117 = vmatprep.subr.mxu0 0.0
        %4118 = vmatpush1.msra.mxu0 0.0
        %4119 = vmatprep.subr.mxu0 0.0
        %4120 = vmatpush1.msra.mxu0 0.0
        %4121 = vmatprep.subr.mxu0 0.0
        %4122 = vmatpush1.msra.mxu0 0.0
        %4123 = vmatprep.subr.mxu0 0.0
        %4124 = vmatpush1.msra.mxu0 0.0
        %4125 = vmatprep.subr.mxu0 0.0
        %4126 = vmatpush1.msra.mxu0 0.0
        %4127 = vmatprep.subr.mxu0 0.0
        %4128 = vmatpush1.msra.mxu0 0.0
        %4129 = vmatprep.subr.mxu0 0.0
        %4130 = vmatpush1.msra.mxu0 0.0
        %4131 = vmatprep.subr.mxu0 0.0
        %4132 = vmatpush1.msra.mxu0 0.0
        %4133 = vmatprep.subr.mxu0 0.0
        %4134 = vmatpush1.msra.mxu0 0.0
        %4135 = vmatprep.subr.mxu0 0.0
        %4136 = vmatpush1.msra.mxu0 %v2845
        %4137 = vmatprep.subr.mxu0 0.0
        %4138 = vmatpush1.msra.mxu0 %v2844
        %4139 = vmatprep.subr.mxu0 0.0
        %4140 = vmatpush2.msra.mxu0 0.0
        %4141 = vmatprep.subr.mxu0 0.0
        %4142 = vmatpush2.msra.mxu0 0.0
        %4143 = vmatprep.subr.mxu0 0.0
        %4144 = vmatpush2.msra.mxu0 0.0
        %4145 = vmatprep.subr.mxu0 0.0
        %4146 = vmatpush2.msra.mxu0 0.0
        %4147 = vmatprep.subr.mxu0 0.0
        %4148 = vmatpush2.msra.mxu0 0.0
        %4149 = vmatprep.subr.mxu0 0.0
        %4150 = vmatpush2.msra.mxu0 0.0
        %4151 = vmatprep.subr.mxu0 0.0
        %4152 = vmatpush2.msra.mxu0 0.0
        %4153 = vmatprep.subr.mxu0 0.0
        %4154 = vmatpush2.msra.mxu0 0.0
        %4155 = vmatprep.subr.mxu0 0.0
        %4156 = vmatpush2.msra.mxu0 0.0
        %4157 = vmatprep.subr.mxu0 0.0
        %4158 = vmatpush2.msra.mxu0 0.0
        %4159 = vmatprep.subr.mxu0 0.0
        %4160 = vmatpush2.msra.mxu0 0.0
        %4161 = vmatprep.subr.mxu0 0.0
        %4162 = vmatpush2.msra.mxu0 0.0
        %4163 = vmatprep.subr.mxu0 0.0
        %4164 = vmatpush2.msra.mxu0 0.0
        %4165 = vmatprep.subr.mxu0 0.0
        %4166 = vmatpush2.msra.mxu0 0.0
        %4167 = vmatprep.subr.mxu0 0.0
        %4168 = vmatpush2.msra.mxu0 0.0
        %4169 = vmatprep.subr.mxu0 0.0
        %4170 = vmatpush2.msra.mxu0 0.0
        %4171 = vmatprep.mubr.f32.mxu0 0.0
        %4172 = vmatmul.mubr.f32.gmra.mxu0 %v4105
        %v4173 = vpop.f32.mrf.mxu0
        %v4174 = vadd.f32 %v2846, %v4173
        %v4175 = vpop.f32.mrf.mxu0
        %4176 = vdwg.mxu0
        %v4177 = vadd.f32 %v4104, %v4174
        %v4178 = vxor.u32 %v4177, 2147483648
        %v4179 = vmul.f32 %v4178, 1.442695
        %v4180 = vpow.pop %v4179
        %v4181 = vadd.f32 %v4180, 1.0
        %v4182 = vrcp.pop %v4181
        %v4183 = vmul.f32 1.0, %v4182
        %4185 = vrot.lane.b32.xlu0 %v4174, 96
        %v4186 = vpop.permute.xlu0 %4185
        %v4188 = vmul.f32 %v4183, %v4186
        %4190 = vrot.lane.b32.xlu0 %v4188, 32
        %v4191 = vpop.permute.xlu0 %4190
        %v4193 = vadd.f32 %v4104, %v4191
        %v4194 = vtanh.pop %v4193
        %v4195 = vsub.f32 1.0, %v4183
        %4197 = vrot.lane.b32.xlu0 %v4194, 112
        %v4198 = vpop.permute.xlu0 %4197
        %v4200 = vmul.f32 %v4195, %v4198
        %v4201 = vmul.f32 %v4183, %v4098
        %v4202 = vadd.f32 %v4200, %v4201
        %4204 = vrot.lane.b32.xlu0 %v4202, 112
        %v4205 = vpop.permute.xlu0 %4204
        %4207 = vst.msk [vmem:[#allocation5 + $0xc] sm:$0x1] %vm1092, %v4205
        %v4208 = vld [vmem:[#allocation3 + $0xd] sm:$0x1]
        %v4209 = vsel %vm981, %v4205, 0
        %4211 = vmatprep.subr.mxu0 0.0
        %4212 = vmatpush1.msra.mxu0 0.0
        %4213 = vmatprep.subr.mxu0 0.0
        %4214 = vmatpush1.msra.mxu0 0.0
        %4215 = vmatprep.subr.mxu0 0.0
        %4216 = vmatpush1.msra.mxu0 0.0
        %4217 = vmatprep.subr.mxu0 0.0
        %4218 = vmatpush1.msra.mxu0 0.0
        %4219 = vmatprep.subr.mxu0 0.0
        %4220 = vmatpush1.msra.mxu0 0.0
        %4221 = vmatprep.subr.mxu0 0.0
        %4222 = vmatpush1.msra.mxu0 0.0
        %4223 = vmatprep.subr.mxu0 0.0
        %4224 = vmatpush1.msra.mxu0 0.0
        %4225 = vmatprep.subr.mxu0 0.0
        %4226 = vmatpush1.msra.mxu0 0.0
        %4227 = vmatprep.subr.mxu0 0.0
        %4228 = vmatpush1.msra.mxu0 0.0
        %4229 = vmatprep.subr.mxu0 0.0
        %4230 = vmatpush1.msra.mxu0 0.0
        %4231 = vmatprep.subr.mxu0 0.0
        %4232 = vmatpush1.msra.mxu0 0.0
        %4233 = vmatprep.subr.mxu0 0.0
        %4234 = vmatpush1.msra.mxu0 0.0
        %4235 = vmatprep.subr.mxu0 0.0
        %4236 = vmatpush1.msra.mxu0 0.0
        %4237 = vmatprep.subr.mxu0 0.0
        %4238 = vmatpush1.msra.mxu0 0.0
        %4239 = vmatprep.subr.mxu0 0.0
        %4240 = vmatpush1.msra.mxu0 %v2845
        %4241 = vmatprep.subr.mxu0 0.0
        %4242 = vmatpush1.msra.mxu0 %v2844
        %4243 = vmatprep.subr.mxu0 0.0
        %4244 = vmatpush2.msra.mxu0 0.0
        %4245 = vmatprep.subr.mxu0 0.0
        %4246 = vmatpush2.msra.mxu0 0.0
        %4247 = vmatprep.subr.mxu0 0.0
        %4248 = vmatpush2.msra.mxu0 0.0
        %4249 = vmatprep.subr.mxu0 0.0
        %4250 = vmatpush2.msra.mxu0 0.0
        %4251 = vmatprep.subr.mxu0 0.0
        %4252 = vmatpush2.msra.mxu0 0.0
        %4253 = vmatprep.subr.mxu0 0.0
        %4254 = vmatpush2.msra.mxu0 0.0
        %4255 = vmatprep.subr.mxu0 0.0
        %4256 = vmatpush2.msra.mxu0 0.0
        %4257 = vmatprep.subr.mxu0 0.0
        %4258 = vmatpush2.msra.mxu0 0.0
        %4259 = vmatprep.subr.mxu0 0.0
        %4260 = vmatpush2.msra.mxu0 0.0
        %4261 = vmatprep.subr.mxu0 0.0
        %4262 = vmatpush2.msra.mxu0 0.0
        %4263 = vmatprep.subr.mxu0 0.0
        %4264 = vmatpush2.msra.mxu0 0.0
        %4265 = vmatprep.subr.mxu0 0.0
        %4266 = vmatpush2.msra.mxu0 0.0
        %4267 = vmatprep.subr.mxu0 0.0
        %4268 = vmatpush2.msra.mxu0 0.0
        %4269 = vmatprep.subr.mxu0 0.0
        %4270 = vmatpush2.msra.mxu0 0.0
        %4271 = vmatprep.subr.mxu0 0.0
        %4272 = vmatpush2.msra.mxu0 0.0
        %4273 = vmatprep.subr.mxu0 0.0
        %4274 = vmatpush2.msra.mxu0 0.0
        %4275 = vmatprep.mubr.f32.mxu0 0.0
        %4276 = vmatmul.mubr.f32.gmra.mxu0 %v4209
        %v4277 = vpop.f32.mrf.mxu0
        %v4278 = vadd.f32 %v2846, %v4277
        %v4279 = vpop.f32.mrf.mxu0
        %4280 = vdwg.mxu0
        %v4281 = vadd.f32 %v4208, %v4278
        %v4282 = vxor.u32 %v4281, 2147483648
        %v4283 = vmul.f32 %v4282, 1.442695
        %v4284 = vpow.pop %v4283
        %v4285 = vadd.f32 %v4284, 1.0
        %v4286 = vrcp.pop %v4285
        %v4287 = vmul.f32 1.0, %v4286
        %4289 = vrot.lane.b32.xlu0 %v4278, 96
        %v4290 = vpop.permute.xlu0 %4289
        %v4292 = vmul.f32 %v4287, %v4290
        %4294 = vrot.lane.b32.xlu0 %v4292, 32
        %v4295 = vpop.permute.xlu0 %4294
        %v4297 = vadd.f32 %v4208, %v4295
        %v4298 = vtanh.pop %v4297
        %v4299 = vsub.f32 1.0, %v4287
        %4301 = vrot.lane.b32.xlu0 %v4298, 112
        %v4302 = vpop.permute.xlu0 %4301
        %v4304 = vmul.f32 %v4299, %v4302
        %v4305 = vmul.f32 %v4287, %v4202
        %v4306 = vadd.f32 %v4304, %v4305
        %4308 = vrot.lane.b32.xlu0 %v4306, 112
        %v4309 = vpop.permute.xlu0 %4308
        %4311 = vst.msk [vmem:[#allocation5 + $0xd] sm:$0x1] %vm1092, %v4309
        %v4312 = vld [vmem:[#allocation3 + $0xe] sm:$0x1]
        %v4313 = vsel %vm981, %v4309, 0
        %4315 = vmatprep.subr.mxu0 0.0
        %4316 = vmatpush1.msra.mxu0 0.0
        %4317 = vmatprep.subr.mxu0 0.0
        %4318 = vmatpush1.msra.mxu0 0.0
        %4319 = vmatprep.subr.mxu0 0.0
        %4320 = vmatpush1.msra.mxu0 0.0
        %4321 = vmatprep.subr.mxu0 0.0
        %4322 = vmatpush1.msra.mxu0 0.0
        %4323 = vmatprep.subr.mxu0 0.0
        %4324 = vmatpush1.msra.mxu0 0.0
        %4325 = vmatprep.subr.mxu0 0.0
        %4326 = vmatpush1.msra.mxu0 0.0
        %4327 = vmatprep.subr.mxu0 0.0
        %4328 = vmatpush1.msra.mxu0 0.0
        %4329 = vmatprep.subr.mxu0 0.0
        %4330 = vmatpush1.msra.mxu0 0.0
        %4331 = vmatprep.subr.mxu0 0.0
        %4332 = vmatpush1.msra.mxu0 0.0
        %4333 = vmatprep.subr.mxu0 0.0
        %4334 = vmatpush1.msra.mxu0 0.0
        %4335 = vmatprep.subr.mxu0 0.0
        %4336 = vmatpush1.msra.mxu0 0.0
        %4337 = vmatprep.subr.mxu0 0.0
        %4338 = vmatpush1.msra.mxu0 0.0
        %4339 = vmatprep.subr.mxu0 0.0
        %4340 = vmatpush1.msra.mxu0 0.0
        %4341 = vmatprep.subr.mxu0 0.0
        %4342 = vmatpush1.msra.mxu0 0.0
        %4343 = vmatprep.subr.mxu0 0.0
        %4344 = vmatpush1.msra.mxu0 %v2845
        %4345 = vmatprep.subr.mxu0 0.0
        %4346 = vmatpush1.msra.mxu0 %v2844
        %4347 = vmatprep.subr.mxu0 0.0
        %4348 = vmatpush2.msra.mxu0 0.0
        %4349 = vmatprep.subr.mxu0 0.0
        %4350 = vmatpush2.msra.mxu0 0.0
        %4351 = vmatprep.subr.mxu0 0.0
        %4352 = vmatpush2.msra.mxu0 0.0
        %4353 = vmatprep.subr.mxu0 0.0
        %4354 = vmatpush2.msra.mxu0 0.0
        %4355 = vmatprep.subr.mxu0 0.0
        %4356 = vmatpush2.msra.mxu0 0.0
        %4357 = vmatprep.subr.mxu0 0.0
        %4358 = vmatpush2.msra.mxu0 0.0
        %4359 = vmatprep.subr.mxu0 0.0
        %4360 = vmatpush2.msra.mxu0 0.0
        %4361 = vmatprep.subr.mxu0 0.0
        %4362 = vmatpush2.msra.mxu0 0.0
        %4363 = vmatprep.subr.mxu0 0.0
        %4364 = vmatpush2.msra.mxu0 0.0
        %4365 = vmatprep.subr.mxu0 0.0
        %4366 = vmatpush2.msra.mxu0 0.0
        %4367 = vmatprep.subr.mxu0 0.0
        %4368 = vmatpush2.msra.mxu0 0.0
        %4369 = vmatprep.subr.mxu0 0.0
        %4370 = vmatpush2.msra.mxu0 0.0
        %4371 = vmatprep.subr.mxu0 0.0
        %4372 = vmatpush2.msra.mxu0 0.0
        %4373 = vmatprep.subr.mxu0 0.0
        %4374 = vmatpush2.msra.mxu0 0.0
        %4375 = vmatprep.subr.mxu0 0.0
        %4376 = vmatpush2.msra.mxu0 0.0
        %4377 = vmatprep.subr.mxu0 0.0
        %4378 = vmatpush2.msra.mxu0 0.0
        %4379 = vmatprep.mubr.f32.mxu0 0.0
        %4380 = vmatmul.mubr.f32.gmra.mxu0 %v4313
        %v4381 = vpop.f32.mrf.mxu0
        %v4382 = vadd.f32 %v2846, %v4381
        %v4383 = vpop.f32.mrf.mxu0
        %4384 = vdwg.mxu0
        %v4385 = vadd.f32 %v4312, %v4382
        %v4386 = vxor.u32 %v4385, 2147483648
        %v4387 = vmul.f32 %v4386, 1.442695
        %v4388 = vpow.pop %v4387
        %v4389 = vadd.f32 %v4388, 1.0
        %v4390 = vrcp.pop %v4389
        %v4391 = vmul.f32 1.0, %v4390
        %4393 = vrot.lane.b32.xlu0 %v4382, 96
        %v4394 = vpop.permute.xlu0 %4393
        %v4396 = vmul.f32 %v4391, %v4394
        %4398 = vrot.lane.b32.xlu0 %v4396, 32
        %v4399 = vpop.permute.xlu0 %4398
        %v4401 = vadd.f32 %v4312, %v4399
        %v4402 = vtanh.pop %v4401
        %v4403 = vsub.f32 1.0, %v4391
        %4405 = vrot.lane.b32.xlu0 %v4402, 112
        %v4406 = vpop.permute.xlu0 %4405
        %v4408 = vmul.f32 %v4403, %v4406
        %v4409 = vmul.f32 %v4391, %v4306
        %v4410 = vadd.f32 %v4408, %v4409
        %4412 = vrot.lane.b32.xlu0 %v4410, 112
        %v4413 = vpop.permute.xlu0 %4412
        %4415 = vst.msk [vmem:[#allocation5 + $0xe] sm:$0x1] %vm1092, %v4413
        %v4416 = vld [vmem:[#allocation3 + $0xf] sm:$0x1]
        %v4417 = vsel %vm981, %v4413, 0
        %4419 = vmatprep.subr.mxu0 0.0
        %4420 = vmatpush1.msra.mxu0 0.0
        %4421 = vmatprep.subr.mxu0 0.0
        %4422 = vmatpush1.msra.mxu0 0.0
        %4423 = vmatprep.subr.mxu0 0.0
        %4424 = vmatpush1.msra.mxu0 0.0
        %4425 = vmatprep.subr.mxu0 0.0
        %4426 = vmatpush1.msra.mxu0 0.0
        %4427 = vmatprep.subr.mxu0 0.0
        %4428 = vmatpush1.msra.mxu0 0.0
        %4429 = vmatprep.subr.mxu0 0.0
        %4430 = vmatpush1.msra.mxu0 0.0
        %4431 = vmatprep.subr.mxu0 0.0
        %4432 = vmatpush1.msra.mxu0 0.0
        %4433 = vmatprep.subr.mxu0 0.0
        %4434 = vmatpush1.msra.mxu0 0.0
        %4435 = vmatprep.subr.mxu0 0.0
        %4436 = vmatpush1.msra.mxu0 0.0
        %4437 = vmatprep.subr.mxu0 0.0
        %4438 = vmatpush1.msra.mxu0 0.0
        %4439 = vmatprep.subr.mxu0 0.0
        %4440 = vmatpush1.msra.mxu0 0.0
        %4441 = vmatprep.subr.mxu0 0.0
        %4442 = vmatpush1.msra.mxu0 0.0
        %4443 = vmatprep.subr.mxu0 0.0
        %4444 = vmatpush1.msra.mxu0 0.0
        %4445 = vmatprep.subr.mxu0 0.0
        %4446 = vmatpush1.msra.mxu0 0.0
        %4447 = vmatprep.subr.mxu0 0.0
        %4448 = vmatpush1.msra.mxu0 %v2845
        %4449 = vmatprep.subr.mxu0 0.0
        %4450 = vmatpush1.msra.mxu0 %v2844
        %4451 = vmatprep.subr.mxu0 0.0
        %4452 = vmatpush2.msra.mxu0 0.0
        %4453 = vmatprep.subr.mxu0 0.0
        %4454 = vmatpush2.msra.mxu0 0.0
        %4455 = vmatprep.subr.mxu0 0.0
        %4456 = vmatpush2.msra.mxu0 0.0
        %4457 = vmatprep.subr.mxu0 0.0
        %4458 = vmatpush2.msra.mxu0 0.0
        %4459 = vmatprep.subr.mxu0 0.0
        %4460 = vmatpush2.msra.mxu0 0.0
        %4461 = vmatprep.subr.mxu0 0.0
        %4462 = vmatpush2.msra.mxu0 0.0
        %4463 = vmatprep.subr.mxu0 0.0
        %4464 = vmatpush2.msra.mxu0 0.0
        %4465 = vmatprep.subr.mxu0 0.0
        %4466 = vmatpush2.msra.mxu0 0.0
        %4467 = vmatprep.subr.mxu0 0.0
        %4468 = vmatpush2.msra.mxu0 0.0
        %4469 = vmatprep.subr.mxu0 0.0
        %4470 = vmatpush2.msra.mxu0 0.0
        %4471 = vmatprep.subr.mxu0 0.0
        %4472 = vmatpush2.msra.mxu0 0.0
        %4473 = vmatprep.subr.mxu0 0.0
        %4474 = vmatpush2.msra.mxu0 0.0
        %4475 = vmatprep.subr.mxu0 0.0
        %4476 = vmatpush2.msra.mxu0 0.0
        %4477 = vmatprep.subr.mxu0 0.0
        %4478 = vmatpush2.msra.mxu0 0.0
        %4479 = vmatprep.subr.mxu0 0.0
        %4480 = vmatpush2.msra.mxu0 0.0
        %4481 = vmatprep.subr.mxu0 0.0
        %4482 = vmatpush2.msra.mxu0 0.0
        %4483 = vmatprep.mubr.f32.mxu0 0.0
        %4484 = vmatmul.mubr.f32.gmra.mxu0 %v4417
        %v4485 = vpop.f32.mrf.mxu0
        %v4486 = vadd.f32 %v2846, %v4485
        %v4487 = vpop.f32.mrf.mxu0
        %4488 = vdwg.mxu0
        %v4489 = vadd.f32 %v4416, %v4486
        %v4490 = vxor.u32 %v4489, 2147483648
        %v4491 = vmul.f32 %v4490, 1.442695
        %v4492 = vpow.pop %v4491
        %v4493 = vadd.f32 %v4492, 1.0
        %v4494 = vrcp.pop %v4493
        %v4495 = vmul.f32 1.0, %v4494
        %4497 = vrot.lane.b32.xlu0 %v4486, 96
        %v4498 = vpop.permute.xlu0 %4497
        %v4500 = vmul.f32 %v4495, %v4498
        %4502 = vrot.lane.b32.xlu0 %v4500, 32
        %v4503 = vpop.permute.xlu0 %4502
        %v4505 = vadd.f32 %v4416, %v4503
        %v4506 = vtanh.pop %v4505
        %v4507 = vsub.f32 1.0, %v4495
        %4509 = vrot.lane.b32.xlu0 %v4506, 112
        %v4510 = vpop.permute.xlu0 %4509
        %v4512 = vmul.f32 %v4507, %v4510
        %v4513 = vmul.f32 %v4495, %v4410
        %v4514 = vadd.f32 %v4512, %v4513
        %4516 = vrot.lane.b32.xlu0 %v4514, 112
        %v4517 = vpop.permute.xlu0 %4516
        %4519 = vst.msk [vmem:[#allocation5 + $0xf] sm:$0x1] %vm1092, %v4517
        %4520 = vst.msk [vmem:[#allocation8] sm:$0x1] %vm1092, %v4517
        %v4521 = vld [vmem:[#allocation2] sm:$0xff]
        %v4522 = vld [vmem:[#allocation2 + $0x8] sm:$0xff]
        %v4523 = vld [vmem:[#allocation22] sm:$0xff]
        %v4524 = vld [vmem:[#allocation22 + $0x8] sm:$0xff]
        %v4525 = vld [vmem:[#allocation22 + $0x10] sm:$0xff]
        %v4526 = vld [vmem:[#allocation22 + $0x18] sm:$0xff]
        %v4527 = vld [vmem:[#allocation22 + $0x20] sm:$0xff]
        %v4528 = vld [vmem:[#allocation22 + $0x28] sm:$0xff]
        %v4529 = vld [vmem:[#allocation22 + $0x30] sm:$0xff]
        %v4530 = vld [vmem:[#allocation22 + $0x38] sm:$0xff]
        %v4531 = vld [vmem:[#allocation22 + $0x40] sm:$0xff]
        %v4532 = vld [vmem:[#allocation22 + $0x48] sm:$0xff]
        %v4533 = vld [vmem:[#allocation22 + $0x50] sm:$0xff]
        %v4534 = vld [vmem:[#allocation22 + $0x58] sm:$0xff]
        %v4535 = vld [vmem:[#allocation22 + $0x60] sm:$0xff]
        %v4536 = vld [vmem:[#allocation22 + $0x68] sm:$0xff]
        %v4537 = vld [vmem:[#allocation22 + $0x70] sm:$0xff]
        %v4538 = vld [vmem:[#allocation22 + $0x78] sm:$0xff]
        %v4539 = vld [vmem:[#allocation5] sm:$0xff]
        %v4540 = vld [vmem:[#allocation5 + $0x8] sm:$0xff]
        %v4541 = vld [vmem:[%s12] sm:$0xff]
        %v4542 = vld [vmem:[%s12 + $0x8] sm:$0xff]
        %v4544 = vsel %vm981, %v4539, 0
        %v4547 = vsel %vm981, %v4540, 0
        %4549 = vmatprep.subr.mxu0 0.0
        %4550 = vmatpush1.msra.mxu0 0.0
        %4551 = vmatprep.subr.mxu0 0.0
        %4552 = vmatpush1.msra.mxu0 0.0
        %4553 = vmatprep.subr.mxu0 0.0
        %4554 = vmatpush1.msra.mxu0 0.0
        %4555 = vmatprep.subr.mxu0 0.0
        %4556 = vmatpush1.msra.mxu0 0.0
        %4557 = vmatprep.subr.mxu0 0.0
        %4558 = vmatpush1.msra.mxu0 0.0
        %4559 = vmatprep.subr.mxu0 0.0
        %4560 = vmatpush1.msra.mxu0 0.0
        %4561 = vmatprep.subr.mxu0 0.0
        %4562 = vmatpush1.msra.mxu0 0.0
        %4563 = vmatprep.subr.mxu0 0.0
        %4564 = vmatpush1.msra.mxu0 0.0
        %4565 = vmatprep.subr.mxu0 0.0
        %4566 = vmatpush1.msra.mxu0 0.0
        %4567 = vmatprep.subr.mxu0 0.0
        %4568 = vmatpush1.msra.mxu0 0.0
        %4569 = vmatprep.subr.mxu0 0.0
        %4570 = vmatpush1.msra.mxu0 0.0
        %4571 = vmatprep.subr.mxu0 0.0
        %4572 = vmatpush1.msra.mxu0 0.0
        %4573 = vmatprep.subr.mxu0 0.0
        %4574 = vmatpush1.msra.mxu0 0.0
        %4575 = vmatprep.subr.mxu0 0.0
        %4576 = vmatpush1.msra.mxu0 0.0
        %4577 = vmatprep.subr.mxu0 0.0
        %4578 = vmatpush1.msra.mxu0 %v4542
        %4579 = vmatprep.subr.mxu0 0.0
        %4580 = vmatpush1.msra.mxu0 %v4541
        %4581 = vmatprep.subr.mxu0 0.0
        %4582 = vmatpush2.msra.mxu0 0.0
        %4583 = vmatprep.subr.mxu0 0.0
        %4584 = vmatpush2.msra.mxu0 0.0
        %4585 = vmatprep.subr.mxu0 0.0
        %4586 = vmatpush2.msra.mxu0 0.0
        %4587 = vmatprep.subr.mxu0 0.0
        %4588 = vmatpush2.msra.mxu0 0.0
        %4589 = vmatprep.subr.mxu0 0.0
        %4590 = vmatpush2.msra.mxu0 0.0
        %4591 = vmatprep.subr.mxu0 0.0
        %4592 = vmatpush2.msra.mxu0 0.0
        %4593 = vmatprep.subr.mxu0 0.0
        %4594 = vmatpush2.msra.mxu0 0.0
        %4595 = vmatprep.subr.mxu0 0.0
        %4596 = vmatpush2.msra.mxu0 0.0
        %4597 = vmatprep.subr.mxu0 0.0
        %4598 = vmatpush2.msra.mxu0 0.0
        %4599 = vmatprep.subr.mxu0 0.0
        %4600 = vmatpush2.msra.mxu0 0.0
        %4601 = vmatprep.subr.mxu0 0.0
        %4602 = vmatpush2.msra.mxu0 0.0
        %4603 = vmatprep.subr.mxu0 0.0
        %4604 = vmatpush2.msra.mxu0 0.0
        %4605 = vmatprep.subr.mxu0 0.0
        %4606 = vmatpush2.msra.mxu0 0.0
        %4607 = vmatprep.subr.mxu0 0.0
        %4608 = vmatpush2.msra.mxu0 0.0
        %4609 = vmatprep.subr.mxu0 0.0
        %4610 = vmatpush2.msra.mxu0 0.0
        %4611 = vmatprep.subr.mxu0 0.0
        %4612 = vmatpush2.msra.mxu0 0.0
        %4613 = vmatprep.mubr.f32.mxu0 0.0
        %4614 = vmatmul.mubr.f32.gmra.mxu0 %v4544
        %v4615 = vpop.f32.mrf.mxu0
        %v4616 = vadd.f32 0.0, %v4615
        %v4617 = vpop.f32.mrf.mxu0
        %4618 = vmatprep.mubr.f32.mxu0 0.0
        %4619 = vmatmul.mubr.f32.gmra.mxu0 %v4547
        %v4620 = vpop.f32.mrf.mxu0
        %v4621 = vadd.f32 0.0, %v4620
        %v4622 = vpop.f32.mrf.mxu0
        %4623 = vdwg.mxu0
        %4624 = vmatprep.subr.mxu0 0.0
        %4625 = vmatpush1.msra.mxu0 %v4538
        %4626 = vmatprep.subr.mxu0 0.0
        %4627 = vmatpush1.msra.mxu0 %v4537
        %4628 = vmatprep.subr.mxu0 0.0
        %4629 = vmatpush1.msra.mxu0 %v4536
        %4630 = vmatprep.subr.mxu0 0.0
        %4631 = vmatpush1.msra.mxu0 %v4535
        %4632 = vmatprep.subr.mxu0 0.0
        %4633 = vmatpush1.msra.mxu0 %v4534
        %4634 = vmatprep.subr.mxu0 0.0
        %4635 = vmatpush1.msra.mxu0 %v4533
        %4636 = vmatprep.subr.mxu0 0.0
        %4637 = vmatpush1.msra.mxu0 %v4532
        %4638 = vmatprep.subr.mxu0 0.0
        %4639 = vmatpush1.msra.mxu0 %v4531
        %4640 = vmatprep.subr.mxu0 0.0
        %4641 = vmatpush1.msra.mxu0 %v4530
        %4642 = vmatprep.subr.mxu0 0.0
        %4643 = vmatpush1.msra.mxu0 %v4529
        %4644 = vmatprep.subr.mxu0 0.0
        %4645 = vmatpush1.msra.mxu0 %v4528
        %4646 = vmatprep.subr.mxu0 0.0
        %4647 = vmatpush1.msra.mxu0 %v4527
        %4648 = vmatprep.subr.mxu0 0.0
        %4649 = vmatpush1.msra.mxu0 %v4526
        %4650 = vmatprep.subr.mxu0 0.0
        %4651 = vmatpush1.msra.mxu0 %v4525
        %4652 = vmatprep.subr.mxu0 0.0
        %4653 = vmatpush1.msra.mxu0 %v4524
        %4654 = vmatprep.subr.mxu0 0.0
        %4655 = vmatpush1.msra.mxu0 %v4523
        %4656 = vmatprep.subr.mxu0 0.0
        %4657 = vmatpush2.msra.mxu0 0.0
        %4658 = vmatprep.subr.mxu0 0.0
        %4659 = vmatpush2.msra.mxu0 0.0
        %4660 = vmatprep.subr.mxu0 0.0
        %4661 = vmatpush2.msra.mxu0 0.0
        %4662 = vmatprep.subr.mxu0 0.0
        %4663 = vmatpush2.msra.mxu0 0.0
        %4664 = vmatprep.subr.mxu0 0.0
        %4665 = vmatpush2.msra.mxu0 0.0
        %4666 = vmatprep.subr.mxu0 0.0
        %4667 = vmatpush2.msra.mxu0 0.0
        %4668 = vmatprep.subr.mxu0 0.0
        %4669 = vmatpush2.msra.mxu0 0.0
        %4670 = vmatprep.subr.mxu0 0.0
        %4671 = vmatpush2.msra.mxu0 0.0
        %4672 = vmatprep.subr.mxu0 0.0
        %4673 = vmatpush2.msra.mxu0 0.0
        %4674 = vmatprep.subr.mxu0 0.0
        %4675 = vmatpush2.msra.mxu0 0.0
        %4676 = vmatprep.subr.mxu0 0.0
        %4677 = vmatpush2.msra.mxu0 0.0
        %4678 = vmatprep.subr.mxu0 0.0
        %4679 = vmatpush2.msra.mxu0 0.0
        %4680 = vmatprep.subr.mxu0 0.0
        %4681 = vmatpush2.msra.mxu0 0.0
        %4682 = vmatprep.subr.mxu0 0.0
        %4683 = vmatpush2.msra.mxu0 0.0
        %4684 = vmatprep.subr.mxu0 0.0
        %4685 = vmatpush2.msra.mxu0 0.0
        %4686 = vmatprep.subr.mxu0 0.0
        %4687 = vmatpush2.msra.mxu0 0.0
        %4688 = vmatprep.mubr.f32.mxu0 0.0
        %4689 = vmatmul.mubr.f32.gmra.mxu0 %v4521
        %v4690 = vpop.f32.mrf.mxu0
        %v4691 = vadd.f32 %v4616, %v4690
        %v4692 = vpop.f32.mrf.mxu0
        %4693 = vmatprep.mubr.f32.mxu0 0.0
        %4694 = vmatmul.mubr.f32.gmra.mxu0 %v4522
        %v4695 = vpop.f32.mrf.mxu0
        %v4696 = vadd.f32 %v4621, %v4695
        %v4697 = vpop.f32.mrf.mxu0
        %4698 = vdwg.mxu0
        %v4699 = vld [vmem:[#allocation4] sm:$0xff]
        %v4700 = vld [vmem:[#allocation4 + $0x8] sm:$0xff]
        %v4701 = vld [vmem:[#allocation24] sm:$0xff]
        %v4702 = vld [vmem:[#allocation24 + $0x8] sm:$0xff]
        %v4704 = vsel %vm981, %v4699, 0
        %v4707 = vsel %vm981, %v4700, 0
        %4709 = vmatprep.subr.mxu0 0.0
        %4710 = vmatpush1.msra.mxu0 0.0
        %4711 = vmatprep.subr.mxu0 0.0
        %4712 = vmatpush1.msra.mxu0 0.0
        %4713 = vmatprep.subr.mxu0 0.0
        %4714 = vmatpush1.msra.mxu0 0.0
        %4715 = vmatprep.subr.mxu0 0.0
        %4716 = vmatpush1.msra.mxu0 0.0
        %4717 = vmatprep.subr.mxu0 0.0
        %4718 = vmatpush1.msra.mxu0 0.0
        %4719 = vmatprep.subr.mxu0 0.0
        %4720 = vmatpush1.msra.mxu0 0.0
        %4721 = vmatprep.subr.mxu0 0.0
        %4722 = vmatpush1.msra.mxu0 0.0
        %4723 = vmatprep.subr.mxu0 0.0
        %4724 = vmatpush1.msra.mxu0 0.0
        %4725 = vmatprep.subr.mxu0 0.0
        %4726 = vmatpush1.msra.mxu0 0.0
        %4727 = vmatprep.subr.mxu0 0.0
        %4728 = vmatpush1.msra.mxu0 0.0
        %4729 = vmatprep.subr.mxu0 0.0
        %4730 = vmatpush1.msra.mxu0 0.0
        %4731 = vmatprep.subr.mxu0 0.0
        %4732 = vmatpush1.msra.mxu0 0.0
        %4733 = vmatprep.subr.mxu0 0.0
        %4734 = vmatpush1.msra.mxu0 0.0
        %4735 = vmatprep.subr.mxu0 0.0
        %4736 = vmatpush1.msra.mxu0 0.0
        %4737 = vmatprep.subr.mxu0 0.0
        %4738 = vmatpush1.msra.mxu0 %v4702
        %4739 = vmatprep.subr.mxu0 0.0
        %4740 = vmatpush1.msra.mxu0 %v4701
        %4741 = vmatprep.subr.mxu0 0.0
        %4742 = vmatpush2.msra.mxu0 0.0
        %4743 = vmatprep.subr.mxu0 0.0
        %4744 = vmatpush2.msra.mxu0 0.0
        %4745 = vmatprep.subr.mxu0 0.0
        %4746 = vmatpush2.msra.mxu0 0.0
        %4747 = vmatprep.subr.mxu0 0.0
        %4748 = vmatpush2.msra.mxu0 0.0
        %4749 = vmatprep.subr.mxu0 0.0
        %4750 = vmatpush2.msra.mxu0 0.0
        %4751 = vmatprep.subr.mxu0 0.0
        %4752 = vmatpush2.msra.mxu0 0.0
        %4753 = vmatprep.subr.mxu0 0.0
        %4754 = vmatpush2.msra.mxu0 0.0
        %4755 = vmatprep.subr.mxu0 0.0
        %4756 = vmatpush2.msra.mxu0 0.0
        %4757 = vmatprep.subr.mxu0 0.0
        %4758 = vmatpush2.msra.mxu0 0.0
        %4759 = vmatprep.subr.mxu0 0.0
        %4760 = vmatpush2.msra.mxu0 0.0
        %4761 = vmatprep.subr.mxu0 0.0
        %4762 = vmatpush2.msra.mxu0 0.0
        %4763 = vmatprep.subr.mxu0 0.0
        %4764 = vmatpush2.msra.mxu0 0.0
        %4765 = vmatprep.subr.mxu0 0.0
        %4766 = vmatpush2.msra.mxu0 0.0
        %4767 = vmatprep.subr.mxu0 0.0
        %4768 = vmatpush2.msra.mxu0 0.0
        %4769 = vmatprep.subr.mxu0 0.0
        %4770 = vmatpush2.msra.mxu0 0.0
        %4771 = vmatprep.subr.mxu0 0.0
        %4772 = vmatpush2.msra.mxu0 0.0
        %4773 = vmatprep.mubr.f32.mxu0 0.0
        %4774 = vmatmul.mubr.f32.gmra.mxu0 %v4704
        %v4775 = vpop.f32.mrf.mxu0
        %v4776 = vadd.f32 0.0, %v4775
        %v4777 = vpop.f32.mrf.mxu0
        %4778 = vmatprep.mubr.f32.mxu0 0.0
        %4779 = vmatmul.mubr.f32.gmra.mxu0 %v4707
        %v4780 = vpop.f32.mrf.mxu0
        %v4781 = vadd.f32 0.0, %v4780
        %v4782 = vpop.f32.mrf.mxu0
        %4783 = vdwg.mxu0
        %v4784 = vadd.f32 %v4691, %v4776
        %v4785 = vadd.f32 %v4696, %v4781
        %v4786 = vld [vmem:[%s15] sm:$0x1]
        %v4788 = vlaneseq
        %v4789 = vshrl.u32 %v4788, 7
        %v4790 = vsub.s32 0, %v4789
        %v4791 = vrot.slane %v4786, %v4790
        %v4793 = vadd.f32 %v4784, %v4791
        %v4794 = vadd.f32 %v4785, %v4791
        %4795 = vst [vmem:[#allocation3] sm:$0xff] %v4793
        %4796 = vst [vmem:[#allocation3 + $0x8] sm:$0xff] %v4794
        %v4797 = vld [vmem:[#allocation25] sm:$0xff]
        %v4798 = vld [vmem:[#allocation25 + $0x8] sm:$0xff]
        %v4799 = vld [vmem:[#allocation25 + $0x10] sm:$0xff]
        %v4800 = vld [vmem:[#allocation25 + $0x18] sm:$0xff]
        %v4801 = vld [vmem:[%s16] sm:$0x1]
        %v4802 = vld [vmem:[#allocation9] sm:$0x1]
        %v4803 = vld [vmem:[#allocation3] sm:$0x1]
        %vm4804 = vcmask 261120
        %v4806 = vsel %vm4804, %v4802, 0
        %4808 = vmatprep.subr.mxu0 0.0
        %4809 = vmatpush1.msra.mxu0 0.0
        %4810 = vmatprep.subr.mxu0 0.0
        %4811 = vmatpush1.msra.mxu0 0.0
        %4812 = vmatprep.subr.mxu0 0.0
        %4813 = vmatpush1.msra.mxu0 0.0
        %4814 = vmatprep.subr.mxu0 0.0
        %4815 = vmatpush1.msra.mxu0 0.0
        %4816 = vmatprep.subr.mxu0 0.0
        %4817 = vmatpush1.msra.mxu0 0.0
        %4818 = vmatprep.subr.mxu0 0.0
        %4819 = vmatpush1.msra.mxu0 0.0
        %4820 = vmatprep.subr.mxu0 0.0
        %4821 = vmatpush1.msra.mxu0 0.0
        %4822 = vmatprep.subr.mxu0 0.0
        %4823 = vmatpush1.msra.mxu0 0.0
        %4824 = vmatprep.subr.mxu0 0.0
        %4825 = vmatpush1.msra.mxu0 0.0
        %4826 = vmatprep.subr.mxu0 0.0
        %4827 = vmatpush1.msra.mxu0 0.0
        %4828 = vmatprep.subr.mxu0 0.0
        %4829 = vmatpush1.msra.mxu0 0.0
        %4830 = vmatprep.subr.mxu0 0.0
        %4831 = vmatpush1.msra.mxu0 0.0
        %4832 = vmatprep.subr.mxu0 0.0
        %4833 = vmatpush1.msra.mxu0 %v4800
        %4834 = vmatprep.subr.mxu0 0.0
        %4835 = vmatpush1.msra.mxu0 %v4799
        %4836 = vmatprep.subr.mxu0 0.0
        %4837 = vmatpush1.msra.mxu0 %v4798
        %4838 = vmatprep.subr.mxu0 0.0
        %4839 = vmatpush1.msra.mxu0 %v4797
        %4840 = vmatprep.subr.mxu0 0.0
        %4841 = vmatpush2.msra.mxu0 0.0
        %4842 = vmatprep.subr.mxu0 0.0
        %4843 = vmatpush2.msra.mxu0 0.0
        %4844 = vmatprep.subr.mxu0 0.0
        %4845 = vmatpush2.msra.mxu0 0.0
        %4846 = vmatprep.subr.mxu0 0.0
        %4847 = vmatpush2.msra.mxu0 0.0
        %4848 = vmatprep.subr.mxu0 0.0
        %4849 = vmatpush2.msra.mxu0 0.0
        %4850 = vmatprep.subr.mxu0 0.0
        %4851 = vmatpush2.msra.mxu0 0.0
        %4852 = vmatprep.subr.mxu0 0.0
        %4853 = vmatpush2.msra.mxu0 0.0
        %4854 = vmatprep.subr.mxu0 0.0
        %4855 = vmatpush2.msra.mxu0 0.0
        %4856 = vmatprep.subr.mxu0 0.0
        %4857 = vmatpush2.msra.mxu0 0.0
        %4858 = vmatprep.subr.mxu0 0.0
        %4859 = vmatpush2.msra.mxu0 0.0
        %4860 = vmatprep.subr.mxu0 0.0
        %4861 = vmatpush2.msra.mxu0 0.0
        %4862 = vmatprep.subr.mxu0 0.0
        %4863 = vmatpush2.msra.mxu0 0.0
        %4864 = vmatprep.subr.mxu0 0.0
        %4865 = vmatpush2.msra.mxu0 0.0
        %4866 = vmatprep.subr.mxu0 0.0
        %4867 = vmatpush2.msra.mxu0 0.0
        %4868 = vmatprep.subr.mxu0 0.0
        %4869 = vmatpush2.msra.mxu0 0.0
        %4870 = vmatprep.subr.mxu0 0.0
        %4871 = vmatpush2.msra.mxu0 0.0
        %4872 = vmatprep.mubr.f32.mxu0 0.0
        %4873 = vmatmul.mubr.f32.gmra.mxu0 %v4806
        %v4874 = vpop.f32.mrf.mxu0
        %v4875 = vadd.f32 %v4801, %v4874
        %v4876 = vpop.f32.mrf.mxu0
        %4877 = vdwg.mxu0
        %v4878 = vadd.f32 %v4803, %v4875
        %v4879 = vxor.u32 %v4878, 2147483648
        %v4880 = vmul.f32 %v4879, 1.442695
        %v4881 = vpow.pop %v4880
        %v4882 = vadd.f32 %v4881, 1.0
        %v4883 = vrcp.pop %v4882
        %v4884 = vmul.f32 1.0, %v4883
        %4886 = vrot.lane.b32.xlu0 %v4875, 64
        %v4887 = vpop.permute.xlu0 %4886
        %v4889 = vmul.f32 %v4884, %v4887
        %4891 = vrot.lane.b32.xlu0 %v4889, 64
        %v4892 = vpop.permute.xlu0 %4891
        %v4894 = vadd.f32 %v4803, %v4892
        %v4895 = vtanh.pop %v4894
        %v4896 = vsub.f32 1.0, %v4884
        %4898 = vrot.lane.b32.xlu0 %v4895, 96
        %v4899 = vpop.permute.xlu0 %4898
        %v4901 = vmul.f32 %v4896, %v4899
        %v4902 = vlaneseq
        %v4903 = vshrl.u32 %v4902, 7
        %v4904 = vsub.s32 0, %v4903
        %v4905 = vrot.slane %v4802, %v4904
        %4906 = vrot.lane.b32.xlu0 %v4905, 32
        %v4907 = vpop.permute.xlu0 %4906
        %v4909 = vmul.f32 %v4884, %v4907
        %v4910 = vadd.f32 %v4901, %v4909
        %4912 = vrot.lane.b32.xlu0 %v4910, 96
        %v4913 = vpop.permute.xlu0 %4912
        %vm4915 = vcmask 253952
        %4916 = vst.msk [vmem:[#allocation6] sm:$0x1] %vm4915, %v4913
        %v4917 = vld [vmem:[#allocation3 + $0x1] sm:$0x1]
        %v4918 = vsel %vm4804, %v4913, 0
        %4920 = vmatprep.subr.mxu0 0.0
        %4921 = vmatpush1.msra.mxu0 0.0
        %4922 = vmatprep.subr.mxu0 0.0
        %4923 = vmatpush1.msra.mxu0 0.0
        %4924 = vmatprep.subr.mxu0 0.0
        %4925 = vmatpush1.msra.mxu0 0.0
        %4926 = vmatprep.subr.mxu0 0.0
        %4927 = vmatpush1.msra.mxu0 0.0
        %4928 = vmatprep.subr.mxu0 0.0
        %4929 = vmatpush1.msra.mxu0 0.0
        %4930 = vmatprep.subr.mxu0 0.0
        %4931 = vmatpush1.msra.mxu0 0.0
        %4932 = vmatprep.subr.mxu0 0.0
        %4933 = vmatpush1.msra.mxu0 0.0
        %4934 = vmatprep.subr.mxu0 0.0
        %4935 = vmatpush1.msra.mxu0 0.0
        %4936 = vmatprep.subr.mxu0 0.0
        %4937 = vmatpush1.msra.mxu0 0.0
        %4938 = vmatprep.subr.mxu0 0.0
        %4939 = vmatpush1.msra.mxu0 0.0
        %4940 = vmatprep.subr.mxu0 0.0
        %4941 = vmatpush1.msra.mxu0 0.0
        %4942 = vmatprep.subr.mxu0 0.0
        %4943 = vmatpush1.msra.mxu0 0.0
        %4944 = vmatprep.subr.mxu0 0.0
        %4945 = vmatpush1.msra.mxu0 %v4800
        %4946 = vmatprep.subr.mxu0 0.0
        %4947 = vmatpush1.msra.mxu0 %v4799
        %4948 = vmatprep.subr.mxu0 0.0
        %4949 = vmatpush1.msra.mxu0 %v4798
        %4950 = vmatprep.subr.mxu0 0.0
        %4951 = vmatpush1.msra.mxu0 %v4797
        %4952 = vmatprep.subr.mxu0 0.0
        %4953 = vmatpush2.msra.mxu0 0.0
        %4954 = vmatprep.subr.mxu0 0.0
        %4955 = vmatpush2.msra.mxu0 0.0
        %4956 = vmatprep.subr.mxu0 0.0
        %4957 = vmatpush2.msra.mxu0 0.0
        %4958 = vmatprep.subr.mxu0 0.0
        %4959 = vmatpush2.msra.mxu0 0.0
        %4960 = vmatprep.subr.mxu0 0.0
        %4961 = vmatpush2.msra.mxu0 0.0
        %4962 = vmatprep.subr.mxu0 0.0
        %4963 = vmatpush2.msra.mxu0 0.0
        %4964 = vmatprep.subr.mxu0 0.0
        %4965 = vmatpush2.msra.mxu0 0.0
        %4966 = vmatprep.subr.mxu0 0.0
        %4967 = vmatpush2.msra.mxu0 0.0
        %4968 = vmatprep.subr.mxu0 0.0
        %4969 = vmatpush2.msra.mxu0 0.0
        %4970 = vmatprep.subr.mxu0 0.0
        %4971 = vmatpush2.msra.mxu0 0.0
        %4972 = vmatprep.subr.mxu0 0.0
        %4973 = vmatpush2.msra.mxu0 0.0
        %4974 = vmatprep.subr.mxu0 0.0
        %4975 = vmatpush2.msra.mxu0 0.0
        %4976 = vmatprep.subr.mxu0 0.0
        %4977 = vmatpush2.msra.mxu0 0.0
        %4978 = vmatprep.subr.mxu0 0.0
        %4979 = vmatpush2.msra.mxu0 0.0
        %4980 = vmatprep.subr.mxu0 0.0
        %4981 = vmatpush2.msra.mxu0 0.0
        %4982 = vmatprep.subr.mxu0 0.0
        %4983 = vmatpush2.msra.mxu0 0.0
        %4984 = vmatprep.mubr.f32.mxu0 0.0
        %4985 = vmatmul.mubr.f32.gmra.mxu0 %v4918
        %v4986 = vpop.f32.mrf.mxu0
        %v4987 = vadd.f32 %v4801, %v4986
        %v4988 = vpop.f32.mrf.mxu0
        %4989 = vdwg.mxu0
        %v4990 = vadd.f32 %v4917, %v4987
        %v4991 = vxor.u32 %v4990, 2147483648
        %v4992 = vmul.f32 %v4991, 1.442695
        %v4993 = vpow.pop %v4992
        %v4994 = vadd.f32 %v4993, 1.0
        %v4995 = vrcp.pop %v4994
        %v4996 = vmul.f32 1.0, %v4995
        %4998 = vrot.lane.b32.xlu0 %v4987, 64
        %v4999 = vpop.permute.xlu0 %4998
        %v5001 = vmul.f32 %v4996, %v4999
        %5003 = vrot.lane.b32.xlu0 %v5001, 64
        %v5004 = vpop.permute.xlu0 %5003
        %v5006 = vadd.f32 %v4917, %v5004
        %v5007 = vtanh.pop %v5006
        %v5008 = vsub.f32 1.0, %v4996
        %5010 = vrot.lane.b32.xlu0 %v5007, 96
        %v5011 = vpop.permute.xlu0 %5010
        %v5013 = vmul.f32 %v5008, %v5011
        %v5014 = vmul.f32 %v4996, %v4910
        %v5015 = vadd.f32 %v5013, %v5014
        %5017 = vrot.lane.b32.xlu0 %v5015, 96
        %v5018 = vpop.permute.xlu0 %5017
        %5020 = vst.msk [vmem:[#allocation6 + $0x1] sm:$0x1] %vm4915, %v5018
        %v5021 = vld [vmem:[#allocation3 + $0x2] sm:$0x1]
        %v5022 = vsel %vm4804, %v5018, 0
        %5024 = vmatprep.subr.mxu0 0.0
        %5025 = vmatpush1.msra.mxu0 0.0
        %5026 = vmatprep.subr.mxu0 0.0
        %5027 = vmatpush1.msra.mxu0 0.0
        %5028 = vmatprep.subr.mxu0 0.0
        %5029 = vmatpush1.msra.mxu0 0.0
        %5030 = vmatprep.subr.mxu0 0.0
        %5031 = vmatpush1.msra.mxu0 0.0
        %5032 = vmatprep.subr.mxu0 0.0
        %5033 = vmatpush1.msra.mxu0 0.0
        %5034 = vmatprep.subr.mxu0 0.0
        %5035 = vmatpush1.msra.mxu0 0.0
        %5036 = vmatprep.subr.mxu0 0.0
        %5037 = vmatpush1.msra.mxu0 0.0
        %5038 = vmatprep.subr.mxu0 0.0
        %5039 = vmatpush1.msra.mxu0 0.0
        %5040 = vmatprep.subr.mxu0 0.0
        %5041 = vmatpush1.msra.mxu0 0.0
        %5042 = vmatprep.subr.mxu0 0.0
        %5043 = vmatpush1.msra.mxu0 0.0
        %5044 = vmatprep.subr.mxu0 0.0
        %5045 = vmatpush1.msra.mxu0 0.0
        %5046 = vmatprep.subr.mxu0 0.0
        %5047 = vmatpush1.msra.mxu0 0.0
        %5048 = vmatprep.subr.mxu0 0.0
        %5049 = vmatpush1.msra.mxu0 %v4800
        %5050 = vmatprep.subr.mxu0 0.0
        %5051 = vmatpush1.msra.mxu0 %v4799
        %5052 = vmatprep.subr.mxu0 0.0
        %5053 = vmatpush1.msra.mxu0 %v4798
        %5054 = vmatprep.subr.mxu0 0.0
        %5055 = vmatpush1.msra.mxu0 %v4797
        %5056 = vmatprep.subr.mxu0 0.0
        %5057 = vmatpush2.msra.mxu0 0.0
        %5058 = vmatprep.subr.mxu0 0.0
        %5059 = vmatpush2.msra.mxu0 0.0
        %5060 = vmatprep.subr.mxu0 0.0
        %5061 = vmatpush2.msra.mxu0 0.0
        %5062 = vmatprep.subr.mxu0 0.0
        %5063 = vmatpush2.msra.mxu0 0.0
        %5064 = vmatprep.subr.mxu0 0.0
        %5065 = vmatpush2.msra.mxu0 0.0
        %5066 = vmatprep.subr.mxu0 0.0
        %5067 = vmatpush2.msra.mxu0 0.0
        %5068 = vmatprep.subr.mxu0 0.0
        %5069 = vmatpush2.msra.mxu0 0.0
        %5070 = vmatprep.subr.mxu0 0.0
        %5071 = vmatpush2.msra.mxu0 0.0
        %5072 = vmatprep.subr.mxu0 0.0
        %5073 = vmatpush2.msra.mxu0 0.0
        %5074 = vmatprep.subr.mxu0 0.0
        %5075 = vmatpush2.msra.mxu0 0.0
        %5076 = vmatprep.subr.mxu0 0.0
        %5077 = vmatpush2.msra.mxu0 0.0
        %5078 = vmatprep.subr.mxu0 0.0
        %5079 = vmatpush2.msra.mxu0 0.0
        %5080 = vmatprep.subr.mxu0 0.0
        %5081 = vmatpush2.msra.mxu0 0.0
        %5082 = vmatprep.subr.mxu0 0.0
        %5083 = vmatpush2.msra.mxu0 0.0
        %5084 = vmatprep.subr.mxu0 0.0
        %5085 = vmatpush2.msra.mxu0 0.0
        %5086 = vmatprep.subr.mxu0 0.0
        %5087 = vmatpush2.msra.mxu0 0.0
        %5088 = vmatprep.mubr.f32.mxu0 0.0
        %5089 = vmatmul.mubr.f32.gmra.mxu0 %v5022
        %v5090 = vpop.f32.mrf.mxu0
        %v5091 = vadd.f32 %v4801, %v5090
        %v5092 = vpop.f32.mrf.mxu0
        %5093 = vdwg.mxu0
        %v5094 = vadd.f32 %v5021, %v5091
        %v5095 = vxor.u32 %v5094, 2147483648
        %v5096 = vmul.f32 %v5095, 1.442695
        %v5097 = vpow.pop %v5096
        %v5098 = vadd.f32 %v5097, 1.0
        %v5099 = vrcp.pop %v5098
        %v5100 = vmul.f32 1.0, %v5099
        %5102 = vrot.lane.b32.xlu0 %v5091, 64
        %v5103 = vpop.permute.xlu0 %5102
        %v5105 = vmul.f32 %v5100, %v5103
        %5107 = vrot.lane.b32.xlu0 %v5105, 64
        %v5108 = vpop.permute.xlu0 %5107
        %v5110 = vadd.f32 %v5021, %v5108
        %v5111 = vtanh.pop %v5110
        %v5112 = vsub.f32 1.0, %v5100
        %5114 = vrot.lane.b32.xlu0 %v5111, 96
        %v5115 = vpop.permute.xlu0 %5114
        %v5117 = vmul.f32 %v5112, %v5115
        %v5118 = vmul.f32 %v5100, %v5015
        %v5119 = vadd.f32 %v5117, %v5118
        %5121 = vrot.lane.b32.xlu0 %v5119, 96
        %v5122 = vpop.permute.xlu0 %5121
        %5124 = vst.msk [vmem:[#allocation6 + $0x2] sm:$0x1] %vm4915, %v5122
        %v5125 = vld [vmem:[#allocation3 + $0x3] sm:$0x1]
        %v5126 = vsel %vm4804, %v5122, 0
        %5128 = vmatprep.subr.mxu0 0.0
        %5129 = vmatpush1.msra.mxu0 0.0
        %5130 = vmatprep.subr.mxu0 0.0
        %5131 = vmatpush1.msra.mxu0 0.0
        %5132 = vmatprep.subr.mxu0 0.0
        %5133 = vmatpush1.msra.mxu0 0.0
        %5134 = vmatprep.subr.mxu0 0.0
        %5135 = vmatpush1.msra.mxu0 0.0
        %5136 = vmatprep.subr.mxu0 0.0
        %5137 = vmatpush1.msra.mxu0 0.0
        %5138 = vmatprep.subr.mxu0 0.0
        %5139 = vmatpush1.msra.mxu0 0.0
        %5140 = vmatprep.subr.mxu0 0.0
        %5141 = vmatpush1.msra.mxu0 0.0
        %5142 = vmatprep.subr.mxu0 0.0
        %5143 = vmatpush1.msra.mxu0 0.0
        %5144 = vmatprep.subr.mxu0 0.0
        %5145 = vmatpush1.msra.mxu0 0.0
        %5146 = vmatprep.subr.mxu0 0.0
        %5147 = vmatpush1.msra.mxu0 0.0
        %5148 = vmatprep.subr.mxu0 0.0
        %5149 = vmatpush1.msra.mxu0 0.0
        %5150 = vmatprep.subr.mxu0 0.0
        %5151 = vmatpush1.msra.mxu0 0.0
        %5152 = vmatprep.subr.mxu0 0.0
        %5153 = vmatpush1.msra.mxu0 %v4800
        %5154 = vmatprep.subr.mxu0 0.0
        %5155 = vmatpush1.msra.mxu0 %v4799
        %5156 = vmatprep.subr.mxu0 0.0
        %5157 = vmatpush1.msra.mxu0 %v4798
        %5158 = vmatprep.subr.mxu0 0.0
        %5159 = vmatpush1.msra.mxu0 %v4797
        %5160 = vmatprep.subr.mxu0 0.0
        %5161 = vmatpush2.msra.mxu0 0.0
        %5162 = vmatprep.subr.mxu0 0.0
        %5163 = vmatpush2.msra.mxu0 0.0
        %5164 = vmatprep.subr.mxu0 0.0
        %5165 = vmatpush2.msra.mxu0 0.0
        %5166 = vmatprep.subr.mxu0 0.0
        %5167 = vmatpush2.msra.mxu0 0.0
        %5168 = vmatprep.subr.mxu0 0.0
        %5169 = vmatpush2.msra.mxu0 0.0
        %5170 = vmatprep.subr.mxu0 0.0
        %5171 = vmatpush2.msra.mxu0 0.0
        %5172 = vmatprep.subr.mxu0 0.0
        %5173 = vmatpush2.msra.mxu0 0.0
        %5174 = vmatprep.subr.mxu0 0.0
        %5175 = vmatpush2.msra.mxu0 0.0
        %5176 = vmatprep.subr.mxu0 0.0
        %5177 = vmatpush2.msra.mxu0 0.0
        %5178 = vmatprep.subr.mxu0 0.0
        %5179 = vmatpush2.msra.mxu0 0.0
        %5180 = vmatprep.subr.mxu0 0.0
        %5181 = vmatpush2.msra.mxu0 0.0
        %5182 = vmatprep.subr.mxu0 0.0
        %5183 = vmatpush2.msra.mxu0 0.0
        %5184 = vmatprep.subr.mxu0 0.0
        %5185 = vmatpush2.msra.mxu0 0.0
        %5186 = vmatprep.subr.mxu0 0.0
        %5187 = vmatpush2.msra.mxu0 0.0
        %5188 = vmatprep.subr.mxu0 0.0
        %5189 = vmatpush2.msra.mxu0 0.0
        %5190 = vmatprep.subr.mxu0 0.0
        %5191 = vmatpush2.msra.mxu0 0.0
        %5192 = vmatprep.mubr.f32.mxu0 0.0
        %5193 = vmatmul.mubr.f32.gmra.mxu0 %v5126
        %v5194 = vpop.f32.mrf.mxu0
        %v5195 = vadd.f32 %v4801, %v5194
        %v5196 = vpop.f32.mrf.mxu0
        %5197 = vdwg.mxu0
        %v5198 = vadd.f32 %v5125, %v5195
        %v5199 = vxor.u32 %v5198, 2147483648
        %v5200 = vmul.f32 %v5199, 1.442695
        %v5201 = vpow.pop %v5200
        %v5202 = vadd.f32 %v5201, 1.0
        %v5203 = vrcp.pop %v5202
        %v5204 = vmul.f32 1.0, %v5203
        %5206 = vrot.lane.b32.xlu0 %v5195, 64
        %v5207 = vpop.permute.xlu0 %5206
        %v5209 = vmul.f32 %v5204, %v5207
        %5211 = vrot.lane.b32.xlu0 %v5209, 64
        %v5212 = vpop.permute.xlu0 %5211
        %v5214 = vadd.f32 %v5125, %v5212
        %v5215 = vtanh.pop %v5214
        %v5216 = vsub.f32 1.0, %v5204
        %5218 = vrot.lane.b32.xlu0 %v5215, 96
        %v5219 = vpop.permute.xlu0 %5218
        %v5221 = vmul.f32 %v5216, %v5219
        %v5222 = vmul.f32 %v5204, %v5119
        %v5223 = vadd.f32 %v5221, %v5222
        %5225 = vrot.lane.b32.xlu0 %v5223, 96
        %v5226 = vpop.permute.xlu0 %5225
        %5228 = vst.msk [vmem:[#allocation6 + $0x3] sm:$0x1] %vm4915, %v5226
        %v5229 = vld [vmem:[#allocation3 + $0x4] sm:$0x1]
        %v5230 = vsel %vm4804, %v5226, 0
        %5232 = vmatprep.subr.mxu0 0.0
        %5233 = vmatpush1.msra.mxu0 0.0
        %5234 = vmatprep.subr.mxu0 0.0
        %5235 = vmatpush1.msra.mxu0 0.0
        %5236 = vmatprep.subr.mxu0 0.0
        %5237 = vmatpush1.msra.mxu0 0.0
        %5238 = vmatprep.subr.mxu0 0.0
        %5239 = vmatpush1.msra.mxu0 0.0
        %5240 = vmatprep.subr.mxu0 0.0
        %5241 = vmatpush1.msra.mxu0 0.0
        %5242 = vmatprep.subr.mxu0 0.0
        %5243 = vmatpush1.msra.mxu0 0.0
        %5244 = vmatprep.subr.mxu0 0.0
        %5245 = vmatpush1.msra.mxu0 0.0
        %5246 = vmatprep.subr.mxu0 0.0
        %5247 = vmatpush1.msra.mxu0 0.0
        %5248 = vmatprep.subr.mxu0 0.0
        %5249 = vmatpush1.msra.mxu0 0.0
        %5250 = vmatprep.subr.mxu0 0.0
        %5251 = vmatpush1.msra.mxu0 0.0
        %5252 = vmatprep.subr.mxu0 0.0
        %5253 = vmatpush1.msra.mxu0 0.0
        %5254 = vmatprep.subr.mxu0 0.0
        %5255 = vmatpush1.msra.mxu0 0.0
        %5256 = vmatprep.subr.mxu0 0.0
        %5257 = vmatpush1.msra.mxu0 %v4800
        %5258 = vmatprep.subr.mxu0 0.0
        %5259 = vmatpush1.msra.mxu0 %v4799
        %5260 = vmatprep.subr.mxu0 0.0
        %5261 = vmatpush1.msra.mxu0 %v4798
        %5262 = vmatprep.subr.mxu0 0.0
        %5263 = vmatpush1.msra.mxu0 %v4797
        %5264 = vmatprep.subr.mxu0 0.0
        %5265 = vmatpush2.msra.mxu0 0.0
        %5266 = vmatprep.subr.mxu0 0.0
        %5267 = vmatpush2.msra.mxu0 0.0
        %5268 = vmatprep.subr.mxu0 0.0
        %5269 = vmatpush2.msra.mxu0 0.0
        %5270 = vmatprep.subr.mxu0 0.0
        %5271 = vmatpush2.msra.mxu0 0.0
        %5272 = vmatprep.subr.mxu0 0.0
        %5273 = vmatpush2.msra.mxu0 0.0
        %5274 = vmatprep.subr.mxu0 0.0
        %5275 = vmatpush2.msra.mxu0 0.0
        %5276 = vmatprep.subr.mxu0 0.0
        %5277 = vmatpush2.msra.mxu0 0.0
        %5278 = vmatprep.subr.mxu0 0.0
        %5279 = vmatpush2.msra.mxu0 0.0
        %5280 = vmatprep.subr.mxu0 0.0
        %5281 = vmatpush2.msra.mxu0 0.0
        %5282 = vmatprep.subr.mxu0 0.0
        %5283 = vmatpush2.msra.mxu0 0.0
        %5284 = vmatprep.subr.mxu0 0.0
        %5285 = vmatpush2.msra.mxu0 0.0
        %5286 = vmatprep.subr.mxu0 0.0
        %5287 = vmatpush2.msra.mxu0 0.0
        %5288 = vmatprep.subr.mxu0 0.0
        %5289 = vmatpush2.msra.mxu0 0.0
        %5290 = vmatprep.subr.mxu0 0.0
        %5291 = vmatpush2.msra.mxu0 0.0
        %5292 = vmatprep.subr.mxu0 0.0
        %5293 = vmatpush2.msra.mxu0 0.0
        %5294 = vmatprep.subr.mxu0 0.0
        %5295 = vmatpush2.msra.mxu0 0.0
        %5296 = vmatprep.mubr.f32.mxu0 0.0
        %5297 = vmatmul.mubr.f32.gmra.mxu0 %v5230
        %v5298 = vpop.f32.mrf.mxu0
        %v5299 = vadd.f32 %v4801, %v5298
        %v5300 = vpop.f32.mrf.mxu0
        %5301 = vdwg.mxu0
        %v5302 = vadd.f32 %v5229, %v5299
        %v5303 = vxor.u32 %v5302, 2147483648
        %v5304 = vmul.f32 %v5303, 1.442695
        %v5305 = vpow.pop %v5304
        %v5306 = vadd.f32 %v5305, 1.0
        %v5307 = vrcp.pop %v5306
        %v5308 = vmul.f32 1.0, %v5307
        %5310 = vrot.lane.b32.xlu0 %v5299, 64
        %v5311 = vpop.permute.xlu0 %5310
        %v5313 = vmul.f32 %v5308, %v5311
        %5315 = vrot.lane.b32.xlu0 %v5313, 64
        %v5316 = vpop.permute.xlu0 %5315
        %v5318 = vadd.f32 %v5229, %v5316
        %v5319 = vtanh.pop %v5318
        %v5320 = vsub.f32 1.0, %v5308
        %5322 = vrot.lane.b32.xlu0 %v5319, 96
        %v5323 = vpop.permute.xlu0 %5322
        %v5325 = vmul.f32 %v5320, %v5323
        %v5326 = vmul.f32 %v5308, %v5223
        %v5327 = vadd.f32 %v5325, %v5326
        %5329 = vrot.lane.b32.xlu0 %v5327, 96
        %v5330 = vpop.permute.xlu0 %5329
        %5332 = vst.msk [vmem:[#allocation6 + $0x4] sm:$0x1] %vm4915, %v5330
        %v5333 = vld [vmem:[#allocation3 + $0x5] sm:$0x1]
        %v5334 = vsel %vm4804, %v5330, 0
        %5336 = vmatprep.subr.mxu0 0.0
        %5337 = vmatpush1.msra.mxu0 0.0
        %5338 = vmatprep.subr.mxu0 0.0
        %5339 = vmatpush1.msra.mxu0 0.0
        %5340 = vmatprep.subr.mxu0 0.0
        %5341 = vmatpush1.msra.mxu0 0.0
        %5342 = vmatprep.subr.mxu0 0.0
        %5343 = vmatpush1.msra.mxu0 0.0
        %5344 = vmatprep.subr.mxu0 0.0
        %5345 = vmatpush1.msra.mxu0 0.0
        %5346 = vmatprep.subr.mxu0 0.0
        %5347 = vmatpush1.msra.mxu0 0.0
        %5348 = vmatprep.subr.mxu0 0.0
        %5349 = vmatpush1.msra.mxu0 0.0
        %5350 = vmatprep.subr.mxu0 0.0
        %5351 = vmatpush1.msra.mxu0 0.0
        %5352 = vmatprep.subr.mxu0 0.0
        %5353 = vmatpush1.msra.mxu0 0.0
        %5354 = vmatprep.subr.mxu0 0.0
        %5355 = vmatpush1.msra.mxu0 0.0
        %5356 = vmatprep.subr.mxu0 0.0
        %5357 = vmatpush1.msra.mxu0 0.0
        %5358 = vmatprep.subr.mxu0 0.0
        %5359 = vmatpush1.msra.mxu0 0.0
        %5360 = vmatprep.subr.mxu0 0.0
        %5361 = vmatpush1.msra.mxu0 %v4800
        %5362 = vmatprep.subr.mxu0 0.0
        %5363 = vmatpush1.msra.mxu0 %v4799
        %5364 = vmatprep.subr.mxu0 0.0
        %5365 = vmatpush1.msra.mxu0 %v4798
        %5366 = vmatprep.subr.mxu0 0.0
        %5367 = vmatpush1.msra.mxu0 %v4797
        %5368 = vmatprep.subr.mxu0 0.0
        %5369 = vmatpush2.msra.mxu0 0.0
        %5370 = vmatprep.subr.mxu0 0.0
        %5371 = vmatpush2.msra.mxu0 0.0
        %5372 = vmatprep.subr.mxu0 0.0
        %5373 = vmatpush2.msra.mxu0 0.0
        %5374 = vmatprep.subr.mxu0 0.0
        %5375 = vmatpush2.msra.mxu0 0.0
        %5376 = vmatprep.subr.mxu0 0.0
        %5377 = vmatpush2.msra.mxu0 0.0
        %5378 = vmatprep.subr.mxu0 0.0
        %5379 = vmatpush2.msra.mxu0 0.0
        %5380 = vmatprep.subr.mxu0 0.0
        %5381 = vmatpush2.msra.mxu0 0.0
        %5382 = vmatprep.subr.mxu0 0.0
        %5383 = vmatpush2.msra.mxu0 0.0
        %5384 = vmatprep.subr.mxu0 0.0
        %5385 = vmatpush2.msra.mxu0 0.0
        %5386 = vmatprep.subr.mxu0 0.0
        %5387 = vmatpush2.msra.mxu0 0.0
        %5388 = vmatprep.subr.mxu0 0.0
        %5389 = vmatpush2.msra.mxu0 0.0
        %5390 = vmatprep.subr.mxu0 0.0
        %5391 = vmatpush2.msra.mxu0 0.0
        %5392 = vmatprep.subr.mxu0 0.0
        %5393 = vmatpush2.msra.mxu0 0.0
        %5394 = vmatprep.subr.mxu0 0.0
        %5395 = vmatpush2.msra.mxu0 0.0
        %5396 = vmatprep.subr.mxu0 0.0
        %5397 = vmatpush2.msra.mxu0 0.0
        %5398 = vmatprep.subr.mxu0 0.0
        %5399 = vmatpush2.msra.mxu0 0.0
        %5400 = vmatprep.mubr.f32.mxu0 0.0
        %5401 = vmatmul.mubr.f32.gmra.mxu0 %v5334
        %v5402 = vpop.f32.mrf.mxu0
        %v5403 = vadd.f32 %v4801, %v5402
        %v5404 = vpop.f32.mrf.mxu0
        %5405 = vdwg.mxu0
        %v5406 = vadd.f32 %v5333, %v5403
        %v5407 = vxor.u32 %v5406, 2147483648
        %v5408 = vmul.f32 %v5407, 1.442695
        %v5409 = vpow.pop %v5408
        %v5410 = vadd.f32 %v5409, 1.0
        %v5411 = vrcp.pop %v5410
        %v5412 = vmul.f32 1.0, %v5411
        %5414 = vrot.lane.b32.xlu0 %v5403, 64
        %v5415 = vpop.permute.xlu0 %5414
        %v5417 = vmul.f32 %v5412, %v5415
        %5419 = vrot.lane.b32.xlu0 %v5417, 64
        %v5420 = vpop.permute.xlu0 %5419
        %v5422 = vadd.f32 %v5333, %v5420
        %v5423 = vtanh.pop %v5422
        %v5424 = vsub.f32 1.0, %v5412
        %5426 = vrot.lane.b32.xlu0 %v5423, 96
        %v5427 = vpop.permute.xlu0 %5426
        %v5429 = vmul.f32 %v5424, %v5427
        %v5430 = vmul.f32 %v5412, %v5327
        %v5431 = vadd.f32 %v5429, %v5430
        %5433 = vrot.lane.b32.xlu0 %v5431, 96
        %v5434 = vpop.permute.xlu0 %5433
        %5436 = vst.msk [vmem:[#allocation6 + $0x5] sm:$0x1] %vm4915, %v5434
        %v5437 = vld [vmem:[#allocation3 + $0x6] sm:$0x1]
        %v5438 = vsel %vm4804, %v5434, 0
        %5440 = vmatprep.subr.mxu0 0.0
        %5441 = vmatpush1.msra.mxu0 0.0
        %5442 = vmatprep.subr.mxu0 0.0
        %5443 = vmatpush1.msra.mxu0 0.0
        %5444 = vmatprep.subr.mxu0 0.0
        %5445 = vmatpush1.msra.mxu0 0.0
        %5446 = vmatprep.subr.mxu0 0.0
        %5447 = vmatpush1.msra.mxu0 0.0
        %5448 = vmatprep.subr.mxu0 0.0
        %5449 = vmatpush1.msra.mxu0 0.0
        %5450 = vmatprep.subr.mxu0 0.0
        %5451 = vmatpush1.msra.mxu0 0.0
        %5452 = vmatprep.subr.mxu0 0.0
        %5453 = vmatpush1.msra.mxu0 0.0
        %5454 = vmatprep.subr.mxu0 0.0
        %5455 = vmatpush1.msra.mxu0 0.0
        %5456 = vmatprep.subr.mxu0 0.0
        %5457 = vmatpush1.msra.mxu0 0.0
        %5458 = vmatprep.subr.mxu0 0.0
        %5459 = vmatpush1.msra.mxu0 0.0
        %5460 = vmatprep.subr.mxu0 0.0
        %5461 = vmatpush1.msra.mxu0 0.0
        %5462 = vmatprep.subr.mxu0 0.0
        %5463 = vmatpush1.msra.mxu0 0.0
        %5464 = vmatprep.subr.mxu0 0.0
        %5465 = vmatpush1.msra.mxu0 %v4800
        %5466 = vmatprep.subr.mxu0 0.0
        %5467 = vmatpush1.msra.mxu0 %v4799
        %5468 = vmatprep.subr.mxu0 0.0
        %5469 = vmatpush1.msra.mxu0 %v4798
        %5470 = vmatprep.subr.mxu0 0.0
        %5471 = vmatpush1.msra.mxu0 %v4797
        %5472 = vmatprep.subr.mxu0 0.0
        %5473 = vmatpush2.msra.mxu0 0.0
        %5474 = vmatprep.subr.mxu0 0.0
        %5475 = vmatpush2.msra.mxu0 0.0
        %5476 = vmatprep.subr.mxu0 0.0
        %5477 = vmatpush2.msra.mxu0 0.0
        %5478 = vmatprep.subr.mxu0 0.0
        %5479 = vmatpush2.msra.mxu0 0.0
        %5480 = vmatprep.subr.mxu0 0.0
        %5481 = vmatpush2.msra.mxu0 0.0
        %5482 = vmatprep.subr.mxu0 0.0
        %5483 = vmatpush2.msra.mxu0 0.0
        %5484 = vmatprep.subr.mxu0 0.0
        %5485 = vmatpush2.msra.mxu0 0.0
        %5486 = vmatprep.subr.mxu0 0.0
        %5487 = vmatpush2.msra.mxu0 0.0
        %5488 = vmatprep.subr.mxu0 0.0
        %5489 = vmatpush2.msra.mxu0 0.0
        %5490 = vmatprep.subr.mxu0 0.0
        %5491 = vmatpush2.msra.mxu0 0.0
        %5492 = vmatprep.subr.mxu0 0.0
        %5493 = vmatpush2.msra.mxu0 0.0
        %5494 = vmatprep.subr.mxu0 0.0
        %5495 = vmatpush2.msra.mxu0 0.0
        %5496 = vmatprep.subr.mxu0 0.0
        %5497 = vmatpush2.msra.mxu0 0.0
        %5498 = vmatprep.subr.mxu0 0.0
        %5499 = vmatpush2.msra.mxu0 0.0
        %5500 = vmatprep.subr.mxu0 0.0
        %5501 = vmatpush2.msra.mxu0 0.0
        %5502 = vmatprep.subr.mxu0 0.0
        %5503 = vmatpush2.msra.mxu0 0.0
        %5504 = vmatprep.mubr.f32.mxu0 0.0
        %5505 = vmatmul.mubr.f32.gmra.mxu0 %v5438
        %v5506 = vpop.f32.mrf.mxu0
        %v5507 = vadd.f32 %v4801, %v5506
        %v5508 = vpop.f32.mrf.mxu0
        %5509 = vdwg.mxu0
        %v5510 = vadd.f32 %v5437, %v5507
        %v5511 = vxor.u32 %v5510, 2147483648
        %v5512 = vmul.f32 %v5511, 1.442695
        %v5513 = vpow.pop %v5512
        %v5514 = vadd.f32 %v5513, 1.0
        %v5515 = vrcp.pop %v5514
        %v5516 = vmul.f32 1.0, %v5515
        %5518 = vrot.lane.b32.xlu0 %v5507, 64
        %v5519 = vpop.permute.xlu0 %5518
        %v5521 = vmul.f32 %v5516, %v5519
        %5523 = vrot.lane.b32.xlu0 %v5521, 64
        %v5524 = vpop.permute.xlu0 %5523
        %v5526 = vadd.f32 %v5437, %v5524
        %v5527 = vtanh.pop %v5526
        %v5528 = vsub.f32 1.0, %v5516
        %5530 = vrot.lane.b32.xlu0 %v5527, 96
        %v5531 = vpop.permute.xlu0 %5530
        %v5533 = vmul.f32 %v5528, %v5531
        %v5534 = vmul.f32 %v5516, %v5431
        %v5535 = vadd.f32 %v5533, %v5534
        %5537 = vrot.lane.b32.xlu0 %v5535, 96
        %v5538 = vpop.permute.xlu0 %5537
        %5540 = vst.msk [vmem:[#allocation6 + $0x6] sm:$0x1] %vm4915, %v5538
        %v5541 = vld [vmem:[#allocation3 + $0x7] sm:$0x1]
        %v5542 = vsel %vm4804, %v5538, 0
        %5544 = vmatprep.subr.mxu0 0.0
        %5545 = vmatpush1.msra.mxu0 0.0
        %5546 = vmatprep.subr.mxu0 0.0
        %5547 = vmatpush1.msra.mxu0 0.0
        %5548 = vmatprep.subr.mxu0 0.0
        %5549 = vmatpush1.msra.mxu0 0.0
        %5550 = vmatprep.subr.mxu0 0.0
        %5551 = vmatpush1.msra.mxu0 0.0
        %5552 = vmatprep.subr.mxu0 0.0
        %5553 = vmatpush1.msra.mxu0 0.0
        %5554 = vmatprep.subr.mxu0 0.0
        %5555 = vmatpush1.msra.mxu0 0.0
        %5556 = vmatprep.subr.mxu0 0.0
        %5557 = vmatpush1.msra.mxu0 0.0
        %5558 = vmatprep.subr.mxu0 0.0
        %5559 = vmatpush1.msra.mxu0 0.0
        %5560 = vmatprep.subr.mxu0 0.0
        %5561 = vmatpush1.msra.mxu0 0.0
        %5562 = vmatprep.subr.mxu0 0.0
        %5563 = vmatpush1.msra.mxu0 0.0
        %5564 = vmatprep.subr.mxu0 0.0
        %5565 = vmatpush1.msra.mxu0 0.0
        %5566 = vmatprep.subr.mxu0 0.0
        %5567 = vmatpush1.msra.mxu0 0.0
        %5568 = vmatprep.subr.mxu0 0.0
        %5569 = vmatpush1.msra.mxu0 %v4800
        %5570 = vmatprep.subr.mxu0 0.0
        %5571 = vmatpush1.msra.mxu0 %v4799
        %5572 = vmatprep.subr.mxu0 0.0
        %5573 = vmatpush1.msra.mxu0 %v4798
        %5574 = vmatprep.subr.mxu0 0.0
        %5575 = vmatpush1.msra.mxu0 %v4797
        %5576 = vmatprep.subr.mxu0 0.0
        %5577 = vmatpush2.msra.mxu0 0.0
        %5578 = vmatprep.subr.mxu0 0.0
        %5579 = vmatpush2.msra.mxu0 0.0
        %5580 = vmatprep.subr.mxu0 0.0
        %5581 = vmatpush2.msra.mxu0 0.0
        %5582 = vmatprep.subr.mxu0 0.0
        %5583 = vmatpush2.msra.mxu0 0.0
        %5584 = vmatprep.subr.mxu0 0.0
        %5585 = vmatpush2.msra.mxu0 0.0
        %5586 = vmatprep.subr.mxu0 0.0
        %5587 = vmatpush2.msra.mxu0 0.0
        %5588 = vmatprep.subr.mxu0 0.0
        %5589 = vmatpush2.msra.mxu0 0.0
        %5590 = vmatprep.subr.mxu0 0.0
        %5591 = vmatpush2.msra.mxu0 0.0
        %5592 = vmatprep.subr.mxu0 0.0
        %5593 = vmatpush2.msra.mxu0 0.0
        %5594 = vmatprep.subr.mxu0 0.0
        %5595 = vmatpush2.msra.mxu0 0.0
        %5596 = vmatprep.subr.mxu0 0.0
        %5597 = vmatpush2.msra.mxu0 0.0
        %5598 = vmatprep.subr.mxu0 0.0
        %5599 = vmatpush2.msra.mxu0 0.0
        %5600 = vmatprep.subr.mxu0 0.0
        %5601 = vmatpush2.msra.mxu0 0.0
        %5602 = vmatprep.subr.mxu0 0.0
        %5603 = vmatpush2.msra.mxu0 0.0
        %5604 = vmatprep.subr.mxu0 0.0
        %5605 = vmatpush2.msra.mxu0 0.0
        %5606 = vmatprep.subr.mxu0 0.0
        %5607 = vmatpush2.msra.mxu0 0.0
        %5608 = vmatprep.mubr.f32.mxu0 0.0
        %5609 = vmatmul.mubr.f32.gmra.mxu0 %v5542
        %v5610 = vpop.f32.mrf.mxu0
        %v5611 = vadd.f32 %v4801, %v5610
        %v5612 = vpop.f32.mrf.mxu0
        %5613 = vdwg.mxu0
        %v5614 = vadd.f32 %v5541, %v5611
        %v5615 = vxor.u32 %v5614, 2147483648
        %v5616 = vmul.f32 %v5615, 1.442695
        %v5617 = vpow.pop %v5616
        %v5618 = vadd.f32 %v5617, 1.0
        %v5619 = vrcp.pop %v5618
        %v5620 = vmul.f32 1.0, %v5619
        %5622 = vrot.lane.b32.xlu0 %v5611, 64
        %v5623 = vpop.permute.xlu0 %5622
        %v5625 = vmul.f32 %v5620, %v5623
        %5627 = vrot.lane.b32.xlu0 %v5625, 64
        %v5628 = vpop.permute.xlu0 %5627
        %v5630 = vadd.f32 %v5541, %v5628
        %v5631 = vtanh.pop %v5630
        %v5632 = vsub.f32 1.0, %v5620
        %5634 = vrot.lane.b32.xlu0 %v5631, 96
        %v5635 = vpop.permute.xlu0 %5634
        %v5637 = vmul.f32 %v5632, %v5635
        %v5638 = vmul.f32 %v5620, %v5535
        %v5639 = vadd.f32 %v5637, %v5638
        %5641 = vrot.lane.b32.xlu0 %v5639, 96
        %v5642 = vpop.permute.xlu0 %5641
        %5644 = vst.msk [vmem:[#allocation6 + $0x7] sm:$0x1] %vm4915, %v5642
        %v5645 = vld [vmem:[#allocation3 + $0x8] sm:$0x1]
        %v5646 = vsel %vm4804, %v5642, 0
        %5648 = vmatprep.subr.mxu0 0.0
        %5649 = vmatpush1.msra.mxu0 0.0
        %5650 = vmatprep.subr.mxu0 0.0
        %5651 = vmatpush1.msra.mxu0 0.0
        %5652 = vmatprep.subr.mxu0 0.0
        %5653 = vmatpush1.msra.mxu0 0.0
        %5654 = vmatprep.subr.mxu0 0.0
        %5655 = vmatpush1.msra.mxu0 0.0
        %5656 = vmatprep.subr.mxu0 0.0
        %5657 = vmatpush1.msra.mxu0 0.0
        %5658 = vmatprep.subr.mxu0 0.0
        %5659 = vmatpush1.msra.mxu0 0.0
        %5660 = vmatprep.subr.mxu0 0.0
        %5661 = vmatpush1.msra.mxu0 0.0
        %5662 = vmatprep.subr.mxu0 0.0
        %5663 = vmatpush1.msra.mxu0 0.0
        %5664 = vmatprep.subr.mxu0 0.0
        %5665 = vmatpush1.msra.mxu0 0.0
        %5666 = vmatprep.subr.mxu0 0.0
        %5667 = vmatpush1.msra.mxu0 0.0
        %5668 = vmatprep.subr.mxu0 0.0
        %5669 = vmatpush1.msra.mxu0 0.0
        %5670 = vmatprep.subr.mxu0 0.0
        %5671 = vmatpush1.msra.mxu0 0.0
        %5672 = vmatprep.subr.mxu0 0.0
        %5673 = vmatpush1.msra.mxu0 %v4800
        %5674 = vmatprep.subr.mxu0 0.0
        %5675 = vmatpush1.msra.mxu0 %v4799
        %5676 = vmatprep.subr.mxu0 0.0
        %5677 = vmatpush1.msra.mxu0 %v4798
        %5678 = vmatprep.subr.mxu0 0.0
        %5679 = vmatpush1.msra.mxu0 %v4797
        %5680 = vmatprep.subr.mxu0 0.0
        %5681 = vmatpush2.msra.mxu0 0.0
        %5682 = vmatprep.subr.mxu0 0.0
        %5683 = vmatpush2.msra.mxu0 0.0
        %5684 = vmatprep.subr.mxu0 0.0
        %5685 = vmatpush2.msra.mxu0 0.0
        %5686 = vmatprep.subr.mxu0 0.0
        %5687 = vmatpush2.msra.mxu0 0.0
        %5688 = vmatprep.subr.mxu0 0.0
        %5689 = vmatpush2.msra.mxu0 0.0
        %5690 = vmatprep.subr.mxu0 0.0
        %5691 = vmatpush2.msra.mxu0 0.0
        %5692 = vmatprep.subr.mxu0 0.0
        %5693 = vmatpush2.msra.mxu0 0.0
        %5694 = vmatprep.subr.mxu0 0.0
        %5695 = vmatpush2.msra.mxu0 0.0
        %5696 = vmatprep.subr.mxu0 0.0
        %5697 = vmatpush2.msra.mxu0 0.0
        %5698 = vmatprep.subr.mxu0 0.0
        %5699 = vmatpush2.msra.mxu0 0.0
        %5700 = vmatprep.subr.mxu0 0.0
        %5701 = vmatpush2.msra.mxu0 0.0
        %5702 = vmatprep.subr.mxu0 0.0
        %5703 = vmatpush2.msra.mxu0 0.0
        %5704 = vmatprep.subr.mxu0 0.0
        %5705 = vmatpush2.msra.mxu0 0.0
        %5706 = vmatprep.subr.mxu0 0.0
        %5707 = vmatpush2.msra.mxu0 0.0
        %5708 = vmatprep.subr.mxu0 0.0
        %5709 = vmatpush2.msra.mxu0 0.0
        %5710 = vmatprep.subr.mxu0 0.0
        %5711 = vmatpush2.msra.mxu0 0.0
        %5712 = vmatprep.mubr.f32.mxu0 0.0
        %5713 = vmatmul.mubr.f32.gmra.mxu0 %v5646
        %v5714 = vpop.f32.mrf.mxu0
        %v5715 = vadd.f32 %v4801, %v5714
        %v5716 = vpop.f32.mrf.mxu0
        %5717 = vdwg.mxu0
        %v5718 = vadd.f32 %v5645, %v5715
        %v5719 = vxor.u32 %v5718, 2147483648
        %v5720 = vmul.f32 %v5719, 1.442695
        %v5721 = vpow.pop %v5720
        %v5722 = vadd.f32 %v5721, 1.0
        %v5723 = vrcp.pop %v5722
        %v5724 = vmul.f32 1.0, %v5723
        %5726 = vrot.lane.b32.xlu0 %v5715, 64
        %v5727 = vpop.permute.xlu0 %5726
        %v5729 = vmul.f32 %v5724, %v5727
        %5731 = vrot.lane.b32.xlu0 %v5729, 64
        %v5732 = vpop.permute.xlu0 %5731
        %v5734 = vadd.f32 %v5645, %v5732
        %v5735 = vtanh.pop %v5734
        %v5736 = vsub.f32 1.0, %v5724
        %5738 = vrot.lane.b32.xlu0 %v5735, 96
        %v5739 = vpop.permute.xlu0 %5738
        %v5741 = vmul.f32 %v5736, %v5739
        %v5742 = vmul.f32 %v5724, %v5639
        %v5743 = vadd.f32 %v5741, %v5742
        %5745 = vrot.lane.b32.xlu0 %v5743, 96
        %v5746 = vpop.permute.xlu0 %5745
        %5748 = vst.msk [vmem:[#allocation6 + $0x8] sm:$0x1] %vm4915, %v5746
        %v5749 = vld [vmem:[#allocation3 + $0x9] sm:$0x1]
        %v5750 = vsel %vm4804, %v5746, 0
        %5752 = vmatprep.subr.mxu0 0.0
        %5753 = vmatpush1.msra.mxu0 0.0
        %5754 = vmatprep.subr.mxu0 0.0
        %5755 = vmatpush1.msra.mxu0 0.0
        %5756 = vmatprep.subr.mxu0 0.0
        %5757 = vmatpush1.msra.mxu0 0.0
        %5758 = vmatprep.subr.mxu0 0.0
        %5759 = vmatpush1.msra.mxu0 0.0
        %5760 = vmatprep.subr.mxu0 0.0
        %5761 = vmatpush1.msra.mxu0 0.0
        %5762 = vmatprep.subr.mxu0 0.0
        %5763 = vmatpush1.msra.mxu0 0.0
        %5764 = vmatprep.subr.mxu0 0.0
        %5765 = vmatpush1.msra.mxu0 0.0
        %5766 = vmatprep.subr.mxu0 0.0
        %5767 = vmatpush1.msra.mxu0 0.0
        %5768 = vmatprep.subr.mxu0 0.0
        %5769 = vmatpush1.msra.mxu0 0.0
        %5770 = vmatprep.subr.mxu0 0.0
        %5771 = vmatpush1.msra.mxu0 0.0
        %5772 = vmatprep.subr.mxu0 0.0
        %5773 = vmatpush1.msra.mxu0 0.0
        %5774 = vmatprep.subr.mxu0 0.0
        %5775 = vmatpush1.msra.mxu0 0.0
        %5776 = vmatprep.subr.mxu0 0.0
        %5777 = vmatpush1.msra.mxu0 %v4800
        %5778 = vmatprep.subr.mxu0 0.0
        %5779 = vmatpush1.msra.mxu0 %v4799
        %5780 = vmatprep.subr.mxu0 0.0
        %5781 = vmatpush1.msra.mxu0 %v4798
        %5782 = vmatprep.subr.mxu0 0.0
        %5783 = vmatpush1.msra.mxu0 %v4797
        %5784 = vmatprep.subr.mxu0 0.0
        %5785 = vmatpush2.msra.mxu0 0.0
        %5786 = vmatprep.subr.mxu0 0.0
        %5787 = vmatpush2.msra.mxu0 0.0
        %5788 = vmatprep.subr.mxu0 0.0
        %5789 = vmatpush2.msra.mxu0 0.0
        %5790 = vmatprep.subr.mxu0 0.0
        %5791 = vmatpush2.msra.mxu0 0.0
        %5792 = vmatprep.subr.mxu0 0.0
        %5793 = vmatpush2.msra.mxu0 0.0
        %5794 = vmatprep.subr.mxu0 0.0
        %5795 = vmatpush2.msra.mxu0 0.0
        %5796 = vmatprep.subr.mxu0 0.0
        %5797 = vmatpush2.msra.mxu0 0.0
        %5798 = vmatprep.subr.mxu0 0.0
        %5799 = vmatpush2.msra.mxu0 0.0
        %5800 = vmatprep.subr.mxu0 0.0
        %5801 = vmatpush2.msra.mxu0 0.0
        %5802 = vmatprep.subr.mxu0 0.0
        %5803 = vmatpush2.msra.mxu0 0.0
        %5804 = vmatprep.subr.mxu0 0.0
        %5805 = vmatpush2.msra.mxu0 0.0
        %5806 = vmatprep.subr.mxu0 0.0
        %5807 = vmatpush2.msra.mxu0 0.0
        %5808 = vmatprep.subr.mxu0 0.0
        %5809 = vmatpush2.msra.mxu0 0.0
        %5810 = vmatprep.subr.mxu0 0.0
        %5811 = vmatpush2.msra.mxu0 0.0
        %5812 = vmatprep.subr.mxu0 0.0
        %5813 = vmatpush2.msra.mxu0 0.0
        %5814 = vmatprep.subr.mxu0 0.0
        %5815 = vmatpush2.msra.mxu0 0.0
        %5816 = vmatprep.mubr.f32.mxu0 0.0
        %5817 = vmatmul.mubr.f32.gmra.mxu0 %v5750
        %v5818 = vpop.f32.mrf.mxu0
        %v5819 = vadd.f32 %v4801, %v5818
        %v5820 = vpop.f32.mrf.mxu0
        %5821 = vdwg.mxu0
        %v5822 = vadd.f32 %v5749, %v5819
        %v5823 = vxor.u32 %v5822, 2147483648
        %v5824 = vmul.f32 %v5823, 1.442695
        %v5825 = vpow.pop %v5824
        %v5826 = vadd.f32 %v5825, 1.0
        %v5827 = vrcp.pop %v5826
        %v5828 = vmul.f32 1.0, %v5827
        %5830 = vrot.lane.b32.xlu0 %v5819, 64
        %v5831 = vpop.permute.xlu0 %5830
        %v5833 = vmul.f32 %v5828, %v5831
        %5835 = vrot.lane.b32.xlu0 %v5833, 64
        %v5836 = vpop.permute.xlu0 %5835
        %v5838 = vadd.f32 %v5749, %v5836
        %v5839 = vtanh.pop %v5838
        %v5840 = vsub.f32 1.0, %v5828
        %5842 = vrot.lane.b32.xlu0 %v5839, 96
        %v5843 = vpop.permute.xlu0 %5842
        %v5845 = vmul.f32 %v5840, %v5843
        %v5846 = vmul.f32 %v5828, %v5743
        %v5847 = vadd.f32 %v5845, %v5846
        %5849 = vrot.lane.b32.xlu0 %v5847, 96
        %v5850 = vpop.permute.xlu0 %5849
        %5852 = vst.msk [vmem:[#allocation6 + $0x9] sm:$0x1] %vm4915, %v5850
        %v5853 = vld [vmem:[#allocation3 + $0xa] sm:$0x1]
        %v5854 = vsel %vm4804, %v5850, 0
        %5856 = vmatprep.subr.mxu0 0.0
        %5857 = vmatpush1.msra.mxu0 0.0
        %5858 = vmatprep.subr.mxu0 0.0
        %5859 = vmatpush1.msra.mxu0 0.0
        %5860 = vmatprep.subr.mxu0 0.0
        %5861 = vmatpush1.msra.mxu0 0.0
        %5862 = vmatprep.subr.mxu0 0.0
        %5863 = vmatpush1.msra.mxu0 0.0
        %5864 = vmatprep.subr.mxu0 0.0
        %5865 = vmatpush1.msra.mxu0 0.0
        %5866 = vmatprep.subr.mxu0 0.0
        %5867 = vmatpush1.msra.mxu0 0.0
        %5868 = vmatprep.subr.mxu0 0.0
        %5869 = vmatpush1.msra.mxu0 0.0
        %5870 = vmatprep.subr.mxu0 0.0
        %5871 = vmatpush1.msra.mxu0 0.0
        %5872 = vmatprep.subr.mxu0 0.0
        %5873 = vmatpush1.msra.mxu0 0.0
        %5874 = vmatprep.subr.mxu0 0.0
        %5875 = vmatpush1.msra.mxu0 0.0
        %5876 = vmatprep.subr.mxu0 0.0
        %5877 = vmatpush1.msra.mxu0 0.0
        %5878 = vmatprep.subr.mxu0 0.0
        %5879 = vmatpush1.msra.mxu0 0.0
        %5880 = vmatprep.subr.mxu0 0.0
        %5881 = vmatpush1.msra.mxu0 %v4800
        %5882 = vmatprep.subr.mxu0 0.0
        %5883 = vmatpush1.msra.mxu0 %v4799
        %5884 = vmatprep.subr.mxu0 0.0
        %5885 = vmatpush1.msra.mxu0 %v4798
        %5886 = vmatprep.subr.mxu0 0.0
        %5887 = vmatpush1.msra.mxu0 %v4797
        %5888 = vmatprep.subr.mxu0 0.0
        %5889 = vmatpush2.msra.mxu0 0.0
        %5890 = vmatprep.subr.mxu0 0.0
        %5891 = vmatpush2.msra.mxu0 0.0
        %5892 = vmatprep.subr.mxu0 0.0
        %5893 = vmatpush2.msra.mxu0 0.0
        %5894 = vmatprep.subr.mxu0 0.0
        %5895 = vmatpush2.msra.mxu0 0.0
        %5896 = vmatprep.subr.mxu0 0.0
        %5897 = vmatpush2.msra.mxu0 0.0
        %5898 = vmatprep.subr.mxu0 0.0
        %5899 = vmatpush2.msra.mxu0 0.0
        %5900 = vmatprep.subr.mxu0 0.0
        %5901 = vmatpush2.msra.mxu0 0.0
        %5902 = vmatprep.subr.mxu0 0.0
        %5903 = vmatpush2.msra.mxu0 0.0
        %5904 = vmatprep.subr.mxu0 0.0
        %5905 = vmatpush2.msra.mxu0 0.0
        %5906 = vmatprep.subr.mxu0 0.0
        %5907 = vmatpush2.msra.mxu0 0.0
        %5908 = vmatprep.subr.mxu0 0.0
        %5909 = vmatpush2.msra.mxu0 0.0
        %5910 = vmatprep.subr.mxu0 0.0
        %5911 = vmatpush2.msra.mxu0 0.0
        %5912 = vmatprep.subr.mxu0 0.0
        %5913 = vmatpush2.msra.mxu0 0.0
        %5914 = vmatprep.subr.mxu0 0.0
        %5915 = vmatpush2.msra.mxu0 0.0
        %5916 = vmatprep.subr.mxu0 0.0
        %5917 = vmatpush2.msra.mxu0 0.0
        %5918 = vmatprep.subr.mxu0 0.0
        %5919 = vmatpush2.msra.mxu0 0.0
        %5920 = vmatprep.mubr.f32.mxu0 0.0
        %5921 = vmatmul.mubr.f32.gmra.mxu0 %v5854
        %v5922 = vpop.f32.mrf.mxu0
        %v5923 = vadd.f32 %v4801, %v5922
        %v5924 = vpop.f32.mrf.mxu0
        %5925 = vdwg.mxu0
        %v5926 = vadd.f32 %v5853, %v5923
        %v5927 = vxor.u32 %v5926, 2147483648
        %v5928 = vmul.f32 %v5927, 1.442695
        %v5929 = vpow.pop %v5928
        %v5930 = vadd.f32 %v5929, 1.0
        %v5931 = vrcp.pop %v5930
        %v5932 = vmul.f32 1.0, %v5931
        %5934 = vrot.lane.b32.xlu0 %v5923, 64
        %v5935 = vpop.permute.xlu0 %5934
        %v5937 = vmul.f32 %v5932, %v5935
        %5939 = vrot.lane.b32.xlu0 %v5937, 64
        %v5940 = vpop.permute.xlu0 %5939
        %v5942 = vadd.f32 %v5853, %v5940
        %v5943 = vtanh.pop %v5942
        %v5944 = vsub.f32 1.0, %v5932
        %5946 = vrot.lane.b32.xlu0 %v5943, 96
        %v5947 = vpop.permute.xlu0 %5946
        %v5949 = vmul.f32 %v5944, %v5947
        %v5950 = vmul.f32 %v5932, %v5847
        %v5951 = vadd.f32 %v5949, %v5950
        %5953 = vrot.lane.b32.xlu0 %v5951, 96
        %v5954 = vpop.permute.xlu0 %5953
        %5956 = vst.msk [vmem:[#allocation6 + $0xa] sm:$0x1] %vm4915, %v5954
        %v5957 = vld [vmem:[#allocation3 + $0xb] sm:$0x1]
        %v5958 = vsel %vm4804, %v5954, 0
        %5960 = vmatprep.subr.mxu0 0.0
        %5961 = vmatpush1.msra.mxu0 0.0
        %5962 = vmatprep.subr.mxu0 0.0
        %5963 = vmatpush1.msra.mxu0 0.0
        %5964 = vmatprep.subr.mxu0 0.0
        %5965 = vmatpush1.msra.mxu0 0.0
        %5966 = vmatprep.subr.mxu0 0.0
        %5967 = vmatpush1.msra.mxu0 0.0
        %5968 = vmatprep.subr.mxu0 0.0
        %5969 = vmatpush1.msra.mxu0 0.0
        %5970 = vmatprep.subr.mxu0 0.0
        %5971 = vmatpush1.msra.mxu0 0.0
        %5972 = vmatprep.subr.mxu0 0.0
        %5973 = vmatpush1.msra.mxu0 0.0
        %5974 = vmatprep.subr.mxu0 0.0
        %5975 = vmatpush1.msra.mxu0 0.0
        %5976 = vmatprep.subr.mxu0 0.0
        %5977 = vmatpush1.msra.mxu0 0.0
        %5978 = vmatprep.subr.mxu0 0.0
        %5979 = vmatpush1.msra.mxu0 0.0
        %5980 = vmatprep.subr.mxu0 0.0
        %5981 = vmatpush1.msra.mxu0 0.0
        %5982 = vmatprep.subr.mxu0 0.0
        %5983 = vmatpush1.msra.mxu0 0.0
        %5984 = vmatprep.subr.mxu0 0.0
        %5985 = vmatpush1.msra.mxu0 %v4800
        %5986 = vmatprep.subr.mxu0 0.0
        %5987 = vmatpush1.msra.mxu0 %v4799
        %5988 = vmatprep.subr.mxu0 0.0
        %5989 = vmatpush1.msra.mxu0 %v4798
        %5990 = vmatprep.subr.mxu0 0.0
        %5991 = vmatpush1.msra.mxu0 %v4797
        %5992 = vmatprep.subr.mxu0 0.0
        %5993 = vmatpush2.msra.mxu0 0.0
        %5994 = vmatprep.subr.mxu0 0.0
        %5995 = vmatpush2.msra.mxu0 0.0
        %5996 = vmatprep.subr.mxu0 0.0
        %5997 = vmatpush2.msra.mxu0 0.0
        %5998 = vmatprep.subr.mxu0 0.0
        %5999 = vmatpush2.msra.mxu0 0.0
        %6000 = vmatprep.subr.mxu0 0.0
        %6001 = vmatpush2.msra.mxu0 0.0
        %6002 = vmatprep.subr.mxu0 0.0
        %6003 = vmatpush2.msra.mxu0 0.0
        %6004 = vmatprep.subr.mxu0 0.0
        %6005 = vmatpush2.msra.mxu0 0.0
        %6006 = vmatprep.subr.mxu0 0.0
        %6007 = vmatpush2.msra.mxu0 0.0
        %6008 = vmatprep.subr.mxu0 0.0
        %6009 = vmatpush2.msra.mxu0 0.0
        %6010 = vmatprep.subr.mxu0 0.0
        %6011 = vmatpush2.msra.mxu0 0.0
        %6012 = vmatprep.subr.mxu0 0.0
        %6013 = vmatpush2.msra.mxu0 0.0
        %6014 = vmatprep.subr.mxu0 0.0
        %6015 = vmatpush2.msra.mxu0 0.0
        %6016 = vmatprep.subr.mxu0 0.0
        %6017 = vmatpush2.msra.mxu0 0.0
        %6018 = vmatprep.subr.mxu0 0.0
        %6019 = vmatpush2.msra.mxu0 0.0
        %6020 = vmatprep.subr.mxu0 0.0
        %6021 = vmatpush2.msra.mxu0 0.0
        %6022 = vmatprep.subr.mxu0 0.0
        %6023 = vmatpush2.msra.mxu0 0.0
        %6024 = vmatprep.mubr.f32.mxu0 0.0
        %6025 = vmatmul.mubr.f32.gmra.mxu0 %v5958
        %v6026 = vpop.f32.mrf.mxu0
        %v6027 = vadd.f32 %v4801, %v6026
        %v6028 = vpop.f32.mrf.mxu0
        %6029 = vdwg.mxu0
        %v6030 = vadd.f32 %v5957, %v6027
        %v6031 = vxor.u32 %v6030, 2147483648
        %v6032 = vmul.f32 %v6031, 1.442695
        %v6033 = vpow.pop %v6032
        %v6034 = vadd.f32 %v6033, 1.0
        %v6035 = vrcp.pop %v6034
        %v6036 = vmul.f32 1.0, %v6035
        %6038 = vrot.lane.b32.xlu0 %v6027, 64
        %v6039 = vpop.permute.xlu0 %6038
        %v6041 = vmul.f32 %v6036, %v6039
        %6043 = vrot.lane.b32.xlu0 %v6041, 64
        %v6044 = vpop.permute.xlu0 %6043
        %v6046 = vadd.f32 %v5957, %v6044
        %v6047 = vtanh.pop %v6046
        %v6048 = vsub.f32 1.0, %v6036
        %6050 = vrot.lane.b32.xlu0 %v6047, 96
        %v6051 = vpop.permute.xlu0 %6050
        %v6053 = vmul.f32 %v6048, %v6051
        %v6054 = vmul.f32 %v6036, %v5951
        %v6055 = vadd.f32 %v6053, %v6054
        %6057 = vrot.lane.b32.xlu0 %v6055, 96
        %v6058 = vpop.permute.xlu0 %6057
        %6060 = vst.msk [vmem:[#allocation6 + $0xb] sm:$0x1] %vm4915, %v6058
        %v6061 = vld [vmem:[#allocation3 + $0xc] sm:$0x1]
        %v6062 = vsel %vm4804, %v6058, 0
        %6064 = vmatprep.subr.mxu0 0.0
        %6065 = vmatpush1.msra.mxu0 0.0
        %6066 = vmatprep.subr.mxu0 0.0
        %6067 = vmatpush1.msra.mxu0 0.0
        %6068 = vmatprep.subr.mxu0 0.0
        %6069 = vmatpush1.msra.mxu0 0.0
        %6070 = vmatprep.subr.mxu0 0.0
        %6071 = vmatpush1.msra.mxu0 0.0
        %6072 = vmatprep.subr.mxu0 0.0
        %6073 = vmatpush1.msra.mxu0 0.0
        %6074 = vmatprep.subr.mxu0 0.0
        %6075 = vmatpush1.msra.mxu0 0.0
        %6076 = vmatprep.subr.mxu0 0.0
        %6077 = vmatpush1.msra.mxu0 0.0
        %6078 = vmatprep.subr.mxu0 0.0
        %6079 = vmatpush1.msra.mxu0 0.0
        %6080 = vmatprep.subr.mxu0 0.0
        %6081 = vmatpush1.msra.mxu0 0.0
        %6082 = vmatprep.subr.mxu0 0.0
        %6083 = vmatpush1.msra.mxu0 0.0
        %6084 = vmatprep.subr.mxu0 0.0
        %6085 = vmatpush1.msra.mxu0 0.0
        %6086 = vmatprep.subr.mxu0 0.0
        %6087 = vmatpush1.msra.mxu0 0.0
        %6088 = vmatprep.subr.mxu0 0.0
        %6089 = vmatpush1.msra.mxu0 %v4800
        %6090 = vmatprep.subr.mxu0 0.0
        %6091 = vmatpush1.msra.mxu0 %v4799
        %6092 = vmatprep.subr.mxu0 0.0
        %6093 = vmatpush1.msra.mxu0 %v4798
        %6094 = vmatprep.subr.mxu0 0.0
        %6095 = vmatpush1.msra.mxu0 %v4797
        %6096 = vmatprep.subr.mxu0 0.0
        %6097 = vmatpush2.msra.mxu0 0.0
        %6098 = vmatprep.subr.mxu0 0.0
        %6099 = vmatpush2.msra.mxu0 0.0
        %6100 = vmatprep.subr.mxu0 0.0
        %6101 = vmatpush2.msra.mxu0 0.0
        %6102 = vmatprep.subr.mxu0 0.0
        %6103 = vmatpush2.msra.mxu0 0.0
        %6104 = vmatprep.subr.mxu0 0.0
        %6105 = vmatpush2.msra.mxu0 0.0
        %6106 = vmatprep.subr.mxu0 0.0
        %6107 = vmatpush2.msra.mxu0 0.0
        %6108 = vmatprep.subr.mxu0 0.0
        %6109 = vmatpush2.msra.mxu0 0.0
        %6110 = vmatprep.subr.mxu0 0.0
        %6111 = vmatpush2.msra.mxu0 0.0
        %6112 = vmatprep.subr.mxu0 0.0
        %6113 = vmatpush2.msra.mxu0 0.0
        %6114 = vmatprep.subr.mxu0 0.0
        %6115 = vmatpush2.msra.mxu0 0.0
        %6116 = vmatprep.subr.mxu0 0.0
        %6117 = vmatpush2.msra.mxu0 0.0
        %6118 = vmatprep.subr.mxu0 0.0
        %6119 = vmatpush2.msra.mxu0 0.0
        %6120 = vmatprep.subr.mxu0 0.0
        %6121 = vmatpush2.msra.mxu0 0.0
        %6122 = vmatprep.subr.mxu0 0.0
        %6123 = vmatpush2.msra.mxu0 0.0
        %6124 = vmatprep.subr.mxu0 0.0
        %6125 = vmatpush2.msra.mxu0 0.0
        %6126 = vmatprep.subr.mxu0 0.0
        %6127 = vmatpush2.msra.mxu0 0.0
        %6128 = vmatprep.mubr.f32.mxu0 0.0
        %6129 = vmatmul.mubr.f32.gmra.mxu0 %v6062
        %v6130 = vpop.f32.mrf.mxu0
        %v6131 = vadd.f32 %v4801, %v6130
        %v6132 = vpop.f32.mrf.mxu0
        %6133 = vdwg.mxu0
        %v6134 = vadd.f32 %v6061, %v6131
        %v6135 = vxor.u32 %v6134, 2147483648
        %v6136 = vmul.f32 %v6135, 1.442695
        %v6137 = vpow.pop %v6136
        %v6138 = vadd.f32 %v6137, 1.0
        %v6139 = vrcp.pop %v6138
        %v6140 = vmul.f32 1.0, %v6139
        %6142 = vrot.lane.b32.xlu0 %v6131, 64
        %v6143 = vpop.permute.xlu0 %6142
        %v6145 = vmul.f32 %v6140, %v6143
        %6147 = vrot.lane.b32.xlu0 %v6145, 64
        %v6148 = vpop.permute.xlu0 %6147
        %v6150 = vadd.f32 %v6061, %v6148
        %v6151 = vtanh.pop %v6150
        %v6152 = vsub.f32 1.0, %v6140
        %6154 = vrot.lane.b32.xlu0 %v6151, 96
        %v6155 = vpop.permute.xlu0 %6154
        %v6157 = vmul.f32 %v6152, %v6155
        %v6158 = vmul.f32 %v6140, %v6055
        %v6159 = vadd.f32 %v6157, %v6158
        %6161 = vrot.lane.b32.xlu0 %v6159, 96
        %v6162 = vpop.permute.xlu0 %6161
        %6164 = vst.msk [vmem:[#allocation6 + $0xc] sm:$0x1] %vm4915, %v6162
        %v6165 = vld [vmem:[#allocation3 + $0xd] sm:$0x1]
        %v6166 = vsel %vm4804, %v6162, 0
        %6168 = vmatprep.subr.mxu0 0.0
        %6169 = vmatpush1.msra.mxu0 0.0
        %6170 = vmatprep.subr.mxu0 0.0
        %6171 = vmatpush1.msra.mxu0 0.0
        %6172 = vmatprep.subr.mxu0 0.0
        %6173 = vmatpush1.msra.mxu0 0.0
        %6174 = vmatprep.subr.mxu0 0.0
        %6175 = vmatpush1.msra.mxu0 0.0
        %6176 = vmatprep.subr.mxu0 0.0
        %6177 = vmatpush1.msra.mxu0 0.0
        %6178 = vmatprep.subr.mxu0 0.0
        %6179 = vmatpush1.msra.mxu0 0.0
        %6180 = vmatprep.subr.mxu0 0.0
        %6181 = vmatpush1.msra.mxu0 0.0
        %6182 = vmatprep.subr.mxu0 0.0
        %6183 = vmatpush1.msra.mxu0 0.0
        %6184 = vmatprep.subr.mxu0 0.0
        %6185 = vmatpush1.msra.mxu0 0.0
        %6186 = vmatprep.subr.mxu0 0.0
        %6187 = vmatpush1.msra.mxu0 0.0
        %6188 = vmatprep.subr.mxu0 0.0
        %6189 = vmatpush1.msra.mxu0 0.0
        %6190 = vmatprep.subr.mxu0 0.0
        %6191 = vmatpush1.msra.mxu0 0.0
        %6192 = vmatprep.subr.mxu0 0.0
        %6193 = vmatpush1.msra.mxu0 %v4800
        %6194 = vmatprep.subr.mxu0 0.0
        %6195 = vmatpush1.msra.mxu0 %v4799
        %6196 = vmatprep.subr.mxu0 0.0
        %6197 = vmatpush1.msra.mxu0 %v4798
        %6198 = vmatprep.subr.mxu0 0.0
        %6199 = vmatpush1.msra.mxu0 %v4797
        %6200 = vmatprep.subr.mxu0 0.0
        %6201 = vmatpush2.msra.mxu0 0.0
        %6202 = vmatprep.subr.mxu0 0.0
        %6203 = vmatpush2.msra.mxu0 0.0
        %6204 = vmatprep.subr.mxu0 0.0
        %6205 = vmatpush2.msra.mxu0 0.0
        %6206 = vmatprep.subr.mxu0 0.0
        %6207 = vmatpush2.msra.mxu0 0.0
        %6208 = vmatprep.subr.mxu0 0.0
        %6209 = vmatpush2.msra.mxu0 0.0
        %6210 = vmatprep.subr.mxu0 0.0
        %6211 = vmatpush2.msra.mxu0 0.0
        %6212 = vmatprep.subr.mxu0 0.0
        %6213 = vmatpush2.msra.mxu0 0.0
        %6214 = vmatprep.subr.mxu0 0.0
        %6215 = vmatpush2.msra.mxu0 0.0
        %6216 = vmatprep.subr.mxu0 0.0
        %6217 = vmatpush2.msra.mxu0 0.0
        %6218 = vmatprep.subr.mxu0 0.0
        %6219 = vmatpush2.msra.mxu0 0.0
        %6220 = vmatprep.subr.mxu0 0.0
        %6221 = vmatpush2.msra.mxu0 0.0
        %6222 = vmatprep.subr.mxu0 0.0
        %6223 = vmatpush2.msra.mxu0 0.0
        %6224 = vmatprep.subr.mxu0 0.0
        %6225 = vmatpush2.msra.mxu0 0.0
        %6226 = vmatprep.subr.mxu0 0.0
        %6227 = vmatpush2.msra.mxu0 0.0
        %6228 = vmatprep.subr.mxu0 0.0
        %6229 = vmatpush2.msra.mxu0 0.0
        %6230 = vmatprep.subr.mxu0 0.0
        %6231 = vmatpush2.msra.mxu0 0.0
        %6232 = vmatprep.mubr.f32.mxu0 0.0
        %6233 = vmatmul.mubr.f32.gmra.mxu0 %v6166
        %v6234 = vpop.f32.mrf.mxu0
        %v6235 = vadd.f32 %v4801, %v6234
        %v6236 = vpop.f32.mrf.mxu0
        %6237 = vdwg.mxu0
        %v6238 = vadd.f32 %v6165, %v6235
        %v6239 = vxor.u32 %v6238, 2147483648
        %v6240 = vmul.f32 %v6239, 1.442695
        %v6241 = vpow.pop %v6240
        %v6242 = vadd.f32 %v6241, 1.0
        %v6243 = vrcp.pop %v6242
        %v6244 = vmul.f32 1.0, %v6243
        %6246 = vrot.lane.b32.xlu0 %v6235, 64
        %v6247 = vpop.permute.xlu0 %6246
        %v6249 = vmul.f32 %v6244, %v6247
        %6251 = vrot.lane.b32.xlu0 %v6249, 64
        %v6252 = vpop.permute.xlu0 %6251
        %v6254 = vadd.f32 %v6165, %v6252
        %v6255 = vtanh.pop %v6254
        %v6256 = vsub.f32 1.0, %v6244
        %6258 = vrot.lane.b32.xlu0 %v6255, 96
        %v6259 = vpop.permute.xlu0 %6258
        %v6261 = vmul.f32 %v6256, %v6259
        %v6262 = vmul.f32 %v6244, %v6159
        %v6263 = vadd.f32 %v6261, %v6262
        %6265 = vrot.lane.b32.xlu0 %v6263, 96
        %v6266 = vpop.permute.xlu0 %6265
        %6268 = vst.msk [vmem:[#allocation6 + $0xd] sm:$0x1] %vm4915, %v6266
        %v6269 = vld [vmem:[#allocation3 + $0xe] sm:$0x1]
        %v6270 = vsel %vm4804, %v6266, 0
        %6272 = vmatprep.subr.mxu0 0.0
        %6273 = vmatpush1.msra.mxu0 0.0
        %6274 = vmatprep.subr.mxu0 0.0
        %6275 = vmatpush1.msra.mxu0 0.0
        %6276 = vmatprep.subr.mxu0 0.0
        %6277 = vmatpush1.msra.mxu0 0.0
        %6278 = vmatprep.subr.mxu0 0.0
        %6279 = vmatpush1.msra.mxu0 0.0
        %6280 = vmatprep.subr.mxu0 0.0
        %6281 = vmatpush1.msra.mxu0 0.0
        %6282 = vmatprep.subr.mxu0 0.0
        %6283 = vmatpush1.msra.mxu0 0.0
        %6284 = vmatprep.subr.mxu0 0.0
        %6285 = vmatpush1.msra.mxu0 0.0
        %6286 = vmatprep.subr.mxu0 0.0
        %6287 = vmatpush1.msra.mxu0 0.0
        %6288 = vmatprep.subr.mxu0 0.0
        %6289 = vmatpush1.msra.mxu0 0.0
        %6290 = vmatprep.subr.mxu0 0.0
        %6291 = vmatpush1.msra.mxu0 0.0
        %6292 = vmatprep.subr.mxu0 0.0
        %6293 = vmatpush1.msra.mxu0 0.0
        %6294 = vmatprep.subr.mxu0 0.0
        %6295 = vmatpush1.msra.mxu0 0.0
        %6296 = vmatprep.subr.mxu0 0.0
        %6297 = vmatpush1.msra.mxu0 %v4800
        %6298 = vmatprep.subr.mxu0 0.0
        %6299 = vmatpush1.msra.mxu0 %v4799
        %6300 = vmatprep.subr.mxu0 0.0
        %6301 = vmatpush1.msra.mxu0 %v4798
        %6302 = vmatprep.subr.mxu0 0.0
        %6303 = vmatpush1.msra.mxu0 %v4797
        %6304 = vmatprep.subr.mxu0 0.0
        %6305 = vmatpush2.msra.mxu0 0.0
        %6306 = vmatprep.subr.mxu0 0.0
        %6307 = vmatpush2.msra.mxu0 0.0
        %6308 = vmatprep.subr.mxu0 0.0
        %6309 = vmatpush2.msra.mxu0 0.0
        %6310 = vmatprep.subr.mxu0 0.0
        %6311 = vmatpush2.msra.mxu0 0.0
        %6312 = vmatprep.subr.mxu0 0.0
        %6313 = vmatpush2.msra.mxu0 0.0
        %6314 = vmatprep.subr.mxu0 0.0
        %6315 = vmatpush2.msra.mxu0 0.0
        %6316 = vmatprep.subr.mxu0 0.0
        %6317 = vmatpush2.msra.mxu0 0.0
        %6318 = vmatprep.subr.mxu0 0.0
        %6319 = vmatpush2.msra.mxu0 0.0
        %6320 = vmatprep.subr.mxu0 0.0
        %6321 = vmatpush2.msra.mxu0 0.0
        %6322 = vmatprep.subr.mxu0 0.0
        %6323 = vmatpush2.msra.mxu0 0.0
        %6324 = vmatprep.subr.mxu0 0.0
        %6325 = vmatpush2.msra.mxu0 0.0
        %6326 = vmatprep.subr.mxu0 0.0
        %6327 = vmatpush2.msra.mxu0 0.0
        %6328 = vmatprep.subr.mxu0 0.0
        %6329 = vmatpush2.msra.mxu0 0.0
        %6330 = vmatprep.subr.mxu0 0.0
        %6331 = vmatpush2.msra.mxu0 0.0
        %6332 = vmatprep.subr.mxu0 0.0
        %6333 = vmatpush2.msra.mxu0 0.0
        %6334 = vmatprep.subr.mxu0 0.0
        %6335 = vmatpush2.msra.mxu0 0.0
        %6336 = vmatprep.mubr.f32.mxu0 0.0
        %6337 = vmatmul.mubr.f32.gmra.mxu0 %v6270
        %v6338 = vpop.f32.mrf.mxu0
        %v6339 = vadd.f32 %v4801, %v6338
        %v6340 = vpop.f32.mrf.mxu0
        %6341 = vdwg.mxu0
        %v6342 = vadd.f32 %v6269, %v6339
        %v6343 = vxor.u32 %v6342, 2147483648
        %v6344 = vmul.f32 %v6343, 1.442695
        %v6345 = vpow.pop %v6344
        %v6346 = vadd.f32 %v6345, 1.0
        %v6347 = vrcp.pop %v6346
        %v6348 = vmul.f32 1.0, %v6347
        %6350 = vrot.lane.b32.xlu0 %v6339, 64
        %v6351 = vpop.permute.xlu0 %6350
        %v6353 = vmul.f32 %v6348, %v6351
        %6355 = vrot.lane.b32.xlu0 %v6353, 64
        %v6356 = vpop.permute.xlu0 %6355
        %v6358 = vadd.f32 %v6269, %v6356
        %v6359 = vtanh.pop %v6358
        %v6360 = vsub.f32 1.0, %v6348
        %6362 = vrot.lane.b32.xlu0 %v6359, 96
        %v6363 = vpop.permute.xlu0 %6362
        %v6365 = vmul.f32 %v6360, %v6363
        %v6366 = vmul.f32 %v6348, %v6263
        %v6367 = vadd.f32 %v6365, %v6366
        %6369 = vrot.lane.b32.xlu0 %v6367, 96
        %v6370 = vpop.permute.xlu0 %6369
        %6372 = vst.msk [vmem:[#allocation6 + $0xe] sm:$0x1] %vm4915, %v6370
        %v6373 = vld [vmem:[#allocation3 + $0xf] sm:$0x1]
        %v6374 = vsel %vm4804, %v6370, 0
        %6376 = vmatprep.subr.mxu0 0.0
        %6377 = vmatpush1.msra.mxu0 0.0
        %6378 = vmatprep.subr.mxu0 0.0
        %6379 = vmatpush1.msra.mxu0 0.0
        %6380 = vmatprep.subr.mxu0 0.0
        %6381 = vmatpush1.msra.mxu0 0.0
        %6382 = vmatprep.subr.mxu0 0.0
        %6383 = vmatpush1.msra.mxu0 0.0
        %6384 = vmatprep.subr.mxu0 0.0
        %6385 = vmatpush1.msra.mxu0 0.0
        %6386 = vmatprep.subr.mxu0 0.0
        %6387 = vmatpush1.msra.mxu0 0.0
        %6388 = vmatprep.subr.mxu0 0.0
        %6389 = vmatpush1.msra.mxu0 0.0
        %6390 = vmatprep.subr.mxu0 0.0
        %6391 = vmatpush1.msra.mxu0 0.0
        %6392 = vmatprep.subr.mxu0 0.0
        %6393 = vmatpush1.msra.mxu0 0.0
        %6394 = vmatprep.subr.mxu0 0.0
        %6395 = vmatpush1.msra.mxu0 0.0
        %6396 = vmatprep.subr.mxu0 0.0
        %6397 = vmatpush1.msra.mxu0 0.0
        %6398 = vmatprep.subr.mxu0 0.0
        %6399 = vmatpush1.msra.mxu0 0.0
        %6400 = vmatprep.subr.mxu0 0.0
        %6401 = vmatpush1.msra.mxu0 %v4800
        %6402 = vmatprep.subr.mxu0 0.0
        %6403 = vmatpush1.msra.mxu0 %v4799
        %6404 = vmatprep.subr.mxu0 0.0
        %6405 = vmatpush1.msra.mxu0 %v4798
        %6406 = vmatprep.subr.mxu0 0.0
        %6407 = vmatpush1.msra.mxu0 %v4797
        %6408 = vmatprep.subr.mxu0 0.0
        %6409 = vmatpush2.msra.mxu0 0.0
        %6410 = vmatprep.subr.mxu0 0.0
        %6411 = vmatpush2.msra.mxu0 0.0
        %6412 = vmatprep.subr.mxu0 0.0
        %6413 = vmatpush2.msra.mxu0 0.0
        %6414 = vmatprep.subr.mxu0 0.0
        %6415 = vmatpush2.msra.mxu0 0.0
        %6416 = vmatprep.subr.mxu0 0.0
        %6417 = vmatpush2.msra.mxu0 0.0
        %6418 = vmatprep.subr.mxu0 0.0
        %6419 = vmatpush2.msra.mxu0 0.0
        %6420 = vmatprep.subr.mxu0 0.0
        %6421 = vmatpush2.msra.mxu0 0.0
        %6422 = vmatprep.subr.mxu0 0.0
        %6423 = vmatpush2.msra.mxu0 0.0
        %6424 = vmatprep.subr.mxu0 0.0
        %6425 = vmatpush2.msra.mxu0 0.0
        %6426 = vmatprep.subr.mxu0 0.0
        %6427 = vmatpush2.msra.mxu0 0.0
        %6428 = vmatprep.subr.mxu0 0.0
        %6429 = vmatpush2.msra.mxu0 0.0
        %6430 = vmatprep.subr.mxu0 0.0
        %6431 = vmatpush2.msra.mxu0 0.0
        %6432 = vmatprep.subr.mxu0 0.0
        %6433 = vmatpush2.msra.mxu0 0.0
        %6434 = vmatprep.subr.mxu0 0.0
        %6435 = vmatpush2.msra.mxu0 0.0
        %6436 = vmatprep.subr.mxu0 0.0
        %6437 = vmatpush2.msra.mxu0 0.0
        %6438 = vmatprep.subr.mxu0 0.0
        %6439 = vmatpush2.msra.mxu0 0.0
        %6440 = vmatprep.mubr.f32.mxu0 0.0
        %6441 = vmatmul.mubr.f32.gmra.mxu0 %v6374
        %v6442 = vpop.f32.mrf.mxu0
        %v6443 = vadd.f32 %v4801, %v6442
        %v6444 = vpop.f32.mrf.mxu0
        %6445 = vdwg.mxu0
        %v6446 = vadd.f32 %v6373, %v6443
        %v6447 = vxor.u32 %v6446, 2147483648
        %v6448 = vmul.f32 %v6447, 1.442695
        %v6449 = vpow.pop %v6448
        %v6450 = vadd.f32 %v6449, 1.0
        %v6451 = vrcp.pop %v6450
        %v6452 = vmul.f32 1.0, %v6451
        %6454 = vrot.lane.b32.xlu0 %v6443, 64
        %v6455 = vpop.permute.xlu0 %6454
        %v6457 = vmul.f32 %v6452, %v6455
        %6459 = vrot.lane.b32.xlu0 %v6457, 64
        %v6460 = vpop.permute.xlu0 %6459
        %v6462 = vadd.f32 %v6373, %v6460
        %v6463 = vtanh.pop %v6462
        %v6464 = vsub.f32 1.0, %v6452
        %6466 = vrot.lane.b32.xlu0 %v6463, 96
        %v6467 = vpop.permute.xlu0 %6466
        %v6469 = vmul.f32 %v6464, %v6467
        %v6470 = vmul.f32 %v6452, %v6367
        %v6471 = vadd.f32 %v6469, %v6470
        %6473 = vrot.lane.b32.xlu0 %v6471, 96
        %v6474 = vpop.permute.xlu0 %6473
        %6476 = vst.msk [vmem:[#allocation6 + $0xf] sm:$0x1] %vm4915, %v6474
        %6477 = vst.msk [vmem:[#allocation9] sm:$0x1] %vm4915, %v6474
        %v6478 = vld [vmem:[#allocation6] sm:$0xff]
        %v6479 = vld [vmem:[#allocation6 + $0x8] sm:$0xff]
        %v6480 = vld [vmem:[#allocation27] sm:$0xff]
        %v6481 = vld [vmem:[#allocation27 + $0x8] sm:$0xff]
        %v6482 = vld [vmem:[#allocation27 + $0x10] sm:$0xff]
        %v6483 = vld [vmem:[#allocation27 + $0x18] sm:$0xff]
        %v6484 = vld [vmem:[%s18] sm:$0x1]
        %v6486 = vlaneseq
        %v6487 = vshrl.u32 %v6486, 7
        %v6488 = vsub.s32 0, %v6487
        %v6489 = vrot.slane %v6484, %v6488
        %v6492 = vsel %vm4804, %v6478, 0
        %v6495 = vsel %vm4804, %v6479, 0
        %6497 = vmatprep.subr.mxu0 0.0
        %6498 = vmatpush1.msra.mxu0 0.0
        %6499 = vmatprep.subr.mxu0 0.0
        %6500 = vmatpush1.msra.mxu0 0.0
        %6501 = vmatprep.subr.mxu0 0.0
        %6502 = vmatpush1.msra.mxu0 0.0
        %6503 = vmatprep.subr.mxu0 0.0
        %6504 = vmatpush1.msra.mxu0 0.0
        %6505 = vmatprep.subr.mxu0 0.0
        %6506 = vmatpush1.msra.mxu0 0.0
        %6507 = vmatprep.subr.mxu0 0.0
        %6508 = vmatpush1.msra.mxu0 0.0
        %6509 = vmatprep.subr.mxu0 0.0
        %6510 = vmatpush1.msra.mxu0 0.0
        %6511 = vmatprep.subr.mxu0 0.0
        %6512 = vmatpush1.msra.mxu0 0.0
        %6513 = vmatprep.subr.mxu0 0.0
        %6514 = vmatpush1.msra.mxu0 0.0
        %6515 = vmatprep.subr.mxu0 0.0
        %6516 = vmatpush1.msra.mxu0 0.0
        %6517 = vmatprep.subr.mxu0 0.0
        %6518 = vmatpush1.msra.mxu0 0.0
        %6519 = vmatprep.subr.mxu0 0.0
        %6520 = vmatpush1.msra.mxu0 0.0
        %6521 = vmatprep.subr.mxu0 0.0
        %6522 = vmatpush1.msra.mxu0 %v6483
        %6523 = vmatprep.subr.mxu0 0.0
        %6524 = vmatpush1.msra.mxu0 %v6482
        %6525 = vmatprep.subr.mxu0 0.0
        %6526 = vmatpush1.msra.mxu0 %v6481
        %6527 = vmatprep.subr.mxu0 0.0
        %6528 = vmatpush1.msra.mxu0 %v6480
        %6529 = vmatprep.subr.mxu0 0.0
        %6530 = vmatpush2.msra.mxu0 0.0
        %6531 = vmatprep.subr.mxu0 0.0
        %6532 = vmatpush2.msra.mxu0 0.0
        %6533 = vmatprep.subr.mxu0 0.0
        %6534 = vmatpush2.msra.mxu0 0.0
        %6535 = vmatprep.subr.mxu0 0.0
        %6536 = vmatpush2.msra.mxu0 0.0
        %6537 = vmatprep.subr.mxu0 0.0
        %6538 = vmatpush2.msra.mxu0 0.0
        %6539 = vmatprep.subr.mxu0 0.0
        %6540 = vmatpush2.msra.mxu0 0.0
        %6541 = vmatprep.subr.mxu0 0.0
        %6542 = vmatpush2.msra.mxu0 0.0
        %6543 = vmatprep.subr.mxu0 0.0
        %6544 = vmatpush2.msra.mxu0 0.0
        %6545 = vmatprep.subr.mxu0 0.0
        %6546 = vmatpush2.msra.mxu0 0.0
        %6547 = vmatprep.subr.mxu0 0.0
        %6548 = vmatpush2.msra.mxu0 0.0
        %6549 = vmatprep.subr.mxu0 0.0
        %6550 = vmatpush2.msra.mxu0 0.0
        %6551 = vmatprep.subr.mxu0 0.0
        %6552 = vmatpush2.msra.mxu0 0.0
        %6553 = vmatprep.subr.mxu0 0.0
        %6554 = vmatpush2.msra.mxu0 0.0
        %6555 = vmatprep.subr.mxu0 0.0
        %6556 = vmatpush2.msra.mxu0 0.0
        %6557 = vmatprep.subr.mxu0 0.0
        %6558 = vmatpush2.msra.mxu0 0.0
        %6559 = vmatprep.subr.mxu0 0.0
        %6560 = vmatpush2.msra.mxu0 0.0
        %6561 = vmatprep.mubr.f32.mxu0 0.0
        %6562 = vmatmul.mubr.f32.gmra.mxu0 %v6492
        %v6563 = vpop.f32.mrf.mxu0
        %v6564 = vadd.f32 %v6489, %v6563
        %v6565 = vpop.f32.mrf.mxu0
        %6566 = vmatprep.mubr.f32.mxu0 0.0
        %6567 = vmatmul.mubr.f32.gmra.mxu0 %v6495
        %v6568 = vpop.f32.mrf.mxu0
        %v6569 = vadd.f32 %v6489, %v6568
        %v6570 = vpop.f32.mrf.mxu0
        %6571 = vdwg.mxu0
        %v6572 = vxor.u32 %v6564, 2147483648
        %v6573 = vxor.u32 %v6569, 2147483648
        %v6574 = vmul.f32 %v6572, 1.442695
        %v6575 = vpow.pop %v6574
        %v6576 = vmul.f32 %v6573, 1.442695
        %v6577 = vpow.pop %v6576
        %v6578 = vadd.f32 %v6575, 1.0
        %v6579 = vadd.f32 %v6577, 1.0
        %v6580 = vrcp.pop %v6578
        %v6581 = vmul.f32 1.0, %v6580
        %v6582 = vrcp.pop %v6579
        %v6583 = vmul.f32 1.0, %v6582
        %v6584 = vld [vmem:[%s671] sm:$0xff]
        %v6585 = vld [vmem:[%s671 + $0x8] sm:$0xff]
        %v6586 = vmul.f32 %v6584, %v6581
        %v6587 = vmul.f32 %v6585, %v6583
        %6588 = vst [vmem:[%s765] sm:$0xff] %v6586
        %6589 = vst [vmem:[%s765 + $0x8] sm:$0xff] %v6587
        %s6590 = sand.u32 %s453, 1
        %s6591 = scalar_lea.sflag [#allocation12], %s6590
        %s6592 = sand.u32 %s453, 1
        %s6593 = smul.addr %s6592, 16
        %s6594 = scalar_lea.vmem [#allocation28], %s6593
        // Predicated region
        $region145: #{tpu_custom_call.1} parent=95 // pred_check
          %p6595 = pneg %p463
        $region146: #{tpu_custom_call.1} parent=95 // pred_check_branch
          %6597 = sbr.rel (%p6595) target = $region148
        $region147: #{tpu_custom_call.1} parent=95 // pred_region
          %s6598 = smul.u32 2, %s41
          %s6600 = ssub.s32 256, 256
          %6601 = vsyncadd %s6591, %s6600
          %s6602 = smul.addr %s6598, 128
          %s6603 = scalar_lea.hbm %s19, %s6602
          %s6604 = sshll.u32 %s6594, 4
          %s6605 = int_to_ptr.vmem [resolvable:$true] %s6604
          %6610 = dma.vmem_to_hbm [thread:$0]  %s6605, 256, %s6603, %s6591, 128, 128, 8
        $region148: #{tpu_custom_call.1} parent=95 // pred_fallthru
          _
      $region96: #{tpu_custom_call.1} parent=5 // pred_fallthru
        _
      %p6611 = scmp.le.s32.totalorder 2, %s36
      // Predicated region
      $region149: #{tpu_custom_call.1} parent=5 // pred_check
        %p6612 = pneg %p6611
      $region150: #{tpu_custom_call.1} parent=5 // pred_check_branch
        %6614 = sbr.rel (%p6612) target = $region152
      $region151: #{tpu_custom_call.1} parent=5 // pred_region
        %s6615 = ssub.s32 %s36, 2
        // Predicated region
        $region153: #{tpu_custom_call.1} parent=151 // pred_check
          %p6616 = pneg %p469
        $region154: #{tpu_custom_call.1} parent=151 // pred_check_branch
          %6618 = sbr.rel (%p6616) target = $region156
        $region155: #{tpu_custom_call.1} parent=151 // pred_region
          %s6619 = sand.u32 %s454, 1
          %s6620 = scalar_lea.sflag [#allocation12], %s6619
          %s6621 = sand.u32 %s454, 1
          %s6622 = smul.addr %s6621, 16
          %s6623 = scalar_lea.vmem [#allocation28], %s6622
          %6624 = dma.done %s6620, 256
        $region156: #{tpu_custom_call.1} parent=151 // pred_fallthru
          _
      $region152: #{tpu_custom_call.1} parent=5 // pred_fallthru
        _
    $region6: #{tpu_custom_call.1} parent=1 // loop_footer
      %s40 = sadd.s32 1, %s36
    $region7: #{tpu_custom_call.1} parent=1 // loop_footer_branch
      %35 = sbr.rel target = $region3
    $region8: #{tpu_custom_call.1} parent=1 // loop_exit
      _
    %6625 = vsyncpa [#allocation11], 1
    %s6626 = scalar_lea.sflag [#allocation11], 1
    %6627 = vsyncpa %s6626, 1
    %6628 = vsyncpa [#allocation14], 1
    %6629 = vsyncpa [#allocation17], 1
    %6630 = vsyncpa [#allocation20], 1
    %6631 = vsyncpa [#allocation23], 1
    %6632 = vsyncpa [#allocation26], 1
    %6633 = vsyncpa [#allocation12], 1
    %s6634 = scalar_lea.sflag [#allocation12], 1
    %6635 = vsyncpa %s6634, 1

</llo_original>
